<compile_context>
chip_gen: v5e
topology: v5e:2x2
jax: 0.10.0
libtpu: 0.0.40
codegen_flags: <defaults>
</compile_context>

<pallas_src>
import functools

import jax
import jax.numpy as jnp
from jax.experimental import pallas as pl
from jax.experimental.pallas import tpu as pltpu


def _round_up(a: int, b: int) -> int:
    return (a + b - 1) // b * b


_VMEM_LIMIT_BYTES = 48 * 1024 * 1024        # safe on v5e/v6e (128 MiB) and v7x (64 MiB/TC)
_RESIDENT_BUDGET_BYTES = 40 * 1024 * 1024   # headroom under the limit for double-buffers


# -----------------------------------------------------------------------------
# Kernel bodies
# -----------------------------------------------------------------------------
def ffn_resident_kernel(x_ref, w1_ref, w2_ref, o_ref, *, gelu_approximate):
    """Whole FFN for one row tile; w1/w2 stay resident in VMEM across the grid.

    x_ref:(tm,E) bf16, w1_ref:(E,H) bf16, w2_ref:(H,E) bf16, o_ref:(tm,E).
    """
    h = jnp.dot(x_ref[...], w1_ref[...], preferred_element_type=jnp.float32)
    h = jax.nn.gelu(h, approximate=gelu_approximate)
    y = jnp.dot(h.astype(w2_ref.dtype), w2_ref[...],
                preferred_element_type=jnp.float32)
    o_ref[...] = y.astype(o_ref.dtype)
    # Dropout(p=0.0) is the identity -> nothing to do.
    # TODO(synk): training-mode dropout (p > 0) is not implemented.


def ffn_htiled_kernel(x_ref, w1_ref, w2_ref, o_ref, acc_ref, *, gelu_approximate):
    """Fallback when weights don't fit in VMEM: tile the hidden dim (grid axis j)."""
    j = pl.program_id(1)

    @pl.when(j == 0)
    def _():
        acc_ref[...] = jnp.zeros_like(acc_ref)

    h = jnp.dot(x_ref[...], w1_ref[...], preferred_element_type=jnp.float32)
    h = jax.nn.gelu(h, approximate=gelu_approximate)
    acc_ref[...] += jnp.dot(h.astype(w2_ref.dtype), w2_ref[...],
                            preferred_element_type=jnp.float32)

    @pl.when(j == pl.num_programs(1) - 1)
    def _():
        o_ref[...] = acc_ref[...].astype(o_ref.dtype)


# -----------------------------------------------------------------------------
# Wrapper
# -----------------------------------------------------------------------------
def feed_forward(x, w1, w2, *, tm=None, th=512, gelu_approximate=True,
                 compute_dtype=jnp.bfloat16):
    """y = gelu(x @ w1) @ w2.  x: (B,S,E); w1: (E,H); w2: (H,E); returns x.dtype.

    Weights should be stored pre-cast to `compute_dtype` (bf16); they are only
    cast here if the caller did not.  gelu_approximate=False gives exact-erf
    nn.GELU() numerics (recommended only on v5e, where the erf polynomial hides
    under the slower MXU).
    """
    B, S, E = x.shape
    E2, H = w1.shape
    assert E2 == E and w2.shape == (H, E)
    assert E % 128 == 0, "emb_dim must be lane-aligned (multiple of 128)"
    M = B * S

    itemsize = jnp.dtype(compute_dtype).itemsize
    out_itemsize = jnp.dtype(x.dtype).itemsize
    weight_bytes = 2 * E * H * itemsize

    # Resident-weight VMEM footprint estimate (weights + double-buffered tiles +
    # f32 hidden intermediate).
    def resident_vmem_bytes(tm_):
        return (weight_bytes
                + 2 * tm_ * E * itemsize          # double-buffered x tile
                + 2 * tm_ * E * out_itemsize      # double-buffered out tile
                + tm_ * H * 4)                    # f32 hidden intermediate

    tm_try = 512 if tm is None else tm
    resident = resident_vmem_bytes(min(tm_try, _round_up(M, 16))) <= _RESIDENT_BUDGET_BYTES

    if tm is None:
        # H-tiled path re-streams weight slices: needs tm >= ~640 flops/byte on
        # v6e (918 TF/s / 1.4 TB/s) to stay compute-bound -> default 768 there.
        tm = 512 if resident else 768

    # bf16 packs 2 rows per sublane -> keep the row tile a multiple of 16.
    tm = min(tm, _round_up(M, 16))
    # Megacore (v7x): keep >= 2 steps on the "parallel" M axis when M allows,
    # otherwise the second TensorCore idles.
    if tm >= M and M >= 32:
        tm = _round_up((M + 1) // 2, 16)
    Mpad = _round_up(M, tm)

    x2d = x.reshape(M, E)
    if x2d.dtype != compute_dtype:
        x2d = x2d.astype(compute_dtype)
    if Mpad != M:
        x2d = jnp.pad(x2d, ((0, Mpad - M), (0, 0)))  # zero rows -> zero outputs (no bias)
    # Weights: cast only if the caller did not pre-cast (avoid per-call HBM pass).
    w1c = w1 if w1.dtype == compute_dtype else w1.astype(compute_dtype)
    w2c = w2 if w2.dtype == compute_dtype else w2.astype(compute_dtype)

    flops = 4 * Mpad * E * H            # two (Mpad, E, H)-sized matmuls
    transcendentals = Mpad * H          # one tanh/erf per hidden element

    if resident:
        grid = (Mpad // tm,)
        cost = pl.CostEstimate(
            flops=flops,
            transcendentals=transcendentals,
            bytes_accessed=(x2d.size * itemsize            # activations in
                            + weight_bytes                  # weights fetched once
                            + Mpad * E * out_itemsize))     # output
        out2d = pl.pallas_call(
            functools.partial(ffn_resident_kernel, gelu_approximate=gelu_approximate),
            out_shape=jax.ShapeDtypeStruct((Mpad, E), x.dtype),
            grid_spec=pltpu.PrefetchScalarGridSpec(
                num_scalar_prefetch=0,
                grid=grid,
                in_specs=[
                    pl.BlockSpec((tm, E), lambda i: (i, 0)),   # row tile of x
                    pl.BlockSpec((E, H), lambda i: (0, 0)),    # full w1, resident
                    pl.BlockSpec((H, E), lambda i: (0, 0)),    # full w2, resident
                ],
                out_specs=pl.BlockSpec((tm, E), lambda i: (i, 0)),
            ),
            compiler_params=pltpu.CompilerParams(
                dimension_semantics=("parallel",),
                vmem_limit_bytes=_VMEM_LIMIT_BYTES),
            cost_estimate=cost,
        )(x2d, w1c, w2c)
    else:
        th = min(th, H)
        assert H % th == 0 and th % 128 == 0, "hidden tile must divide H, 128-aligned"
        grid = (Mpad // tm, H // th)
        cost = pl.CostEstimate(
            flops=flops,
            transcendentals=transcendentals,
            # In this layout the weights are re-streamed once per row tile.
            bytes_accessed=(x2d.size * itemsize
                            + (Mpad // tm) * weight_bytes
                            + Mpad * E * out_itemsize))
        out2d = pl.pallas_call(
            functools.partial(ffn_htiled_kernel, gelu_approximate=gelu_approximate),
            out_shape=jax.ShapeDtypeStruct((Mpad, E), x.dtype),
            grid_spec=pltpu.PrefetchScalarGridSpec(
                num_scalar_prefetch=0,
                grid=grid,
                in_specs=[
                    pl.BlockSpec((tm, E), lambda i, j: (i, 0)),   # row tile of x
                    pl.BlockSpec((E, th), lambda i, j: (0, j)),   # w1 column slice
                    pl.BlockSpec((th, E), lambda i, j: (j, 0)),   # w2 row slice
                ],
                out_specs=pl.BlockSpec((tm, E), lambda i, j: (i, 0)),
                scratch_shapes=[pltpu.VMEM((tm, E), jnp.float32)],
            ),
            compiler_params=pltpu.CompilerParams(
                dimension_semantics=("parallel", "arbitrary"),
                vmem_limit_bytes=_VMEM_LIMIT_BYTES),
            cost_estimate=cost,
        )(x2d, w1c, w2c)

    return out2d[:M].reshape(B, S, E)


def reference(x, w1, w2, *, gelu_approximate=True, compute_dtype=jnp.bfloat16):
    # Mirrors the kernel's numerics (bf16 operands, f32 accumulation, same GELU).
    B, S, E = x.shape
    xb = x.reshape(-1, E).astype(compute_dtype)
    h = jnp.dot(xb, w1.astype(compute_dtype), preferred_element_type=jnp.float32)
    h = jax.nn.gelu(h, approximate=gelu_approximate)
    y = jnp.dot(h.astype(compute_dtype), w2.astype(compute_dtype),
                preferred_element_type=jnp.float32)
    return y.reshape(B, S, E).astype(x.dtype)


if __name__ == "__main__":
    # Module defaults: emb_dim=512 -> hidden=2048; small batch/seq.
    B, S, E = 2, 8, 512
    H = 4 * E

    key = jax.random.PRNGKey(0)
    kx, k1, k2 = jax.random.split(key, 3)
    x = jax.random.normal(kx, (B, S, E), dtype=jnp.float32)
    # Weights stored pre-cast to bf16 (the MXU compute dtype), roughly nn.Linear-scaled,
    # so no per-call HBM cast pass is needed.
    w1 = (jax.random.normal(k1, (E, H), dtype=jnp.float32) * (E ** -0.5)).astype(jnp.bfloat16)
    w2 = (jax.random.normal(k2, (H, E), dtype=jnp.float32) * (H ** -0.5)).astype(jnp.bfloat16)

    out = jax.block_until_ready(feed_forward(x, w1, w2))
    ref = reference(x, w1, w2)

    assert out.shape == (B, S, E)
    max_err = float(jnp.max(jnp.abs(out - ref)))
    assert jnp.allclose(out, ref, atol=2e-2, rtol=2e-2), f"mismatch vs reference: {max_err}"

    print("KERNEL_OK")
</pallas_src>

<mosaic_0001>
module attributes {stable_mosaic.version = 11 : i64} {
  func.func @ffn_resident_kernel(%arg0: i32, %arg1: memref<16x512xbf16, #tpu.memory_space<vmem>>, %arg2: memref<512x2048xbf16, #tpu.memory_space<vmem>>, %arg3: memref<2048x512xbf16, #tpu.memory_space<vmem>>, %arg4: memref<16x512xf32, #tpu.memory_space<vmem>>) attributes {dimension_semantics = [#tpu.dimension_semantics<parallel>], iteration_bounds = array<i64: 1>, scalar_prefetch = 0 : i64, scratch_operands = 0 : i64, tpu.core_type = #tpu.core_type<tc>, window_params = [{transform_indices = @transform_0, window_bounds = array<i64: 16, 512>}, {pipeline_mode = #tpu.pipeline_mode<synchronous>, transform_indices = @transform_1, window_bounds = array<i64: 512, 2048>}, {pipeline_mode = #tpu.pipeline_mode<synchronous>, transform_indices = @transform_2, window_bounds = array<i64: 2048, 512>}, {transform_indices = @transform_3, window_bounds = array<i64: 16, 512>}]} {
    %c0 = arith.constant 0 : index
    %c0_0 = arith.constant 0 : index
    %0 = vector.load %arg1[%c0, %c0_0] : memref<16x512xbf16, #tpu.memory_space<vmem>>, vector<16x512xbf16>
    %c0_1 = arith.constant 0 : index
    %c0_2 = arith.constant 0 : index
    %1 = vector.load %arg2[%c0_1, %c0_2] : memref<512x2048xbf16, #tpu.memory_space<vmem>>, vector<512x2048xbf16>
    %cst = arith.constant dense<0.000000e+00> : vector<16x2048xf32>
    %2 = tpu.matmul %0, %1, %cst {dimension_numbers = #tpu.dot_dimension_numbers<[1], [0], [0], [1], [0, 0, 1, 1], [], []>} : vector<16x512xbf16>, vector<512x2048xbf16>, vector<16x2048xf32> -> vector<16x2048xf32>
    %3 = arith.mulf %2, %2 : vector<16x2048xf32>
    %4 = arith.mulf %2, %3 : vector<16x2048xf32>
    %cst_3 = arith.constant 4.471500e-02 : f32
    %5 = vector.broadcast %cst_3 : f32 to vector<16x2048xf32>
    %6 = arith.mulf %5, %4 : vector<16x2048xf32>
    %7 = arith.addf %2, %6 : vector<16x2048xf32>
    %cst_4 = arith.constant 0.797884583 : f32
    %8 = vector.broadcast %cst_4 : f32 to vector<16x2048xf32>
    %9 = arith.mulf %8, %7 : vector<16x2048xf32>
    %10 = math.tanh %9 : vector<16x2048xf32>
    %cst_5 = arith.constant 1.000000e+00 : f32
    %11 = vector.broadcast %cst_5 : f32 to vector<16x2048xf32>
    %12 = arith.addf %11, %10 : vector<16x2048xf32>
    %cst_6 = arith.constant 5.000000e-01 : f32
    %13 = vector.broadcast %cst_6 : f32 to vector<16x2048xf32>
    %14 = arith.mulf %13, %12 : vector<16x2048xf32>
    %15 = arith.mulf %2, %14 : vector<16x2048xf32>
    %16 = arith.truncf %15 : vector<16x2048xf32> to vector<16x2048xbf16>
    %c0_7 = arith.constant 0 : index
    %c0_8 = arith.constant 0 : index
    %17 = vector.load %arg3[%c0_7, %c0_8] : memref<2048x512xbf16, #tpu.memory_space<vmem>>, vector<2048x512xbf16>
    %cst_9 = arith.constant dense<0.000000e+00> : vector<16x512xf32>
    %18 = tpu.matmul %16, %17, %cst_9 {dimension_numbers = #tpu.dot_dimension_numbers<[1], [0], [0], [1], [0, 0, 1, 1], [], []>} : vector<16x2048xbf16>, vector<2048x512xbf16>, vector<16x512xf32> -> vector<16x512xf32>
    %c0_10 = arith.constant 0 : index
    %c0_11 = arith.constant 0 : index
    %19 = vector.load %arg4[%c0_10, %c0_11] : memref<16x512xf32, #tpu.memory_space<vmem>>, vector<16x512xf32>
    tpu.vector_store %arg4[%c0_10, %c0_11], %18 {strides = array<i32>} : memref<16x512xf32, #tpu.memory_space<vmem>>, vector<16x512xf32>,
    return
  }
  func.func @transform_0(%arg0: i32) -> (i32, i32) {
    %c0_i32 = arith.constant 0 : i32
    %c0_i32_0 = arith.constant 0 : i32
    return %arg0, %c0_i32 : i32, i32
  }
  func.func @transform_1(%arg0: i32) -> (i32, i32) {
    %c0_i32 = arith.constant 0 : i32
    %c0_i32_0 = arith.constant 0 : i32
    %c0_i32_1 = arith.constant 0 : i32
    return %c0_i32, %c0_i32_0 : i32, i32
  }
  func.func @transform_2(%arg0: i32) -> (i32, i32) {
    %c0_i32 = arith.constant 0 : i32
    %c0_i32_0 = arith.constant 0 : i32
    %c0_i32_1 = arith.constant 0 : i32
    return %c0_i32, %c0_i32_0 : i32, i32
  }
  func.func @transform_3(%arg0: i32) -> (i32, i32) {
    %c0_i32 = arith.constant 0 : i32
    %c0_i32_0 = arith.constant 0 : i32
    return %arg0, %c0_i32 : i32, i32
  }
}

</mosaic_0001>

<llo_original>
// kernel: tpu_custom_call.1
$region0: #{tpu_custom_call.1}
  #allocation0 [shape = 'u32[]', space=smem, size = 0x4, offset = 0x4, fixed_abs, tag = 'smem constant byte address 0x4 - core index']
  #allocation1 [shape = 'u32[72,128]{1,0:T(1,128)}', space=vmem, size = 0x9000, scoped, tag = 'internal scratch']
  %s0 = inlined_call_operand.hbm [shape: bf16[16,512], index: 0, kind: input, shape index: {}]
  %s1 = inlined_call_operand.hbm [shape: bf16[512,2048], index: 1, kind: input, shape index: {}]
  %s2 = inlined_call_operand.hbm [shape: bf16[2048,512], index: 2, kind: input, shape index: {}]
  %s3 = inlined_call_operand.hbm [shape: f32[16,512], index: 3, kind: output, shape index: {}]
  %s4 = sld [smem:[#allocation0]]
  $region34: #{tpu_custom_call.1} parent=0
    _
  %s6 = ssub.s32 1, %s4
  %s7 = scalar_select 0, %s6, %s4
  $region1: #{tpu_custom_call.1} parent=0
    #allocation2 [shape = 'u8[16384]{0}', space=vmem, size = 0x4000, scoped, tag = 'input window, operand 0, single buffered']
    #allocation3 [shape = 's32[1]{0}', space=sflag, size = 0x4, scoped, tag = 'scoped memory for tpu_custom_call.1']
    #allocation4 [shape = 's32[1]{0}', space=sflag, size = 0x4, scoped, tag = 'scoped memory for tpu_custom_call.1']
    #allocation5 [shape = 'u8[2097152]{0}', space=vmem, size = 0x200000, scoped, tag = 'input window, operand 1, single buffered']
    #allocation6 [shape = 's32[1]{0}', space=sflag, size = 0x4, scoped, tag = 'scoped memory for tpu_custom_call.1']
    #allocation7 [shape = 'u8[2097152]{0}', space=vmem, size = 0x200000, scoped, tag = 'input window, operand 2, single buffered']
    #allocation8 [shape = 'u8[32768]{0}', space=vmem, size = 0x8000, scoped, tag = 'output window, operand 0, single buffered']
    %8 = vsyncpa [#allocation3], 0
    %9 = vsyncpa [#allocation6], 0
    %10 = vsyncpa [#allocation4], 0
    // Predicated region
    $region2: #{tpu_custom_call.1} parent=1 // pred_check
      _
    $region3: #{tpu_custom_call.1} parent=1 // pred_check_branch
      %12 = sbr.rel (0) target = $region5
    $region4: #{tpu_custom_call.1} parent=1 // pred_region
      %14 = vsyncadd [#allocation3], 0
      %s15 = sshll.u32 %s0, 4
      %s16 = int_to_ptr.hbm [resolvable:$true] %s15
      %s17 = sshll.u32 [#allocation2], 4
      %s18 = int_to_ptr.vmem [resolvable:$true] %s17
      %23 = dma.hbm_to_vmem [thread:$0]  %s16, 512, %s18, [#allocation3], 256, 256, 16
    $region5: #{tpu_custom_call.1} parent=1 // pred_fallthru
      _
    // Predicated region
    $region6: #{tpu_custom_call.1} parent=1 // pred_check
      _
    $region7: #{tpu_custom_call.1} parent=1 // pred_check_branch
      %25 = sbr.rel (0) target = $region9
    $region8: #{tpu_custom_call.1} parent=1 // pred_region
      %27 = vsyncadd [#allocation6], 0
      %s28 = sshll.u32 %s1, 4
      %s29 = int_to_ptr.hbm [resolvable:$true] %s28
      %s30 = sshll.u32 [#allocation5], 4
      %s31 = int_to_ptr.vmem [resolvable:$true] %s30
      %36 = dma.hbm_to_vmem [thread:$0]  %s29, 65536, %s31, [#allocation6], 1024, 1024, 64
    $region9: #{tpu_custom_call.1} parent=1 // pred_fallthru
      _
    // Predicated region
    $region10: #{tpu_custom_call.1} parent=1 // pred_check
      _
    $region11: #{tpu_custom_call.1} parent=1 // pred_check_branch
      %38 = sbr.rel (0) target = $region13
    $region12: #{tpu_custom_call.1} parent=1 // pred_region
      %40 = vsyncadd [#allocation6], 0
      %s41 = sshll.u32 %s2, 4
      %s42 = int_to_ptr.hbm [resolvable:$true] %s41
      %s43 = sshll.u32 [#allocation7], 4
      %s44 = int_to_ptr.vmem [resolvable:$true] %s43
      %49 = dma.hbm_to_vmem [thread:$0]  %s42, 65536, %s44, [#allocation6], 256, 256, 16
    $region13: #{tpu_custom_call.1} parent=1 // pred_fallthru
      _
    // Predicated region
    $region14: #{tpu_custom_call.1} parent=1 // pred_check
      _
    $region15: #{tpu_custom_call.1} parent=1 // pred_check_branch
      %51 = sbr.rel (0) target = $region17
    $region16: #{tpu_custom_call.1} parent=1 // pred_region
      %53 = dma.done [#allocation3], 512
    $region17: #{tpu_custom_call.1} parent=1 // pred_fallthru
      _
    // Predicated region
    $region18: #{tpu_custom_call.1} parent=1 // pred_check
      _
    $region19: #{tpu_custom_call.1} parent=1 // pred_check_branch
      %55 = sbr.rel (0) target = $region21
    $region20: #{tpu_custom_call.1} parent=1 // pred_region
      %57 = dma.done [#allocation6], 65536
    $region21: #{tpu_custom_call.1} parent=1 // pred_fallthru
      _
    // Predicated region
    $region22: #{tpu_custom_call.1} parent=1 // pred_check
      _
    $region23: #{tpu_custom_call.1} parent=1 // pred_check_branch
      %59 = sbr.rel (0) target = $region25
    $region24: #{tpu_custom_call.1} parent=1 // pred_region
      %61 = dma.done [#allocation6], 65536
    $region25: #{tpu_custom_call.1} parent=1 // pred_fallthru
      _
    %v62 = vld [vmem:[#allocation2] sm:$0xff]
    %v63 = vld [vmem:[#allocation2 + $0x8] sm:$0xff]
    %v64 = vld [vmem:[#allocation2 + $0x10] sm:$0xff]
    %v65 = vld [vmem:[#allocation2 + $0x18] sm:$0xff]
    %v66 = vld [vmem:[#allocation5] sm:$0xff]
    %v67 = vld [vmem:[#allocation5 + $0x8] sm:$0xff]
    %v68 = vld [vmem:[#allocation5 + $0x10] sm:$0xff]
    %v69 = vld [vmem:[#allocation5 + $0x18] sm:$0xff]
    %v70 = vld [vmem:[#allocation5 + $0x20] sm:$0xff]
    %v71 = vld [vmem:[#allocation5 + $0x28] sm:$0xff]
    %v72 = vld [vmem:[#allocation5 + $0x30] sm:$0xff]
    %v73 = vld [vmem:[#allocation5 + $0x38] sm:$0xff]
    %v74 = vld [vmem:[#allocation5 + $0x40] sm:$0xff]
    %v75 = vld [vmem:[#allocation5 + $0x48] sm:$0xff]
    %v76 = vld [vmem:[#allocation5 + $0x50] sm:$0xff]
    %v77 = vld [vmem:[#allocation5 + $0x58] sm:$0xff]
    %v78 = vld [vmem:[#allocation5 + $0x60] sm:$0xff]
    %v79 = vld [vmem:[#allocation5 + $0x68] sm:$0xff]
    %v80 = vld [vmem:[#allocation5 + $0x70] sm:$0xff]
    %v81 = vld [vmem:[#allocation5 + $0x78] sm:$0xff]
    %v82 = vld [vmem:[#allocation5 + $0x80] sm:$0xff]
    %v83 = vld [vmem:[#allocation5 + $0x88] sm:$0xff]
    %v84 = vld [vmem:[#allocation5 + $0x90] sm:$0xff]
    %v85 = vld [vmem:[#allocation5 + $0x98] sm:$0xff]
    %v86 = vld [vmem:[#allocation5 + $0xa0] sm:$0xff]
    %v87 = vld [vmem:[#allocation5 + $0xa8] sm:$0xff]
    %v88 = vld [vmem:[#allocation5 + $0xb0] sm:$0xff]
    %v89 = vld [vmem:[#allocation5 + $0xb8] sm:$0xff]
    %v90 = vld [vmem:[#allocation5 + $0xc0] sm:$0xff]
    %v91 = vld [vmem:[#allocation5 + $0xc8] sm:$0xff]
    %v92 = vld [vmem:[#allocation5 + $0xd0] sm:$0xff]
    %v93 = vld [vmem:[#allocation5 + $0xd8] sm:$0xff]
    %v94 = vld [vmem:[#allocation5 + $0xe0] sm:$0xff]
    %v95 = vld [vmem:[#allocation5 + $0xe8] sm:$0xff]
    %v96 = vld [vmem:[#allocation5 + $0xf0] sm:$0xff]
    %v97 = vld [vmem:[#allocation5 + $0xf8] sm:$0xff]
    %v98 = vld [vmem:[#allocation5 + $0x100] sm:$0xff]
    %v99 = vld [vmem:[#allocation5 + $0x108] sm:$0xff]
    %v100 = vld [vmem:[#allocation5 + $0x110] sm:$0xff]
    %v101 = vld [vmem:[#allocation5 + $0x118] sm:$0xff]
    %v102 = vld [vmem:[#allocation5 + $0x120] sm:$0xff]
    %v103 = vld [vmem:[#allocation5 + $0x128] sm:$0xff]
    %v104 = vld [vmem:[#allocation5 + $0x130] sm:$0xff]
    %v105 = vld [vmem:[#allocation5 + $0x138] sm:$0xff]
    %v106 = vld [vmem:[#allocation5 + $0x140] sm:$0xff]
    %v107 = vld [vmem:[#allocation5 + $0x148] sm:$0xff]
    %v108 = vld [vmem:[#allocation5 + $0x150] sm:$0xff]
    %v109 = vld [vmem:[#allocation5 + $0x158] sm:$0xff]
    %v110 = vld [vmem:[#allocation5 + $0x160] sm:$0xff]
    %v111 = vld [vmem:[#allocation5 + $0x168] sm:$0xff]
    %v112 = vld [vmem:[#allocation5 + $0x170] sm:$0xff]
    %v113 = vld [vmem:[#allocation5 + $0x178] sm:$0xff]
    %v114 = vld [vmem:[#allocation5 + $0x180] sm:$0xff]
    %v115 = vld [vmem:[#allocation5 + $0x188] sm:$0xff]
    %v116 = vld [vmem:[#allocation5 + $0x190] sm:$0xff]
    %v117 = vld [vmem:[#allocation5 + $0x198] sm:$0xff]
    %v118 = vld [vmem:[#allocation5 + $0x1a0] sm:$0xff]
    %v119 = vld [vmem:[#allocation5 + $0x1a8] sm:$0xff]
    %v120 = vld [vmem:[#allocation5 + $0x1b0] sm:$0xff]
    %v121 = vld [vmem:[#allocation5 + $0x1b8] sm:$0xff]
    %v122 = vld [vmem:[#allocation5 + $0x1c0] sm:$0xff]
    %v123 = vld [vmem:[#allocation5 + $0x1c8] sm:$0xff]
    %v124 = vld [vmem:[#allocation5 + $0x1d0] sm:$0xff]
    %v125 = vld [vmem:[#allocation5 + $0x1d8] sm:$0xff]
    %v126 = vld [vmem:[#allocation5 + $0x1e0] sm:$0xff]
    %v127 = vld [vmem:[#allocation5 + $0x1e8] sm:$0xff]
    %v128 = vld [vmem:[#allocation5 + $0x1f0] sm:$0xff]
    %v129 = vld [vmem:[#allocation5 + $0x1f8] sm:$0xff]
    %v130 = vld [vmem:[#allocation5 + $0x200] sm:$0xff]
    %v131 = vld [vmem:[#allocation5 + $0x208] sm:$0xff]
    %v132 = vld [vmem:[#allocation5 + $0x210] sm:$0xff]
    %v133 = vld [vmem:[#allocation5 + $0x218] sm:$0xff]
    %v134 = vld [vmem:[#allocation5 + $0x220] sm:$0xff]
    %v135 = vld [vmem:[#allocation5 + $0x228] sm:$0xff]
    %v136 = vld [vmem:[#allocation5 + $0x230] sm:$0xff]
    %v137 = vld [vmem:[#allocation5 + $0x238] sm:$0xff]
    %v138 = vld [vmem:[#allocation5 + $0x240] sm:$0xff]
    %v139 = vld [vmem:[#allocation5 + $0x248] sm:$0xff]
    %v140 = vld [vmem:[#allocation5 + $0x250] sm:$0xff]
    %v141 = vld [vmem:[#allocation5 + $0x258] sm:$0xff]
    %v142 = vld [vmem:[#allocation5 + $0x260] sm:$0xff]
    %v143 = vld [vmem:[#allocation5 + $0x268] sm:$0xff]
    %v144 = vld [vmem:[#allocation5 + $0x270] sm:$0xff]
    %v145 = vld [vmem:[#allocation5 + $0x278] sm:$0xff]
    %v146 = vld [vmem:[#allocation5 + $0x280] sm:$0xff]
    %v147 = vld [vmem:[#allocation5 + $0x288] sm:$0xff]
    %v148 = vld [vmem:[#allocation5 + $0x290] sm:$0xff]
    %v149 = vld [vmem:[#allocation5 + $0x298] sm:$0xff]
    %v150 = vld [vmem:[#allocation5 + $0x2a0] sm:$0xff]
    %v151 = vld [vmem:[#allocation5 + $0x2a8] sm:$0xff]
    %v152 = vld [vmem:[#allocation5 + $0x2b0] sm:$0xff]
    %v153 = vld [vmem:[#allocation5 + $0x2b8] sm:$0xff]
    %v154 = vld [vmem:[#allocation5 + $0x2c0] sm:$0xff]
    %v155 = vld [vmem:[#allocation5 + $0x2c8] sm:$0xff]
    %v156 = vld [vmem:[#allocation5 + $0x2d0] sm:$0xff]
    %v157 = vld [vmem:[#allocation5 + $0x2d8] sm:$0xff]
    %v158 = vld [vmem:[#allocation5 + $0x2e0] sm:$0xff]
    %v159 = vld [vmem:[#allocation5 + $0x2e8] sm:$0xff]
    %v160 = vld [vmem:[#allocation5 + $0x2f0] sm:$0xff]
    %v161 = vld [vmem:[#allocation5 + $0x2f8] sm:$0xff]
    %v162 = vld [vmem:[#allocation5 + $0x300] sm:$0xff]
    %v163 = vld [vmem:[#allocation5 + $0x308] sm:$0xff]
    %v164 = vld [vmem:[#allocation5 + $0x310] sm:$0xff]
    %v165 = vld [vmem:[#allocation5 + $0x318] sm:$0xff]
    %v166 = vld [vmem:[#allocation5 + $0x320] sm:$0xff]
    %v167 = vld [vmem:[#allocation5 + $0x328] sm:$0xff]
    %v168 = vld [vmem:[#allocation5 + $0x330] sm:$0xff]
    %v169 = vld [vmem:[#allocation5 + $0x338] sm:$0xff]
    %v170 = vld [vmem:[#allocation5 + $0x340] sm:$0xff]
    %v171 = vld [vmem:[#allocation5 + $0x348] sm:$0xff]
    %v172 = vld [vmem:[#allocation5 + $0x350] sm:$0xff]
    %v173 = vld [vmem:[#allocation5 + $0x358] sm:$0xff]
    %v174 = vld [vmem:[#allocation5 + $0x360] sm:$0xff]
    %v175 = vld [vmem:[#allocation5 + $0x368] sm:$0xff]
    %v176 = vld [vmem:[#allocation5 + $0x370] sm:$0xff]
    %v177 = vld [vmem:[#allocation5 + $0x378] sm:$0xff]
    %v178 = vld [vmem:[#allocation5 + $0x380] sm:$0xff]
    %v179 = vld [vmem:[#allocation5 + $0x388] sm:$0xff]
    %v180 = vld [vmem:[#allocation5 + $0x390] sm:$0xff]
    %v181 = vld [vmem:[#allocation5 + $0x398] sm:$0xff]
    %v182 = vld [vmem:[#allocation5 + $0x3a0] sm:$0xff]
    %v183 = vld [vmem:[#allocation5 + $0x3a8] sm:$0xff]
    %v184 = vld [vmem:[#allocation5 + $0x3b0] sm:$0xff]
    %v185 = vld [vmem:[#allocation5 + $0x3b8] sm:$0xff]
    %v186 = vld [vmem:[#allocation5 + $0x3c0] sm:$0xff]
    %v187 = vld [vmem:[#allocation5 + $0x3c8] sm:$0xff]
    %v188 = vld [vmem:[#allocation5 + $0x3d0] sm:$0xff]
    %v189 = vld [vmem:[#allocation5 + $0x3d8] sm:$0xff]
    %v190 = vld [vmem:[#allocation5 + $0x3e0] sm:$0xff]
    %v191 = vld [vmem:[#allocation5 + $0x3e8] sm:$0xff]
    %v192 = vld [vmem:[#allocation5 + $0x3f0] sm:$0xff]
    %v193 = vld [vmem:[#allocation5 + $0x3f8] sm:$0xff]
    %v194 = vld [vmem:[#allocation5 + $0x400] sm:$0xff]
    %v195 = vld [vmem:[#allocation5 + $0x408] sm:$0xff]
    %v196 = vld [vmem:[#allocation5 + $0x410] sm:$0xff]
    %v197 = vld [vmem:[#allocation5 + $0x418] sm:$0xff]
    %v198 = vld [vmem:[#allocation5 + $0x420] sm:$0xff]
    %v199 = vld [vmem:[#allocation5 + $0x428] sm:$0xff]
    %v200 = vld [vmem:[#allocation5 + $0x430] sm:$0xff]
    %v201 = vld [vmem:[#allocation5 + $0x438] sm:$0xff]
    %v202 = vld [vmem:[#allocation5 + $0x440] sm:$0xff]
    %v203 = vld [vmem:[#allocation5 + $0x448] sm:$0xff]
    %v204 = vld [vmem:[#allocation5 + $0x450] sm:$0xff]
    %v205 = vld [vmem:[#allocation5 + $0x458] sm:$0xff]
    %v206 = vld [vmem:[#allocation5 + $0x460] sm:$0xff]
    %v207 = vld [vmem:[#allocation5 + $0x468] sm:$0xff]
    %v208 = vld [vmem:[#allocation5 + $0x470] sm:$0xff]
    %v209 = vld [vmem:[#allocation5 + $0x478] sm:$0xff]
    %v210 = vld [vmem:[#allocation5 + $0x480] sm:$0xff]
    %v211 = vld [vmem:[#allocation5 + $0x488] sm:$0xff]
    %v212 = vld [vmem:[#allocation5 + $0x490] sm:$0xff]
    %v213 = vld [vmem:[#allocation5 + $0x498] sm:$0xff]
    %v214 = vld [vmem:[#allocation5 + $0x4a0] sm:$0xff]
    %v215 = vld [vmem:[#allocation5 + $0x4a8] sm:$0xff]
    %v216 = vld [vmem:[#allocation5 + $0x4b0] sm:$0xff]
    %v217 = vld [vmem:[#allocation5 + $0x4b8] sm:$0xff]
    %v218 = vld [vmem:[#allocation5 + $0x4c0] sm:$0xff]
    %v219 = vld [vmem:[#allocation5 + $0x4c8] sm:$0xff]
    %v220 = vld [vmem:[#allocation5 + $0x4d0] sm:$0xff]
    %v221 = vld [vmem:[#allocation5 + $0x4d8] sm:$0xff]
    %v222 = vld [vmem:[#allocation5 + $0x4e0] sm:$0xff]
    %v223 = vld [vmem:[#allocation5 + $0x4e8] sm:$0xff]
    %v224 = vld [vmem:[#allocation5 + $0x4f0] sm:$0xff]
    %v225 = vld [vmem:[#allocation5 + $0x4f8] sm:$0xff]
    %v226 = vld [vmem:[#allocation5 + $0x500] sm:$0xff]
    %v227 = vld [vmem:[#allocation5 + $0x508] sm:$0xff]
    %v228 = vld [vmem:[#allocation5 + $0x510] sm:$0xff]
    %v229 = vld [vmem:[#allocation5 + $0x518] sm:$0xff]
    %v230 = vld [vmem:[#allocation5 + $0x520] sm:$0xff]
    %v231 = vld [vmem:[#allocation5 + $0x528] sm:$0xff]
    %v232 = vld [vmem:[#allocation5 + $0x530] sm:$0xff]
    %v233 = vld [vmem:[#allocation5 + $0x538] sm:$0xff]
    %v234 = vld [vmem:[#allocation5 + $0x540] sm:$0xff]
    %v235 = vld [vmem:[#allocation5 + $0x548] sm:$0xff]
    %v236 = vld [vmem:[#allocation5 + $0x550] sm:$0xff]
    %v237 = vld [vmem:[#allocation5 + $0x558] sm:$0xff]
    %v238 = vld [vmem:[#allocation5 + $0x560] sm:$0xff]
    %v239 = vld [vmem:[#allocation5 + $0x568] sm:$0xff]
    %v240 = vld [vmem:[#allocation5 + $0x570] sm:$0xff]
    %v241 = vld [vmem:[#allocation5 + $0x578] sm:$0xff]
    %v242 = vld [vmem:[#allocation5 + $0x580] sm:$0xff]
    %v243 = vld [vmem:[#allocation5 + $0x588] sm:$0xff]
    %v244 = vld [vmem:[#allocation5 + $0x590] sm:$0xff]
    %v245 = vld [vmem:[#allocation5 + $0x598] sm:$0xff]
    %v246 = vld [vmem:[#allocation5 + $0x5a0] sm:$0xff]
    %v247 = vld [vmem:[#allocation5 + $0x5a8] sm:$0xff]
    %v248 = vld [vmem:[#allocation5 + $0x5b0] sm:$0xff]
    %v249 = vld [vmem:[#allocation5 + $0x5b8] sm:$0xff]
    %v250 = vld [vmem:[#allocation5 + $0x5c0] sm:$0xff]
    %v251 = vld [vmem:[#allocation5 + $0x5c8] sm:$0xff]
    %v252 = vld [vmem:[#allocation5 + $0x5d0] sm:$0xff]
    %v253 = vld [vmem:[#allocation5 + $0x5d8] sm:$0xff]
    %v254 = vld [vmem:[#allocation5 + $0x5e0] sm:$0xff]
    %v255 = vld [vmem:[#allocation5 + $0x5e8] sm:$0xff]
    %v256 = vld [vmem:[#allocation5 + $0x5f0] sm:$0xff]
    %v257 = vld [vmem:[#allocation5 + $0x5f8] sm:$0xff]
    %v258 = vld [vmem:[#allocation5 + $0x600] sm:$0xff]
    %v259 = vld [vmem:[#allocation5 + $0x608] sm:$0xff]
    %v260 = vld [vmem:[#allocation5 + $0x610] sm:$0xff]
    %v261 = vld [vmem:[#allocation5 + $0x618] sm:$0xff]
    %v262 = vld [vmem:[#allocation5 + $0x620] sm:$0xff]
    %v263 = vld [vmem:[#allocation5 + $0x628] sm:$0xff]
    %v264 = vld [vmem:[#allocation5 + $0x630] sm:$0xff]
    %v265 = vld [vmem:[#allocation5 + $0x638] sm:$0xff]
    %v266 = vld [vmem:[#allocation5 + $0x640] sm:$0xff]
    %v267 = vld [vmem:[#allocation5 + $0x648] sm:$0xff]
    %v268 = vld [vmem:[#allocation5 + $0x650] sm:$0xff]
    %v269 = vld [vmem:[#allocation5 + $0x658] sm:$0xff]
    %v270 = vld [vmem:[#allocation5 + $0x660] sm:$0xff]
    %v271 = vld [vmem:[#allocation5 + $0x668] sm:$0xff]
    %v272 = vld [vmem:[#allocation5 + $0x670] sm:$0xff]
    %v273 = vld [vmem:[#allocation5 + $0x678] sm:$0xff]
    %v274 = vld [vmem:[#allocation5 + $0x680] sm:$0xff]
    %v275 = vld [vmem:[#allocation5 + $0x688] sm:$0xff]
    %v276 = vld [vmem:[#allocation5 + $0x690] sm:$0xff]
    %v277 = vld [vmem:[#allocation5 + $0x698] sm:$0xff]
    %v278 = vld [vmem:[#allocation5 + $0x6a0] sm:$0xff]
    %v279 = vld [vmem:[#allocation5 + $0x6a8] sm:$0xff]
    %v280 = vld [vmem:[#allocation5 + $0x6b0] sm:$0xff]
    %v281 = vld [vmem:[#allocation5 + $0x6b8] sm:$0xff]
    %v282 = vld [vmem:[#allocation5 + $0x6c0] sm:$0xff]
    %v283 = vld [vmem:[#allocation5 + $0x6c8] sm:$0xff]
    %v284 = vld [vmem:[#allocation5 + $0x6d0] sm:$0xff]
    %v285 = vld [vmem:[#allocation5 + $0x6d8] sm:$0xff]
    %v286 = vld [vmem:[#allocation5 + $0x6e0] sm:$0xff]
    %v287 = vld [vmem:[#allocation5 + $0x6e8] sm:$0xff]
    %v288 = vld [vmem:[#allocation5 + $0x6f0] sm:$0xff]
    %v289 = vld [vmem:[#allocation5 + $0x6f8] sm:$0xff]
    %v290 = vld [vmem:[#allocation5 + $0x700] sm:$0xff]
    %v291 = vld [vmem:[#allocation5 + $0x708] sm:$0xff]
    %v292 = vld [vmem:[#allocation5 + $0x710] sm:$0xff]
    %v293 = vld [vmem:[#allocation5 + $0x718] sm:$0xff]
    %v294 = vld [vmem:[#allocation5 + $0x720] sm:$0xff]
    %v295 = vld [vmem:[#allocation5 + $0x728] sm:$0xff]
    %v296 = vld [vmem:[#allocation5 + $0x730] sm:$0xff]
    %v297 = vld [vmem:[#allocation5 + $0x738] sm:$0xff]
    %v298 = vld [vmem:[#allocation5 + $0x740] sm:$0xff]
    %v299 = vld [vmem:[#allocation5 + $0x748] sm:$0xff]
    %v300 = vld [vmem:[#allocation5 + $0x750] sm:$0xff]
    %v301 = vld [vmem:[#allocation5 + $0x758] sm:$0xff]
    %v302 = vld [vmem:[#allocation5 + $0x760] sm:$0xff]
    %v303 = vld [vmem:[#allocation5 + $0x768] sm:$0xff]
    %v304 = vld [vmem:[#allocation5 + $0x770] sm:$0xff]
    %v305 = vld [vmem:[#allocation5 + $0x778] sm:$0xff]
    %v306 = vld [vmem:[#allocation5 + $0x780] sm:$0xff]
    %v307 = vld [vmem:[#allocation5 + $0x788] sm:$0xff]
    %v308 = vld [vmem:[#allocation5 + $0x790] sm:$0xff]
    %v309 = vld [vmem:[#allocation5 + $0x798] sm:$0xff]
    %v310 = vld [vmem:[#allocation5 + $0x7a0] sm:$0xff]
    %v311 = vld [vmem:[#allocation5 + $0x7a8] sm:$0xff]
    %v312 = vld [vmem:[#allocation5 + $0x7b0] sm:$0xff]
    %v313 = vld [vmem:[#allocation5 + $0x7b8] sm:$0xff]
    %v314 = vld [vmem:[#allocation5 + $0x7c0] sm:$0xff]
    %v315 = vld [vmem:[#allocation5 + $0x7c8] sm:$0xff]
    %v316 = vld [vmem:[#allocation5 + $0x7d0] sm:$0xff]
    %v317 = vld [vmem:[#allocation5 + $0x7d8] sm:$0xff]
    %v318 = vld [vmem:[#allocation5 + $0x7e0] sm:$0xff]
    %v319 = vld [vmem:[#allocation5 + $0x7e8] sm:$0xff]
    %v320 = vld [vmem:[#allocation5 + $0x7f0] sm:$0xff]
    %v321 = vld [vmem:[#allocation5 + $0x7f8] sm:$0xff]
    %v322 = vld [vmem:[#allocation5 + $0x800] sm:$0xff]
    %v323 = vld [vmem:[#allocation5 + $0x808] sm:$0xff]
    %v324 = vld [vmem:[#allocation5 + $0x810] sm:$0xff]
    %v325 = vld [vmem:[#allocation5 + $0x818] sm:$0xff]
    %v326 = vld [vmem:[#allocation5 + $0x820] sm:$0xff]
    %v327 = vld [vmem:[#allocation5 + $0x828] sm:$0xff]
    %v328 = vld [vmem:[#allocation5 + $0x830] sm:$0xff]
    %v329 = vld [vmem:[#allocation5 + $0x838] sm:$0xff]
    %v330 = vld [vmem:[#allocation5 + $0x840] sm:$0xff]
    %v331 = vld [vmem:[#allocation5 + $0x848] sm:$0xff]
    %v332 = vld [vmem:[#allocation5 + $0x850] sm:$0xff]
    %v333 = vld [vmem:[#allocation5 + $0x858] sm:$0xff]
    %v334 = vld [vmem:[#allocation5 + $0x860] sm:$0xff]
    %v335 = vld [vmem:[#allocation5 + $0x868] sm:$0xff]
    %v336 = vld [vmem:[#allocation5 + $0x870] sm:$0xff]
    %v337 = vld [vmem:[#allocation5 + $0x878] sm:$0xff]
    %v338 = vld [vmem:[#allocation5 + $0x880] sm:$0xff]
    %v339 = vld [vmem:[#allocation5 + $0x888] sm:$0xff]
    %v340 = vld [vmem:[#allocation5 + $0x890] sm:$0xff]
    %v341 = vld [vmem:[#allocation5 + $0x898] sm:$0xff]
    %v342 = vld [vmem:[#allocation5 + $0x8a0] sm:$0xff]
    %v343 = vld [vmem:[#allocation5 + $0x8a8] sm:$0xff]
    %v344 = vld [vmem:[#allocation5 + $0x8b0] sm:$0xff]
    %v345 = vld [vmem:[#allocation5 + $0x8b8] sm:$0xff]
    %v346 = vld [vmem:[#allocation5 + $0x8c0] sm:$0xff]
    %v347 = vld [vmem:[#allocation5 + $0x8c8] sm:$0xff]
    %v348 = vld [vmem:[#allocation5 + $0x8d0] sm:$0xff]
    %v349 = vld [vmem:[#allocation5 + $0x8d8] sm:$0xff]
    %v350 = vld [vmem:[#allocation5 + $0x8e0] sm:$0xff]
    %v351 = vld [vmem:[#allocation5 + $0x8e8] sm:$0xff]
    %v352 = vld [vmem:[#allocation5 + $0x8f0] sm:$0xff]
    %v353 = vld [vmem:[#allocation5 + $0x8f8] sm:$0xff]
    %v354 = vld [vmem:[#allocation5 + $0x900] sm:$0xff]
    %v355 = vld [vmem:[#allocation5 + $0x908] sm:$0xff]
    %v356 = vld [vmem:[#allocation5 + $0x910] sm:$0xff]
    %v357 = vld [vmem:[#allocation5 + $0x918] sm:$0xff]
    %v358 = vld [vmem:[#allocation5 + $0x920] sm:$0xff]
    %v359 = vld [vmem:[#allocation5 + $0x928] sm:$0xff]
    %v360 = vld [vmem:[#allocation5 + $0x930] sm:$0xff]
    %v361 = vld [vmem:[#allocation5 + $0x938] sm:$0xff]
    %v362 = vld [vmem:[#allocation5 + $0x940] sm:$0xff]
    %v363 = vld [vmem:[#allocation5 + $0x948] sm:$0xff]
    %v364 = vld [vmem:[#allocation5 + $0x950] sm:$0xff]
    %v365 = vld [vmem:[#allocation5 + $0x958] sm:$0xff]
    %v366 = vld [vmem:[#allocation5 + $0x960] sm:$0xff]
    %v367 = vld [vmem:[#allocation5 + $0x968] sm:$0xff]
    %v368 = vld [vmem:[#allocation5 + $0x970] sm:$0xff]
    %v369 = vld [vmem:[#allocation5 + $0x978] sm:$0xff]
    %v370 = vld [vmem:[#allocation5 + $0x980] sm:$0xff]
    %v371 = vld [vmem:[#allocation5 + $0x988] sm:$0xff]
    %v372 = vld [vmem:[#allocation5 + $0x990] sm:$0xff]
    %v373 = vld [vmem:[#allocation5 + $0x998] sm:$0xff]
    %v374 = vld [vmem:[#allocation5 + $0x9a0] sm:$0xff]
    %v375 = vld [vmem:[#allocation5 + $0x9a8] sm:$0xff]
    %v376 = vld [vmem:[#allocation5 + $0x9b0] sm:$0xff]
    %v377 = vld [vmem:[#allocation5 + $0x9b8] sm:$0xff]
    %v378 = vld [vmem:[#allocation5 + $0x9c0] sm:$0xff]
    %v379 = vld [vmem:[#allocation5 + $0x9c8] sm:$0xff]
    %v380 = vld [vmem:[#allocation5 + $0x9d0] sm:$0xff]
    %v381 = vld [vmem:[#allocation5 + $0x9d8] sm:$0xff]
    %v382 = vld [vmem:[#allocation5 + $0x9e0] sm:$0xff]
    %v383 = vld [vmem:[#allocation5 + $0x9e8] sm:$0xff]
    %v384 = vld [vmem:[#allocation5 + $0x9f0] sm:$0xff]
    %v385 = vld [vmem:[#allocation5 + $0x9f8] sm:$0xff]
    %v386 = vld [vmem:[#allocation5 + $0xa00] sm:$0xff]
    %v387 = vld [vmem:[#allocation5 + $0xa08] sm:$0xff]
    %v388 = vld [vmem:[#allocation5 + $0xa10] sm:$0xff]
    %v389 = vld [vmem:[#allocation5 + $0xa18] sm:$0xff]
    %v390 = vld [vmem:[#allocation5 + $0xa20] sm:$0xff]
    %v391 = vld [vmem:[#allocation5 + $0xa28] sm:$0xff]
    %v392 = vld [vmem:[#allocation5 + $0xa30] sm:$0xff]
    %v393 = vld [vmem:[#allocation5 + $0xa38] sm:$0xff]
    %v394 = vld [vmem:[#allocation5 + $0xa40] sm:$0xff]
    %v395 = vld [vmem:[#allocation5 + $0xa48] sm:$0xff]
    %v396 = vld [vmem:[#allocation5 + $0xa50] sm:$0xff]
    %v397 = vld [vmem:[#allocation5 + $0xa58] sm:$0xff]
    %v398 = vld [vmem:[#allocation5 + $0xa60] sm:$0xff]
    %v399 = vld [vmem:[#allocation5 + $0xa68] sm:$0xff]
    %v400 = vld [vmem:[#allocation5 + $0xa70] sm:$0xff]
    %v401 = vld [vmem:[#allocation5 + $0xa78] sm:$0xff]
    %v402 = vld [vmem:[#allocation5 + $0xa80] sm:$0xff]
    %v403 = vld [vmem:[#allocation5 + $0xa88] sm:$0xff]
    %v404 = vld [vmem:[#allocation5 + $0xa90] sm:$0xff]
    %v405 = vld [vmem:[#allocation5 + $0xa98] sm:$0xff]
    %v406 = vld [vmem:[#allocation5 + $0xaa0] sm:$0xff]
    %v407 = vld [vmem:[#allocation5 + $0xaa8] sm:$0xff]
    %v408 = vld [vmem:[#allocation5 + $0xab0] sm:$0xff]
    %v409 = vld [vmem:[#allocation5 + $0xab8] sm:$0xff]
    %v410 = vld [vmem:[#allocation5 + $0xac0] sm:$0xff]
    %v411 = vld [vmem:[#allocation5 + $0xac8] sm:$0xff]
    %v412 = vld [vmem:[#allocation5 + $0xad0] sm:$0xff]
    %v413 = vld [vmem:[#allocation5 + $0xad8] sm:$0xff]
    %v414 = vld [vmem:[#allocation5 + $0xae0] sm:$0xff]
    %v415 = vld [vmem:[#allocation5 + $0xae8] sm:$0xff]
    %v416 = vld [vmem:[#allocation5 + $0xaf0] sm:$0xff]
    %v417 = vld [vmem:[#allocation5 + $0xaf8] sm:$0xff]
    %v418 = vld [vmem:[#allocation5 + $0xb00] sm:$0xff]
    %v419 = vld [vmem:[#allocation5 + $0xb08] sm:$0xff]
    %v420 = vld [vmem:[#allocation5 + $0xb10] sm:$0xff]
    %v421 = vld [vmem:[#allocation5 + $0xb18] sm:$0xff]
    %v422 = vld [vmem:[#allocation5 + $0xb20] sm:$0xff]
    %v423 = vld [vmem:[#allocation5 + $0xb28] sm:$0xff]
    %v424 = vld [vmem:[#allocation5 + $0xb30] sm:$0xff]
    %v425 = vld [vmem:[#allocation5 + $0xb38] sm:$0xff]
    %v426 = vld [vmem:[#allocation5 + $0xb40] sm:$0xff]
    %v427 = vld [vmem:[#allocation5 + $0xb48] sm:$0xff]
    %v428 = vld [vmem:[#allocation5 + $0xb50] sm:$0xff]
    %v429 = vld [vmem:[#allocation5 + $0xb58] sm:$0xff]
    %v430 = vld [vmem:[#allocation5 + $0xb60] sm:$0xff]
    %v431 = vld [vmem:[#allocation5 + $0xb68] sm:$0xff]
    %v432 = vld [vmem:[#allocation5 + $0xb70] sm:$0xff]
    %v433 = vld [vmem:[#allocation5 + $0xb78] sm:$0xff]
    %v434 = vld [vmem:[#allocation5 + $0xb80] sm:$0xff]
    %v435 = vld [vmem:[#allocation5 + $0xb88] sm:$0xff]
    %v436 = vld [vmem:[#allocation5 + $0xb90] sm:$0xff]
    %v437 = vld [vmem:[#allocation5 + $0xb98] sm:$0xff]
    %v438 = vld [vmem:[#allocation5 + $0xba0] sm:$0xff]
    %v439 = vld [vmem:[#allocation5 + $0xba8] sm:$0xff]
    %v440 = vld [vmem:[#allocation5 + $0xbb0] sm:$0xff]
    %v441 = vld [vmem:[#allocation5 + $0xbb8] sm:$0xff]
    %v442 = vld [vmem:[#allocation5 + $0xbc0] sm:$0xff]
    %v443 = vld [vmem:[#allocation5 + $0xbc8] sm:$0xff]
    %v444 = vld [vmem:[#allocation5 + $0xbd0] sm:$0xff]
    %v445 = vld [vmem:[#allocation5 + $0xbd8] sm:$0xff]
    %v446 = vld [vmem:[#allocation5 + $0xbe0] sm:$0xff]
    %v447 = vld [vmem:[#allocation5 + $0xbe8] sm:$0xff]
    %v448 = vld [vmem:[#allocation5 + $0xbf0] sm:$0xff]
    %v449 = vld [vmem:[#allocation5 + $0xbf8] sm:$0xff]
    %v450 = vld [vmem:[#allocation5 + $0xc00] sm:$0xff]
    %v451 = vld [vmem:[#allocation5 + $0xc08] sm:$0xff]
    %v452 = vld [vmem:[#allocation5 + $0xc10] sm:$0xff]
    %v453 = vld [vmem:[#allocation5 + $0xc18] sm:$0xff]
    %v454 = vld [vmem:[#allocation5 + $0xc20] sm:$0xff]
    %v455 = vld [vmem:[#allocation5 + $0xc28] sm:$0xff]
    %v456 = vld [vmem:[#allocation5 + $0xc30] sm:$0xff]
    %v457 = vld [vmem:[#allocation5 + $0xc38] sm:$0xff]
    %v458 = vld [vmem:[#allocation5 + $0xc40] sm:$0xff]
    %v459 = vld [vmem:[#allocation5 + $0xc48] sm:$0xff]
    %v460 = vld [vmem:[#allocation5 + $0xc50] sm:$0xff]
    %v461 = vld [vmem:[#allocation5 + $0xc58] sm:$0xff]
    %v462 = vld [vmem:[#allocation5 + $0xc60] sm:$0xff]
    %v463 = vld [vmem:[#allocation5 + $0xc68] sm:$0xff]
    %v464 = vld [vmem:[#allocation5 + $0xc70] sm:$0xff]
    %v465 = vld [vmem:[#allocation5 + $0xc78] sm:$0xff]
    %v466 = vld [vmem:[#allocation5 + $0xc80] sm:$0xff]
    %v467 = vld [vmem:[#allocation5 + $0xc88] sm:$0xff]
    %v468 = vld [vmem:[#allocation5 + $0xc90] sm:$0xff]
    %v469 = vld [vmem:[#allocation5 + $0xc98] sm:$0xff]
    %v470 = vld [vmem:[#allocation5 + $0xca0] sm:$0xff]
    %v471 = vld [vmem:[#allocation5 + $0xca8] sm:$0xff]
    %v472 = vld [vmem:[#allocation5 + $0xcb0] sm:$0xff]
    %v473 = vld [vmem:[#allocation5 + $0xcb8] sm:$0xff]
    %v474 = vld [vmem:[#allocation5 + $0xcc0] sm:$0xff]
    %v475 = vld [vmem:[#allocation5 + $0xcc8] sm:$0xff]
    %v476 = vld [vmem:[#allocation5 + $0xcd0] sm:$0xff]
    %v477 = vld [vmem:[#allocation5 + $0xcd8] sm:$0xff]
    %v478 = vld [vmem:[#allocation5 + $0xce0] sm:$0xff]
    %v479 = vld [vmem:[#allocation5 + $0xce8] sm:$0xff]
    %v480 = vld [vmem:[#allocation5 + $0xcf0] sm:$0xff]
    %v481 = vld [vmem:[#allocation5 + $0xcf8] sm:$0xff]
    %v482 = vld [vmem:[#allocation5 + $0xd00] sm:$0xff]
    %v483 = vld [vmem:[#allocation5 + $0xd08] sm:$0xff]
    %v484 = vld [vmem:[#allocation5 + $0xd10] sm:$0xff]
    %v485 = vld [vmem:[#allocation5 + $0xd18] sm:$0xff]
    %v486 = vld [vmem:[#allocation5 + $0xd20] sm:$0xff]
    %v487 = vld [vmem:[#allocation5 + $0xd28] sm:$0xff]
    %v488 = vld [vmem:[#allocation5 + $0xd30] sm:$0xff]
    %v489 = vld [vmem:[#allocation5 + $0xd38] sm:$0xff]
    %v490 = vld [vmem:[#allocation5 + $0xd40] sm:$0xff]
    %v491 = vld [vmem:[#allocation5 + $0xd48] sm:$0xff]
    %v492 = vld [vmem:[#allocation5 + $0xd50] sm:$0xff]
    %v493 = vld [vmem:[#allocation5 + $0xd58] sm:$0xff]
    %v494 = vld [vmem:[#allocation5 + $0xd60] sm:$0xff]
    %v495 = vld [vmem:[#allocation5 + $0xd68] sm:$0xff]
    %v496 = vld [vmem:[#allocation5 + $0xd70] sm:$0xff]
    %v497 = vld [vmem:[#allocation5 + $0xd78] sm:$0xff]
    %v498 = vld [vmem:[#allocation5 + $0xd80] sm:$0xff]
    %v499 = vld [vmem:[#allocation5 + $0xd88] sm:$0xff]
    %v500 = vld [vmem:[#allocation5 + $0xd90] sm:$0xff]
    %v501 = vld [vmem:[#allocation5 + $0xd98] sm:$0xff]
    %v502 = vld [vmem:[#allocation5 + $0xda0] sm:$0xff]
    %v503 = vld [vmem:[#allocation5 + $0xda8] sm:$0xff]
    %v504 = vld [vmem:[#allocation5 + $0xdb0] sm:$0xff]
    %v505 = vld [vmem:[#allocation5 + $0xdb8] sm:$0xff]
    %v506 = vld [vmem:[#allocation5 + $0xdc0] sm:$0xff]
    %v507 = vld [vmem:[#allocation5 + $0xdc8] sm:$0xff]
    %v508 = vld [vmem:[#allocation5 + $0xdd0] sm:$0xff]
    %v509 = vld [vmem:[#allocation5 + $0xdd8] sm:$0xff]
    %v510 = vld [vmem:[#allocation5 + $0xde0] sm:$0xff]
    %v511 = vld [vmem:[#allocation5 + $0xde8] sm:$0xff]
    %v512 = vld [vmem:[#allocation5 + $0xdf0] sm:$0xff]
    %v513 = vld [vmem:[#allocation5 + $0xdf8] sm:$0xff]
    %v514 = vld [vmem:[#allocation5 + $0xe00] sm:$0xff]
    %v515 = vld [vmem:[#allocation5 + $0xe08] sm:$0xff]
    %v516 = vld [vmem:[#allocation5 + $0xe10] sm:$0xff]
    %v517 = vld [vmem:[#allocation5 + $0xe18] sm:$0xff]
    %v518 = vld [vmem:[#allocation5 + $0xe20] sm:$0xff]
    %v519 = vld [vmem:[#allocation5 + $0xe28] sm:$0xff]
    %v520 = vld [vmem:[#allocation5 + $0xe30] sm:$0xff]
    %v521 = vld [vmem:[#allocation5 + $0xe38] sm:$0xff]
    %v522 = vld [vmem:[#allocation5 + $0xe40] sm:$0xff]
    %v523 = vld [vmem:[#allocation5 + $0xe48] sm:$0xff]
    %v524 = vld [vmem:[#allocation5 + $0xe50] sm:$0xff]
    %v525 = vld [vmem:[#allocation5 + $0xe58] sm:$0xff]
    %v526 = vld [vmem:[#allocation5 + $0xe60] sm:$0xff]
    %v527 = vld [vmem:[#allocation5 + $0xe68] sm:$0xff]
    %v528 = vld [vmem:[#allocation5 + $0xe70] sm:$0xff]
    %v529 = vld [vmem:[#allocation5 + $0xe78] sm:$0xff]
    %v530 = vld [vmem:[#allocation5 + $0xe80] sm:$0xff]
    %v531 = vld [vmem:[#allocation5 + $0xe88] sm:$0xff]
    %v532 = vld [vmem:[#allocation5 + $0xe90] sm:$0xff]
    %v533 = vld [vmem:[#allocation5 + $0xe98] sm:$0xff]
    %v534 = vld [vmem:[#allocation5 + $0xea0] sm:$0xff]
    %v535 = vld [vmem:[#allocation5 + $0xea8] sm:$0xff]
    %v536 = vld [vmem:[#allocation5 + $0xeb0] sm:$0xff]
    %v537 = vld [vmem:[#allocation5 + $0xeb8] sm:$0xff]
    %v538 = vld [vmem:[#allocation5 + $0xec0] sm:$0xff]
    %v539 = vld [vmem:[#allocation5 + $0xec8] sm:$0xff]
    %v540 = vld [vmem:[#allocation5 + $0xed0] sm:$0xff]
    %v541 = vld [vmem:[#allocation5 + $0xed8] sm:$0xff]
    %v542 = vld [vmem:[#allocation5 + $0xee0] sm:$0xff]
    %v543 = vld [vmem:[#allocation5 + $0xee8] sm:$0xff]
    %v544 = vld [vmem:[#allocation5 + $0xef0] sm:$0xff]
    %v545 = vld [vmem:[#allocation5 + $0xef8] sm:$0xff]
    %v546 = vld [vmem:[#allocation5 + $0xf00] sm:$0xff]
    %v547 = vld [vmem:[#allocation5 + $0xf08] sm:$0xff]
    %v548 = vld [vmem:[#allocation5 + $0xf10] sm:$0xff]
    %v549 = vld [vmem:[#allocation5 + $0xf18] sm:$0xff]
    %v550 = vld [vmem:[#allocation5 + $0xf20] sm:$0xff]
    %v551 = vld [vmem:[#allocation5 + $0xf28] sm:$0xff]
    %v552 = vld [vmem:[#allocation5 + $0xf30] sm:$0xff]
    %v553 = vld [vmem:[#allocation5 + $0xf38] sm:$0xff]
    %v554 = vld [vmem:[#allocation5 + $0xf40] sm:$0xff]
    %v555 = vld [vmem:[#allocation5 + $0xf48] sm:$0xff]
    %v556 = vld [vmem:[#allocation5 + $0xf50] sm:$0xff]
    %v557 = vld [vmem:[#allocation5 + $0xf58] sm:$0xff]
    %v558 = vld [vmem:[#allocation5 + $0xf60] sm:$0xff]
    %v559 = vld [vmem:[#allocation5 + $0xf68] sm:$0xff]
    %v560 = vld [vmem:[#allocation5 + $0xf70] sm:$0xff]
    %v561 = vld [vmem:[#allocation5 + $0xf78] sm:$0xff]
    %v562 = vld [vmem:[#allocation5 + $0xf80] sm:$0xff]
    %v563 = vld [vmem:[#allocation5 + $0xf88] sm:$0xff]
    %v564 = vld [vmem:[#allocation5 + $0xf90] sm:$0xff]
    %v565 = vld [vmem:[#allocation5 + $0xf98] sm:$0xff]
    %v566 = vld [vmem:[#allocation5 + $0xfa0] sm:$0xff]
    %v567 = vld [vmem:[#allocation5 + $0xfa8] sm:$0xff]
    %v568 = vld [vmem:[#allocation5 + $0xfb0] sm:$0xff]
    %v569 = vld [vmem:[#allocation5 + $0xfb8] sm:$0xff]
    %v570 = vld [vmem:[#allocation5 + $0xfc0] sm:$0xff]
    %v571 = vld [vmem:[#allocation5 + $0xfc8] sm:$0xff]
    %v572 = vld [vmem:[#allocation5 + $0xfd0] sm:$0xff]
    %v573 = vld [vmem:[#allocation5 + $0xfd8] sm:$0xff]
    %v574 = vld [vmem:[#allocation5 + $0xfe0] sm:$0xff]
    %v575 = vld [vmem:[#allocation5 + $0xfe8] sm:$0xff]
    %v576 = vld [vmem:[#allocation5 + $0xff0] sm:$0xff]
    %v577 = vld [vmem:[#allocation5 + $0xff8] sm:$0xff]
    %v582 = vunpack.c.l.b16 %v62
    %v583 = vunpack.c.h.b16 %v62
    %v584 = vunpack.c.l.b16 %v63
    %v585 = vunpack.c.h.b16 %v63
    %v586 = vunpack.c.l.b16 %v64
    %v587 = vunpack.c.h.b16 %v64
    %v588 = vunpack.c.l.b16 %v65
    %v589 = vunpack.c.h.b16 %v65
    %v590 = vpack.c.b16 %v586, %v582
    %v591 = vpack.c.b16 %v587, %v583
    %v592 = vpack.c.b16 %v588, %v584
    %v593 = vpack.c.b16 %v589, %v585
    %v1110 = vunpack.c.l.b16 %v66
    %v1111 = vunpack.c.h.b16 %v66
    %v1112 = vunpack.c.l.b16 %v67
    %v1113 = vunpack.c.h.b16 %v67
    %v1114 = vunpack.c.l.b16 %v68
    %v1115 = vunpack.c.h.b16 %v68
    %v1116 = vunpack.c.l.b16 %v69
    %v1117 = vunpack.c.h.b16 %v69
    %v1118 = vunpack.c.l.b16 %v70
    %v1119 = vunpack.c.h.b16 %v70
    %v1120 = vunpack.c.l.b16 %v71
    %v1121 = vunpack.c.h.b16 %v71
    %v1122 = vunpack.c.l.b16 %v72
    %v1123 = vunpack.c.h.b16 %v72
    %v1124 = vunpack.c.l.b16 %v73
    %v1125 = vunpack.c.h.b16 %v73
    %v1126 = vunpack.c.l.b16 %v74
    %v1127 = vunpack.c.h.b16 %v74
    %v1128 = vunpack.c.l.b16 %v75
    %v1129 = vunpack.c.h.b16 %v75
    %v1130 = vunpack.c.l.b16 %v76
    %v1131 = vunpack.c.h.b16 %v76
    %v1132 = vunpack.c.l.b16 %v77
    %v1133 = vunpack.c.h.b16 %v77
    %v1134 = vunpack.c.l.b16 %v78
    %v1135 = vunpack.c.h.b16 %v78
    %v1136 = vunpack.c.l.b16 %v79
    %v1137 = vunpack.c.h.b16 %v79
    %v1138 = vunpack.c.l.b16 %v80
    %v1139 = vunpack.c.h.b16 %v80
    %v1140 = vunpack.c.l.b16 %v81
    %v1141 = vunpack.c.h.b16 %v81
    %v1142 = vunpack.c.l.b16 %v82
    %v1143 = vunpack.c.h.b16 %v82
    %v1144 = vunpack.c.l.b16 %v83
    %v1145 = vunpack.c.h.b16 %v83
    %v1146 = vunpack.c.l.b16 %v84
    %v1147 = vunpack.c.h.b16 %v84
    %v1148 = vunpack.c.l.b16 %v85
    %v1149 = vunpack.c.h.b16 %v85
    %v1150 = vunpack.c.l.b16 %v86
    %v1151 = vunpack.c.h.b16 %v86
    %v1152 = vunpack.c.l.b16 %v87
    %v1153 = vunpack.c.h.b16 %v87
    %v1154 = vunpack.c.l.b16 %v88
    %v1155 = vunpack.c.h.b16 %v88
    %v1156 = vunpack.c.l.b16 %v89
    %v1157 = vunpack.c.h.b16 %v89
    %v1158 = vunpack.c.l.b16 %v90
    %v1159 = vunpack.c.h.b16 %v90
    %v1160 = vunpack.c.l.b16 %v91
    %v1161 = vunpack.c.h.b16 %v91
    %v1162 = vunpack.c.l.b16 %v92
    %v1163 = vunpack.c.h.b16 %v92
    %v1164 = vunpack.c.l.b16 %v93
    %v1165 = vunpack.c.h.b16 %v93
    %v1166 = vunpack.c.l.b16 %v94
    %v1167 = vunpack.c.h.b16 %v94
    %v1168 = vunpack.c.l.b16 %v95
    %v1169 = vunpack.c.h.b16 %v95
    %v1170 = vunpack.c.l.b16 %v96
    %v1171 = vunpack.c.h.b16 %v96
    %v1172 = vunpack.c.l.b16 %v97
    %v1173 = vunpack.c.h.b16 %v97
    %v1174 = vunpack.c.l.b16 %v98
    %v1175 = vunpack.c.h.b16 %v98
    %v1176 = vunpack.c.l.b16 %v99
    %v1177 = vunpack.c.h.b16 %v99
    %v1178 = vunpack.c.l.b16 %v100
    %v1179 = vunpack.c.h.b16 %v100
    %v1180 = vunpack.c.l.b16 %v101
    %v1181 = vunpack.c.h.b16 %v101
    %v1182 = vunpack.c.l.b16 %v102
    %v1183 = vunpack.c.h.b16 %v102
    %v1184 = vunpack.c.l.b16 %v103
    %v1185 = vunpack.c.h.b16 %v103
    %v1186 = vunpack.c.l.b16 %v104
    %v1187 = vunpack.c.h.b16 %v104
    %v1188 = vunpack.c.l.b16 %v105
    %v1189 = vunpack.c.h.b16 %v105
    %v1190 = vunpack.c.l.b16 %v106
    %v1191 = vunpack.c.h.b16 %v106
    %v1192 = vunpack.c.l.b16 %v107
    %v1193 = vunpack.c.h.b16 %v107
    %v1194 = vunpack.c.l.b16 %v108
    %v1195 = vunpack.c.h.b16 %v108
    %v1196 = vunpack.c.l.b16 %v109
    %v1197 = vunpack.c.h.b16 %v109
    %v1198 = vunpack.c.l.b16 %v110
    %v1199 = vunpack.c.h.b16 %v110
    %v1200 = vunpack.c.l.b16 %v111
    %v1201 = vunpack.c.h.b16 %v111
    %v1202 = vunpack.c.l.b16 %v112
    %v1203 = vunpack.c.h.b16 %v112
    %v1204 = vunpack.c.l.b16 %v113
    %v1205 = vunpack.c.h.b16 %v113
    %v1206 = vunpack.c.l.b16 %v114
    %v1207 = vunpack.c.h.b16 %v114
    %v1208 = vunpack.c.l.b16 %v115
    %v1209 = vunpack.c.h.b16 %v115
    %v1210 = vunpack.c.l.b16 %v116
    %v1211 = vunpack.c.h.b16 %v116
    %v1212 = vunpack.c.l.b16 %v117
    %v1213 = vunpack.c.h.b16 %v117
    %v1214 = vunpack.c.l.b16 %v118
    %v1215 = vunpack.c.h.b16 %v118
    %v1216 = vunpack.c.l.b16 %v119
    %v1217 = vunpack.c.h.b16 %v119
    %v1218 = vunpack.c.l.b16 %v120
    %v1219 = vunpack.c.h.b16 %v120
    %v1220 = vunpack.c.l.b16 %v121
    %v1221 = vunpack.c.h.b16 %v121
    %v1222 = vunpack.c.l.b16 %v122
    %v1223 = vunpack.c.h.b16 %v122
    %v1224 = vunpack.c.l.b16 %v123
    %v1225 = vunpack.c.h.b16 %v123
    %v1226 = vunpack.c.l.b16 %v124
    %v1227 = vunpack.c.h.b16 %v124
    %v1228 = vunpack.c.l.b16 %v125
    %v1229 = vunpack.c.h.b16 %v125
    %v1230 = vunpack.c.l.b16 %v126
    %v1231 = vunpack.c.h.b16 %v126
    %v1232 = vunpack.c.l.b16 %v127
    %v1233 = vunpack.c.h.b16 %v127
    %v1234 = vunpack.c.l.b16 %v128
    %v1235 = vunpack.c.h.b16 %v128
    %v1236 = vunpack.c.l.b16 %v129
    %v1237 = vunpack.c.h.b16 %v129
    %v1238 = vunpack.c.l.b16 %v130
    %v1239 = vunpack.c.h.b16 %v130
    %v1240 = vunpack.c.l.b16 %v131
    %v1241 = vunpack.c.h.b16 %v131
    %v1242 = vunpack.c.l.b16 %v132
    %v1243 = vunpack.c.h.b16 %v132
    %v1244 = vunpack.c.l.b16 %v133
    %v1245 = vunpack.c.h.b16 %v133
    %v1246 = vunpack.c.l.b16 %v134
    %v1247 = vunpack.c.h.b16 %v134
    %v1248 = vunpack.c.l.b16 %v135
    %v1249 = vunpack.c.h.b16 %v135
    %v1250 = vunpack.c.l.b16 %v136
    %v1251 = vunpack.c.h.b16 %v136
    %v1252 = vunpack.c.l.b16 %v137
    %v1253 = vunpack.c.h.b16 %v137
    %v1254 = vunpack.c.l.b16 %v138
    %v1255 = vunpack.c.h.b16 %v138
    %v1256 = vunpack.c.l.b16 %v139
    %v1257 = vunpack.c.h.b16 %v139
    %v1258 = vunpack.c.l.b16 %v140
    %v1259 = vunpack.c.h.b16 %v140
    %v1260 = vunpack.c.l.b16 %v141
    %v1261 = vunpack.c.h.b16 %v141
    %v1262 = vunpack.c.l.b16 %v142
    %v1263 = vunpack.c.h.b16 %v142
    %v1264 = vunpack.c.l.b16 %v143
    %v1265 = vunpack.c.h.b16 %v143
    %v1266 = vunpack.c.l.b16 %v144
    %v1267 = vunpack.c.h.b16 %v144
    %v1268 = vunpack.c.l.b16 %v145
    %v1269 = vunpack.c.h.b16 %v145
    %v1270 = vunpack.c.l.b16 %v146
    %v1271 = vunpack.c.h.b16 %v146
    %v1272 = vunpack.c.l.b16 %v147
    %v1273 = vunpack.c.h.b16 %v147
    %v1274 = vunpack.c.l.b16 %v148
    %v1275 = vunpack.c.h.b16 %v148
    %v1276 = vunpack.c.l.b16 %v149
    %v1277 = vunpack.c.h.b16 %v149
    %v1278 = vunpack.c.l.b16 %v150
    %v1279 = vunpack.c.h.b16 %v150
    %v1280 = vunpack.c.l.b16 %v151
    %v1281 = vunpack.c.h.b16 %v151
    %v1282 = vunpack.c.l.b16 %v152
    %v1283 = vunpack.c.h.b16 %v152
    %v1284 = vunpack.c.l.b16 %v153
    %v1285 = vunpack.c.h.b16 %v153
    %v1286 = vunpack.c.l.b16 %v154
    %v1287 = vunpack.c.h.b16 %v154
    %v1288 = vunpack.c.l.b16 %v155
    %v1289 = vunpack.c.h.b16 %v155
    %v1290 = vunpack.c.l.b16 %v156
    %v1291 = vunpack.c.h.b16 %v156
    %v1292 = vunpack.c.l.b16 %v157
    %v1293 = vunpack.c.h.b16 %v157
    %v1294 = vunpack.c.l.b16 %v158
    %v1295 = vunpack.c.h.b16 %v158
    %v1296 = vunpack.c.l.b16 %v159
    %v1297 = vunpack.c.h.b16 %v159
    %v1298 = vunpack.c.l.b16 %v160
    %v1299 = vunpack.c.h.b16 %v160
    %v1300 = vunpack.c.l.b16 %v161
    %v1301 = vunpack.c.h.b16 %v161
    %v1302 = vunpack.c.l.b16 %v162
    %v1303 = vunpack.c.h.b16 %v162
    %v1304 = vunpack.c.l.b16 %v163
    %v1305 = vunpack.c.h.b16 %v163
    %v1306 = vunpack.c.l.b16 %v164
    %v1307 = vunpack.c.h.b16 %v164
    %v1308 = vunpack.c.l.b16 %v165
    %v1309 = vunpack.c.h.b16 %v165
    %v1310 = vunpack.c.l.b16 %v166
    %v1311 = vunpack.c.h.b16 %v166
    %v1312 = vunpack.c.l.b16 %v167
    %v1313 = vunpack.c.h.b16 %v167
    %v1314 = vunpack.c.l.b16 %v168
    %v1315 = vunpack.c.h.b16 %v168
    %v1316 = vunpack.c.l.b16 %v169
    %v1317 = vunpack.c.h.b16 %v169
    %v1318 = vunpack.c.l.b16 %v170
    %v1319 = vunpack.c.h.b16 %v170
    %v1320 = vunpack.c.l.b16 %v171
    %v1321 = vunpack.c.h.b16 %v171
    %v1322 = vunpack.c.l.b16 %v172
    %v1323 = vunpack.c.h.b16 %v172
    %v1324 = vunpack.c.l.b16 %v173
    %v1325 = vunpack.c.h.b16 %v173
    %v1326 = vunpack.c.l.b16 %v174
    %v1327 = vunpack.c.h.b16 %v174
    %v1328 = vunpack.c.l.b16 %v175
    %v1329 = vunpack.c.h.b16 %v175
    %v1330 = vunpack.c.l.b16 %v176
    %v1331 = vunpack.c.h.b16 %v176
    %v1332 = vunpack.c.l.b16 %v177
    %v1333 = vunpack.c.h.b16 %v177
    %v1334 = vunpack.c.l.b16 %v178
    %v1335 = vunpack.c.h.b16 %v178
    %v1336 = vunpack.c.l.b16 %v179
    %v1337 = vunpack.c.h.b16 %v179
    %v1338 = vunpack.c.l.b16 %v180
    %v1339 = vunpack.c.h.b16 %v180
    %v1340 = vunpack.c.l.b16 %v181
    %v1341 = vunpack.c.h.b16 %v181
    %v1342 = vunpack.c.l.b16 %v182
    %v1343 = vunpack.c.h.b16 %v182
    %v1344 = vunpack.c.l.b16 %v183
    %v1345 = vunpack.c.h.b16 %v183
    %v1346 = vunpack.c.l.b16 %v184
    %v1347 = vunpack.c.h.b16 %v184
    %v1348 = vunpack.c.l.b16 %v185
    %v1349 = vunpack.c.h.b16 %v185
    %v1350 = vunpack.c.l.b16 %v186
    %v1351 = vunpack.c.h.b16 %v186
    %v1352 = vunpack.c.l.b16 %v187
    %v1353 = vunpack.c.h.b16 %v187
    %v1354 = vunpack.c.l.b16 %v188
    %v1355 = vunpack.c.h.b16 %v188
    %v1356 = vunpack.c.l.b16 %v189
    %v1357 = vunpack.c.h.b16 %v189
    %v1358 = vunpack.c.l.b16 %v190
    %v1359 = vunpack.c.h.b16 %v190
    %v1360 = vunpack.c.l.b16 %v191
    %v1361 = vunpack.c.h.b16 %v191
    %v1362 = vunpack.c.l.b16 %v192
    %v1363 = vunpack.c.h.b16 %v192
    %v1364 = vunpack.c.l.b16 %v193
    %v1365 = vunpack.c.h.b16 %v193
    %v1366 = vunpack.c.l.b16 %v194
    %v1367 = vunpack.c.h.b16 %v194
    %v1368 = vunpack.c.l.b16 %v195
    %v1369 = vunpack.c.h.b16 %v195
    %v1370 = vunpack.c.l.b16 %v196
    %v1371 = vunpack.c.h.b16 %v196
    %v1372 = vunpack.c.l.b16 %v197
    %v1373 = vunpack.c.h.b16 %v197
    %v1374 = vunpack.c.l.b16 %v198
    %v1375 = vunpack.c.h.b16 %v198
    %v1376 = vunpack.c.l.b16 %v199
    %v1377 = vunpack.c.h.b16 %v199
    %v1378 = vunpack.c.l.b16 %v200
    %v1379 = vunpack.c.h.b16 %v200
    %v1380 = vunpack.c.l.b16 %v201
    %v1381 = vunpack.c.h.b16 %v201
    %v1382 = vunpack.c.l.b16 %v202
    %v1383 = vunpack.c.h.b16 %v202
    %v1384 = vunpack.c.l.b16 %v203
    %v1385 = vunpack.c.h.b16 %v203
    %v1386 = vunpack.c.l.b16 %v204
    %v1387 = vunpack.c.h.b16 %v204
    %v1388 = vunpack.c.l.b16 %v205
    %v1389 = vunpack.c.h.b16 %v205
    %v1390 = vunpack.c.l.b16 %v206
    %v1391 = vunpack.c.h.b16 %v206
    %v1392 = vunpack.c.l.b16 %v207
    %v1393 = vunpack.c.h.b16 %v207
    %v1394 = vunpack.c.l.b16 %v208
    %v1395 = vunpack.c.h.b16 %v208
    %v1396 = vunpack.c.l.b16 %v209
    %v1397 = vunpack.c.h.b16 %v209
    %v1398 = vunpack.c.l.b16 %v210
    %v1399 = vunpack.c.h.b16 %v210
    %v1400 = vunpack.c.l.b16 %v211
    %v1401 = vunpack.c.h.b16 %v211
    %v1402 = vunpack.c.l.b16 %v212
    %v1403 = vunpack.c.h.b16 %v212
    %v1404 = vunpack.c.l.b16 %v213
    %v1405 = vunpack.c.h.b16 %v213
    %v1406 = vunpack.c.l.b16 %v214
    %v1407 = vunpack.c.h.b16 %v214
    %v1408 = vunpack.c.l.b16 %v215
    %v1409 = vunpack.c.h.b16 %v215
    %v1410 = vunpack.c.l.b16 %v216
    %v1411 = vunpack.c.h.b16 %v216
    %v1412 = vunpack.c.l.b16 %v217
    %v1413 = vunpack.c.h.b16 %v217
    %v1414 = vunpack.c.l.b16 %v218
    %v1415 = vunpack.c.h.b16 %v218
    %v1416 = vunpack.c.l.b16 %v219
    %v1417 = vunpack.c.h.b16 %v219
    %v1418 = vunpack.c.l.b16 %v220
    %v1419 = vunpack.c.h.b16 %v220
    %v1420 = vunpack.c.l.b16 %v221
    %v1421 = vunpack.c.h.b16 %v221
    %v1422 = vunpack.c.l.b16 %v222
    %v1423 = vunpack.c.h.b16 %v222
    %v1424 = vunpack.c.l.b16 %v223
    %v1425 = vunpack.c.h.b16 %v223
    %v1426 = vunpack.c.l.b16 %v224
    %v1427 = vunpack.c.h.b16 %v224
    %v1428 = vunpack.c.l.b16 %v225
    %v1429 = vunpack.c.h.b16 %v225
    %v1430 = vunpack.c.l.b16 %v226
    %v1431 = vunpack.c.h.b16 %v226
    %v1432 = vunpack.c.l.b16 %v227
    %v1433 = vunpack.c.h.b16 %v227
    %v1434 = vunpack.c.l.b16 %v228
    %v1435 = vunpack.c.h.b16 %v228
    %v1436 = vunpack.c.l.b16 %v229
    %v1437 = vunpack.c.h.b16 %v229
    %v1438 = vunpack.c.l.b16 %v230
    %v1439 = vunpack.c.h.b16 %v230
    %v1440 = vunpack.c.l.b16 %v231
    %v1441 = vunpack.c.h.b16 %v231
    %v1442 = vunpack.c.l.b16 %v232
    %v1443 = vunpack.c.h.b16 %v232
    %v1444 = vunpack.c.l.b16 %v233
    %v1445 = vunpack.c.h.b16 %v233
    %v1446 = vunpack.c.l.b16 %v234
    %v1447 = vunpack.c.h.b16 %v234
    %v1448 = vunpack.c.l.b16 %v235
    %v1449 = vunpack.c.h.b16 %v235
    %v1450 = vunpack.c.l.b16 %v236
    %v1451 = vunpack.c.h.b16 %v236
    %v1452 = vunpack.c.l.b16 %v237
    %v1453 = vunpack.c.h.b16 %v237
    %v1454 = vunpack.c.l.b16 %v238
    %v1455 = vunpack.c.h.b16 %v238
    %v1456 = vunpack.c.l.b16 %v239
    %v1457 = vunpack.c.h.b16 %v239
    %v1458 = vunpack.c.l.b16 %v240
    %v1459 = vunpack.c.h.b16 %v240
    %v1460 = vunpack.c.l.b16 %v241
    %v1461 = vunpack.c.h.b16 %v241
    %v1462 = vunpack.c.l.b16 %v242
    %v1463 = vunpack.c.h.b16 %v242
    %v1464 = vunpack.c.l.b16 %v243
    %v1465 = vunpack.c.h.b16 %v243
    %v1466 = vunpack.c.l.b16 %v244
    %v1467 = vunpack.c.h.b16 %v244
    %v1468 = vunpack.c.l.b16 %v245
    %v1469 = vunpack.c.h.b16 %v245
    %v1470 = vunpack.c.l.b16 %v246
    %v1471 = vunpack.c.h.b16 %v246
    %v1472 = vunpack.c.l.b16 %v247
    %v1473 = vunpack.c.h.b16 %v247
    %v1474 = vunpack.c.l.b16 %v248
    %v1475 = vunpack.c.h.b16 %v248
    %v1476 = vunpack.c.l.b16 %v249
    %v1477 = vunpack.c.h.b16 %v249
    %v1478 = vunpack.c.l.b16 %v250
    %v1479 = vunpack.c.h.b16 %v250
    %v1480 = vunpack.c.l.b16 %v251
    %v1481 = vunpack.c.h.b16 %v251
    %v1482 = vunpack.c.l.b16 %v252
    %v1483 = vunpack.c.h.b16 %v252
    %v1484 = vunpack.c.l.b16 %v253
    %v1485 = vunpack.c.h.b16 %v253
    %v1486 = vunpack.c.l.b16 %v254
    %v1487 = vunpack.c.h.b16 %v254
    %v1488 = vunpack.c.l.b16 %v255
    %v1489 = vunpack.c.h.b16 %v255
    %v1490 = vunpack.c.l.b16 %v256
    %v1491 = vunpack.c.h.b16 %v256
    %v1492 = vunpack.c.l.b16 %v257
    %v1493 = vunpack.c.h.b16 %v257
    %v1494 = vunpack.c.l.b16 %v258
    %v1495 = vunpack.c.h.b16 %v258
    %v1496 = vunpack.c.l.b16 %v259
    %v1497 = vunpack.c.h.b16 %v259
    %v1498 = vunpack.c.l.b16 %v260
    %v1499 = vunpack.c.h.b16 %v260
    %v1500 = vunpack.c.l.b16 %v261
    %v1501 = vunpack.c.h.b16 %v261
    %v1502 = vunpack.c.l.b16 %v262
    %v1503 = vunpack.c.h.b16 %v262
    %v1504 = vunpack.c.l.b16 %v263
    %v1505 = vunpack.c.h.b16 %v263
    %v1506 = vunpack.c.l.b16 %v264
    %v1507 = vunpack.c.h.b16 %v264
    %v1508 = vunpack.c.l.b16 %v265
    %v1509 = vunpack.c.h.b16 %v265
    %v1510 = vunpack.c.l.b16 %v266
    %v1511 = vunpack.c.h.b16 %v266
    %v1512 = vunpack.c.l.b16 %v267
    %v1513 = vunpack.c.h.b16 %v267
    %v1514 = vunpack.c.l.b16 %v268
    %v1515 = vunpack.c.h.b16 %v268
    %v1516 = vunpack.c.l.b16 %v269
    %v1517 = vunpack.c.h.b16 %v269
    %v1518 = vunpack.c.l.b16 %v270
    %v1519 = vunpack.c.h.b16 %v270
    %v1520 = vunpack.c.l.b16 %v271
    %v1521 = vunpack.c.h.b16 %v271
    %v1522 = vunpack.c.l.b16 %v272
    %v1523 = vunpack.c.h.b16 %v272
    %v1524 = vunpack.c.l.b16 %v273
    %v1525 = vunpack.c.h.b16 %v273
    %v1526 = vunpack.c.l.b16 %v274
    %v1527 = vunpack.c.h.b16 %v274
    %v1528 = vunpack.c.l.b16 %v275
    %v1529 = vunpack.c.h.b16 %v275
    %v1530 = vunpack.c.l.b16 %v276
    %v1531 = vunpack.c.h.b16 %v276
    %v1532 = vunpack.c.l.b16 %v277
    %v1533 = vunpack.c.h.b16 %v277
    %v1534 = vunpack.c.l.b16 %v278
    %v1535 = vunpack.c.h.b16 %v278
    %v1536 = vunpack.c.l.b16 %v279
    %v1537 = vunpack.c.h.b16 %v279
    %v1538 = vunpack.c.l.b16 %v280
    %v1539 = vunpack.c.h.b16 %v280
    %v1540 = vunpack.c.l.b16 %v281
    %v1541 = vunpack.c.h.b16 %v281
    %v1542 = vunpack.c.l.b16 %v282
    %v1543 = vunpack.c.h.b16 %v282
    %v1544 = vunpack.c.l.b16 %v283
    %v1545 = vunpack.c.h.b16 %v283
    %v1546 = vunpack.c.l.b16 %v284
    %v1547 = vunpack.c.h.b16 %v284
    %v1548 = vunpack.c.l.b16 %v285
    %v1549 = vunpack.c.h.b16 %v285
    %v1550 = vunpack.c.l.b16 %v286
    %v1551 = vunpack.c.h.b16 %v286
    %v1552 = vunpack.c.l.b16 %v287
    %v1553 = vunpack.c.h.b16 %v287
    %v1554 = vunpack.c.l.b16 %v288
    %v1555 = vunpack.c.h.b16 %v288
    %v1556 = vunpack.c.l.b16 %v289
    %v1557 = vunpack.c.h.b16 %v289
    %v1558 = vunpack.c.l.b16 %v290
    %v1559 = vunpack.c.h.b16 %v290
    %v1560 = vunpack.c.l.b16 %v291
    %v1561 = vunpack.c.h.b16 %v291
    %v1562 = vunpack.c.l.b16 %v292
    %v1563 = vunpack.c.h.b16 %v292
    %v1564 = vunpack.c.l.b16 %v293
    %v1565 = vunpack.c.h.b16 %v293
    %v1566 = vunpack.c.l.b16 %v294
    %v1567 = vunpack.c.h.b16 %v294
    %v1568 = vunpack.c.l.b16 %v295
    %v1569 = vunpack.c.h.b16 %v295
    %v1570 = vunpack.c.l.b16 %v296
    %v1571 = vunpack.c.h.b16 %v296
    %v1572 = vunpack.c.l.b16 %v297
    %v1573 = vunpack.c.h.b16 %v297
    %v1574 = vunpack.c.l.b16 %v298
    %v1575 = vunpack.c.h.b16 %v298
    %v1576 = vunpack.c.l.b16 %v299
    %v1577 = vunpack.c.h.b16 %v299
    %v1578 = vunpack.c.l.b16 %v300
    %v1579 = vunpack.c.h.b16 %v300
    %v1580 = vunpack.c.l.b16 %v301
    %v1581 = vunpack.c.h.b16 %v301
    %v1582 = vunpack.c.l.b16 %v302
    %v1583 = vunpack.c.h.b16 %v302
    %v1584 = vunpack.c.l.b16 %v303
    %v1585 = vunpack.c.h.b16 %v303
    %v1586 = vunpack.c.l.b16 %v304
    %v1587 = vunpack.c.h.b16 %v304
    %v1588 = vunpack.c.l.b16 %v305
    %v1589 = vunpack.c.h.b16 %v305
    %v1590 = vunpack.c.l.b16 %v306
    %v1591 = vunpack.c.h.b16 %v306
    %v1592 = vunpack.c.l.b16 %v307
    %v1593 = vunpack.c.h.b16 %v307
    %v1594 = vunpack.c.l.b16 %v308
    %v1595 = vunpack.c.h.b16 %v308
    %v1596 = vunpack.c.l.b16 %v309
    %v1597 = vunpack.c.h.b16 %v309
    %v1598 = vunpack.c.l.b16 %v310
    %v1599 = vunpack.c.h.b16 %v310
    %v1600 = vunpack.c.l.b16 %v311
    %v1601 = vunpack.c.h.b16 %v311
    %v1602 = vunpack.c.l.b16 %v312
    %v1603 = vunpack.c.h.b16 %v312
    %v1604 = vunpack.c.l.b16 %v313
    %v1605 = vunpack.c.h.b16 %v313
    %v1606 = vunpack.c.l.b16 %v314
    %v1607 = vunpack.c.h.b16 %v314
    %v1608 = vunpack.c.l.b16 %v315
    %v1609 = vunpack.c.h.b16 %v315
    %v1610 = vunpack.c.l.b16 %v316
    %v1611 = vunpack.c.h.b16 %v316
    %v1612 = vunpack.c.l.b16 %v317
    %v1613 = vunpack.c.h.b16 %v317
    %v1614 = vunpack.c.l.b16 %v318
    %v1615 = vunpack.c.h.b16 %v318
    %v1616 = vunpack.c.l.b16 %v319
    %v1617 = vunpack.c.h.b16 %v319
    %v1618 = vunpack.c.l.b16 %v320
    %v1619 = vunpack.c.h.b16 %v320
    %v1620 = vunpack.c.l.b16 %v321
    %v1621 = vunpack.c.h.b16 %v321
    %v1622 = vunpack.c.l.b16 %v322
    %v1623 = vunpack.c.h.b16 %v322
    %v1624 = vunpack.c.l.b16 %v323
    %v1625 = vunpack.c.h.b16 %v323
    %v1626 = vunpack.c.l.b16 %v324
    %v1627 = vunpack.c.h.b16 %v324
    %v1628 = vunpack.c.l.b16 %v325
    %v1629 = vunpack.c.h.b16 %v325
    %v1630 = vunpack.c.l.b16 %v326
    %v1631 = vunpack.c.h.b16 %v326
    %v1632 = vunpack.c.l.b16 %v327
    %v1633 = vunpack.c.h.b16 %v327
    %v1634 = vunpack.c.l.b16 %v328
    %v1635 = vunpack.c.h.b16 %v328
    %v1636 = vunpack.c.l.b16 %v329
    %v1637 = vunpack.c.h.b16 %v329
    %v1638 = vunpack.c.l.b16 %v330
    %v1639 = vunpack.c.h.b16 %v330
    %v1640 = vunpack.c.l.b16 %v331
    %v1641 = vunpack.c.h.b16 %v331
    %v1642 = vunpack.c.l.b16 %v332
    %v1643 = vunpack.c.h.b16 %v332
    %v1644 = vunpack.c.l.b16 %v333
    %v1645 = vunpack.c.h.b16 %v333
    %v1646 = vunpack.c.l.b16 %v334
    %v1647 = vunpack.c.h.b16 %v334
    %v1648 = vunpack.c.l.b16 %v335
    %v1649 = vunpack.c.h.b16 %v335
    %v1650 = vunpack.c.l.b16 %v336
    %v1651 = vunpack.c.h.b16 %v336
    %v1652 = vunpack.c.l.b16 %v337
    %v1653 = vunpack.c.h.b16 %v337
    %v1654 = vunpack.c.l.b16 %v338
    %v1655 = vunpack.c.h.b16 %v338
    %v1656 = vunpack.c.l.b16 %v339
    %v1657 = vunpack.c.h.b16 %v339
    %v1658 = vunpack.c.l.b16 %v340
    %v1659 = vunpack.c.h.b16 %v340
    %v1660 = vunpack.c.l.b16 %v341
    %v1661 = vunpack.c.h.b16 %v341
    %v1662 = vunpack.c.l.b16 %v342
    %v1663 = vunpack.c.h.b16 %v342
    %v1664 = vunpack.c.l.b16 %v343
    %v1665 = vunpack.c.h.b16 %v343
    %v1666 = vunpack.c.l.b16 %v344
    %v1667 = vunpack.c.h.b16 %v344
    %v1668 = vunpack.c.l.b16 %v345
    %v1669 = vunpack.c.h.b16 %v345
    %v1670 = vunpack.c.l.b16 %v346
    %v1671 = vunpack.c.h.b16 %v346
    %v1672 = vunpack.c.l.b16 %v347
    %v1673 = vunpack.c.h.b16 %v347
    %v1674 = vunpack.c.l.b16 %v348
    %v1675 = vunpack.c.h.b16 %v348
    %v1676 = vunpack.c.l.b16 %v349
    %v1677 = vunpack.c.h.b16 %v349
    %v1678 = vunpack.c.l.b16 %v350
    %v1679 = vunpack.c.h.b16 %v350
    %v1680 = vunpack.c.l.b16 %v351
    %v1681 = vunpack.c.h.b16 %v351
    %v1682 = vunpack.c.l.b16 %v352
    %v1683 = vunpack.c.h.b16 %v352
    %v1684 = vunpack.c.l.b16 %v353
    %v1685 = vunpack.c.h.b16 %v353
    %v1686 = vunpack.c.l.b16 %v354
    %v1687 = vunpack.c.h.b16 %v354
    %v1688 = vunpack.c.l.b16 %v355
    %v1689 = vunpack.c.h.b16 %v355
    %v1690 = vunpack.c.l.b16 %v356
    %v1691 = vunpack.c.h.b16 %v356
    %v1692 = vunpack.c.l.b16 %v357
    %v1693 = vunpack.c.h.b16 %v357
    %v1694 = vunpack.c.l.b16 %v358
    %v1695 = vunpack.c.h.b16 %v358
    %v1696 = vunpack.c.l.b16 %v359
    %v1697 = vunpack.c.h.b16 %v359
    %v1698 = vunpack.c.l.b16 %v360
    %v1699 = vunpack.c.h.b16 %v360
    %v1700 = vunpack.c.l.b16 %v361
    %v1701 = vunpack.c.h.b16 %v361
    %v1702 = vunpack.c.l.b16 %v362
    %v1703 = vunpack.c.h.b16 %v362
    %v1704 = vunpack.c.l.b16 %v363
    %v1705 = vunpack.c.h.b16 %v363
    %v1706 = vunpack.c.l.b16 %v364
    %v1707 = vunpack.c.h.b16 %v364
    %v1708 = vunpack.c.l.b16 %v365
    %v1709 = vunpack.c.h.b16 %v365
    %v1710 = vunpack.c.l.b16 %v366
    %v1711 = vunpack.c.h.b16 %v366
    %v1712 = vunpack.c.l.b16 %v367
    %v1713 = vunpack.c.h.b16 %v367
    %v1714 = vunpack.c.l.b16 %v368
    %v1715 = vunpack.c.h.b16 %v368
    %v1716 = vunpack.c.l.b16 %v369
    %v1717 = vunpack.c.h.b16 %v369
    %v1718 = vunpack.c.l.b16 %v370
    %v1719 = vunpack.c.h.b16 %v370
    %v1720 = vunpack.c.l.b16 %v371
    %v1721 = vunpack.c.h.b16 %v371
    %v1722 = vunpack.c.l.b16 %v372
    %v1723 = vunpack.c.h.b16 %v372
    %v1724 = vunpack.c.l.b16 %v373
    %v1725 = vunpack.c.h.b16 %v373
    %v1726 = vunpack.c.l.b16 %v374
    %v1727 = vunpack.c.h.b16 %v374
    %v1728 = vunpack.c.l.b16 %v375
    %v1729 = vunpack.c.h.b16 %v375
    %v1730 = vunpack.c.l.b16 %v376
    %v1731 = vunpack.c.h.b16 %v376
    %v1732 = vunpack.c.l.b16 %v377
    %v1733 = vunpack.c.h.b16 %v377
    %v1734 = vunpack.c.l.b16 %v378
    %v1735 = vunpack.c.h.b16 %v378
    %v1736 = vunpack.c.l.b16 %v379
    %v1737 = vunpack.c.h.b16 %v379
    %v1738 = vunpack.c.l.b16 %v380
    %v1739 = vunpack.c.h.b16 %v380
    %v1740 = vunpack.c.l.b16 %v381
    %v1741 = vunpack.c.h.b16 %v381
    %v1742 = vunpack.c.l.b16 %v382
    %v1743 = vunpack.c.h.b16 %v382
    %v1744 = vunpack.c.l.b16 %v383
    %v1745 = vunpack.c.h.b16 %v383
    %v1746 = vunpack.c.l.b16 %v384
    %v1747 = vunpack.c.h.b16 %v384
    %v1748 = vunpack.c.l.b16 %v385
    %v1749 = vunpack.c.h.b16 %v385
    %v1750 = vunpack.c.l.b16 %v386
    %v1751 = vunpack.c.h.b16 %v386
    %v1752 = vunpack.c.l.b16 %v387
    %v1753 = vunpack.c.h.b16 %v387
    %v1754 = vunpack.c.l.b16 %v388
    %v1755 = vunpack.c.h.b16 %v388
    %v1756 = vunpack.c.l.b16 %v389
    %v1757 = vunpack.c.h.b16 %v389
    %v1758 = vunpack.c.l.b16 %v390
    %v1759 = vunpack.c.h.b16 %v390
    %v1760 = vunpack.c.l.b16 %v391
    %v1761 = vunpack.c.h.b16 %v391
    %v1762 = vunpack.c.l.b16 %v392
    %v1763 = vunpack.c.h.b16 %v392
    %v1764 = vunpack.c.l.b16 %v393
    %v1765 = vunpack.c.h.b16 %v393
    %v1766 = vunpack.c.l.b16 %v394
    %v1767 = vunpack.c.h.b16 %v394
    %v1768 = vunpack.c.l.b16 %v395
    %v1769 = vunpack.c.h.b16 %v395
    %v1770 = vunpack.c.l.b16 %v396
    %v1771 = vunpack.c.h.b16 %v396
    %v1772 = vunpack.c.l.b16 %v397
    %v1773 = vunpack.c.h.b16 %v397
    %v1774 = vunpack.c.l.b16 %v398
    %v1775 = vunpack.c.h.b16 %v398
    %v1776 = vunpack.c.l.b16 %v399
    %v1777 = vunpack.c.h.b16 %v399
    %v1778 = vunpack.c.l.b16 %v400
    %v1779 = vunpack.c.h.b16 %v400
    %v1780 = vunpack.c.l.b16 %v401
    %v1781 = vunpack.c.h.b16 %v401
    %v1782 = vunpack.c.l.b16 %v402
    %v1783 = vunpack.c.h.b16 %v402
    %v1784 = vunpack.c.l.b16 %v403
    %v1785 = vunpack.c.h.b16 %v403
    %v1786 = vunpack.c.l.b16 %v404
    %v1787 = vunpack.c.h.b16 %v404
    %v1788 = vunpack.c.l.b16 %v405
    %v1789 = vunpack.c.h.b16 %v405
    %v1790 = vunpack.c.l.b16 %v406
    %v1791 = vunpack.c.h.b16 %v406
    %v1792 = vunpack.c.l.b16 %v407
    %v1793 = vunpack.c.h.b16 %v407
    %v1794 = vunpack.c.l.b16 %v408
    %v1795 = vunpack.c.h.b16 %v408
    %v1796 = vunpack.c.l.b16 %v409
    %v1797 = vunpack.c.h.b16 %v409
    %v1798 = vunpack.c.l.b16 %v410
    %v1799 = vunpack.c.h.b16 %v410
    %v1800 = vunpack.c.l.b16 %v411
    %v1801 = vunpack.c.h.b16 %v411
    %v1802 = vunpack.c.l.b16 %v412
    %v1803 = vunpack.c.h.b16 %v412
    %v1804 = vunpack.c.l.b16 %v413
    %v1805 = vunpack.c.h.b16 %v413
    %v1806 = vunpack.c.l.b16 %v414
    %v1807 = vunpack.c.h.b16 %v414
    %v1808 = vunpack.c.l.b16 %v415
    %v1809 = vunpack.c.h.b16 %v415
    %v1810 = vunpack.c.l.b16 %v416
    %v1811 = vunpack.c.h.b16 %v416
    %v1812 = vunpack.c.l.b16 %v417
    %v1813 = vunpack.c.h.b16 %v417
    %v1814 = vunpack.c.l.b16 %v418
    %v1815 = vunpack.c.h.b16 %v418
    %v1816 = vunpack.c.l.b16 %v419
    %v1817 = vunpack.c.h.b16 %v419
    %v1818 = vunpack.c.l.b16 %v420
    %v1819 = vunpack.c.h.b16 %v420
    %v1820 = vunpack.c.l.b16 %v421
    %v1821 = vunpack.c.h.b16 %v421
    %v1822 = vunpack.c.l.b16 %v422
    %v1823 = vunpack.c.h.b16 %v422
    %v1824 = vunpack.c.l.b16 %v423
    %v1825 = vunpack.c.h.b16 %v423
    %v1826 = vunpack.c.l.b16 %v424
    %v1827 = vunpack.c.h.b16 %v424
    %v1828 = vunpack.c.l.b16 %v425
    %v1829 = vunpack.c.h.b16 %v425
    %v1830 = vunpack.c.l.b16 %v426
    %v1831 = vunpack.c.h.b16 %v426
    %v1832 = vunpack.c.l.b16 %v427
    %v1833 = vunpack.c.h.b16 %v427
    %v1834 = vunpack.c.l.b16 %v428
    %v1835 = vunpack.c.h.b16 %v428
    %v1836 = vunpack.c.l.b16 %v429
    %v1837 = vunpack.c.h.b16 %v429
    %v1838 = vunpack.c.l.b16 %v430
    %v1839 = vunpack.c.h.b16 %v430
    %v1840 = vunpack.c.l.b16 %v431
    %v1841 = vunpack.c.h.b16 %v431
    %v1842 = vunpack.c.l.b16 %v432
    %v1843 = vunpack.c.h.b16 %v432
    %v1844 = vunpack.c.l.b16 %v433
    %v1845 = vunpack.c.h.b16 %v433
    %v1846 = vunpack.c.l.b16 %v434
    %v1847 = vunpack.c.h.b16 %v434
    %v1848 = vunpack.c.l.b16 %v435
    %v1849 = vunpack.c.h.b16 %v435
    %v1850 = vunpack.c.l.b16 %v436
    %v1851 = vunpack.c.h.b16 %v436
    %v1852 = vunpack.c.l.b16 %v437
    %v1853 = vunpack.c.h.b16 %v437
    %v1854 = vunpack.c.l.b16 %v438
    %v1855 = vunpack.c.h.b16 %v438
    %v1856 = vunpack.c.l.b16 %v439
    %v1857 = vunpack.c.h.b16 %v439
    %v1858 = vunpack.c.l.b16 %v440
    %v1859 = vunpack.c.h.b16 %v440
    %v1860 = vunpack.c.l.b16 %v441
    %v1861 = vunpack.c.h.b16 %v441
    %v1862 = vunpack.c.l.b16 %v442
    %v1863 = vunpack.c.h.b16 %v442
    %v1864 = vunpack.c.l.b16 %v443
    %v1865 = vunpack.c.h.b16 %v443
    %v1866 = vunpack.c.l.b16 %v444
    %v1867 = vunpack.c.h.b16 %v444
    %v1868 = vunpack.c.l.b16 %v445
    %v1869 = vunpack.c.h.b16 %v445
    %v1870 = vunpack.c.l.b16 %v446
    %v1871 = vunpack.c.h.b16 %v446
    %v1872 = vunpack.c.l.b16 %v447
    %v1873 = vunpack.c.h.b16 %v447
    %v1874 = vunpack.c.l.b16 %v448
    %v1875 = vunpack.c.h.b16 %v448
    %v1876 = vunpack.c.l.b16 %v449
    %v1877 = vunpack.c.h.b16 %v449
    %v1878 = vunpack.c.l.b16 %v450
    %v1879 = vunpack.c.h.b16 %v450
    %v1880 = vunpack.c.l.b16 %v451
    %v1881 = vunpack.c.h.b16 %v451
    %v1882 = vunpack.c.l.b16 %v452
    %v1883 = vunpack.c.h.b16 %v452
    %v1884 = vunpack.c.l.b16 %v453
    %v1885 = vunpack.c.h.b16 %v453
    %v1886 = vunpack.c.l.b16 %v454
    %v1887 = vunpack.c.h.b16 %v454
    %v1888 = vunpack.c.l.b16 %v455
    %v1889 = vunpack.c.h.b16 %v455
    %v1890 = vunpack.c.l.b16 %v456
    %v1891 = vunpack.c.h.b16 %v456
    %v1892 = vunpack.c.l.b16 %v457
    %v1893 = vunpack.c.h.b16 %v457
    %v1894 = vunpack.c.l.b16 %v458
    %v1895 = vunpack.c.h.b16 %v458
    %v1896 = vunpack.c.l.b16 %v459
    %v1897 = vunpack.c.h.b16 %v459
    %v1898 = vunpack.c.l.b16 %v460
    %v1899 = vunpack.c.h.b16 %v460
    %v1900 = vunpack.c.l.b16 %v461
    %v1901 = vunpack.c.h.b16 %v461
    %v1902 = vunpack.c.l.b16 %v462
    %v1903 = vunpack.c.h.b16 %v462
    %v1904 = vunpack.c.l.b16 %v463
    %v1905 = vunpack.c.h.b16 %v463
    %v1906 = vunpack.c.l.b16 %v464
    %v1907 = vunpack.c.h.b16 %v464
    %v1908 = vunpack.c.l.b16 %v465
    %v1909 = vunpack.c.h.b16 %v465
    %v1910 = vunpack.c.l.b16 %v466
    %v1911 = vunpack.c.h.b16 %v466
    %v1912 = vunpack.c.l.b16 %v467
    %v1913 = vunpack.c.h.b16 %v467
    %v1914 = vunpack.c.l.b16 %v468
    %v1915 = vunpack.c.h.b16 %v468
    %v1916 = vunpack.c.l.b16 %v469
    %v1917 = vunpack.c.h.b16 %v469
    %v1918 = vunpack.c.l.b16 %v470
    %v1919 = vunpack.c.h.b16 %v470
    %v1920 = vunpack.c.l.b16 %v471
    %v1921 = vunpack.c.h.b16 %v471
    %v1922 = vunpack.c.l.b16 %v472
    %v1923 = vunpack.c.h.b16 %v472
    %v1924 = vunpack.c.l.b16 %v473
    %v1925 = vunpack.c.h.b16 %v473
    %v1926 = vunpack.c.l.b16 %v474
    %v1927 = vunpack.c.h.b16 %v474
    %v1928 = vunpack.c.l.b16 %v475
    %v1929 = vunpack.c.h.b16 %v475
    %v1930 = vunpack.c.l.b16 %v476
    %v1931 = vunpack.c.h.b16 %v476
    %v1932 = vunpack.c.l.b16 %v477
    %v1933 = vunpack.c.h.b16 %v477
    %v1934 = vunpack.c.l.b16 %v478
    %v1935 = vunpack.c.h.b16 %v478
    %v1936 = vunpack.c.l.b16 %v479
    %v1937 = vunpack.c.h.b16 %v479
    %v1938 = vunpack.c.l.b16 %v480
    %v1939 = vunpack.c.h.b16 %v480
    %v1940 = vunpack.c.l.b16 %v481
    %v1941 = vunpack.c.h.b16 %v481
    %v1942 = vunpack.c.l.b16 %v482
    %v1943 = vunpack.c.h.b16 %v482
    %v1944 = vunpack.c.l.b16 %v483
    %v1945 = vunpack.c.h.b16 %v483
    %v1946 = vunpack.c.l.b16 %v484
    %v1947 = vunpack.c.h.b16 %v484
    %v1948 = vunpack.c.l.b16 %v485
    %v1949 = vunpack.c.h.b16 %v485
    %v1950 = vunpack.c.l.b16 %v486
    %v1951 = vunpack.c.h.b16 %v486
    %v1952 = vunpack.c.l.b16 %v487
    %v1953 = vunpack.c.h.b16 %v487
    %v1954 = vunpack.c.l.b16 %v488
    %v1955 = vunpack.c.h.b16 %v488
    %v1956 = vunpack.c.l.b16 %v489
    %v1957 = vunpack.c.h.b16 %v489
    %v1958 = vunpack.c.l.b16 %v490
    %v1959 = vunpack.c.h.b16 %v490
    %v1960 = vunpack.c.l.b16 %v491
    %v1961 = vunpack.c.h.b16 %v491
    %v1962 = vunpack.c.l.b16 %v492
    %v1963 = vunpack.c.h.b16 %v492
    %v1964 = vunpack.c.l.b16 %v493
    %v1965 = vunpack.c.h.b16 %v493
    %v1966 = vunpack.c.l.b16 %v494
    %v1967 = vunpack.c.h.b16 %v494
    %v1968 = vunpack.c.l.b16 %v495
    %v1969 = vunpack.c.h.b16 %v495
    %v1970 = vunpack.c.l.b16 %v496
    %v1971 = vunpack.c.h.b16 %v496
    %v1972 = vunpack.c.l.b16 %v497
    %v1973 = vunpack.c.h.b16 %v497
    %v1974 = vunpack.c.l.b16 %v498
    %v1975 = vunpack.c.h.b16 %v498
    %v1976 = vunpack.c.l.b16 %v499
    %v1977 = vunpack.c.h.b16 %v499
    %v1978 = vunpack.c.l.b16 %v500
    %v1979 = vunpack.c.h.b16 %v500
    %v1980 = vunpack.c.l.b16 %v501
    %v1981 = vunpack.c.h.b16 %v501
    %v1982 = vunpack.c.l.b16 %v502
    %v1983 = vunpack.c.h.b16 %v502
    %v1984 = vunpack.c.l.b16 %v503
    %v1985 = vunpack.c.h.b16 %v503
    %v1986 = vunpack.c.l.b16 %v504
    %v1987 = vunpack.c.h.b16 %v504
    %v1988 = vunpack.c.l.b16 %v505
    %v1989 = vunpack.c.h.b16 %v505
    %v1990 = vunpack.c.l.b16 %v506
    %v1991 = vunpack.c.h.b16 %v506
    %v1992 = vunpack.c.l.b16 %v507
    %v1993 = vunpack.c.h.b16 %v507
    %v1994 = vunpack.c.l.b16 %v508
    %v1995 = vunpack.c.h.b16 %v508
    %v1996 = vunpack.c.l.b16 %v509
    %v1997 = vunpack.c.h.b16 %v509
    %v1998 = vunpack.c.l.b16 %v510
    %v1999 = vunpack.c.h.b16 %v510
    %v2000 = vunpack.c.l.b16 %v511
    %v2001 = vunpack.c.h.b16 %v511
    %v2002 = vunpack.c.l.b16 %v512
    %v2003 = vunpack.c.h.b16 %v512
    %v2004 = vunpack.c.l.b16 %v513
    %v2005 = vunpack.c.h.b16 %v513
    %v2006 = vunpack.c.l.b16 %v514
    %v2007 = vunpack.c.h.b16 %v514
    %v2008 = vunpack.c.l.b16 %v515
    %v2009 = vunpack.c.h.b16 %v515
    %v2010 = vunpack.c.l.b16 %v516
    %v2011 = vunpack.c.h.b16 %v516
    %v2012 = vunpack.c.l.b16 %v517
    %v2013 = vunpack.c.h.b16 %v517
    %v2014 = vunpack.c.l.b16 %v518
    %v2015 = vunpack.c.h.b16 %v518
    %v2016 = vunpack.c.l.b16 %v519
    %v2017 = vunpack.c.h.b16 %v519
    %v2018 = vunpack.c.l.b16 %v520
    %v2019 = vunpack.c.h.b16 %v520
    %v2020 = vunpack.c.l.b16 %v521
    %v2021 = vunpack.c.h.b16 %v521
    %v2022 = vunpack.c.l.b16 %v522
    %v2023 = vunpack.c.h.b16 %v522
    %v2024 = vunpack.c.l.b16 %v523
    %v2025 = vunpack.c.h.b16 %v523
    %v2026 = vunpack.c.l.b16 %v524
    %v2027 = vunpack.c.h.b16 %v524
    %v2028 = vunpack.c.l.b16 %v525
    %v2029 = vunpack.c.h.b16 %v525
    %v2030 = vunpack.c.l.b16 %v526
    %v2031 = vunpack.c.h.b16 %v526
    %v2032 = vunpack.c.l.b16 %v527
    %v2033 = vunpack.c.h.b16 %v527
    %v2034 = vunpack.c.l.b16 %v528
    %v2035 = vunpack.c.h.b16 %v528
    %v2036 = vunpack.c.l.b16 %v529
    %v2037 = vunpack.c.h.b16 %v529
    %v2038 = vunpack.c.l.b16 %v530
    %v2039 = vunpack.c.h.b16 %v530
    %v2040 = vunpack.c.l.b16 %v531
    %v2041 = vunpack.c.h.b16 %v531
    %v2042 = vunpack.c.l.b16 %v532
    %v2043 = vunpack.c.h.b16 %v532
    %v2044 = vunpack.c.l.b16 %v533
    %v2045 = vunpack.c.h.b16 %v533
    %v2046 = vunpack.c.l.b16 %v534
    %v2047 = vunpack.c.h.b16 %v534
    %v2048 = vunpack.c.l.b16 %v535
    %v2049 = vunpack.c.h.b16 %v535
    %v2050 = vunpack.c.l.b16 %v536
    %v2051 = vunpack.c.h.b16 %v536
    %v2052 = vunpack.c.l.b16 %v537
    %v2053 = vunpack.c.h.b16 %v537
    %v2054 = vunpack.c.l.b16 %v538
    %v2055 = vunpack.c.h.b16 %v538
    %v2056 = vunpack.c.l.b16 %v539
    %v2057 = vunpack.c.h.b16 %v539
    %v2058 = vunpack.c.l.b16 %v540
    %v2059 = vunpack.c.h.b16 %v540
    %v2060 = vunpack.c.l.b16 %v541
    %v2061 = vunpack.c.h.b16 %v541
    %v2062 = vunpack.c.l.b16 %v542
    %v2063 = vunpack.c.h.b16 %v542
    %v2064 = vunpack.c.l.b16 %v543
    %v2065 = vunpack.c.h.b16 %v543
    %v2066 = vunpack.c.l.b16 %v544
    %v2067 = vunpack.c.h.b16 %v544
    %v2068 = vunpack.c.l.b16 %v545
    %v2069 = vunpack.c.h.b16 %v545
    %v2070 = vunpack.c.l.b16 %v546
    %v2071 = vunpack.c.h.b16 %v546
    %v2072 = vunpack.c.l.b16 %v547
    %v2073 = vunpack.c.h.b16 %v547
    %v2074 = vunpack.c.l.b16 %v548
    %v2075 = vunpack.c.h.b16 %v548
    %v2076 = vunpack.c.l.b16 %v549
    %v2077 = vunpack.c.h.b16 %v549
    %v2078 = vunpack.c.l.b16 %v550
    %v2079 = vunpack.c.h.b16 %v550
    %v2080 = vunpack.c.l.b16 %v551
    %v2081 = vunpack.c.h.b16 %v551
    %v2082 = vunpack.c.l.b16 %v552
    %v2083 = vunpack.c.h.b16 %v552
    %v2084 = vunpack.c.l.b16 %v553
    %v2085 = vunpack.c.h.b16 %v553
    %v2086 = vunpack.c.l.b16 %v554
    %v2087 = vunpack.c.h.b16 %v554
    %v2088 = vunpack.c.l.b16 %v555
    %v2089 = vunpack.c.h.b16 %v555
    %v2090 = vunpack.c.l.b16 %v556
    %v2091 = vunpack.c.h.b16 %v556
    %v2092 = vunpack.c.l.b16 %v557
    %v2093 = vunpack.c.h.b16 %v557
    %v2094 = vunpack.c.l.b16 %v558
    %v2095 = vunpack.c.h.b16 %v558
    %v2096 = vunpack.c.l.b16 %v559
    %v2097 = vunpack.c.h.b16 %v559
    %v2098 = vunpack.c.l.b16 %v560
    %v2099 = vunpack.c.h.b16 %v560
    %v2100 = vunpack.c.l.b16 %v561
    %v2101 = vunpack.c.h.b16 %v561
    %v2102 = vunpack.c.l.b16 %v562
    %v2103 = vunpack.c.h.b16 %v562
    %v2104 = vunpack.c.l.b16 %v563
    %v2105 = vunpack.c.h.b16 %v563
    %v2106 = vunpack.c.l.b16 %v564
    %v2107 = vunpack.c.h.b16 %v564
    %v2108 = vunpack.c.l.b16 %v565
    %v2109 = vunpack.c.h.b16 %v565
    %v2110 = vunpack.c.l.b16 %v566
    %v2111 = vunpack.c.h.b16 %v566
    %v2112 = vunpack.c.l.b16 %v567
    %v2113 = vunpack.c.h.b16 %v567
    %v2114 = vunpack.c.l.b16 %v568
    %v2115 = vunpack.c.h.b16 %v568
    %v2116 = vunpack.c.l.b16 %v569
    %v2117 = vunpack.c.h.b16 %v569
    %v2118 = vunpack.c.l.b16 %v570
    %v2119 = vunpack.c.h.b16 %v570
    %v2120 = vunpack.c.l.b16 %v571
    %v2121 = vunpack.c.h.b16 %v571
    %v2122 = vunpack.c.l.b16 %v572
    %v2123 = vunpack.c.h.b16 %v572
    %v2124 = vunpack.c.l.b16 %v573
    %v2125 = vunpack.c.h.b16 %v573
    %v2126 = vunpack.c.l.b16 %v574
    %v2127 = vunpack.c.h.b16 %v574
    %v2128 = vunpack.c.l.b16 %v575
    %v2129 = vunpack.c.h.b16 %v575
    %v2130 = vunpack.c.l.b16 %v576
    %v2131 = vunpack.c.h.b16 %v576
    %v2132 = vunpack.c.l.b16 %v577
    %v2133 = vunpack.c.h.b16 %v577
    %v2134 = vpack.c.b16 %v1126, %v1110
    %v2135 = vpack.c.b16 %v1127, %v1111
    %v2136 = vpack.c.b16 %v1128, %v1112
    %v2137 = vpack.c.b16 %v1129, %v1113
    %v2138 = vpack.c.b16 %v1130, %v1114
    %v2139 = vpack.c.b16 %v1131, %v1115
    %v2140 = vpack.c.b16 %v1132, %v1116
    %v2141 = vpack.c.b16 %v1133, %v1117
    %v2142 = vpack.c.b16 %v1134, %v1118
    %v2143 = vpack.c.b16 %v1135, %v1119
    %v2144 = vpack.c.b16 %v1136, %v1120
    %v2145 = vpack.c.b16 %v1137, %v1121
    %v2146 = vpack.c.b16 %v1138, %v1122
    %v2147 = vpack.c.b16 %v1139, %v1123
    %v2148 = vpack.c.b16 %v1140, %v1124
    %v2149 = vpack.c.b16 %v1141, %v1125
    %v2150 = vpack.c.b16 %v1158, %v1142
    %v2151 = vpack.c.b16 %v1159, %v1143
    %v2152 = vpack.c.b16 %v1160, %v1144
    %v2153 = vpack.c.b16 %v1161, %v1145
    %v2154 = vpack.c.b16 %v1162, %v1146
    %v2155 = vpack.c.b16 %v1163, %v1147
    %v2156 = vpack.c.b16 %v1164, %v1148
    %v2157 = vpack.c.b16 %v1165, %v1149
    %v2158 = vpack.c.b16 %v1166, %v1150
    %v2159 = vpack.c.b16 %v1167, %v1151
    %v2160 = vpack.c.b16 %v1168, %v1152
    %v2161 = vpack.c.b16 %v1169, %v1153
    %v2162 = vpack.c.b16 %v1170, %v1154
    %v2163 = vpack.c.b16 %v1171, %v1155
    %v2164 = vpack.c.b16 %v1172, %v1156
    %v2165 = vpack.c.b16 %v1173, %v1157
    %v2166 = vpack.c.b16 %v1190, %v1174
    %v2167 = vpack.c.b16 %v1191, %v1175
    %v2168 = vpack.c.b16 %v1192, %v1176
    %v2169 = vpack.c.b16 %v1193, %v1177
    %v2170 = vpack.c.b16 %v1194, %v1178
    %v2171 = vpack.c.b16 %v1195, %v1179
    %v2172 = vpack.c.b16 %v1196, %v1180
    %v2173 = vpack.c.b16 %v1197, %v1181
    %v2174 = vpack.c.b16 %v1198, %v1182
    %v2175 = vpack.c.b16 %v1199, %v1183
    %v2176 = vpack.c.b16 %v1200, %v1184
    %v2177 = vpack.c.b16 %v1201, %v1185
    %v2178 = vpack.c.b16 %v1202, %v1186
    %v2179 = vpack.c.b16 %v1203, %v1187
    %v2180 = vpack.c.b16 %v1204, %v1188
    %v2181 = vpack.c.b16 %v1205, %v1189
    %v2182 = vpack.c.b16 %v1222, %v1206
    %v2183 = vpack.c.b16 %v1223, %v1207
    %v2184 = vpack.c.b16 %v1224, %v1208
    %v2185 = vpack.c.b16 %v1225, %v1209
    %v2186 = vpack.c.b16 %v1226, %v1210
    %v2187 = vpack.c.b16 %v1227, %v1211
    %v2188 = vpack.c.b16 %v1228, %v1212
    %v2189 = vpack.c.b16 %v1229, %v1213
    %v2190 = vpack.c.b16 %v1230, %v1214
    %v2191 = vpack.c.b16 %v1231, %v1215
    %v2192 = vpack.c.b16 %v1232, %v1216
    %v2193 = vpack.c.b16 %v1233, %v1217
    %v2194 = vpack.c.b16 %v1234, %v1218
    %v2195 = vpack.c.b16 %v1235, %v1219
    %v2196 = vpack.c.b16 %v1236, %v1220
    %v2197 = vpack.c.b16 %v1237, %v1221
    %v2198 = vpack.c.b16 %v1254, %v1238
    %v2199 = vpack.c.b16 %v1255, %v1239
    %v2200 = vpack.c.b16 %v1256, %v1240
    %v2201 = vpack.c.b16 %v1257, %v1241
    %v2202 = vpack.c.b16 %v1258, %v1242
    %v2203 = vpack.c.b16 %v1259, %v1243
    %v2204 = vpack.c.b16 %v1260, %v1244
    %v2205 = vpack.c.b16 %v1261, %v1245
    %v2206 = vpack.c.b16 %v1262, %v1246
    %v2207 = vpack.c.b16 %v1263, %v1247
    %v2208 = vpack.c.b16 %v1264, %v1248
    %v2209 = vpack.c.b16 %v1265, %v1249
    %v2210 = vpack.c.b16 %v1266, %v1250
    %v2211 = vpack.c.b16 %v1267, %v1251
    %v2212 = vpack.c.b16 %v1268, %v1252
    %v2213 = vpack.c.b16 %v1269, %v1253
    %v2214 = vpack.c.b16 %v1286, %v1270
    %v2215 = vpack.c.b16 %v1287, %v1271
    %v2216 = vpack.c.b16 %v1288, %v1272
    %v2217 = vpack.c.b16 %v1289, %v1273
    %v2218 = vpack.c.b16 %v1290, %v1274
    %v2219 = vpack.c.b16 %v1291, %v1275
    %v2220 = vpack.c.b16 %v1292, %v1276
    %v2221 = vpack.c.b16 %v1293, %v1277
    %v2222 = vpack.c.b16 %v1294, %v1278
    %v2223 = vpack.c.b16 %v1295, %v1279
    %v2224 = vpack.c.b16 %v1296, %v1280
    %v2225 = vpack.c.b16 %v1297, %v1281
    %v2226 = vpack.c.b16 %v1298, %v1282
    %v2227 = vpack.c.b16 %v1299, %v1283
    %v2228 = vpack.c.b16 %v1300, %v1284
    %v2229 = vpack.c.b16 %v1301, %v1285
    %v2230 = vpack.c.b16 %v1318, %v1302
    %v2231 = vpack.c.b16 %v1319, %v1303
    %v2232 = vpack.c.b16 %v1320, %v1304
    %v2233 = vpack.c.b16 %v1321, %v1305
    %v2234 = vpack.c.b16 %v1322, %v1306
    %v2235 = vpack.c.b16 %v1323, %v1307
    %v2236 = vpack.c.b16 %v1324, %v1308
    %v2237 = vpack.c.b16 %v1325, %v1309
    %v2238 = vpack.c.b16 %v1326, %v1310
    %v2239 = vpack.c.b16 %v1327, %v1311
    %v2240 = vpack.c.b16 %v1328, %v1312
    %v2241 = vpack.c.b16 %v1329, %v1313
    %v2242 = vpack.c.b16 %v1330, %v1314
    %v2243 = vpack.c.b16 %v1331, %v1315
    %v2244 = vpack.c.b16 %v1332, %v1316
    %v2245 = vpack.c.b16 %v1333, %v1317
    %v2246 = vpack.c.b16 %v1350, %v1334
    %v2247 = vpack.c.b16 %v1351, %v1335
    %v2248 = vpack.c.b16 %v1352, %v1336
    %v2249 = vpack.c.b16 %v1353, %v1337
    %v2250 = vpack.c.b16 %v1354, %v1338
    %v2251 = vpack.c.b16 %v1355, %v1339
    %v2252 = vpack.c.b16 %v1356, %v1340
    %v2253 = vpack.c.b16 %v1357, %v1341
    %v2254 = vpack.c.b16 %v1358, %v1342
    %v2255 = vpack.c.b16 %v1359, %v1343
    %v2256 = vpack.c.b16 %v1360, %v1344
    %v2257 = vpack.c.b16 %v1361, %v1345
    %v2258 = vpack.c.b16 %v1362, %v1346
    %v2259 = vpack.c.b16 %v1363, %v1347
    %v2260 = vpack.c.b16 %v1364, %v1348
    %v2261 = vpack.c.b16 %v1365, %v1349
    %v2262 = vpack.c.b16 %v1382, %v1366
    %v2263 = vpack.c.b16 %v1383, %v1367
    %v2264 = vpack.c.b16 %v1384, %v1368
    %v2265 = vpack.c.b16 %v1385, %v1369
    %v2266 = vpack.c.b16 %v1386, %v1370
    %v2267 = vpack.c.b16 %v1387, %v1371
    %v2268 = vpack.c.b16 %v1388, %v1372
    %v2269 = vpack.c.b16 %v1389, %v1373
    %v2270 = vpack.c.b16 %v1390, %v1374
    %v2271 = vpack.c.b16 %v1391, %v1375
    %v2272 = vpack.c.b16 %v1392, %v1376
    %v2273 = vpack.c.b16 %v1393, %v1377
    %v2274 = vpack.c.b16 %v1394, %v1378
    %v2275 = vpack.c.b16 %v1395, %v1379
    %v2276 = vpack.c.b16 %v1396, %v1380
    %v2277 = vpack.c.b16 %v1397, %v1381
    %v2278 = vpack.c.b16 %v1414, %v1398
    %v2279 = vpack.c.b16 %v1415, %v1399
    %v2280 = vpack.c.b16 %v1416, %v1400
    %v2281 = vpack.c.b16 %v1417, %v1401
    %v2282 = vpack.c.b16 %v1418, %v1402
    %v2283 = vpack.c.b16 %v1419, %v1403
    %v2284 = vpack.c.b16 %v1420, %v1404
    %v2285 = vpack.c.b16 %v1421, %v1405
    %v2286 = vpack.c.b16 %v1422, %v1406
    %v2287 = vpack.c.b16 %v1423, %v1407
    %v2288 = vpack.c.b16 %v1424, %v1408
    %v2289 = vpack.c.b16 %v1425, %v1409
    %v2290 = vpack.c.b16 %v1426, %v1410
    %v2291 = vpack.c.b16 %v1427, %v1411
    %v2292 = vpack.c.b16 %v1428, %v1412
    %v2293 = vpack.c.b16 %v1429, %v1413
    %v2294 = vpack.c.b16 %v1446, %v1430
    %v2295 = vpack.c.b16 %v1447, %v1431
    %v2296 = vpack.c.b16 %v1448, %v1432
    %v2297 = vpack.c.b16 %v1449, %v1433
    %v2298 = vpack.c.b16 %v1450, %v1434
    %v2299 = vpack.c.b16 %v1451, %v1435
    %v2300 = vpack.c.b16 %v1452, %v1436
    %v2301 = vpack.c.b16 %v1453, %v1437
    %v2302 = vpack.c.b16 %v1454, %v1438
    %v2303 = vpack.c.b16 %v1455, %v1439
    %v2304 = vpack.c.b16 %v1456, %v1440
    %v2305 = vpack.c.b16 %v1457, %v1441
    %v2306 = vpack.c.b16 %v1458, %v1442
    %v2307 = vpack.c.b16 %v1459, %v1443
    %v2308 = vpack.c.b16 %v1460, %v1444
    %v2309 = vpack.c.b16 %v1461, %v1445
    %v2310 = vpack.c.b16 %v1478, %v1462
    %v2311 = vpack.c.b16 %v1479, %v1463
    %v2312 = vpack.c.b16 %v1480, %v1464
    %v2313 = vpack.c.b16 %v1481, %v1465
    %v2314 = vpack.c.b16 %v1482, %v1466
    %v2315 = vpack.c.b16 %v1483, %v1467
    %v2316 = vpack.c.b16 %v1484, %v1468
    %v2317 = vpack.c.b16 %v1485, %v1469
    %v2318 = vpack.c.b16 %v1486, %v1470
    %v2319 = vpack.c.b16 %v1487, %v1471
    %v2320 = vpack.c.b16 %v1488, %v1472
    %v2321 = vpack.c.b16 %v1489, %v1473
    %v2322 = vpack.c.b16 %v1490, %v1474
    %v2323 = vpack.c.b16 %v1491, %v1475
    %v2324 = vpack.c.b16 %v1492, %v1476
    %v2325 = vpack.c.b16 %v1493, %v1477
    %v2326 = vpack.c.b16 %v1510, %v1494
    %v2327 = vpack.c.b16 %v1511, %v1495
    %v2328 = vpack.c.b16 %v1512, %v1496
    %v2329 = vpack.c.b16 %v1513, %v1497
    %v2330 = vpack.c.b16 %v1514, %v1498
    %v2331 = vpack.c.b16 %v1515, %v1499
    %v2332 = vpack.c.b16 %v1516, %v1500
    %v2333 = vpack.c.b16 %v1517, %v1501
    %v2334 = vpack.c.b16 %v1518, %v1502
    %v2335 = vpack.c.b16 %v1519, %v1503
    %v2336 = vpack.c.b16 %v1520, %v1504
    %v2337 = vpack.c.b16 %v1521, %v1505
    %v2338 = vpack.c.b16 %v1522, %v1506
    %v2339 = vpack.c.b16 %v1523, %v1507
    %v2340 = vpack.c.b16 %v1524, %v1508
    %v2341 = vpack.c.b16 %v1525, %v1509
    %v2342 = vpack.c.b16 %v1542, %v1526
    %v2343 = vpack.c.b16 %v1543, %v1527
    %v2344 = vpack.c.b16 %v1544, %v1528
    %v2345 = vpack.c.b16 %v1545, %v1529
    %v2346 = vpack.c.b16 %v1546, %v1530
    %v2347 = vpack.c.b16 %v1547, %v1531
    %v2348 = vpack.c.b16 %v1548, %v1532
    %v2349 = vpack.c.b16 %v1549, %v1533
    %v2350 = vpack.c.b16 %v1550, %v1534
    %v2351 = vpack.c.b16 %v1551, %v1535
    %v2352 = vpack.c.b16 %v1552, %v1536
    %v2353 = vpack.c.b16 %v1553, %v1537
    %v2354 = vpack.c.b16 %v1554, %v1538
    %v2355 = vpack.c.b16 %v1555, %v1539
    %v2356 = vpack.c.b16 %v1556, %v1540
    %v2357 = vpack.c.b16 %v1557, %v1541
    %v2358 = vpack.c.b16 %v1574, %v1558
    %v2359 = vpack.c.b16 %v1575, %v1559
    %v2360 = vpack.c.b16 %v1576, %v1560
    %v2361 = vpack.c.b16 %v1577, %v1561
    %v2362 = vpack.c.b16 %v1578, %v1562
    %v2363 = vpack.c.b16 %v1579, %v1563
    %v2364 = vpack.c.b16 %v1580, %v1564
    %v2365 = vpack.c.b16 %v1581, %v1565
    %v2366 = vpack.c.b16 %v1582, %v1566
    %v2367 = vpack.c.b16 %v1583, %v1567
    %v2368 = vpack.c.b16 %v1584, %v1568
    %v2369 = vpack.c.b16 %v1585, %v1569
    %v2370 = vpack.c.b16 %v1586, %v1570
    %v2371 = vpack.c.b16 %v1587, %v1571
    %v2372 = vpack.c.b16 %v1588, %v1572
    %v2373 = vpack.c.b16 %v1589, %v1573
    %v2374 = vpack.c.b16 %v1606, %v1590
    %v2375 = vpack.c.b16 %v1607, %v1591
    %v2376 = vpack.c.b16 %v1608, %v1592
    %v2377 = vpack.c.b16 %v1609, %v1593
    %v2378 = vpack.c.b16 %v1610, %v1594
    %v2379 = vpack.c.b16 %v1611, %v1595
    %v2380 = vpack.c.b16 %v1612, %v1596
    %v2381 = vpack.c.b16 %v1613, %v1597
    %v2382 = vpack.c.b16 %v1614, %v1598
    %v2383 = vpack.c.b16 %v1615, %v1599
    %v2384 = vpack.c.b16 %v1616, %v1600
    %v2385 = vpack.c.b16 %v1617, %v1601
    %v2386 = vpack.c.b16 %v1618, %v1602
    %v2387 = vpack.c.b16 %v1619, %v1603
    %v2388 = vpack.c.b16 %v1620, %v1604
    %v2389 = vpack.c.b16 %v1621, %v1605
    %v2390 = vpack.c.b16 %v1638, %v1622
    %v2391 = vpack.c.b16 %v1639, %v1623
    %v2392 = vpack.c.b16 %v1640, %v1624
    %v2393 = vpack.c.b16 %v1641, %v1625
    %v2394 = vpack.c.b16 %v1642, %v1626
    %v2395 = vpack.c.b16 %v1643, %v1627
    %v2396 = vpack.c.b16 %v1644, %v1628
    %v2397 = vpack.c.b16 %v1645, %v1629
    %v2398 = vpack.c.b16 %v1646, %v1630
    %v2399 = vpack.c.b16 %v1647, %v1631
    %v2400 = vpack.c.b16 %v1648, %v1632
    %v2401 = vpack.c.b16 %v1649, %v1633
    %v2402 = vpack.c.b16 %v1650, %v1634
    %v2403 = vpack.c.b16 %v1651, %v1635
    %v2404 = vpack.c.b16 %v1652, %v1636
    %v2405 = vpack.c.b16 %v1653, %v1637
    %v2406 = vpack.c.b16 %v1670, %v1654
    %v2407 = vpack.c.b16 %v1671, %v1655
    %v2408 = vpack.c.b16 %v1672, %v1656
    %v2409 = vpack.c.b16 %v1673, %v1657
    %v2410 = vpack.c.b16 %v1674, %v1658
    %v2411 = vpack.c.b16 %v1675, %v1659
    %v2412 = vpack.c.b16 %v1676, %v1660
    %v2413 = vpack.c.b16 %v1677, %v1661
    %v2414 = vpack.c.b16 %v1678, %v1662
    %v2415 = vpack.c.b16 %v1679, %v1663
    %v2416 = vpack.c.b16 %v1680, %v1664
    %v2417 = vpack.c.b16 %v1681, %v1665
    %v2418 = vpack.c.b16 %v1682, %v1666
    %v2419 = vpack.c.b16 %v1683, %v1667
    %v2420 = vpack.c.b16 %v1684, %v1668
    %v2421 = vpack.c.b16 %v1685, %v1669
    %v2422 = vpack.c.b16 %v1702, %v1686
    %v2423 = vpack.c.b16 %v1703, %v1687
    %v2424 = vpack.c.b16 %v1704, %v1688
    %v2425 = vpack.c.b16 %v1705, %v1689
    %v2426 = vpack.c.b16 %v1706, %v1690
    %v2427 = vpack.c.b16 %v1707, %v1691
    %v2428 = vpack.c.b16 %v1708, %v1692
    %v2429 = vpack.c.b16 %v1709, %v1693
    %v2430 = vpack.c.b16 %v1710, %v1694
    %v2431 = vpack.c.b16 %v1711, %v1695
    %v2432 = vpack.c.b16 %v1712, %v1696
    %v2433 = vpack.c.b16 %v1713, %v1697
    %v2434 = vpack.c.b16 %v1714, %v1698
    %v2435 = vpack.c.b16 %v1715, %v1699
    %v2436 = vpack.c.b16 %v1716, %v1700
    %v2437 = vpack.c.b16 %v1717, %v1701
    %v2438 = vpack.c.b16 %v1734, %v1718
    %v2439 = vpack.c.b16 %v1735, %v1719
    %v2440 = vpack.c.b16 %v1736, %v1720
    %v2441 = vpack.c.b16 %v1737, %v1721
    %v2442 = vpack.c.b16 %v1738, %v1722
    %v2443 = vpack.c.b16 %v1739, %v1723
    %v2444 = vpack.c.b16 %v1740, %v1724
    %v2445 = vpack.c.b16 %v1741, %v1725
    %v2446 = vpack.c.b16 %v1742, %v1726
    %v2447 = vpack.c.b16 %v1743, %v1727
    %v2448 = vpack.c.b16 %v1744, %v1728
    %v2449 = vpack.c.b16 %v1745, %v1729
    %v2450 = vpack.c.b16 %v1746, %v1730
    %v2451 = vpack.c.b16 %v1747, %v1731
    %v2452 = vpack.c.b16 %v1748, %v1732
    %v2453 = vpack.c.b16 %v1749, %v1733
    %v2454 = vpack.c.b16 %v1766, %v1750
    %v2455 = vpack.c.b16 %v1767, %v1751
    %v2456 = vpack.c.b16 %v1768, %v1752
    %v2457 = vpack.c.b16 %v1769, %v1753
    %v2458 = vpack.c.b16 %v1770, %v1754
    %v2459 = vpack.c.b16 %v1771, %v1755
    %v2460 = vpack.c.b16 %v1772, %v1756
    %v2461 = vpack.c.b16 %v1773, %v1757
    %v2462 = vpack.c.b16 %v1774, %v1758
    %v2463 = vpack.c.b16 %v1775, %v1759
    %v2464 = vpack.c.b16 %v1776, %v1760
    %v2465 = vpack.c.b16 %v1777, %v1761
    %v2466 = vpack.c.b16 %v1778, %v1762
    %v2467 = vpack.c.b16 %v1779, %v1763
    %v2468 = vpack.c.b16 %v1780, %v1764
    %v2469 = vpack.c.b16 %v1781, %v1765
    %v2470 = vpack.c.b16 %v1798, %v1782
    %v2471 = vpack.c.b16 %v1799, %v1783
    %v2472 = vpack.c.b16 %v1800, %v1784
    %v2473 = vpack.c.b16 %v1801, %v1785
    %v2474 = vpack.c.b16 %v1802, %v1786
    %v2475 = vpack.c.b16 %v1803, %v1787
    %v2476 = vpack.c.b16 %v1804, %v1788
    %v2477 = vpack.c.b16 %v1805, %v1789
    %v2478 = vpack.c.b16 %v1806, %v1790
    %v2479 = vpack.c.b16 %v1807, %v1791
    %v2480 = vpack.c.b16 %v1808, %v1792
    %v2481 = vpack.c.b16 %v1809, %v1793
    %v2482 = vpack.c.b16 %v1810, %v1794
    %v2483 = vpack.c.b16 %v1811, %v1795
    %v2484 = vpack.c.b16 %v1812, %v1796
    %v2485 = vpack.c.b16 %v1813, %v1797
    %v2486 = vpack.c.b16 %v1830, %v1814
    %v2487 = vpack.c.b16 %v1831, %v1815
    %v2488 = vpack.c.b16 %v1832, %v1816
    %v2489 = vpack.c.b16 %v1833, %v1817
    %v2490 = vpack.c.b16 %v1834, %v1818
    %v2491 = vpack.c.b16 %v1835, %v1819
    %v2492 = vpack.c.b16 %v1836, %v1820
    %v2493 = vpack.c.b16 %v1837, %v1821
    %v2494 = vpack.c.b16 %v1838, %v1822
    %v2495 = vpack.c.b16 %v1839, %v1823
    %v2496 = vpack.c.b16 %v1840, %v1824
    %v2497 = vpack.c.b16 %v1841, %v1825
    %v2498 = vpack.c.b16 %v1842, %v1826
    %v2499 = vpack.c.b16 %v1843, %v1827
    %v2500 = vpack.c.b16 %v1844, %v1828
    %v2501 = vpack.c.b16 %v1845, %v1829
    %v2502 = vpack.c.b16 %v1862, %v1846
    %v2503 = vpack.c.b16 %v1863, %v1847
    %v2504 = vpack.c.b16 %v1864, %v1848
    %v2505 = vpack.c.b16 %v1865, %v1849
    %v2506 = vpack.c.b16 %v1866, %v1850
    %v2507 = vpack.c.b16 %v1867, %v1851
    %v2508 = vpack.c.b16 %v1868, %v1852
    %v2509 = vpack.c.b16 %v1869, %v1853
    %v2510 = vpack.c.b16 %v1870, %v1854
    %v2511 = vpack.c.b16 %v1871, %v1855
    %v2512 = vpack.c.b16 %v1872, %v1856
    %v2513 = vpack.c.b16 %v1873, %v1857
    %v2514 = vpack.c.b16 %v1874, %v1858
    %v2515 = vpack.c.b16 %v1875, %v1859
    %v2516 = vpack.c.b16 %v1876, %v1860
    %v2517 = vpack.c.b16 %v1877, %v1861
    %v2518 = vpack.c.b16 %v1894, %v1878
    %v2519 = vpack.c.b16 %v1895, %v1879
    %v2520 = vpack.c.b16 %v1896, %v1880
    %v2521 = vpack.c.b16 %v1897, %v1881
    %v2522 = vpack.c.b16 %v1898, %v1882
    %v2523 = vpack.c.b16 %v1899, %v1883
    %v2524 = vpack.c.b16 %v1900, %v1884
    %v2525 = vpack.c.b16 %v1901, %v1885
    %v2526 = vpack.c.b16 %v1902, %v1886
    %v2527 = vpack.c.b16 %v1903, %v1887
    %v2528 = vpack.c.b16 %v1904, %v1888
    %v2529 = vpack.c.b16 %v1905, %v1889
    %v2530 = vpack.c.b16 %v1906, %v1890
    %v2531 = vpack.c.b16 %v1907, %v1891
    %v2532 = vpack.c.b16 %v1908, %v1892
    %v2533 = vpack.c.b16 %v1909, %v1893
    %v2534 = vpack.c.b16 %v1926, %v1910
    %v2535 = vpack.c.b16 %v1927, %v1911
    %v2536 = vpack.c.b16 %v1928, %v1912
    %v2537 = vpack.c.b16 %v1929, %v1913
    %v2538 = vpack.c.b16 %v1930, %v1914
    %v2539 = vpack.c.b16 %v1931, %v1915
    %v2540 = vpack.c.b16 %v1932, %v1916
    %v2541 = vpack.c.b16 %v1933, %v1917
    %v2542 = vpack.c.b16 %v1934, %v1918
    %v2543 = vpack.c.b16 %v1935, %v1919
    %v2544 = vpack.c.b16 %v1936, %v1920
    %v2545 = vpack.c.b16 %v1937, %v1921
    %v2546 = vpack.c.b16 %v1938, %v1922
    %v2547 = vpack.c.b16 %v1939, %v1923
    %v2548 = vpack.c.b16 %v1940, %v1924
    %v2549 = vpack.c.b16 %v1941, %v1925
    %v2550 = vpack.c.b16 %v1958, %v1942
    %v2551 = vpack.c.b16 %v1959, %v1943
    %v2552 = vpack.c.b16 %v1960, %v1944
    %v2553 = vpack.c.b16 %v1961, %v1945
    %v2554 = vpack.c.b16 %v1962, %v1946
    %v2555 = vpack.c.b16 %v1963, %v1947
    %v2556 = vpack.c.b16 %v1964, %v1948
    %v2557 = vpack.c.b16 %v1965, %v1949
    %v2558 = vpack.c.b16 %v1966, %v1950
    %v2559 = vpack.c.b16 %v1967, %v1951
    %v2560 = vpack.c.b16 %v1968, %v1952
    %v2561 = vpack.c.b16 %v1969, %v1953
    %v2562 = vpack.c.b16 %v1970, %v1954
    %v2563 = vpack.c.b16 %v1971, %v1955
    %v2564 = vpack.c.b16 %v1972, %v1956
    %v2565 = vpack.c.b16 %v1973, %v1957
    %v2566 = vpack.c.b16 %v1990, %v1974
    %v2567 = vpack.c.b16 %v1991, %v1975
    %v2568 = vpack.c.b16 %v1992, %v1976
    %v2569 = vpack.c.b16 %v1993, %v1977
    %v2570 = vpack.c.b16 %v1994, %v1978
    %v2571 = vpack.c.b16 %v1995, %v1979
    %v2572 = vpack.c.b16 %v1996, %v1980
    %v2573 = vpack.c.b16 %v1997, %v1981
    %v2574 = vpack.c.b16 %v1998, %v1982
    %v2575 = vpack.c.b16 %v1999, %v1983
    %v2576 = vpack.c.b16 %v2000, %v1984
    %v2577 = vpack.c.b16 %v2001, %v1985
    %v2578 = vpack.c.b16 %v2002, %v1986
    %v2579 = vpack.c.b16 %v2003, %v1987
    %v2580 = vpack.c.b16 %v2004, %v1988
    %v2581 = vpack.c.b16 %v2005, %v1989
    %v2582 = vpack.c.b16 %v2022, %v2006
    %v2583 = vpack.c.b16 %v2023, %v2007
    %v2584 = vpack.c.b16 %v2024, %v2008
    %v2585 = vpack.c.b16 %v2025, %v2009
    %v2586 = vpack.c.b16 %v2026, %v2010
    %v2587 = vpack.c.b16 %v2027, %v2011
    %v2588 = vpack.c.b16 %v2028, %v2012
    %v2589 = vpack.c.b16 %v2029, %v2013
    %v2590 = vpack.c.b16 %v2030, %v2014
    %v2591 = vpack.c.b16 %v2031, %v2015
    %v2592 = vpack.c.b16 %v2032, %v2016
    %v2593 = vpack.c.b16 %v2033, %v2017
    %v2594 = vpack.c.b16 %v2034, %v2018
    %v2595 = vpack.c.b16 %v2035, %v2019
    %v2596 = vpack.c.b16 %v2036, %v2020
    %v2597 = vpack.c.b16 %v2037, %v2021
    %v2598 = vpack.c.b16 %v2054, %v2038
    %v2599 = vpack.c.b16 %v2055, %v2039
    %v2600 = vpack.c.b16 %v2056, %v2040
    %v2601 = vpack.c.b16 %v2057, %v2041
    %v2602 = vpack.c.b16 %v2058, %v2042
    %v2603 = vpack.c.b16 %v2059, %v2043
    %v2604 = vpack.c.b16 %v2060, %v2044
    %v2605 = vpack.c.b16 %v2061, %v2045
    %v2606 = vpack.c.b16 %v2062, %v2046
    %v2607 = vpack.c.b16 %v2063, %v2047
    %v2608 = vpack.c.b16 %v2064, %v2048
    %v2609 = vpack.c.b16 %v2065, %v2049
    %v2610 = vpack.c.b16 %v2066, %v2050
    %v2611 = vpack.c.b16 %v2067, %v2051
    %v2612 = vpack.c.b16 %v2068, %v2052
    %v2613 = vpack.c.b16 %v2069, %v2053
    %v2614 = vpack.c.b16 %v2086, %v2070
    %v2615 = vpack.c.b16 %v2087, %v2071
    %v2616 = vpack.c.b16 %v2088, %v2072
    %v2617 = vpack.c.b16 %v2089, %v2073
    %v2618 = vpack.c.b16 %v2090, %v2074
    %v2619 = vpack.c.b16 %v2091, %v2075
    %v2620 = vpack.c.b16 %v2092, %v2076
    %v2621 = vpack.c.b16 %v2093, %v2077
    %v2622 = vpack.c.b16 %v2094, %v2078
    %v2623 = vpack.c.b16 %v2095, %v2079
    %v2624 = vpack.c.b16 %v2096, %v2080
    %v2625 = vpack.c.b16 %v2097, %v2081
    %v2626 = vpack.c.b16 %v2098, %v2082
    %v2627 = vpack.c.b16 %v2099, %v2083
    %v2628 = vpack.c.b16 %v2100, %v2084
    %v2629 = vpack.c.b16 %v2101, %v2085
    %v2630 = vpack.c.b16 %v2118, %v2102
    %v2631 = vpack.c.b16 %v2119, %v2103
    %v2632 = vpack.c.b16 %v2120, %v2104
    %v2633 = vpack.c.b16 %v2121, %v2105
    %v2634 = vpack.c.b16 %v2122, %v2106
    %v2635 = vpack.c.b16 %v2123, %v2107
    %v2636 = vpack.c.b16 %v2124, %v2108
    %v2637 = vpack.c.b16 %v2125, %v2109
    %v2638 = vpack.c.b16 %v2126, %v2110
    %v2639 = vpack.c.b16 %v2127, %v2111
    %v2640 = vpack.c.b16 %v2128, %v2112
    %v2641 = vpack.c.b16 %v2129, %v2113
    %v2642 = vpack.c.b16 %v2130, %v2114
    %v2643 = vpack.c.b16 %v2131, %v2115
    %v2644 = vpack.c.b16 %v2132, %v2116
    %v2645 = vpack.c.b16 %v2133, %v2117
    %3158 = vmatpush.bf16.msra.mxu0 %v2246
    %3159 = vmatpush.bf16.msra.mxu0 %v2230
    %3160 = vmatpush.bf16.msra.mxu0 %v2214
    %3161 = vmatpush.bf16.msra.mxu0 %v2198
    %3162 = vmatpush.bf16.msra.mxu0 %v2182
    %3163 = vmatpush.bf16.msra.mxu0 %v2166
    %3164 = vmatpush.bf16.msra.mxu0 %v2150
    %3165 = vmatpush.bf16.msra.mxu0 %v2134
    %3166 = vmatmul.bf16.gmra.mxu0 %v590
    %v3167 = vpop.f32.mrf.mxu0
    %v3168 = vadd.f32 0.0, %v3167
    %v3169 = vpop.f32.mrf.mxu0
    %v3170 = vadd.f32 0.0, %v3169
    %3171 = vdwg.mxu0
    %3172 = vmatpush.bf16.msra.mxu0 %v2374
    %3173 = vmatpush.bf16.msra.mxu0 %v2358
    %3174 = vmatpush.bf16.msra.mxu0 %v2342
    %3175 = vmatpush.bf16.msra.mxu0 %v2326
    %3176 = vmatpush.bf16.msra.mxu0 %v2310
    %3177 = vmatpush.bf16.msra.mxu0 %v2294
    %3178 = vmatpush.bf16.msra.mxu0 %v2278
    %3179 = vmatpush.bf16.msra.mxu0 %v2262
    %3180 = vmatmul.bf16.gmra.mxu0 %v591
    %v3181 = vpop.f32.mrf.mxu0
    %v3182 = vadd.f32 %v3168, %v3181
    %v3183 = vpop.f32.mrf.mxu0
    %v3184 = vadd.f32 %v3170, %v3183
    %3185 = vdwg.mxu0
    %3186 = vmatpush.bf16.msra.mxu0 %v2502
    %3187 = vmatpush.bf16.msra.mxu0 %v2486
    %3188 = vmatpush.bf16.msra.mxu0 %v2470
    %3189 = vmatpush.bf16.msra.mxu0 %v2454
    %3190 = vmatpush.bf16.msra.mxu0 %v2438
    %3191 = vmatpush.bf16.msra.mxu0 %v2422
    %3192 = vmatpush.bf16.msra.mxu0 %v2406
    %3193 = vmatpush.bf16.msra.mxu0 %v2390
    %3194 = vmatmul.bf16.gmra.mxu0 %v592
    %v3195 = vpop.f32.mrf.mxu0
    %v3196 = vadd.f32 %v3182, %v3195
    %v3197 = vpop.f32.mrf.mxu0
    %v3198 = vadd.f32 %v3184, %v3197
    %3199 = vdwg.mxu0
    %3200 = vmatpush.bf16.msra.mxu0 %v2630
    %3201 = vmatpush.bf16.msra.mxu0 %v2614
    %3202 = vmatpush.bf16.msra.mxu0 %v2598
    %3203 = vmatpush.bf16.msra.mxu0 %v2582
    %3204 = vmatpush.bf16.msra.mxu0 %v2566
    %3205 = vmatpush.bf16.msra.mxu0 %v2550
    %3206 = vmatpush.bf16.msra.mxu0 %v2534
    %3207 = vmatpush.bf16.msra.mxu0 %v2518
    %3208 = vmatmul.bf16.gmra.mxu0 %v593
    %v3209 = vpop.f32.mrf.mxu0
    %v3210 = vadd.f32 %v3196, %v3209
    %v3211 = vpop.f32.mrf.mxu0
    %v3212 = vadd.f32 %v3198, %v3211
    %3213 = vdwg.mxu0
    %3214 = vmatpush.bf16.msra.mxu0 %v2247
    %3215 = vmatpush.bf16.msra.mxu0 %v2231
    %3216 = vmatpush.bf16.msra.mxu0 %v2215
    %3217 = vmatpush.bf16.msra.mxu0 %v2199
    %3218 = vmatpush.bf16.msra.mxu0 %v2183
    %3219 = vmatpush.bf16.msra.mxu0 %v2167
    %3220 = vmatpush.bf16.msra.mxu0 %v2151
    %3221 = vmatpush.bf16.msra.mxu0 %v2135
    %3222 = vmatmul.bf16.gmra.mxu0 %v590
    %v3223 = vpop.f32.mrf.mxu0
    %v3224 = vadd.f32 0.0, %v3223
    %v3225 = vpop.f32.mrf.mxu0
    %v3226 = vadd.f32 0.0, %v3225
    %3227 = vdwg.mxu0
    %3228 = vmatpush.bf16.msra.mxu0 %v2375
    %3229 = vmatpush.bf16.msra.mxu0 %v2359
    %3230 = vmatpush.bf16.msra.mxu0 %v2343
    %3231 = vmatpush.bf16.msra.mxu0 %v2327
    %3232 = vmatpush.bf16.msra.mxu0 %v2311
    %3233 = vmatpush.bf16.msra.mxu0 %v2295
    %3234 = vmatpush.bf16.msra.mxu0 %v2279
    %3235 = vmatpush.bf16.msra.mxu0 %v2263
    %3236 = vmatmul.bf16.gmra.mxu0 %v591
    %v3237 = vpop.f32.mrf.mxu0
    %v3238 = vadd.f32 %v3224, %v3237
    %v3239 = vpop.f32.mrf.mxu0
    %v3240 = vadd.f32 %v3226, %v3239
    %3241 = vdwg.mxu0
    %3242 = vmatpush.bf16.msra.mxu0 %v2503
    %3243 = vmatpush.bf16.msra.mxu0 %v2487
    %3244 = vmatpush.bf16.msra.mxu0 %v2471
    %3245 = vmatpush.bf16.msra.mxu0 %v2455
    %3246 = vmatpush.bf16.msra.mxu0 %v2439
    %3247 = vmatpush.bf16.msra.mxu0 %v2423
    %3248 = vmatpush.bf16.msra.mxu0 %v2407
    %3249 = vmatpush.bf16.msra.mxu0 %v2391
    %3250 = vmatmul.bf16.gmra.mxu0 %v592
    %v3251 = vpop.f32.mrf.mxu0
    %v3252 = vadd.f32 %v3238, %v3251
    %v3253 = vpop.f32.mrf.mxu0
    %v3254 = vadd.f32 %v3240, %v3253
    %3255 = vdwg.mxu0
    %3256 = vmatpush.bf16.msra.mxu0 %v2631
    %3257 = vmatpush.bf16.msra.mxu0 %v2615
    %3258 = vmatpush.bf16.msra.mxu0 %v2599
    %3259 = vmatpush.bf16.msra.mxu0 %v2583
    %3260 = vmatpush.bf16.msra.mxu0 %v2567
    %3261 = vmatpush.bf16.msra.mxu0 %v2551
    %3262 = vmatpush.bf16.msra.mxu0 %v2535
    %3263 = vmatpush.bf16.msra.mxu0 %v2519
    %3264 = vmatmul.bf16.gmra.mxu0 %v593
    %v3265 = vpop.f32.mrf.mxu0
    %v3266 = vadd.f32 %v3252, %v3265
    %v3267 = vpop.f32.mrf.mxu0
    %v3268 = vadd.f32 %v3254, %v3267
    %3269 = vdwg.mxu0
    %3270 = vmatpush.bf16.msra.mxu0 %v2248
    %3271 = vmatpush.bf16.msra.mxu0 %v2232
    %3272 = vmatpush.bf16.msra.mxu0 %v2216
    %3273 = vmatpush.bf16.msra.mxu0 %v2200
    %3274 = vmatpush.bf16.msra.mxu0 %v2184
    %3275 = vmatpush.bf16.msra.mxu0 %v2168
    %3276 = vmatpush.bf16.msra.mxu0 %v2152
    %3277 = vmatpush.bf16.msra.mxu0 %v2136
    %3278 = vmatmul.bf16.gmra.mxu0 %v590
    %v3279 = vpop.f32.mrf.mxu0
    %v3280 = vadd.f32 0.0, %v3279
    %v3281 = vpop.f32.mrf.mxu0
    %v3282 = vadd.f32 0.0, %v3281
    %3283 = vdwg.mxu0
    %3284 = vmatpush.bf16.msra.mxu0 %v2376
    %3285 = vmatpush.bf16.msra.mxu0 %v2360
    %3286 = vmatpush.bf16.msra.mxu0 %v2344
    %3287 = vmatpush.bf16.msra.mxu0 %v2328
    %3288 = vmatpush.bf16.msra.mxu0 %v2312
    %3289 = vmatpush.bf16.msra.mxu0 %v2296
    %3290 = vmatpush.bf16.msra.mxu0 %v2280
    %3291 = vmatpush.bf16.msra.mxu0 %v2264
    %3292 = vmatmul.bf16.gmra.mxu0 %v591
    %v3293 = vpop.f32.mrf.mxu0
    %v3294 = vadd.f32 %v3280, %v3293
    %v3295 = vpop.f32.mrf.mxu0
    %v3296 = vadd.f32 %v3282, %v3295
    %3297 = vdwg.mxu0
    %3298 = vmatpush.bf16.msra.mxu0 %v2504
    %3299 = vmatpush.bf16.msra.mxu0 %v2488
    %3300 = vmatpush.bf16.msra.mxu0 %v2472
    %3301 = vmatpush.bf16.msra.mxu0 %v2456
    %3302 = vmatpush.bf16.msra.mxu0 %v2440
    %3303 = vmatpush.bf16.msra.mxu0 %v2424
    %3304 = vmatpush.bf16.msra.mxu0 %v2408
    %3305 = vmatpush.bf16.msra.mxu0 %v2392
    %3306 = vmatmul.bf16.gmra.mxu0 %v592
    %v3307 = vpop.f32.mrf.mxu0
    %v3308 = vadd.f32 %v3294, %v3307
    %v3309 = vpop.f32.mrf.mxu0
    %v3310 = vadd.f32 %v3296, %v3309
    %3311 = vdwg.mxu0
    %3312 = vmatpush.bf16.msra.mxu0 %v2632
    %3313 = vmatpush.bf16.msra.mxu0 %v2616
    %3314 = vmatpush.bf16.msra.mxu0 %v2600
    %3315 = vmatpush.bf16.msra.mxu0 %v2584
    %3316 = vmatpush.bf16.msra.mxu0 %v2568
    %3317 = vmatpush.bf16.msra.mxu0 %v2552
    %3318 = vmatpush.bf16.msra.mxu0 %v2536
    %3319 = vmatpush.bf16.msra.mxu0 %v2520
    %3320 = vmatmul.bf16.gmra.mxu0 %v593
    %v3321 = vpop.f32.mrf.mxu0
    %v3322 = vadd.f32 %v3308, %v3321
    %v3323 = vpop.f32.mrf.mxu0
    %v3324 = vadd.f32 %v3310, %v3323
    %3325 = vdwg.mxu0
    %3326 = vmatpush.bf16.msra.mxu0 %v2249
    %3327 = vmatpush.bf16.msra.mxu0 %v2233
    %3328 = vmatpush.bf16.msra.mxu0 %v2217
    %3329 = vmatpush.bf16.msra.mxu0 %v2201
    %3330 = vmatpush.bf16.msra.mxu0 %v2185
    %3331 = vmatpush.bf16.msra.mxu0 %v2169
    %3332 = vmatpush.bf16.msra.mxu0 %v2153
    %3333 = vmatpush.bf16.msra.mxu0 %v2137
    %3334 = vmatmul.bf16.gmra.mxu0 %v590
    %v3335 = vpop.f32.mrf.mxu0
    %v3336 = vadd.f32 0.0, %v3335
    %v3337 = vpop.f32.mrf.mxu0
    %v3338 = vadd.f32 0.0, %v3337
    %3339 = vdwg.mxu0
    %3340 = vmatpush.bf16.msra.mxu0 %v2377
    %3341 = vmatpush.bf16.msra.mxu0 %v2361
    %3342 = vmatpush.bf16.msra.mxu0 %v2345
    %3343 = vmatpush.bf16.msra.mxu0 %v2329
    %3344 = vmatpush.bf16.msra.mxu0 %v2313
    %3345 = vmatpush.bf16.msra.mxu0 %v2297
    %3346 = vmatpush.bf16.msra.mxu0 %v2281
    %3347 = vmatpush.bf16.msra.mxu0 %v2265
    %3348 = vmatmul.bf16.gmra.mxu0 %v591
    %v3349 = vpop.f32.mrf.mxu0
    %v3350 = vadd.f32 %v3336, %v3349
    %v3351 = vpop.f32.mrf.mxu0
    %v3352 = vadd.f32 %v3338, %v3351
    %3353 = vdwg.mxu0
    %3354 = vmatpush.bf16.msra.mxu0 %v2505
    %3355 = vmatpush.bf16.msra.mxu0 %v2489
    %3356 = vmatpush.bf16.msra.mxu0 %v2473
    %3357 = vmatpush.bf16.msra.mxu0 %v2457
    %3358 = vmatpush.bf16.msra.mxu0 %v2441
    %3359 = vmatpush.bf16.msra.mxu0 %v2425
    %3360 = vmatpush.bf16.msra.mxu0 %v2409
    %3361 = vmatpush.bf16.msra.mxu0 %v2393
    %3362 = vmatmul.bf16.gmra.mxu0 %v592
    %v3363 = vpop.f32.mrf.mxu0
    %v3364 = vadd.f32 %v3350, %v3363
    %v3365 = vpop.f32.mrf.mxu0
    %v3366 = vadd.f32 %v3352, %v3365
    %3367 = vdwg.mxu0
    %3368 = vmatpush.bf16.msra.mxu0 %v2633
    %3369 = vmatpush.bf16.msra.mxu0 %v2617
    %3370 = vmatpush.bf16.msra.mxu0 %v2601
    %3371 = vmatpush.bf16.msra.mxu0 %v2585
    %3372 = vmatpush.bf16.msra.mxu0 %v2569
    %3373 = vmatpush.bf16.msra.mxu0 %v2553
    %3374 = vmatpush.bf16.msra.mxu0 %v2537
    %3375 = vmatpush.bf16.msra.mxu0 %v2521
    %3376 = vmatmul.bf16.gmra.mxu0 %v593
    %v3377 = vpop.f32.mrf.mxu0
    %v3378 = vadd.f32 %v3364, %v3377
    %v3379 = vpop.f32.mrf.mxu0
    %v3380 = vadd.f32 %v3366, %v3379
    %3381 = vdwg.mxu0
    %3382 = vmatpush.bf16.msra.mxu0 %v2250
    %3383 = vmatpush.bf16.msra.mxu0 %v2234
    %3384 = vmatpush.bf16.msra.mxu0 %v2218
    %3385 = vmatpush.bf16.msra.mxu0 %v2202
    %3386 = vmatpush.bf16.msra.mxu0 %v2186
    %3387 = vmatpush.bf16.msra.mxu0 %v2170
    %3388 = vmatpush.bf16.msra.mxu0 %v2154
    %3389 = vmatpush.bf16.msra.mxu0 %v2138
    %3390 = vmatmul.bf16.gmra.mxu0 %v590
    %v3391 = vpop.f32.mrf.mxu0
    %v3392 = vadd.f32 0.0, %v3391
    %v3393 = vpop.f32.mrf.mxu0
    %v3394 = vadd.f32 0.0, %v3393
    %3395 = vdwg.mxu0
    %3396 = vmatpush.bf16.msra.mxu0 %v2378
    %3397 = vmatpush.bf16.msra.mxu0 %v2362
    %3398 = vmatpush.bf16.msra.mxu0 %v2346
    %3399 = vmatpush.bf16.msra.mxu0 %v2330
    %3400 = vmatpush.bf16.msra.mxu0 %v2314
    %3401 = vmatpush.bf16.msra.mxu0 %v2298
    %3402 = vmatpush.bf16.msra.mxu0 %v2282
    %3403 = vmatpush.bf16.msra.mxu0 %v2266
    %3404 = vmatmul.bf16.gmra.mxu0 %v591
    %v3405 = vpop.f32.mrf.mxu0
    %v3406 = vadd.f32 %v3392, %v3405
    %v3407 = vpop.f32.mrf.mxu0
    %v3408 = vadd.f32 %v3394, %v3407
    %3409 = vdwg.mxu0
    %3410 = vmatpush.bf16.msra.mxu0 %v2506
    %3411 = vmatpush.bf16.msra.mxu0 %v2490
    %3412 = vmatpush.bf16.msra.mxu0 %v2474
    %3413 = vmatpush.bf16.msra.mxu0 %v2458
    %3414 = vmatpush.bf16.msra.mxu0 %v2442
    %3415 = vmatpush.bf16.msra.mxu0 %v2426
    %3416 = vmatpush.bf16.msra.mxu0 %v2410
    %3417 = vmatpush.bf16.msra.mxu0 %v2394
    %3418 = vmatmul.bf16.gmra.mxu0 %v592
    %v3419 = vpop.f32.mrf.mxu0
    %v3420 = vadd.f32 %v3406, %v3419
    %v3421 = vpop.f32.mrf.mxu0
    %v3422 = vadd.f32 %v3408, %v3421
    %3423 = vdwg.mxu0
    %3424 = vmatpush.bf16.msra.mxu0 %v2634
    %3425 = vmatpush.bf16.msra.mxu0 %v2618
    %3426 = vmatpush.bf16.msra.mxu0 %v2602
    %3427 = vmatpush.bf16.msra.mxu0 %v2586
    %3428 = vmatpush.bf16.msra.mxu0 %v2570
    %3429 = vmatpush.bf16.msra.mxu0 %v2554
    %3430 = vmatpush.bf16.msra.mxu0 %v2538
    %3431 = vmatpush.bf16.msra.mxu0 %v2522
    %3432 = vmatmul.bf16.gmra.mxu0 %v593
    %v3433 = vpop.f32.mrf.mxu0
    %v3434 = vadd.f32 %v3420, %v3433
    %v3435 = vpop.f32.mrf.mxu0
    %v3436 = vadd.f32 %v3422, %v3435
    %3437 = vdwg.mxu0
    %3438 = vmatpush.bf16.msra.mxu0 %v2251
    %3439 = vmatpush.bf16.msra.mxu0 %v2235
    %3440 = vmatpush.bf16.msra.mxu0 %v2219
    %3441 = vmatpush.bf16.msra.mxu0 %v2203
    %3442 = vmatpush.bf16.msra.mxu0 %v2187
    %3443 = vmatpush.bf16.msra.mxu0 %v2171
    %3444 = vmatpush.bf16.msra.mxu0 %v2155
    %3445 = vmatpush.bf16.msra.mxu0 %v2139
    %3446 = vmatmul.bf16.gmra.mxu0 %v590
    %v3447 = vpop.f32.mrf.mxu0
    %v3448 = vadd.f32 0.0, %v3447
    %v3449 = vpop.f32.mrf.mxu0
    %v3450 = vadd.f32 0.0, %v3449
    %3451 = vdwg.mxu0
    %3452 = vmatpush.bf16.msra.mxu0 %v2379
    %3453 = vmatpush.bf16.msra.mxu0 %v2363
    %3454 = vmatpush.bf16.msra.mxu0 %v2347
    %3455 = vmatpush.bf16.msra.mxu0 %v2331
    %3456 = vmatpush.bf16.msra.mxu0 %v2315
    %3457 = vmatpush.bf16.msra.mxu0 %v2299
    %3458 = vmatpush.bf16.msra.mxu0 %v2283
    %3459 = vmatpush.bf16.msra.mxu0 %v2267
    %3460 = vmatmul.bf16.gmra.mxu0 %v591
    %v3461 = vpop.f32.mrf.mxu0
    %v3462 = vadd.f32 %v3448, %v3461
    %v3463 = vpop.f32.mrf.mxu0
    %v3464 = vadd.f32 %v3450, %v3463
    %3465 = vdwg.mxu0
    %3466 = vmatpush.bf16.msra.mxu0 %v2507
    %3467 = vmatpush.bf16.msra.mxu0 %v2491
    %3468 = vmatpush.bf16.msra.mxu0 %v2475
    %3469 = vmatpush.bf16.msra.mxu0 %v2459
    %3470 = vmatpush.bf16.msra.mxu0 %v2443
    %3471 = vmatpush.bf16.msra.mxu0 %v2427
    %3472 = vmatpush.bf16.msra.mxu0 %v2411
    %3473 = vmatpush.bf16.msra.mxu0 %v2395
    %3474 = vmatmul.bf16.gmra.mxu0 %v592
    %v3475 = vpop.f32.mrf.mxu0
    %v3476 = vadd.f32 %v3462, %v3475
    %v3477 = vpop.f32.mrf.mxu0
    %v3478 = vadd.f32 %v3464, %v3477
    %3479 = vdwg.mxu0
    %3480 = vmatpush.bf16.msra.mxu0 %v2635
    %3481 = vmatpush.bf16.msra.mxu0 %v2619
    %3482 = vmatpush.bf16.msra.mxu0 %v2603
    %3483 = vmatpush.bf16.msra.mxu0 %v2587
    %3484 = vmatpush.bf16.msra.mxu0 %v2571
    %3485 = vmatpush.bf16.msra.mxu0 %v2555
    %3486 = vmatpush.bf16.msra.mxu0 %v2539
    %3487 = vmatpush.bf16.msra.mxu0 %v2523
    %3488 = vmatmul.bf16.gmra.mxu0 %v593
    %v3489 = vpop.f32.mrf.mxu0
    %v3490 = vadd.f32 %v3476, %v3489
    %v3491 = vpop.f32.mrf.mxu0
    %v3492 = vadd.f32 %v3478, %v3491
    %3493 = vdwg.mxu0
    %3494 = vmatpush.bf16.msra.mxu0 %v2252
    %3495 = vmatpush.bf16.msra.mxu0 %v2236
    %3496 = vmatpush.bf16.msra.mxu0 %v2220
    %3497 = vmatpush.bf16.msra.mxu0 %v2204
    %3498 = vmatpush.bf16.msra.mxu0 %v2188
    %3499 = vmatpush.bf16.msra.mxu0 %v2172
    %3500 = vmatpush.bf16.msra.mxu0 %v2156
    %3501 = vmatpush.bf16.msra.mxu0 %v2140
    %3502 = vmatmul.bf16.gmra.mxu0 %v590
    %v3503 = vpop.f32.mrf.mxu0
    %v3504 = vadd.f32 0.0, %v3503
    %v3505 = vpop.f32.mrf.mxu0
    %v3506 = vadd.f32 0.0, %v3505
    %3507 = vdwg.mxu0
    %3508 = vmatpush.bf16.msra.mxu0 %v2380
    %3509 = vmatpush.bf16.msra.mxu0 %v2364
    %3510 = vmatpush.bf16.msra.mxu0 %v2348
    %3511 = vmatpush.bf16.msra.mxu0 %v2332
    %3512 = vmatpush.bf16.msra.mxu0 %v2316
    %3513 = vmatpush.bf16.msra.mxu0 %v2300
    %3514 = vmatpush.bf16.msra.mxu0 %v2284
    %3515 = vmatpush.bf16.msra.mxu0 %v2268
    %3516 = vmatmul.bf16.gmra.mxu0 %v591
    %v3517 = vpop.f32.mrf.mxu0
    %v3518 = vadd.f32 %v3504, %v3517
    %v3519 = vpop.f32.mrf.mxu0
    %v3520 = vadd.f32 %v3506, %v3519
    %3521 = vdwg.mxu0
    %3522 = vmatpush.bf16.msra.mxu0 %v2508
    %3523 = vmatpush.bf16.msra.mxu0 %v2492
    %3524 = vmatpush.bf16.msra.mxu0 %v2476
    %3525 = vmatpush.bf16.msra.mxu0 %v2460
    %3526 = vmatpush.bf16.msra.mxu0 %v2444
    %3527 = vmatpush.bf16.msra.mxu0 %v2428
    %3528 = vmatpush.bf16.msra.mxu0 %v2412
    %3529 = vmatpush.bf16.msra.mxu0 %v2396
    %3530 = vmatmul.bf16.gmra.mxu0 %v592
    %v3531 = vpop.f32.mrf.mxu0
    %v3532 = vadd.f32 %v3518, %v3531
    %v3533 = vpop.f32.mrf.mxu0
    %v3534 = vadd.f32 %v3520, %v3533
    %3535 = vdwg.mxu0
    %3536 = vmatpush.bf16.msra.mxu0 %v2636
    %3537 = vmatpush.bf16.msra.mxu0 %v2620
    %3538 = vmatpush.bf16.msra.mxu0 %v2604
    %3539 = vmatpush.bf16.msra.mxu0 %v2588
    %3540 = vmatpush.bf16.msra.mxu0 %v2572
    %3541 = vmatpush.bf16.msra.mxu0 %v2556
    %3542 = vmatpush.bf16.msra.mxu0 %v2540
    %3543 = vmatpush.bf16.msra.mxu0 %v2524
    %3544 = vmatmul.bf16.gmra.mxu0 %v593
    %v3545 = vpop.f32.mrf.mxu0
    %v3546 = vadd.f32 %v3532, %v3545
    %v3547 = vpop.f32.mrf.mxu0
    %v3548 = vadd.f32 %v3534, %v3547
    %3549 = vdwg.mxu0
    %3550 = vmatpush.bf16.msra.mxu0 %v2253
    %3551 = vmatpush.bf16.msra.mxu0 %v2237
    %3552 = vmatpush.bf16.msra.mxu0 %v2221
    %3553 = vmatpush.bf16.msra.mxu0 %v2205
    %3554 = vmatpush.bf16.msra.mxu0 %v2189
    %3555 = vmatpush.bf16.msra.mxu0 %v2173
    %3556 = vmatpush.bf16.msra.mxu0 %v2157
    %3557 = vmatpush.bf16.msra.mxu0 %v2141
    %3558 = vmatmul.bf16.gmra.mxu0 %v590
    %v3559 = vpop.f32.mrf.mxu0
    %v3560 = vadd.f32 0.0, %v3559
    %v3561 = vpop.f32.mrf.mxu0
    %v3562 = vadd.f32 0.0, %v3561
    %3563 = vdwg.mxu0
    %3564 = vmatpush.bf16.msra.mxu0 %v2381
    %3565 = vmatpush.bf16.msra.mxu0 %v2365
    %3566 = vmatpush.bf16.msra.mxu0 %v2349
    %3567 = vmatpush.bf16.msra.mxu0 %v2333
    %3568 = vmatpush.bf16.msra.mxu0 %v2317
    %3569 = vmatpush.bf16.msra.mxu0 %v2301
    %3570 = vmatpush.bf16.msra.mxu0 %v2285
    %3571 = vmatpush.bf16.msra.mxu0 %v2269
    %3572 = vmatmul.bf16.gmra.mxu0 %v591
    %v3573 = vpop.f32.mrf.mxu0
    %v3574 = vadd.f32 %v3560, %v3573
    %v3575 = vpop.f32.mrf.mxu0
    %v3576 = vadd.f32 %v3562, %v3575
    %3577 = vdwg.mxu0
    %3578 = vmatpush.bf16.msra.mxu0 %v2509
    %3579 = vmatpush.bf16.msra.mxu0 %v2493
    %3580 = vmatpush.bf16.msra.mxu0 %v2477
    %3581 = vmatpush.bf16.msra.mxu0 %v2461
    %3582 = vmatpush.bf16.msra.mxu0 %v2445
    %3583 = vmatpush.bf16.msra.mxu0 %v2429
    %3584 = vmatpush.bf16.msra.mxu0 %v2413
    %3585 = vmatpush.bf16.msra.mxu0 %v2397
    %3586 = vmatmul.bf16.gmra.mxu0 %v592
    %v3587 = vpop.f32.mrf.mxu0
    %v3588 = vadd.f32 %v3574, %v3587
    %v3589 = vpop.f32.mrf.mxu0
    %v3590 = vadd.f32 %v3576, %v3589
    %3591 = vdwg.mxu0
    %3592 = vmatpush.bf16.msra.mxu0 %v2637
    %3593 = vmatpush.bf16.msra.mxu0 %v2621
    %3594 = vmatpush.bf16.msra.mxu0 %v2605
    %3595 = vmatpush.bf16.msra.mxu0 %v2589
    %3596 = vmatpush.bf16.msra.mxu0 %v2573
    %3597 = vmatpush.bf16.msra.mxu0 %v2557
    %3598 = vmatpush.bf16.msra.mxu0 %v2541
    %3599 = vmatpush.bf16.msra.mxu0 %v2525
    %3600 = vmatmul.bf16.gmra.mxu0 %v593
    %v3601 = vpop.f32.mrf.mxu0
    %v3602 = vadd.f32 %v3588, %v3601
    %v3603 = vpop.f32.mrf.mxu0
    %v3604 = vadd.f32 %v3590, %v3603
    %3605 = vdwg.mxu0
    %3606 = vmatpush.bf16.msra.mxu0 %v2254
    %3607 = vmatpush.bf16.msra.mxu0 %v2238
    %3608 = vmatpush.bf16.msra.mxu0 %v2222
    %3609 = vmatpush.bf16.msra.mxu0 %v2206
    %3610 = vmatpush.bf16.msra.mxu0 %v2190
    %3611 = vmatpush.bf16.msra.mxu0 %v2174
    %3612 = vmatpush.bf16.msra.mxu0 %v2158
    %3613 = vmatpush.bf16.msra.mxu0 %v2142
    %3614 = vmatmul.bf16.gmra.mxu0 %v590
    %v3615 = vpop.f32.mrf.mxu0
    %v3616 = vadd.f32 0.0, %v3615
    %v3617 = vpop.f32.mrf.mxu0
    %v3618 = vadd.f32 0.0, %v3617
    %3619 = vdwg.mxu0
    %3620 = vmatpush.bf16.msra.mxu0 %v2382
    %3621 = vmatpush.bf16.msra.mxu0 %v2366
    %3622 = vmatpush.bf16.msra.mxu0 %v2350
    %3623 = vmatpush.bf16.msra.mxu0 %v2334
    %3624 = vmatpush.bf16.msra.mxu0 %v2318
    %3625 = vmatpush.bf16.msra.mxu0 %v2302
    %3626 = vmatpush.bf16.msra.mxu0 %v2286
    %3627 = vmatpush.bf16.msra.mxu0 %v2270
    %3628 = vmatmul.bf16.gmra.mxu0 %v591
    %v3629 = vpop.f32.mrf.mxu0
    %v3630 = vadd.f32 %v3616, %v3629
    %v3631 = vpop.f32.mrf.mxu0
    %v3632 = vadd.f32 %v3618, %v3631
    %3633 = vdwg.mxu0
    %3634 = vmatpush.bf16.msra.mxu0 %v2510
    %3635 = vmatpush.bf16.msra.mxu0 %v2494
    %3636 = vmatpush.bf16.msra.mxu0 %v2478
    %3637 = vmatpush.bf16.msra.mxu0 %v2462
    %3638 = vmatpush.bf16.msra.mxu0 %v2446
    %3639 = vmatpush.bf16.msra.mxu0 %v2430
    %3640 = vmatpush.bf16.msra.mxu0 %v2414
    %3641 = vmatpush.bf16.msra.mxu0 %v2398
    %3642 = vmatmul.bf16.gmra.mxu0 %v592
    %v3643 = vpop.f32.mrf.mxu0
    %v3644 = vadd.f32 %v3630, %v3643
    %v3645 = vpop.f32.mrf.mxu0
    %v3646 = vadd.f32 %v3632, %v3645
    %3647 = vdwg.mxu0
    %3648 = vmatpush.bf16.msra.mxu0 %v2638
    %3649 = vmatpush.bf16.msra.mxu0 %v2622
    %3650 = vmatpush.bf16.msra.mxu0 %v2606
    %3651 = vmatpush.bf16.msra.mxu0 %v2590
    %3652 = vmatpush.bf16.msra.mxu0 %v2574
    %3653 = vmatpush.bf16.msra.mxu0 %v2558
    %3654 = vmatpush.bf16.msra.mxu0 %v2542
    %3655 = vmatpush.bf16.msra.mxu0 %v2526
    %3656 = vmatmul.bf16.gmra.mxu0 %v593
    %v3657 = vpop.f32.mrf.mxu0
    %v3658 = vadd.f32 %v3644, %v3657
    %v3659 = vpop.f32.mrf.mxu0
    %v3660 = vadd.f32 %v3646, %v3659
    %3661 = vdwg.mxu0
    %3662 = vmatpush.bf16.msra.mxu0 %v2255
    %3663 = vmatpush.bf16.msra.mxu0 %v2239
    %3664 = vmatpush.bf16.msra.mxu0 %v2223
    %3665 = vmatpush.bf16.msra.mxu0 %v2207
    %3666 = vmatpush.bf16.msra.mxu0 %v2191
    %3667 = vmatpush.bf16.msra.mxu0 %v2175
    %3668 = vmatpush.bf16.msra.mxu0 %v2159
    %3669 = vmatpush.bf16.msra.mxu0 %v2143
    %3670 = vmatmul.bf16.gmra.mxu0 %v590
    %v3671 = vpop.f32.mrf.mxu0
    %v3672 = vadd.f32 0.0, %v3671
    %v3673 = vpop.f32.mrf.mxu0
    %v3674 = vadd.f32 0.0, %v3673
    %3675 = vdwg.mxu0
    %3676 = vmatpush.bf16.msra.mxu0 %v2383
    %3677 = vmatpush.bf16.msra.mxu0 %v2367
    %3678 = vmatpush.bf16.msra.mxu0 %v2351
    %3679 = vmatpush.bf16.msra.mxu0 %v2335
    %3680 = vmatpush.bf16.msra.mxu0 %v2319
    %3681 = vmatpush.bf16.msra.mxu0 %v2303
    %3682 = vmatpush.bf16.msra.mxu0 %v2287
    %3683 = vmatpush.bf16.msra.mxu0 %v2271
    %3684 = vmatmul.bf16.gmra.mxu0 %v591
    %v3685 = vpop.f32.mrf.mxu0
    %v3686 = vadd.f32 %v3672, %v3685
    %v3687 = vpop.f32.mrf.mxu0
    %v3688 = vadd.f32 %v3674, %v3687
    %3689 = vdwg.mxu0
    %3690 = vmatpush.bf16.msra.mxu0 %v2511
    %3691 = vmatpush.bf16.msra.mxu0 %v2495
    %3692 = vmatpush.bf16.msra.mxu0 %v2479
    %3693 = vmatpush.bf16.msra.mxu0 %v2463
    %3694 = vmatpush.bf16.msra.mxu0 %v2447
    %3695 = vmatpush.bf16.msra.mxu0 %v2431
    %3696 = vmatpush.bf16.msra.mxu0 %v2415
    %3697 = vmatpush.bf16.msra.mxu0 %v2399
    %3698 = vmatmul.bf16.gmra.mxu0 %v592
    %v3699 = vpop.f32.mrf.mxu0
    %v3700 = vadd.f32 %v3686, %v3699
    %v3701 = vpop.f32.mrf.mxu0
    %v3702 = vadd.f32 %v3688, %v3701
    %3703 = vdwg.mxu0
    %3704 = vmatpush.bf16.msra.mxu0 %v2639
    %3705 = vmatpush.bf16.msra.mxu0 %v2623
    %3706 = vmatpush.bf16.msra.mxu0 %v2607
    %3707 = vmatpush.bf16.msra.mxu0 %v2591
    %3708 = vmatpush.bf16.msra.mxu0 %v2575
    %3709 = vmatpush.bf16.msra.mxu0 %v2559
    %3710 = vmatpush.bf16.msra.mxu0 %v2543
    %3711 = vmatpush.bf16.msra.mxu0 %v2527
    %3712 = vmatmul.bf16.gmra.mxu0 %v593
    %v3713 = vpop.f32.mrf.mxu0
    %v3714 = vadd.f32 %v3700, %v3713
    %v3715 = vpop.f32.mrf.mxu0
    %v3716 = vadd.f32 %v3702, %v3715
    %3717 = vdwg.mxu0
    %3718 = vmatpush.bf16.msra.mxu0 %v2256
    %3719 = vmatpush.bf16.msra.mxu0 %v2240
    %3720 = vmatpush.bf16.msra.mxu0 %v2224
    %3721 = vmatpush.bf16.msra.mxu0 %v2208
    %3722 = vmatpush.bf16.msra.mxu0 %v2192
    %3723 = vmatpush.bf16.msra.mxu0 %v2176
    %3724 = vmatpush.bf16.msra.mxu0 %v2160
    %3725 = vmatpush.bf16.msra.mxu0 %v2144
    %3726 = vmatmul.bf16.gmra.mxu0 %v590
    %v3727 = vpop.f32.mrf.mxu0
    %v3728 = vadd.f32 0.0, %v3727
    %v3729 = vpop.f32.mrf.mxu0
    %v3730 = vadd.f32 0.0, %v3729
    %3731 = vdwg.mxu0
    %3732 = vmatpush.bf16.msra.mxu0 %v2384
    %3733 = vmatpush.bf16.msra.mxu0 %v2368
    %3734 = vmatpush.bf16.msra.mxu0 %v2352
    %3735 = vmatpush.bf16.msra.mxu0 %v2336
    %3736 = vmatpush.bf16.msra.mxu0 %v2320
    %3737 = vmatpush.bf16.msra.mxu0 %v2304
    %3738 = vmatpush.bf16.msra.mxu0 %v2288
    %3739 = vmatpush.bf16.msra.mxu0 %v2272
    %3740 = vmatmul.bf16.gmra.mxu0 %v591
    %v3741 = vpop.f32.mrf.mxu0
    %v3742 = vadd.f32 %v3728, %v3741
    %v3743 = vpop.f32.mrf.mxu0
    %v3744 = vadd.f32 %v3730, %v3743
    %3745 = vdwg.mxu0
    %3746 = vmatpush.bf16.msra.mxu0 %v2512
    %3747 = vmatpush.bf16.msra.mxu0 %v2496
    %3748 = vmatpush.bf16.msra.mxu0 %v2480
    %3749 = vmatpush.bf16.msra.mxu0 %v2464
    %3750 = vmatpush.bf16.msra.mxu0 %v2448
    %3751 = vmatpush.bf16.msra.mxu0 %v2432
    %3752 = vmatpush.bf16.msra.mxu0 %v2416
    %3753 = vmatpush.bf16.msra.mxu0 %v2400
    %3754 = vmatmul.bf16.gmra.mxu0 %v592
    %v3755 = vpop.f32.mrf.mxu0
    %v3756 = vadd.f32 %v3742, %v3755
    %v3757 = vpop.f32.mrf.mxu0
    %v3758 = vadd.f32 %v3744, %v3757
    %3759 = vdwg.mxu0
    %3760 = vmatpush.bf16.msra.mxu0 %v2640
    %3761 = vmatpush.bf16.msra.mxu0 %v2624
    %3762 = vmatpush.bf16.msra.mxu0 %v2608
    %3763 = vmatpush.bf16.msra.mxu0 %v2592
    %3764 = vmatpush.bf16.msra.mxu0 %v2576
    %3765 = vmatpush.bf16.msra.mxu0 %v2560
    %3766 = vmatpush.bf16.msra.mxu0 %v2544
    %3767 = vmatpush.bf16.msra.mxu0 %v2528
    %3768 = vmatmul.bf16.gmra.mxu0 %v593
    %v3769 = vpop.f32.mrf.mxu0
    %v3770 = vadd.f32 %v3756, %v3769
    %v3771 = vpop.f32.mrf.mxu0
    %v3772 = vadd.f32 %v3758, %v3771
    %3773 = vdwg.mxu0
    %3774 = vmatpush.bf16.msra.mxu0 %v2257
    %3775 = vmatpush.bf16.msra.mxu0 %v2241
    %3776 = vmatpush.bf16.msra.mxu0 %v2225
    %3777 = vmatpush.bf16.msra.mxu0 %v2209
    %3778 = vmatpush.bf16.msra.mxu0 %v2193
    %3779 = vmatpush.bf16.msra.mxu0 %v2177
    %3780 = vmatpush.bf16.msra.mxu0 %v2161
    %3781 = vmatpush.bf16.msra.mxu0 %v2145
    %3782 = vmatmul.bf16.gmra.mxu0 %v590
    %v3783 = vpop.f32.mrf.mxu0
    %v3784 = vadd.f32 0.0, %v3783
    %v3785 = vpop.f32.mrf.mxu0
    %v3786 = vadd.f32 0.0, %v3785
    %3787 = vdwg.mxu0
    %3788 = vmatpush.bf16.msra.mxu0 %v2385
    %3789 = vmatpush.bf16.msra.mxu0 %v2369
    %3790 = vmatpush.bf16.msra.mxu0 %v2353
    %3791 = vmatpush.bf16.msra.mxu0 %v2337
    %3792 = vmatpush.bf16.msra.mxu0 %v2321
    %3793 = vmatpush.bf16.msra.mxu0 %v2305
    %3794 = vmatpush.bf16.msra.mxu0 %v2289
    %3795 = vmatpush.bf16.msra.mxu0 %v2273
    %3796 = vmatmul.bf16.gmra.mxu0 %v591
    %v3797 = vpop.f32.mrf.mxu0
    %v3798 = vadd.f32 %v3784, %v3797
    %v3799 = vpop.f32.mrf.mxu0
    %v3800 = vadd.f32 %v3786, %v3799
    %3801 = vdwg.mxu0
    %3802 = vmatpush.bf16.msra.mxu0 %v2513
    %3803 = vmatpush.bf16.msra.mxu0 %v2497
    %3804 = vmatpush.bf16.msra.mxu0 %v2481
    %3805 = vmatpush.bf16.msra.mxu0 %v2465
    %3806 = vmatpush.bf16.msra.mxu0 %v2449
    %3807 = vmatpush.bf16.msra.mxu0 %v2433
    %3808 = vmatpush.bf16.msra.mxu0 %v2417
    %3809 = vmatpush.bf16.msra.mxu0 %v2401
    %3810 = vmatmul.bf16.gmra.mxu0 %v592
    %v3811 = vpop.f32.mrf.mxu0
    %v3812 = vadd.f32 %v3798, %v3811
    %v3813 = vpop.f32.mrf.mxu0
    %v3814 = vadd.f32 %v3800, %v3813
    %3815 = vdwg.mxu0
    %3816 = vmatpush.bf16.msra.mxu0 %v2641
    %3817 = vmatpush.bf16.msra.mxu0 %v2625
    %3818 = vmatpush.bf16.msra.mxu0 %v2609
    %3819 = vmatpush.bf16.msra.mxu0 %v2593
    %3820 = vmatpush.bf16.msra.mxu0 %v2577
    %3821 = vmatpush.bf16.msra.mxu0 %v2561
    %3822 = vmatpush.bf16.msra.mxu0 %v2545
    %3823 = vmatpush.bf16.msra.mxu0 %v2529
    %3824 = vmatmul.bf16.gmra.mxu0 %v593
    %v3825 = vpop.f32.mrf.mxu0
    %v3826 = vadd.f32 %v3812, %v3825
    %v3827 = vpop.f32.mrf.mxu0
    %v3828 = vadd.f32 %v3814, %v3827
    %3829 = vdwg.mxu0
    %3830 = vmatpush.bf16.msra.mxu0 %v2258
    %3831 = vmatpush.bf16.msra.mxu0 %v2242
    %3832 = vmatpush.bf16.msra.mxu0 %v2226
    %3833 = vmatpush.bf16.msra.mxu0 %v2210
    %3834 = vmatpush.bf16.msra.mxu0 %v2194
    %3835 = vmatpush.bf16.msra.mxu0 %v2178
    %3836 = vmatpush.bf16.msra.mxu0 %v2162
    %3837 = vmatpush.bf16.msra.mxu0 %v2146
    %3838 = vmatmul.bf16.gmra.mxu0 %v590
    %v3839 = vpop.f32.mrf.mxu0
    %v3840 = vadd.f32 0.0, %v3839
    %v3841 = vpop.f32.mrf.mxu0
    %v3842 = vadd.f32 0.0, %v3841
    %3843 = vdwg.mxu0
    %3844 = vmatpush.bf16.msra.mxu0 %v2386
    %3845 = vmatpush.bf16.msra.mxu0 %v2370
    %3846 = vmatpush.bf16.msra.mxu0 %v2354
    %3847 = vmatpush.bf16.msra.mxu0 %v2338
    %3848 = vmatpush.bf16.msra.mxu0 %v2322
    %3849 = vmatpush.bf16.msra.mxu0 %v2306
    %3850 = vmatpush.bf16.msra.mxu0 %v2290
    %3851 = vmatpush.bf16.msra.mxu0 %v2274
    %3852 = vmatmul.bf16.gmra.mxu0 %v591
    %v3853 = vpop.f32.mrf.mxu0
    %v3854 = vadd.f32 %v3840, %v3853
    %v3855 = vpop.f32.mrf.mxu0
    %v3856 = vadd.f32 %v3842, %v3855
    %3857 = vdwg.mxu0
    %3858 = vmatpush.bf16.msra.mxu0 %v2514
    %3859 = vmatpush.bf16.msra.mxu0 %v2498
    %3860 = vmatpush.bf16.msra.mxu0 %v2482
    %3861 = vmatpush.bf16.msra.mxu0 %v2466
    %3862 = vmatpush.bf16.msra.mxu0 %v2450
    %3863 = vmatpush.bf16.msra.mxu0 %v2434
    %3864 = vmatpush.bf16.msra.mxu0 %v2418
    %3865 = vmatpush.bf16.msra.mxu0 %v2402
    %3866 = vmatmul.bf16.gmra.mxu0 %v592
    %v3867 = vpop.f32.mrf.mxu0
    %v3868 = vadd.f32 %v3854, %v3867
    %v3869 = vpop.f32.mrf.mxu0
    %v3870 = vadd.f32 %v3856, %v3869
    %3871 = vdwg.mxu0
    %3872 = vmatpush.bf16.msra.mxu0 %v2642
    %3873 = vmatpush.bf16.msra.mxu0 %v2626
    %3874 = vmatpush.bf16.msra.mxu0 %v2610
    %3875 = vmatpush.bf16.msra.mxu0 %v2594
    %3876 = vmatpush.bf16.msra.mxu0 %v2578
    %3877 = vmatpush.bf16.msra.mxu0 %v2562
    %3878 = vmatpush.bf16.msra.mxu0 %v2546
    %3879 = vmatpush.bf16.msra.mxu0 %v2530
    %3880 = vmatmul.bf16.gmra.mxu0 %v593
    %v3881 = vpop.f32.mrf.mxu0
    %v3882 = vadd.f32 %v3868, %v3881
    %v3883 = vpop.f32.mrf.mxu0
    %v3884 = vadd.f32 %v3870, %v3883
    %3885 = vdwg.mxu0
    %3886 = vmatpush.bf16.msra.mxu0 %v2259
    %3887 = vmatpush.bf16.msra.mxu0 %v2243
    %3888 = vmatpush.bf16.msra.mxu0 %v2227
    %3889 = vmatpush.bf16.msra.mxu0 %v2211
    %3890 = vmatpush.bf16.msra.mxu0 %v2195
    %3891 = vmatpush.bf16.msra.mxu0 %v2179
    %3892 = vmatpush.bf16.msra.mxu0 %v2163
    %3893 = vmatpush.bf16.msra.mxu0 %v2147
    %3894 = vmatmul.bf16.gmra.mxu0 %v590
    %v3895 = vpop.f32.mrf.mxu0
    %v3896 = vadd.f32 0.0, %v3895
    %v3897 = vpop.f32.mrf.mxu0
    %v3898 = vadd.f32 0.0, %v3897
    %3899 = vdwg.mxu0
    %3900 = vmatpush.bf16.msra.mxu0 %v2387
    %3901 = vmatpush.bf16.msra.mxu0 %v2371
    %3902 = vmatpush.bf16.msra.mxu0 %v2355
    %3903 = vmatpush.bf16.msra.mxu0 %v2339
    %3904 = vmatpush.bf16.msra.mxu0 %v2323
    %3905 = vmatpush.bf16.msra.mxu0 %v2307
    %3906 = vmatpush.bf16.msra.mxu0 %v2291
    %3907 = vmatpush.bf16.msra.mxu0 %v2275
    %3908 = vmatmul.bf16.gmra.mxu0 %v591
    %v3909 = vpop.f32.mrf.mxu0
    %v3910 = vadd.f32 %v3896, %v3909
    %v3911 = vpop.f32.mrf.mxu0
    %v3912 = vadd.f32 %v3898, %v3911
    %3913 = vdwg.mxu0
    %3914 = vmatpush.bf16.msra.mxu0 %v2515
    %3915 = vmatpush.bf16.msra.mxu0 %v2499
    %3916 = vmatpush.bf16.msra.mxu0 %v2483
    %3917 = vmatpush.bf16.msra.mxu0 %v2467
    %3918 = vmatpush.bf16.msra.mxu0 %v2451
    %3919 = vmatpush.bf16.msra.mxu0 %v2435
    %3920 = vmatpush.bf16.msra.mxu0 %v2419
    %3921 = vmatpush.bf16.msra.mxu0 %v2403
    %3922 = vmatmul.bf16.gmra.mxu0 %v592
    %v3923 = vpop.f32.mrf.mxu0
    %v3924 = vadd.f32 %v3910, %v3923
    %v3925 = vpop.f32.mrf.mxu0
    %v3926 = vadd.f32 %v3912, %v3925
    %3927 = vdwg.mxu0
    %3928 = vmatpush.bf16.msra.mxu0 %v2643
    %3929 = vmatpush.bf16.msra.mxu0 %v2627
    %3930 = vmatpush.bf16.msra.mxu0 %v2611
    %3931 = vmatpush.bf16.msra.mxu0 %v2595
    %3932 = vmatpush.bf16.msra.mxu0 %v2579
    %3933 = vmatpush.bf16.msra.mxu0 %v2563
    %3934 = vmatpush.bf16.msra.mxu0 %v2547
    %3935 = vmatpush.bf16.msra.mxu0 %v2531
    %3936 = vmatmul.bf16.gmra.mxu0 %v593
    %v3937 = vpop.f32.mrf.mxu0
    %v3938 = vadd.f32 %v3924, %v3937
    %v3939 = vpop.f32.mrf.mxu0
    %v3940 = vadd.f32 %v3926, %v3939
    %3941 = vdwg.mxu0
    %3942 = vmatpush.bf16.msra.mxu0 %v2260
    %3943 = vmatpush.bf16.msra.mxu0 %v2244
    %3944 = vmatpush.bf16.msra.mxu0 %v2228
    %3945 = vmatpush.bf16.msra.mxu0 %v2212
    %3946 = vmatpush.bf16.msra.mxu0 %v2196
    %3947 = vmatpush.bf16.msra.mxu0 %v2180
    %3948 = vmatpush.bf16.msra.mxu0 %v2164
    %3949 = vmatpush.bf16.msra.mxu0 %v2148
    %3950 = vmatmul.bf16.gmra.mxu0 %v590
    %v3951 = vpop.f32.mrf.mxu0
    %v3952 = vadd.f32 0.0, %v3951
    %v3953 = vpop.f32.mrf.mxu0
    %v3954 = vadd.f32 0.0, %v3953
    %3955 = vdwg.mxu0
    %3956 = vmatpush.bf16.msra.mxu0 %v2388
    %3957 = vmatpush.bf16.msra.mxu0 %v2372
    %3958 = vmatpush.bf16.msra.mxu0 %v2356
    %3959 = vmatpush.bf16.msra.mxu0 %v2340
    %3960 = vmatpush.bf16.msra.mxu0 %v2324
    %3961 = vmatpush.bf16.msra.mxu0 %v2308
    %3962 = vmatpush.bf16.msra.mxu0 %v2292
    %3963 = vmatpush.bf16.msra.mxu0 %v2276
    %3964 = vmatmul.bf16.gmra.mxu0 %v591
    %v3965 = vpop.f32.mrf.mxu0
    %v3966 = vadd.f32 %v3952, %v3965
    %v3967 = vpop.f32.mrf.mxu0
    %v3968 = vadd.f32 %v3954, %v3967
    %3969 = vdwg.mxu0
    %3970 = vmatpush.bf16.msra.mxu0 %v2516
    %3971 = vmatpush.bf16.msra.mxu0 %v2500
    %3972 = vmatpush.bf16.msra.mxu0 %v2484
    %3973 = vmatpush.bf16.msra.mxu0 %v2468
    %3974 = vmatpush.bf16.msra.mxu0 %v2452
    %3975 = vmatpush.bf16.msra.mxu0 %v2436
    %3976 = vmatpush.bf16.msra.mxu0 %v2420
    %3977 = vmatpush.bf16.msra.mxu0 %v2404
    %3978 = vmatmul.bf16.gmra.mxu0 %v592
    %v3979 = vpop.f32.mrf.mxu0
    %v3980 = vadd.f32 %v3966, %v3979
    %v3981 = vpop.f32.mrf.mxu0
    %v3982 = vadd.f32 %v3968, %v3981
    %3983 = vdwg.mxu0
    %3984 = vmatpush.bf16.msra.mxu0 %v2644
    %3985 = vmatpush.bf16.msra.mxu0 %v2628
    %3986 = vmatpush.bf16.msra.mxu0 %v2612
    %3987 = vmatpush.bf16.msra.mxu0 %v2596
    %3988 = vmatpush.bf16.msra.mxu0 %v2580
    %3989 = vmatpush.bf16.msra.mxu0 %v2564
    %3990 = vmatpush.bf16.msra.mxu0 %v2548
    %3991 = vmatpush.bf16.msra.mxu0 %v2532
    %3992 = vmatmul.bf16.gmra.mxu0 %v593
    %v3993 = vpop.f32.mrf.mxu0
    %v3994 = vadd.f32 %v3980, %v3993
    %v3995 = vpop.f32.mrf.mxu0
    %v3996 = vadd.f32 %v3982, %v3995
    %3997 = vdwg.mxu0
    %3998 = vmatpush.bf16.msra.mxu0 %v2261
    %3999 = vmatpush.bf16.msra.mxu0 %v2245
    %4000 = vmatpush.bf16.msra.mxu0 %v2229
    %4001 = vmatpush.bf16.msra.mxu0 %v2213
    %4002 = vmatpush.bf16.msra.mxu0 %v2197
    %4003 = vmatpush.bf16.msra.mxu0 %v2181
    %4004 = vmatpush.bf16.msra.mxu0 %v2165
    %4005 = vmatpush.bf16.msra.mxu0 %v2149
    %4006 = vmatmul.bf16.gmra.mxu0 %v590
    %v4007 = vpop.f32.mrf.mxu0
    %v4008 = vadd.f32 0.0, %v4007
    %v4009 = vpop.f32.mrf.mxu0
    %v4010 = vadd.f32 0.0, %v4009
    %4011 = vdwg.mxu0
    %4012 = vmatpush.bf16.msra.mxu0 %v2389
    %4013 = vmatpush.bf16.msra.mxu0 %v2373
    %4014 = vmatpush.bf16.msra.mxu0 %v2357
    %4015 = vmatpush.bf16.msra.mxu0 %v2341
    %4016 = vmatpush.bf16.msra.mxu0 %v2325
    %4017 = vmatpush.bf16.msra.mxu0 %v2309
    %4018 = vmatpush.bf16.msra.mxu0 %v2293
    %4019 = vmatpush.bf16.msra.mxu0 %v2277
    %4020 = vmatmul.bf16.gmra.mxu0 %v591
    %v4021 = vpop.f32.mrf.mxu0
    %v4022 = vadd.f32 %v4008, %v4021
    %v4023 = vpop.f32.mrf.mxu0
    %v4024 = vadd.f32 %v4010, %v4023
    %4025 = vdwg.mxu0
    %4026 = vmatpush.bf16.msra.mxu0 %v2517
    %4027 = vmatpush.bf16.msra.mxu0 %v2501
    %4028 = vmatpush.bf16.msra.mxu0 %v2485
    %4029 = vmatpush.bf16.msra.mxu0 %v2469
    %4030 = vmatpush.bf16.msra.mxu0 %v2453
    %4031 = vmatpush.bf16.msra.mxu0 %v2437
    %4032 = vmatpush.bf16.msra.mxu0 %v2421
    %4033 = vmatpush.bf16.msra.mxu0 %v2405
    %4034 = vmatmul.bf16.gmra.mxu0 %v592
    %v4035 = vpop.f32.mrf.mxu0
    %v4036 = vadd.f32 %v4022, %v4035
    %v4037 = vpop.f32.mrf.mxu0
    %v4038 = vadd.f32 %v4024, %v4037
    %4039 = vdwg.mxu0
    %4040 = vmatpush.bf16.msra.mxu0 %v2645
    %4041 = vmatpush.bf16.msra.mxu0 %v2629
    %4042 = vmatpush.bf16.msra.mxu0 %v2613
    %4043 = vmatpush.bf16.msra.mxu0 %v2597
    %4044 = vmatpush.bf16.msra.mxu0 %v2581
    %4045 = vmatpush.bf16.msra.mxu0 %v2565
    %4046 = vmatpush.bf16.msra.mxu0 %v2549
    %4047 = vmatpush.bf16.msra.mxu0 %v2533
    %4048 = vmatmul.bf16.gmra.mxu0 %v593
    %v4049 = vpop.f32.mrf.mxu0
    %v4050 = vadd.f32 %v4036, %v4049
    %v4051 = vpop.f32.mrf.mxu0
    %v4052 = vadd.f32 %v4038, %v4051
    %4053 = vdwg.mxu0
    %v4054 = vmul.f32 %v3210, %v3210
    %v4055 = vmul.f32 %v3266, %v3266
    %v4056 = vmul.f32 %v3322, %v3322
    %v4057 = vmul.f32 %v3378, %v3378
    %v4058 = vmul.f32 %v3434, %v3434
    %v4059 = vmul.f32 %v3490, %v3490
    %v4060 = vmul.f32 %v3546, %v3546
    %v4061 = vmul.f32 %v3602, %v3602
    %v4062 = vmul.f32 %v3658, %v3658
    %v4063 = vmul.f32 %v3714, %v3714
    %v4064 = vmul.f32 %v3770, %v3770
    %v4065 = vmul.f32 %v3826, %v3826
    %v4066 = vmul.f32 %v3882, %v3882
    %v4067 = vmul.f32 %v3938, %v3938
    %v4068 = vmul.f32 %v3994, %v3994
    %v4069 = vmul.f32 %v4050, %v4050
    %v4070 = vmul.f32 %v3212, %v3212
    %v4071 = vmul.f32 %v3268, %v3268
    %v4072 = vmul.f32 %v3324, %v3324
    %v4073 = vmul.f32 %v3380, %v3380
    %v4074 = vmul.f32 %v3436, %v3436
    %v4075 = vmul.f32 %v3492, %v3492
    %v4076 = vmul.f32 %v3548, %v3548
    %v4077 = vmul.f32 %v3604, %v3604
    %v4078 = vmul.f32 %v3660, %v3660
    %v4079 = vmul.f32 %v3716, %v3716
    %v4080 = vmul.f32 %v3772, %v3772
    %v4081 = vmul.f32 %v3828, %v3828
    %v4082 = vmul.f32 %v3884, %v3884
    %v4083 = vmul.f32 %v3940, %v3940
    %v4084 = vmul.f32 %v3996, %v3996
    %v4085 = vmul.f32 %v4052, %v4052
    %v4086 = vmul.f32 %v3210, %v4054
    %v4087 = vmul.f32 %v3266, %v4055
    %v4088 = vmul.f32 %v3322, %v4056
    %v4089 = vmul.f32 %v3378, %v4057
    %v4090 = vmul.f32 %v3434, %v4058
    %v4091 = vmul.f32 %v3490, %v4059
    %v4092 = vmul.f32 %v3546, %v4060
    %v4093 = vmul.f32 %v3602, %v4061
    %v4094 = vmul.f32 %v3658, %v4062
    %v4095 = vmul.f32 %v3714, %v4063
    %v4096 = vmul.f32 %v3770, %v4064
    %v4097 = vmul.f32 %v3826, %v4065
    %v4098 = vmul.f32 %v3882, %v4066
    %v4099 = vmul.f32 %v3938, %v4067
    %v4100 = vmul.f32 %v3994, %v4068
    %v4101 = vmul.f32 %v4050, %v4069
    %v4102 = vmul.f32 %v3212, %v4070
    %v4103 = vmul.f32 %v3268, %v4071
    %v4104 = vmul.f32 %v3324, %v4072
    %v4105 = vmul.f32 %v3380, %v4073
    %v4106 = vmul.f32 %v3436, %v4074
    %v4107 = vmul.f32 %v3492, %v4075
    %v4108 = vmul.f32 %v3548, %v4076
    %v4109 = vmul.f32 %v3604, %v4077
    %v4110 = vmul.f32 %v3660, %v4078
    %v4111 = vmul.f32 %v3716, %v4079
    %v4112 = vmul.f32 %v3772, %v4080
    %v4113 = vmul.f32 %v3828, %v4081
    %v4114 = vmul.f32 %v3884, %v4082
    %v4115 = vmul.f32 %v3940, %v4083
    %v4116 = vmul.f32 %v3996, %v4084
    %v4117 = vmul.f32 %v4052, %v4085
    %v4118 = vmul.f32 %v4086, 0.044715
    %v4119 = vmul.f32 %v4087, 0.044715
    %v4120 = vmul.f32 %v4088, 0.044715
    %v4121 = vmul.f32 %v4089, 0.044715
    %v4122 = vmul.f32 %v4090, 0.044715
    %v4123 = vmul.f32 %v4091, 0.044715
    %v4124 = vmul.f32 %v4092, 0.044715
    %v4125 = vmul.f32 %v4093, 0.044715
    %v4126 = vmul.f32 %v4094, 0.044715
    %v4127 = vmul.f32 %v4095, 0.044715
    %v4128 = vmul.f32 %v4096, 0.044715
    %v4129 = vmul.f32 %v4097, 0.044715
    %v4130 = vmul.f32 %v4098, 0.044715
    %v4131 = vmul.f32 %v4099, 0.044715
    %v4132 = vmul.f32 %v4100, 0.044715
    %v4133 = vmul.f32 %v4101, 0.044715
    %v4134 = vmul.f32 %v4102, 0.044715
    %v4135 = vmul.f32 %v4103, 0.044715
    %v4136 = vmul.f32 %v4104, 0.044715
    %v4137 = vmul.f32 %v4105, 0.044715
    %v4138 = vmul.f32 %v4106, 0.044715
    %v4139 = vmul.f32 %v4107, 0.044715
    %v4140 = vmul.f32 %v4108, 0.044715
    %v4141 = vmul.f32 %v4109, 0.044715
    %v4142 = vmul.f32 %v4110, 0.044715
    %v4143 = vmul.f32 %v4111, 0.044715
    %v4144 = vmul.f32 %v4112, 0.044715
    %v4145 = vmul.f32 %v4113, 0.044715
    %v4146 = vmul.f32 %v4114, 0.044715
    %v4147 = vmul.f32 %v4115, 0.044715
    %v4148 = vmul.f32 %v4116, 0.044715
    %v4149 = vmul.f32 %v4117, 0.044715
    %v4150 = vadd.f32 %v3210, %v4118
    %v4151 = vadd.f32 %v3266, %v4119
    %v4152 = vadd.f32 %v3322, %v4120
    %v4153 = vadd.f32 %v3378, %v4121
    %v4154 = vadd.f32 %v3434, %v4122
    %v4155 = vadd.f32 %v3490, %v4123
    %v4156 = vadd.f32 %v3546, %v4124
    %v4157 = vadd.f32 %v3602, %v4125
    %v4158 = vadd.f32 %v3658, %v4126
    %v4159 = vadd.f32 %v3714, %v4127
    %v4160 = vadd.f32 %v3770, %v4128
    %v4161 = vadd.f32 %v3826, %v4129
    %v4162 = vadd.f32 %v3882, %v4130
    %v4163 = vadd.f32 %v3938, %v4131
    %v4164 = vadd.f32 %v3994, %v4132
    %v4165 = vadd.f32 %v4050, %v4133
    %v4166 = vadd.f32 %v3212, %v4134
    %v4167 = vadd.f32 %v3268, %v4135
    %v4168 = vadd.f32 %v3324, %v4136
    %v4169 = vadd.f32 %v3380, %v4137
    %v4170 = vadd.f32 %v3436, %v4138
    %v4171 = vadd.f32 %v3492, %v4139
    %v4172 = vadd.f32 %v3548, %v4140
    %v4173 = vadd.f32 %v3604, %v4141
    %v4174 = vadd.f32 %v3660, %v4142
    %v4175 = vadd.f32 %v3716, %v4143
    %v4176 = vadd.f32 %v3772, %v4144
    %v4177 = vadd.f32 %v3828, %v4145
    %v4178 = vadd.f32 %v3884, %v4146
    %v4179 = vadd.f32 %v3940, %v4147
    %v4180 = vadd.f32 %v3996, %v4148
    %v4181 = vadd.f32 %v4052, %v4149
    %v4182 = vmul.f32 %v4150, 0.7978846
    %v4183 = vmul.f32 %v4151, 0.7978846
    %v4184 = vmul.f32 %v4152, 0.7978846
    %v4185 = vmul.f32 %v4153, 0.7978846
    %v4186 = vmul.f32 %v4154, 0.7978846
    %v4187 = vmul.f32 %v4155, 0.7978846
    %v4188 = vmul.f32 %v4156, 0.7978846
    %v4189 = vmul.f32 %v4157, 0.7978846
    %v4190 = vmul.f32 %v4158, 0.7978846
    %v4191 = vmul.f32 %v4159, 0.7978846
    %v4192 = vmul.f32 %v4160, 0.7978846
    %v4193 = vmul.f32 %v4161, 0.7978846
    %v4194 = vmul.f32 %v4162, 0.7978846
    %v4195 = vmul.f32 %v4163, 0.7978846
    %v4196 = vmul.f32 %v4164, 0.7978846
    %v4197 = vmul.f32 %v4165, 0.7978846
    %v4198 = vmul.f32 %v4166, 0.7978846
    %v4199 = vmul.f32 %v4167, 0.7978846
    %v4200 = vmul.f32 %v4168, 0.7978846
    %v4201 = vmul.f32 %v4169, 0.7978846
    %v4202 = vmul.f32 %v4170, 0.7978846
    %v4203 = vmul.f32 %v4171, 0.7978846
    %v4204 = vmul.f32 %v4172, 0.7978846
    %v4205 = vmul.f32 %v4173, 0.7978846
    %v4206 = vmul.f32 %v4174, 0.7978846
    %v4207 = vmul.f32 %v4175, 0.7978846
    %v4208 = vmul.f32 %v4176, 0.7978846
    %v4209 = vmul.f32 %v4177, 0.7978846
    %v4210 = vmul.f32 %v4178, 0.7978846
    %v4211 = vmul.f32 %v4179, 0.7978846
    %v4212 = vmul.f32 %v4180, 0.7978846
    %v4213 = vmul.f32 %v4181, 0.7978846
    %v4214 = vtanh.pop %v4182
    %v4215 = vtanh.pop %v4183
    %v4216 = vtanh.pop %v4184
    %v4217 = vtanh.pop %v4185
    %v4218 = vtanh.pop %v4186
    %v4219 = vtanh.pop %v4187
    %v4220 = vtanh.pop %v4188
    %v4221 = vtanh.pop %v4189
    %v4222 = vtanh.pop %v4190
    %v4223 = vtanh.pop %v4191
    %v4224 = vtanh.pop %v4192
    %v4225 = vtanh.pop %v4193
    %v4226 = vtanh.pop %v4194
    %v4227 = vtanh.pop %v4195
    %v4228 = vtanh.pop %v4196
    %v4229 = vtanh.pop %v4197
    %v4230 = vtanh.pop %v4198
    %v4231 = vtanh.pop %v4199
    %v4232 = vtanh.pop %v4200
    %v4233 = vtanh.pop %v4201
    %v4234 = vtanh.pop %v4202
    %v4235 = vtanh.pop %v4203
    %v4236 = vtanh.pop %v4204
    %v4237 = vtanh.pop %v4205
    %v4238 = vtanh.pop %v4206
    %v4239 = vtanh.pop %v4207
    %v4240 = vtanh.pop %v4208
    %v4241 = vtanh.pop %v4209
    %v4242 = vtanh.pop %v4210
    %v4243 = vtanh.pop %v4211
    %v4244 = vtanh.pop %v4212
    %v4245 = vtanh.pop %v4213
    %v4246 = vadd.f32 %v4214, 1.0
    %v4247 = vadd.f32 %v4215, 1.0
    %v4248 = vadd.f32 %v4216, 1.0
    %v4249 = vadd.f32 %v4217, 1.0
    %v4250 = vadd.f32 %v4218, 1.0
    %v4251 = vadd.f32 %v4219, 1.0
    %v4252 = vadd.f32 %v4220, 1.0
    %v4253 = vadd.f32 %v4221, 1.0
    %v4254 = vadd.f32 %v4222, 1.0
    %v4255 = vadd.f32 %v4223, 1.0
    %v4256 = vadd.f32 %v4224, 1.0
    %v4257 = vadd.f32 %v4225, 1.0
    %v4258 = vadd.f32 %v4226, 1.0
    %v4259 = vadd.f32 %v4227, 1.0
    %v4260 = vadd.f32 %v4228, 1.0
    %v4261 = vadd.f32 %v4229, 1.0
    %v4262 = vadd.f32 %v4230, 1.0
    %v4263 = vadd.f32 %v4231, 1.0
    %v4264 = vadd.f32 %v4232, 1.0
    %v4265 = vadd.f32 %v4233, 1.0
    %v4266 = vadd.f32 %v4234, 1.0
    %v4267 = vadd.f32 %v4235, 1.0
    %v4268 = vadd.f32 %v4236, 1.0
    %v4269 = vadd.f32 %v4237, 1.0
    %v4270 = vadd.f32 %v4238, 1.0
    %v4271 = vadd.f32 %v4239, 1.0
    %v4272 = vadd.f32 %v4240, 1.0
    %v4273 = vadd.f32 %v4241, 1.0
    %v4274 = vadd.f32 %v4242, 1.0
    %v4275 = vadd.f32 %v4243, 1.0
    %v4276 = vadd.f32 %v4244, 1.0
    %v4277 = vadd.f32 %v4245, 1.0
    %v4278 = vmul.f32 %v4246, 0.5
    %v4279 = vmul.f32 %v4247, 0.5
    %v4280 = vmul.f32 %v4248, 0.5
    %v4281 = vmul.f32 %v4249, 0.5
    %v4282 = vmul.f32 %v4250, 0.5
    %v4283 = vmul.f32 %v4251, 0.5
    %v4284 = vmul.f32 %v4252, 0.5
    %v4285 = vmul.f32 %v4253, 0.5
    %v4286 = vmul.f32 %v4254, 0.5
    %v4287 = vmul.f32 %v4255, 0.5
    %v4288 = vmul.f32 %v4256, 0.5
    %v4289 = vmul.f32 %v4257, 0.5
    %v4290 = vmul.f32 %v4258, 0.5
    %v4291 = vmul.f32 %v4259, 0.5
    %v4292 = vmul.f32 %v4260, 0.5
    %v4293 = vmul.f32 %v4261, 0.5
    %v4294 = vmul.f32 %v4262, 0.5
    %v4295 = vmul.f32 %v4263, 0.5
    %v4296 = vmul.f32 %v4264, 0.5
    %v4297 = vmul.f32 %v4265, 0.5
    %v4298 = vmul.f32 %v4266, 0.5
    %v4299 = vmul.f32 %v4267, 0.5
    %v4300 = vmul.f32 %v4268, 0.5
    %v4301 = vmul.f32 %v4269, 0.5
    %v4302 = vmul.f32 %v4270, 0.5
    %v4303 = vmul.f32 %v4271, 0.5
    %v4304 = vmul.f32 %v4272, 0.5
    %v4305 = vmul.f32 %v4273, 0.5
    %v4306 = vmul.f32 %v4274, 0.5
    %v4307 = vmul.f32 %v4275, 0.5
    %v4308 = vmul.f32 %v4276, 0.5
    %v4309 = vmul.f32 %v4277, 0.5
    %v4310 = vmul.f32 %v3210, %v4278
    %v4311 = vmul.f32 %v3266, %v4279
    %v4312 = vmul.f32 %v3322, %v4280
    %v4313 = vmul.f32 %v3378, %v4281
    %v4314 = vmul.f32 %v3434, %v4282
    %v4315 = vmul.f32 %v3490, %v4283
    %v4316 = vmul.f32 %v3546, %v4284
    %v4317 = vmul.f32 %v3602, %v4285
    %v4318 = vmul.f32 %v3658, %v4286
    %v4319 = vmul.f32 %v3714, %v4287
    %v4320 = vmul.f32 %v3770, %v4288
    %v4321 = vmul.f32 %v3826, %v4289
    %v4322 = vmul.f32 %v3882, %v4290
    %v4323 = vmul.f32 %v3938, %v4291
    %v4324 = vmul.f32 %v3994, %v4292
    %v4325 = vmul.f32 %v4050, %v4293
    %v4326 = vmul.f32 %v3212, %v4294
    %v4327 = vmul.f32 %v3268, %v4295
    %v4328 = vmul.f32 %v3324, %v4296
    %v4329 = vmul.f32 %v3380, %v4297
    %v4330 = vmul.f32 %v3436, %v4298
    %v4331 = vmul.f32 %v3492, %v4299
    %v4332 = vmul.f32 %v3548, %v4300
    %v4333 = vmul.f32 %v3604, %v4301
    %v4334 = vmul.f32 %v3660, %v4302
    %v4335 = vmul.f32 %v3716, %v4303
    %v4336 = vmul.f32 %v3772, %v4304
    %v4337 = vmul.f32 %v3828, %v4305
    %v4338 = vmul.f32 %v3884, %v4306
    %v4339 = vmul.f32 %v3940, %v4307
    %v4340 = vmul.f32 %v3996, %v4308
    %v4341 = vmul.f32 %v4052, %v4309
    %v4342 = vpack.c.bf16 %v4326, %v4310
    %v4343 = vpack.c.bf16 %v4327, %v4311
    %v4344 = vpack.c.bf16 %v4328, %v4312
    %v4345 = vpack.c.bf16 %v4329, %v4313
    %v4346 = vpack.c.bf16 %v4330, %v4314
    %v4347 = vpack.c.bf16 %v4331, %v4315
    %v4348 = vpack.c.bf16 %v4332, %v4316
    %v4349 = vpack.c.bf16 %v4333, %v4317
    %v4350 = vpack.c.bf16 %v4334, %v4318
    %v4351 = vpack.c.bf16 %v4335, %v4319
    %v4352 = vpack.c.bf16 %v4336, %v4320
    %v4353 = vpack.c.bf16 %v4337, %v4321
    %v4354 = vpack.c.bf16 %v4338, %v4322
    %v4355 = vpack.c.bf16 %v4339, %v4323
    %v4356 = vpack.c.bf16 %v4340, %v4324
    %v4357 = vpack.c.bf16 %v4341, %v4325
    %v4358 = vld [vmem:[#allocation7] sm:$0xff]
    %v4359 = vld [vmem:[#allocation7 + $0x8] sm:$0xff]
    %v4360 = vld [vmem:[#allocation7 + $0x10] sm:$0xff]
    %v4361 = vld [vmem:[#allocation7 + $0x18] sm:$0xff]
    %v4362 = vld [vmem:[#allocation7 + $0x20] sm:$0xff]
    %v4363 = vld [vmem:[#allocation7 + $0x28] sm:$0xff]
    %v4364 = vld [vmem:[#allocation7 + $0x30] sm:$0xff]
    %v4365 = vld [vmem:[#allocation7 + $0x38] sm:$0xff]
    %v4366 = vld [vmem:[#allocation7 + $0x40] sm:$0xff]
    %v4367 = vld [vmem:[#allocation7 + $0x48] sm:$0xff]
    %v4368 = vld [vmem:[#allocation7 + $0x50] sm:$0xff]
    %v4369 = vld [vmem:[#allocation7 + $0x58] sm:$0xff]
    %v4370 = vld [vmem:[#allocation7 + $0x60] sm:$0xff]
    %v4371 = vld [vmem:[#allocation7 + $0x68] sm:$0xff]
    %v4372 = vld [vmem:[#allocation7 + $0x70] sm:$0xff]
    %v4373 = vld [vmem:[#allocation7 + $0x78] sm:$0xff]
    %v4374 = vld [vmem:[#allocation7 + $0x80] sm:$0xff]
    %v4375 = vld [vmem:[#allocation7 + $0x88] sm:$0xff]
    %v4376 = vld [vmem:[#allocation7 + $0x90] sm:$0xff]
    %v4377 = vld [vmem:[#allocation7 + $0x98] sm:$0xff]
    %v4378 = vld [vmem:[#allocation7 + $0xa0] sm:$0xff]
    %v4379 = vld [vmem:[#allocation7 + $0xa8] sm:$0xff]
    %v4380 = vld [vmem:[#allocation7 + $0xb0] sm:$0xff]
    %v4381 = vld [vmem:[#allocation7 + $0xb8] sm:$0xff]
    %v4382 = vld [vmem:[#allocation7 + $0xc0] sm:$0xff]
    %v4383 = vld [vmem:[#allocation7 + $0xc8] sm:$0xff]
    %v4384 = vld [vmem:[#allocation7 + $0xd0] sm:$0xff]
    %v4385 = vld [vmem:[#allocation7 + $0xd8] sm:$0xff]
    %v4386 = vld [vmem:[#allocation7 + $0xe0] sm:$0xff]
    %v4387 = vld [vmem:[#allocation7 + $0xe8] sm:$0xff]
    %v4388 = vld [vmem:[#allocation7 + $0xf0] sm:$0xff]
    %v4389 = vld [vmem:[#allocation7 + $0xf8] sm:$0xff]
    %v4390 = vld [vmem:[#allocation7 + $0x100] sm:$0xff]
    %v4391 = vld [vmem:[#allocation7 + $0x108] sm:$0xff]
    %v4392 = vld [vmem:[#allocation7 + $0x110] sm:$0xff]
    %v4393 = vld [vmem:[#allocation7 + $0x118] sm:$0xff]
    %v4394 = vld [vmem:[#allocation7 + $0x120] sm:$0xff]
    %v4395 = vld [vmem:[#allocation7 + $0x128] sm:$0xff]
    %v4396 = vld [vmem:[#allocation7 + $0x130] sm:$0xff]
    %v4397 = vld [vmem:[#allocation7 + $0x138] sm:$0xff]
    %v4398 = vld [vmem:[#allocation7 + $0x140] sm:$0xff]
    %v4399 = vld [vmem:[#allocation7 + $0x148] sm:$0xff]
    %v4400 = vld [vmem:[#allocation7 + $0x150] sm:$0xff]
    %v4401 = vld [vmem:[#allocation7 + $0x158] sm:$0xff]
    %v4402 = vld [vmem:[#allocation7 + $0x160] sm:$0xff]
    %v4403 = vld [vmem:[#allocation7 + $0x168] sm:$0xff]
    %v4404 = vld [vmem:[#allocation7 + $0x170] sm:$0xff]
    %v4405 = vld [vmem:[#allocation7 + $0x178] sm:$0xff]
    %v4406 = vld [vmem:[#allocation7 + $0x180] sm:$0xff]
    %v4407 = vld [vmem:[#allocation7 + $0x188] sm:$0xff]
    %v4408 = vld [vmem:[#allocation7 + $0x190] sm:$0xff]
    %v4409 = vld [vmem:[#allocation7 + $0x198] sm:$0xff]
    %v4410 = vld [vmem:[#allocation7 + $0x1a0] sm:$0xff]
    %v4411 = vld [vmem:[#allocation7 + $0x1a8] sm:$0xff]
    %v4412 = vld [vmem:[#allocation7 + $0x1b0] sm:$0xff]
    %v4413 = vld [vmem:[#allocation7 + $0x1b8] sm:$0xff]
    %v4414 = vld [vmem:[#allocation7 + $0x1c0] sm:$0xff]
    %v4415 = vld [vmem:[#allocation7 + $0x1c8] sm:$0xff]
    %v4416 = vld [vmem:[#allocation7 + $0x1d0] sm:$0xff]
    %v4417 = vld [vmem:[#allocation7 + $0x1d8] sm:$0xff]
    %v4418 = vld [vmem:[#allocation7 + $0x1e0] sm:$0xff]
    %v4419 = vld [vmem:[#allocation7 + $0x1e8] sm:$0xff]
    %v4420 = vld [vmem:[#allocation7 + $0x1f0] sm:$0xff]
    %v4421 = vld [vmem:[#allocation7 + $0x1f8] sm:$0xff]
    %v4422 = vld [vmem:[#allocation7 + $0x200] sm:$0xff]
    %v4423 = vld [vmem:[#allocation7 + $0x208] sm:$0xff]
    %v4424 = vld [vmem:[#allocation7 + $0x210] sm:$0xff]
    %v4425 = vld [vmem:[#allocation7 + $0x218] sm:$0xff]
    %v4426 = vld [vmem:[#allocation7 + $0x220] sm:$0xff]
    %v4427 = vld [vmem:[#allocation7 + $0x228] sm:$0xff]
    %v4428 = vld [vmem:[#allocation7 + $0x230] sm:$0xff]
    %v4429 = vld [vmem:[#allocation7 + $0x238] sm:$0xff]
    %v4430 = vld [vmem:[#allocation7 + $0x240] sm:$0xff]
    %v4431 = vld [vmem:[#allocation7 + $0x248] sm:$0xff]
    %v4432 = vld [vmem:[#allocation7 + $0x250] sm:$0xff]
    %v4433 = vld [vmem:[#allocation7 + $0x258] sm:$0xff]
    %v4434 = vld [vmem:[#allocation7 + $0x260] sm:$0xff]
    %v4435 = vld [vmem:[#allocation7 + $0x268] sm:$0xff]
    %v4436 = vld [vmem:[#allocation7 + $0x270] sm:$0xff]
    %v4437 = vld [vmem:[#allocation7 + $0x278] sm:$0xff]
    %v4438 = vld [vmem:[#allocation7 + $0x280] sm:$0xff]
    %v4439 = vld [vmem:[#allocation7 + $0x288] sm:$0xff]
    %v4440 = vld [vmem:[#allocation7 + $0x290] sm:$0xff]
    %v4441 = vld [vmem:[#allocation7 + $0x298] sm:$0xff]
    %v4442 = vld [vmem:[#allocation7 + $0x2a0] sm:$0xff]
    %v4443 = vld [vmem:[#allocation7 + $0x2a8] sm:$0xff]
    %v4444 = vld [vmem:[#allocation7 + $0x2b0] sm:$0xff]
    %v4445 = vld [vmem:[#allocation7 + $0x2b8] sm:$0xff]
    %v4446 = vld [vmem:[#allocation7 + $0x2c0] sm:$0xff]
    %v4447 = vld [vmem:[#allocation7 + $0x2c8] sm:$0xff]
    %v4448 = vld [vmem:[#allocation7 + $0x2d0] sm:$0xff]
    %v4449 = vld [vmem:[#allocation7 + $0x2d8] sm:$0xff]
    %v4450 = vld [vmem:[#allocation7 + $0x2e0] sm:$0xff]
    %v4451 = vld [vmem:[#allocation7 + $0x2e8] sm:$0xff]
    %v4452 = vld [vmem:[#allocation7 + $0x2f0] sm:$0xff]
    %v4453 = vld [vmem:[#allocation7 + $0x2f8] sm:$0xff]
    %v4454 = vld [vmem:[#allocation7 + $0x300] sm:$0xff]
    %v4455 = vld [vmem:[#allocation7 + $0x308] sm:$0xff]
    %v4456 = vld [vmem:[#allocation7 + $0x310] sm:$0xff]
    %v4457 = vld [vmem:[#allocation7 + $0x318] sm:$0xff]
    %v4458 = vld [vmem:[#allocation7 + $0x320] sm:$0xff]
    %v4459 = vld [vmem:[#allocation7 + $0x328] sm:$0xff]
    %v4460 = vld [vmem:[#allocation7 + $0x330] sm:$0xff]
    %v4461 = vld [vmem:[#allocation7 + $0x338] sm:$0xff]
    %v4462 = vld [vmem:[#allocation7 + $0x340] sm:$0xff]
    %v4463 = vld [vmem:[#allocation7 + $0x348] sm:$0xff]
    %v4464 = vld [vmem:[#allocation7 + $0x350] sm:$0xff]
    %v4465 = vld [vmem:[#allocation7 + $0x358] sm:$0xff]
    %v4466 = vld [vmem:[#allocation7 + $0x360] sm:$0xff]
    %v4467 = vld [vmem:[#allocation7 + $0x368] sm:$0xff]
    %v4468 = vld [vmem:[#allocation7 + $0x370] sm:$0xff]
    %v4469 = vld [vmem:[#allocation7 + $0x378] sm:$0xff]
    %v4470 = vld [vmem:[#allocation7 + $0x380] sm:$0xff]
    %v4471 = vld [vmem:[#allocation7 + $0x388] sm:$0xff]
    %v4472 = vld [vmem:[#allocation7 + $0x390] sm:$0xff]
    %v4473 = vld [vmem:[#allocation7 + $0x398] sm:$0xff]
    %v4474 = vld [vmem:[#allocation7 + $0x3a0] sm:$0xff]
    %v4475 = vld [vmem:[#allocation7 + $0x3a8] sm:$0xff]
    %v4476 = vld [vmem:[#allocation7 + $0x3b0] sm:$0xff]
    %v4477 = vld [vmem:[#allocation7 + $0x3b8] sm:$0xff]
    %v4478 = vld [vmem:[#allocation7 + $0x3c0] sm:$0xff]
    %v4479 = vld [vmem:[#allocation7 + $0x3c8] sm:$0xff]
    %v4480 = vld [vmem:[#allocation7 + $0x3d0] sm:$0xff]
    %v4481 = vld [vmem:[#allocation7 + $0x3d8] sm:$0xff]
    %v4482 = vld [vmem:[#allocation7 + $0x3e0] sm:$0xff]
    %v4483 = vld [vmem:[#allocation7 + $0x3e8] sm:$0xff]
    %v4484 = vld [vmem:[#allocation7 + $0x3f0] sm:$0xff]
    %v4485 = vld [vmem:[#allocation7 + $0x3f8] sm:$0xff]
    %v4486 = vld [vmem:[#allocation7 + $0x400] sm:$0xff]
    %v4487 = vld [vmem:[#allocation7 + $0x408] sm:$0xff]
    %v4488 = vld [vmem:[#allocation7 + $0x410] sm:$0xff]
    %v4489 = vld [vmem:[#allocation7 + $0x418] sm:$0xff]
    %v4490 = vld [vmem:[#allocation7 + $0x420] sm:$0xff]
    %v4491 = vld [vmem:[#allocation7 + $0x428] sm:$0xff]
    %v4492 = vld [vmem:[#allocation7 + $0x430] sm:$0xff]
    %v4493 = vld [vmem:[#allocation7 + $0x438] sm:$0xff]
    %v4494 = vld [vmem:[#allocation7 + $0x440] sm:$0xff]
    %v4495 = vld [vmem:[#allocation7 + $0x448] sm:$0xff]
    %v4496 = vld [vmem:[#allocation7 + $0x450] sm:$0xff]
    %v4497 = vld [vmem:[#allocation7 + $0x458] sm:$0xff]
    %v4498 = vld [vmem:[#allocation7 + $0x460] sm:$0xff]
    %v4499 = vld [vmem:[#allocation7 + $0x468] sm:$0xff]
    %v4500 = vld [vmem:[#allocation7 + $0x470] sm:$0xff]
    %v4501 = vld [vmem:[#allocation7 + $0x478] sm:$0xff]
    %v4502 = vld [vmem:[#allocation7 + $0x480] sm:$0xff]
    %v4503 = vld [vmem:[#allocation7 + $0x488] sm:$0xff]
    %v4504 = vld [vmem:[#allocation7 + $0x490] sm:$0xff]
    %v4505 = vld [vmem:[#allocation7 + $0x498] sm:$0xff]
    %v4506 = vld [vmem:[#allocation7 + $0x4a0] sm:$0xff]
    %v4507 = vld [vmem:[#allocation7 + $0x4a8] sm:$0xff]
    %v4508 = vld [vmem:[#allocation7 + $0x4b0] sm:$0xff]
    %v4509 = vld [vmem:[#allocation7 + $0x4b8] sm:$0xff]
    %v4510 = vld [vmem:[#allocation7 + $0x4c0] sm:$0xff]
    %v4511 = vld [vmem:[#allocation7 + $0x4c8] sm:$0xff]
    %v4512 = vld [vmem:[#allocation7 + $0x4d0] sm:$0xff]
    %v4513 = vld [vmem:[#allocation7 + $0x4d8] sm:$0xff]
    %v4514 = vld [vmem:[#allocation7 + $0x4e0] sm:$0xff]
    %v4515 = vld [vmem:[#allocation7 + $0x4e8] sm:$0xff]
    %v4516 = vld [vmem:[#allocation7 + $0x4f0] sm:$0xff]
    %v4517 = vld [vmem:[#allocation7 + $0x4f8] sm:$0xff]
    %v4518 = vld [vmem:[#allocation7 + $0x500] sm:$0xff]
    %v4519 = vld [vmem:[#allocation7 + $0x508] sm:$0xff]
    %v4520 = vld [vmem:[#allocation7 + $0x510] sm:$0xff]
    %v4521 = vld [vmem:[#allocation7 + $0x518] sm:$0xff]
    %v4522 = vld [vmem:[#allocation7 + $0x520] sm:$0xff]
    %v4523 = vld [vmem:[#allocation7 + $0x528] sm:$0xff]
    %v4524 = vld [vmem:[#allocation7 + $0x530] sm:$0xff]
    %v4525 = vld [vmem:[#allocation7 + $0x538] sm:$0xff]
    %v4526 = vld [vmem:[#allocation7 + $0x540] sm:$0xff]
    %v4527 = vld [vmem:[#allocation7 + $0x548] sm:$0xff]
    %v4528 = vld [vmem:[#allocation7 + $0x550] sm:$0xff]
    %v4529 = vld [vmem:[#allocation7 + $0x558] sm:$0xff]
    %v4530 = vld [vmem:[#allocation7 + $0x560] sm:$0xff]
    %v4531 = vld [vmem:[#allocation7 + $0x568] sm:$0xff]
    %v4532 = vld [vmem:[#allocation7 + $0x570] sm:$0xff]
    %v4533 = vld [vmem:[#allocation7 + $0x578] sm:$0xff]
    %v4534 = vld [vmem:[#allocation7 + $0x580] sm:$0xff]
    %v4535 = vld [vmem:[#allocation7 + $0x588] sm:$0xff]
    %v4536 = vld [vmem:[#allocation7 + $0x590] sm:$0xff]
    %v4537 = vld [vmem:[#allocation7 + $0x598] sm:$0xff]
    %v4538 = vld [vmem:[#allocation7 + $0x5a0] sm:$0xff]
    %v4539 = vld [vmem:[#allocation7 + $0x5a8] sm:$0xff]
    %v4540 = vld [vmem:[#allocation7 + $0x5b0] sm:$0xff]
    %v4541 = vld [vmem:[#allocation7 + $0x5b8] sm:$0xff]
    %v4542 = vld [vmem:[#allocation7 + $0x5c0] sm:$0xff]
    %v4543 = vld [vmem:[#allocation7 + $0x5c8] sm:$0xff]
    %v4544 = vld [vmem:[#allocation7 + $0x5d0] sm:$0xff]
    %v4545 = vld [vmem:[#allocation7 + $0x5d8] sm:$0xff]
    %v4546 = vld [vmem:[#allocation7 + $0x5e0] sm:$0xff]
    %v4547 = vld [vmem:[#allocation7 + $0x5e8] sm:$0xff]
    %v4548 = vld [vmem:[#allocation7 + $0x5f0] sm:$0xff]
    %v4549 = vld [vmem:[#allocation7 + $0x5f8] sm:$0xff]
    %v4550 = vld [vmem:[#allocation7 + $0x600] sm:$0xff]
    %v4551 = vld [vmem:[#allocation7 + $0x608] sm:$0xff]
    %v4552 = vld [vmem:[#allocation7 + $0x610] sm:$0xff]
    %v4553 = vld [vmem:[#allocation7 + $0x618] sm:$0xff]
    %v4554 = vld [vmem:[#allocation7 + $0x620] sm:$0xff]
    %v4555 = vld [vmem:[#allocation7 + $0x628] sm:$0xff]
    %v4556 = vld [vmem:[#allocation7 + $0x630] sm:$0xff]
    %v4557 = vld [vmem:[#allocation7 + $0x638] sm:$0xff]
    %v4558 = vld [vmem:[#allocation7 + $0x640] sm:$0xff]
    %v4559 = vld [vmem:[#allocation7 + $0x648] sm:$0xff]
    %v4560 = vld [vmem:[#allocation7 + $0x650] sm:$0xff]
    %v4561 = vld [vmem:[#allocation7 + $0x658] sm:$0xff]
    %v4562 = vld [vmem:[#allocation7 + $0x660] sm:$0xff]
    %v4563 = vld [vmem:[#allocation7 + $0x668] sm:$0xff]
    %v4564 = vld [vmem:[#allocation7 + $0x670] sm:$0xff]
    %v4565 = vld [vmem:[#allocation7 + $0x678] sm:$0xff]
    %v4566 = vld [vmem:[#allocation7 + $0x680] sm:$0xff]
    %v4567 = vld [vmem:[#allocation7 + $0x688] sm:$0xff]
    %v4568 = vld [vmem:[#allocation7 + $0x690] sm:$0xff]
    %v4569 = vld [vmem:[#allocation7 + $0x698] sm:$0xff]
    %v4570 = vld [vmem:[#allocation7 + $0x6a0] sm:$0xff]
    %v4571 = vld [vmem:[#allocation7 + $0x6a8] sm:$0xff]
    %v4572 = vld [vmem:[#allocation7 + $0x6b0] sm:$0xff]
    %v4573 = vld [vmem:[#allocation7 + $0x6b8] sm:$0xff]
    %v4574 = vld [vmem:[#allocation7 + $0x6c0] sm:$0xff]
    %v4575 = vld [vmem:[#allocation7 + $0x6c8] sm:$0xff]
    %v4576 = vld [vmem:[#allocation7 + $0x6d0] sm:$0xff]
    %v4577 = vld [vmem:[#allocation7 + $0x6d8] sm:$0xff]
    %v4578 = vld [vmem:[#allocation7 + $0x6e0] sm:$0xff]
    %v4579 = vld [vmem:[#allocation7 + $0x6e8] sm:$0xff]
    %v4580 = vld [vmem:[#allocation7 + $0x6f0] sm:$0xff]
    %v4581 = vld [vmem:[#allocation7 + $0x6f8] sm:$0xff]
    %v4582 = vld [vmem:[#allocation7 + $0x700] sm:$0xff]
    %v4583 = vld [vmem:[#allocation7 + $0x708] sm:$0xff]
    %v4584 = vld [vmem:[#allocation7 + $0x710] sm:$0xff]
    %v4585 = vld [vmem:[#allocation7 + $0x718] sm:$0xff]
    %v4586 = vld [vmem:[#allocation7 + $0x720] sm:$0xff]
    %v4587 = vld [vmem:[#allocation7 + $0x728] sm:$0xff]
    %v4588 = vld [vmem:[#allocation7 + $0x730] sm:$0xff]
    %v4589 = vld [vmem:[#allocation7 + $0x738] sm:$0xff]
    %v4590 = vld [vmem:[#allocation7 + $0x740] sm:$0xff]
    %v4591 = vld [vmem:[#allocation7 + $0x748] sm:$0xff]
    %v4592 = vld [vmem:[#allocation7 + $0x750] sm:$0xff]
    %v4593 = vld [vmem:[#allocation7 + $0x758] sm:$0xff]
    %v4594 = vld [vmem:[#allocation7 + $0x760] sm:$0xff]
    %v4595 = vld [vmem:[#allocation7 + $0x768] sm:$0xff]
    %v4596 = vld [vmem:[#allocation7 + $0x770] sm:$0xff]
    %v4597 = vld [vmem:[#allocation7 + $0x778] sm:$0xff]
    %v4598 = vld [vmem:[#allocation7 + $0x780] sm:$0xff]
    %v4599 = vld [vmem:[#allocation7 + $0x788] sm:$0xff]
    %v4600 = vld [vmem:[#allocation7 + $0x790] sm:$0xff]
    %v4601 = vld [vmem:[#allocation7 + $0x798] sm:$0xff]
    %v4602 = vld [vmem:[#allocation7 + $0x7a0] sm:$0xff]
    %v4603 = vld [vmem:[#allocation7 + $0x7a8] sm:$0xff]
    %v4604 = vld [vmem:[#allocation7 + $0x7b0] sm:$0xff]
    %v4605 = vld [vmem:[#allocation7 + $0x7b8] sm:$0xff]
    %v4606 = vld [vmem:[#allocation7 + $0x7c0] sm:$0xff]
    %v4607 = vld [vmem:[#allocation7 + $0x7c8] sm:$0xff]
    %v4608 = vld [vmem:[#allocation7 + $0x7d0] sm:$0xff]
    %v4609 = vld [vmem:[#allocation7 + $0x7d8] sm:$0xff]
    %v4610 = vld [vmem:[#allocation7 + $0x7e0] sm:$0xff]
    %v4611 = vld [vmem:[#allocation7 + $0x7e8] sm:$0xff]
    %v4612 = vld [vmem:[#allocation7 + $0x7f0] sm:$0xff]
    %v4613 = vld [vmem:[#allocation7 + $0x7f8] sm:$0xff]
    %v4614 = vld [vmem:[#allocation7 + $0x800] sm:$0xff]
    %v4615 = vld [vmem:[#allocation7 + $0x808] sm:$0xff]
    %v4616 = vld [vmem:[#allocation7 + $0x810] sm:$0xff]
    %v4617 = vld [vmem:[#allocation7 + $0x818] sm:$0xff]
    %v4618 = vld [vmem:[#allocation7 + $0x820] sm:$0xff]
    %v4619 = vld [vmem:[#allocation7 + $0x828] sm:$0xff]
    %v4620 = vld [vmem:[#allocation7 + $0x830] sm:$0xff]
    %v4621 = vld [vmem:[#allocation7 + $0x838] sm:$0xff]
    %v4622 = vld [vmem:[#allocation7 + $0x840] sm:$0xff]
    %v4623 = vld [vmem:[#allocation7 + $0x848] sm:$0xff]
    %v4624 = vld [vmem:[#allocation7 + $0x850] sm:$0xff]
    %v4625 = vld [vmem:[#allocation7 + $0x858] sm:$0xff]
    %v4626 = vld [vmem:[#allocation7 + $0x860] sm:$0xff]
    %v4627 = vld [vmem:[#allocation7 + $0x868] sm:$0xff]
    %v4628 = vld [vmem:[#allocation7 + $0x870] sm:$0xff]
    %v4629 = vld [vmem:[#allocation7 + $0x878] sm:$0xff]
    %v4630 = vld [vmem:[#allocation7 + $0x880] sm:$0xff]
    %v4631 = vld [vmem:[#allocation7 + $0x888] sm:$0xff]
    %v4632 = vld [vmem:[#allocation7 + $0x890] sm:$0xff]
    %v4633 = vld [vmem:[#allocation7 + $0x898] sm:$0xff]
    %v4634 = vld [vmem:[#allocation7 + $0x8a0] sm:$0xff]
    %v4635 = vld [vmem:[#allocation7 + $0x8a8] sm:$0xff]
    %v4636 = vld [vmem:[#allocation7 + $0x8b0] sm:$0xff]
    %v4637 = vld [vmem:[#allocation7 + $0x8b8] sm:$0xff]
    %v4638 = vld [vmem:[#allocation7 + $0x8c0] sm:$0xff]
    %v4639 = vld [vmem:[#allocation7 + $0x8c8] sm:$0xff]
    %v4640 = vld [vmem:[#allocation7 + $0x8d0] sm:$0xff]
    %v4641 = vld [vmem:[#allocation7 + $0x8d8] sm:$0xff]
    %v4642 = vld [vmem:[#allocation7 + $0x8e0] sm:$0xff]
    %v4643 = vld [vmem:[#allocation7 + $0x8e8] sm:$0xff]
    %v4644 = vld [vmem:[#allocation7 + $0x8f0] sm:$0xff]
    %v4645 = vld [vmem:[#allocation7 + $0x8f8] sm:$0xff]
    %v4646 = vld [vmem:[#allocation7 + $0x900] sm:$0xff]
    %v4647 = vld [vmem:[#allocation7 + $0x908] sm:$0xff]
    %v4648 = vld [vmem:[#allocation7 + $0x910] sm:$0xff]
    %v4649 = vld [vmem:[#allocation7 + $0x918] sm:$0xff]
    %v4650 = vld [vmem:[#allocation7 + $0x920] sm:$0xff]
    %v4651 = vld [vmem:[#allocation7 + $0x928] sm:$0xff]
    %v4652 = vld [vmem:[#allocation7 + $0x930] sm:$0xff]
    %v4653 = vld [vmem:[#allocation7 + $0x938] sm:$0xff]
    %v4654 = vld [vmem:[#allocation7 + $0x940] sm:$0xff]
    %v4655 = vld [vmem:[#allocation7 + $0x948] sm:$0xff]
    %v4656 = vld [vmem:[#allocation7 + $0x950] sm:$0xff]
    %v4657 = vld [vmem:[#allocation7 + $0x958] sm:$0xff]
    %v4658 = vld [vmem:[#allocation7 + $0x960] sm:$0xff]
    %v4659 = vld [vmem:[#allocation7 + $0x968] sm:$0xff]
    %v4660 = vld [vmem:[#allocation7 + $0x970] sm:$0xff]
    %v4661 = vld [vmem:[#allocation7 + $0x978] sm:$0xff]
    %v4662 = vld [vmem:[#allocation7 + $0x980] sm:$0xff]
    %v4663 = vld [vmem:[#allocation7 + $0x988] sm:$0xff]
    %v4664 = vld [vmem:[#allocation7 + $0x990] sm:$0xff]
    %v4665 = vld [vmem:[#allocation7 + $0x998] sm:$0xff]
    %v4666 = vld [vmem:[#allocation7 + $0x9a0] sm:$0xff]
    %v4667 = vld [vmem:[#allocation7 + $0x9a8] sm:$0xff]
    %v4668 = vld [vmem:[#allocation7 + $0x9b0] sm:$0xff]
    %v4669 = vld [vmem:[#allocation7 + $0x9b8] sm:$0xff]
    %v4670 = vld [vmem:[#allocation7 + $0x9c0] sm:$0xff]
    %v4671 = vld [vmem:[#allocation7 + $0x9c8] sm:$0xff]
    %v4672 = vld [vmem:[#allocation7 + $0x9d0] sm:$0xff]
    %v4673 = vld [vmem:[#allocation7 + $0x9d8] sm:$0xff]
    %v4674 = vld [vmem:[#allocation7 + $0x9e0] sm:$0xff]
    %v4675 = vld [vmem:[#allocation7 + $0x9e8] sm:$0xff]
    %v4676 = vld [vmem:[#allocation7 + $0x9f0] sm:$0xff]
    %v4677 = vld [vmem:[#allocation7 + $0x9f8] sm:$0xff]
    %v4678 = vld [vmem:[#allocation7 + $0xa00] sm:$0xff]
    %v4679 = vld [vmem:[#allocation7 + $0xa08] sm:$0xff]
    %v4680 = vld [vmem:[#allocation7 + $0xa10] sm:$0xff]
    %v4681 = vld [vmem:[#allocation7 + $0xa18] sm:$0xff]
    %v4682 = vld [vmem:[#allocation7 + $0xa20] sm:$0xff]
    %v4683 = vld [vmem:[#allocation7 + $0xa28] sm:$0xff]
    %v4684 = vld [vmem:[#allocation7 + $0xa30] sm:$0xff]
    %v4685 = vld [vmem:[#allocation7 + $0xa38] sm:$0xff]
    %v4686 = vld [vmem:[#allocation7 + $0xa40] sm:$0xff]
    %v4687 = vld [vmem:[#allocation7 + $0xa48] sm:$0xff]
    %v4688 = vld [vmem:[#allocation7 + $0xa50] sm:$0xff]
    %v4689 = vld [vmem:[#allocation7 + $0xa58] sm:$0xff]
    %v4690 = vld [vmem:[#allocation7 + $0xa60] sm:$0xff]
    %v4691 = vld [vmem:[#allocation7 + $0xa68] sm:$0xff]
    %v4692 = vld [vmem:[#allocation7 + $0xa70] sm:$0xff]
    %v4693 = vld [vmem:[#allocation7 + $0xa78] sm:$0xff]
    %v4694 = vld [vmem:[#allocation7 + $0xa80] sm:$0xff]
    %v4695 = vld [vmem:[#allocation7 + $0xa88] sm:$0xff]
    %v4696 = vld [vmem:[#allocation7 + $0xa90] sm:$0xff]
    %v4697 = vld [vmem:[#allocation7 + $0xa98] sm:$0xff]
    %v4698 = vld [vmem:[#allocation7 + $0xaa0] sm:$0xff]
    %v4699 = vld [vmem:[#allocation7 + $0xaa8] sm:$0xff]
    %v4700 = vld [vmem:[#allocation7 + $0xab0] sm:$0xff]
    %v4701 = vld [vmem:[#allocation7 + $0xab8] sm:$0xff]
    %v4702 = vld [vmem:[#allocation7 + $0xac0] sm:$0xff]
    %v4703 = vld [vmem:[#allocation7 + $0xac8] sm:$0xff]
    %v4704 = vld [vmem:[#allocation7 + $0xad0] sm:$0xff]
    %v4705 = vld [vmem:[#allocation7 + $0xad8] sm:$0xff]
    %v4706 = vld [vmem:[#allocation7 + $0xae0] sm:$0xff]
    %v4707 = vld [vmem:[#allocation7 + $0xae8] sm:$0xff]
    %v4708 = vld [vmem:[#allocation7 + $0xaf0] sm:$0xff]
    %v4709 = vld [vmem:[#allocation7 + $0xaf8] sm:$0xff]
    %v4710 = vld [vmem:[#allocation7 + $0xb00] sm:$0xff]
    %v4711 = vld [vmem:[#allocation7 + $0xb08] sm:$0xff]
    %v4712 = vld [vmem:[#allocation7 + $0xb10] sm:$0xff]
    %v4713 = vld [vmem:[#allocation7 + $0xb18] sm:$0xff]
    %v4714 = vld [vmem:[#allocation7 + $0xb20] sm:$0xff]
    %v4715 = vld [vmem:[#allocation7 + $0xb28] sm:$0xff]
    %v4716 = vld [vmem:[#allocation7 + $0xb30] sm:$0xff]
    %v4717 = vld [vmem:[#allocation7 + $0xb38] sm:$0xff]
    %v4718 = vld [vmem:[#allocation7 + $0xb40] sm:$0xff]
    %v4719 = vld [vmem:[#allocation7 + $0xb48] sm:$0xff]
    %v4720 = vld [vmem:[#allocation7 + $0xb50] sm:$0xff]
    %v4721 = vld [vmem:[#allocation7 + $0xb58] sm:$0xff]
    %v4722 = vld [vmem:[#allocation7 + $0xb60] sm:$0xff]
    %v4723 = vld [vmem:[#allocation7 + $0xb68] sm:$0xff]
    %v4724 = vld [vmem:[#allocation7 + $0xb70] sm:$0xff]
    %v4725 = vld [vmem:[#allocation7 + $0xb78] sm:$0xff]
    %v4726 = vld [vmem:[#allocation7 + $0xb80] sm:$0xff]
    %v4727 = vld [vmem:[#allocation7 + $0xb88] sm:$0xff]
    %v4728 = vld [vmem:[#allocation7 + $0xb90] sm:$0xff]
    %v4729 = vld [vmem:[#allocation7 + $0xb98] sm:$0xff]
    %v4730 = vld [vmem:[#allocation7 + $0xba0] sm:$0xff]
    %v4731 = vld [vmem:[#allocation7 + $0xba8] sm:$0xff]
    %v4732 = vld [vmem:[#allocation7 + $0xbb0] sm:$0xff]
    %v4733 = vld [vmem:[#allocation7 + $0xbb8] sm:$0xff]
    %v4734 = vld [vmem:[#allocation7 + $0xbc0] sm:$0xff]
    %v4735 = vld [vmem:[#allocation7 + $0xbc8] sm:$0xff]
    %v4736 = vld [vmem:[#allocation7 + $0xbd0] sm:$0xff]
    %v4737 = vld [vmem:[#allocation7 + $0xbd8] sm:$0xff]
    %v4738 = vld [vmem:[#allocation7 + $0xbe0] sm:$0xff]
    %v4739 = vld [vmem:[#allocation7 + $0xbe8] sm:$0xff]
    %v4740 = vld [vmem:[#allocation7 + $0xbf0] sm:$0xff]
    %v4741 = vld [vmem:[#allocation7 + $0xbf8] sm:$0xff]
    %v4742 = vld [vmem:[#allocation7 + $0xc00] sm:$0xff]
    %v4743 = vld [vmem:[#allocation7 + $0xc08] sm:$0xff]
    %v4744 = vld [vmem:[#allocation7 + $0xc10] sm:$0xff]
    %v4745 = vld [vmem:[#allocation7 + $0xc18] sm:$0xff]
    %v4746 = vld [vmem:[#allocation7 + $0xc20] sm:$0xff]
    %v4747 = vld [vmem:[#allocation7 + $0xc28] sm:$0xff]
    %v4748 = vld [vmem:[#allocation7 + $0xc30] sm:$0xff]
    %v4749 = vld [vmem:[#allocation7 + $0xc38] sm:$0xff]
    %v4750 = vld [vmem:[#allocation7 + $0xc40] sm:$0xff]
    %v4751 = vld [vmem:[#allocation7 + $0xc48] sm:$0xff]
    %v4752 = vld [vmem:[#allocation7 + $0xc50] sm:$0xff]
    %v4753 = vld [vmem:[#allocation7 + $0xc58] sm:$0xff]
    %v4754 = vld [vmem:[#allocation7 + $0xc60] sm:$0xff]
    %v4755 = vld [vmem:[#allocation7 + $0xc68] sm:$0xff]
    %v4756 = vld [vmem:[#allocation7 + $0xc70] sm:$0xff]
    %v4757 = vld [vmem:[#allocation7 + $0xc78] sm:$0xff]
    %v4758 = vld [vmem:[#allocation7 + $0xc80] sm:$0xff]
    %v4759 = vld [vmem:[#allocation7 + $0xc88] sm:$0xff]
    %v4760 = vld [vmem:[#allocation7 + $0xc90] sm:$0xff]
    %v4761 = vld [vmem:[#allocation7 + $0xc98] sm:$0xff]
    %v4762 = vld [vmem:[#allocation7 + $0xca0] sm:$0xff]
    %v4763 = vld [vmem:[#allocation7 + $0xca8] sm:$0xff]
    %v4764 = vld [vmem:[#allocation7 + $0xcb0] sm:$0xff]
    %v4765 = vld [vmem:[#allocation7 + $0xcb8] sm:$0xff]
    %v4766 = vld [vmem:[#allocation7 + $0xcc0] sm:$0xff]
    %v4767 = vld [vmem:[#allocation7 + $0xcc8] sm:$0xff]
    %v4768 = vld [vmem:[#allocation7 + $0xcd0] sm:$0xff]
    %v4769 = vld [vmem:[#allocation7 + $0xcd8] sm:$0xff]
    %v4770 = vld [vmem:[#allocation7 + $0xce0] sm:$0xff]
    %v4771 = vld [vmem:[#allocation7 + $0xce8] sm:$0xff]
    %v4772 = vld [vmem:[#allocation7 + $0xcf0] sm:$0xff]
    %v4773 = vld [vmem:[#allocation7 + $0xcf8] sm:$0xff]
    %v4774 = vld [vmem:[#allocation7 + $0xd00] sm:$0xff]
    %v4775 = vld [vmem:[#allocation7 + $0xd08] sm:$0xff]
    %v4776 = vld [vmem:[#allocation7 + $0xd10] sm:$0xff]
    %v4777 = vld [vmem:[#allocation7 + $0xd18] sm:$0xff]
    %v4778 = vld [vmem:[#allocation7 + $0xd20] sm:$0xff]
    %v4779 = vld [vmem:[#allocation7 + $0xd28] sm:$0xff]
    %v4780 = vld [vmem:[#allocation7 + $0xd30] sm:$0xff]
    %v4781 = vld [vmem:[#allocation7 + $0xd38] sm:$0xff]
    %v4782 = vld [vmem:[#allocation7 + $0xd40] sm:$0xff]
    %v4783 = vld [vmem:[#allocation7 + $0xd48] sm:$0xff]
    %v4784 = vld [vmem:[#allocation7 + $0xd50] sm:$0xff]
    %v4785 = vld [vmem:[#allocation7 + $0xd58] sm:$0xff]
    %v4786 = vld [vmem:[#allocation7 + $0xd60] sm:$0xff]
    %v4787 = vld [vmem:[#allocation7 + $0xd68] sm:$0xff]
    %v4788 = vld [vmem:[#allocation7 + $0xd70] sm:$0xff]
    %v4789 = vld [vmem:[#allocation7 + $0xd78] sm:$0xff]
    %v4790 = vld [vmem:[#allocation7 + $0xd80] sm:$0xff]
    %v4791 = vld [vmem:[#allocation7 + $0xd88] sm:$0xff]
    %v4792 = vld [vmem:[#allocation7 + $0xd90] sm:$0xff]
    %v4793 = vld [vmem:[#allocation7 + $0xd98] sm:$0xff]
    %v4794 = vld [vmem:[#allocation7 + $0xda0] sm:$0xff]
    %v4795 = vld [vmem:[#allocation7 + $0xda8] sm:$0xff]
    %v4796 = vld [vmem:[#allocation7 + $0xdb0] sm:$0xff]
    %v4797 = vld [vmem:[#allocation7 + $0xdb8] sm:$0xff]
    %v4798 = vld [vmem:[#allocation7 + $0xdc0] sm:$0xff]
    %v4799 = vld [vmem:[#allocation7 + $0xdc8] sm:$0xff]
    %v4800 = vld [vmem:[#allocation7 + $0xdd0] sm:$0xff]
    %v4801 = vld [vmem:[#allocation7 + $0xdd8] sm:$0xff]
    %v4802 = vld [vmem:[#allocation7 + $0xde0] sm:$0xff]
    %v4803 = vld [vmem:[#allocation7 + $0xde8] sm:$0xff]
    %v4804 = vld [vmem:[#allocation7 + $0xdf0] sm:$0xff]
    %v4805 = vld [vmem:[#allocation7 + $0xdf8] sm:$0xff]
    %v4806 = vld [vmem:[#allocation7 + $0xe00] sm:$0xff]
    %v4807 = vld [vmem:[#allocation7 + $0xe08] sm:$0xff]
    %v4808 = vld [vmem:[#allocation7 + $0xe10] sm:$0xff]
    %v4809 = vld [vmem:[#allocation7 + $0xe18] sm:$0xff]
    %v4810 = vld [vmem:[#allocation7 + $0xe20] sm:$0xff]
    %v4811 = vld [vmem:[#allocation7 + $0xe28] sm:$0xff]
    %v4812 = vld [vmem:[#allocation7 + $0xe30] sm:$0xff]
    %v4813 = vld [vmem:[#allocation7 + $0xe38] sm:$0xff]
    %v4814 = vld [vmem:[#allocation7 + $0xe40] sm:$0xff]
    %v4815 = vld [vmem:[#allocation7 + $0xe48] sm:$0xff]
    %v4816 = vld [vmem:[#allocation7 + $0xe50] sm:$0xff]
    %v4817 = vld [vmem:[#allocation7 + $0xe58] sm:$0xff]
    %v4818 = vld [vmem:[#allocation7 + $0xe60] sm:$0xff]
    %v4819 = vld [vmem:[#allocation7 + $0xe68] sm:$0xff]
    %v4820 = vld [vmem:[#allocation7 + $0xe70] sm:$0xff]
    %v4821 = vld [vmem:[#allocation7 + $0xe78] sm:$0xff]
    %v4822 = vld [vmem:[#allocation7 + $0xe80] sm:$0xff]
    %v4823 = vld [vmem:[#allocation7 + $0xe88] sm:$0xff]
    %v4824 = vld [vmem:[#allocation7 + $0xe90] sm:$0xff]
    %v4825 = vld [vmem:[#allocation7 + $0xe98] sm:$0xff]
    %v4826 = vld [vmem:[#allocation7 + $0xea0] sm:$0xff]
    %v4827 = vld [vmem:[#allocation7 + $0xea8] sm:$0xff]
    %v4828 = vld [vmem:[#allocation7 + $0xeb0] sm:$0xff]
    %v4829 = vld [vmem:[#allocation7 + $0xeb8] sm:$0xff]
    %v4830 = vld [vmem:[#allocation7 + $0xec0] sm:$0xff]
    %v4831 = vld [vmem:[#allocation7 + $0xec8] sm:$0xff]
    %v4832 = vld [vmem:[#allocation7 + $0xed0] sm:$0xff]
    %v4833 = vld [vmem:[#allocation7 + $0xed8] sm:$0xff]
    %v4834 = vld [vmem:[#allocation7 + $0xee0] sm:$0xff]
    %v4835 = vld [vmem:[#allocation7 + $0xee8] sm:$0xff]
    %v4836 = vld [vmem:[#allocation7 + $0xef0] sm:$0xff]
    %v4837 = vld [vmem:[#allocation7 + $0xef8] sm:$0xff]
    %v4838 = vld [vmem:[#allocation7 + $0xf00] sm:$0xff]
    %v4839 = vld [vmem:[#allocation7 + $0xf08] sm:$0xff]
    %v4840 = vld [vmem:[#allocation7 + $0xf10] sm:$0xff]
    %v4841 = vld [vmem:[#allocation7 + $0xf18] sm:$0xff]
    %v4842 = vld [vmem:[#allocation7 + $0xf20] sm:$0xff]
    %v4843 = vld [vmem:[#allocation7 + $0xf28] sm:$0xff]
    %v4844 = vld [vmem:[#allocation7 + $0xf30] sm:$0xff]
    %v4845 = vld [vmem:[#allocation7 + $0xf38] sm:$0xff]
    %v4846 = vld [vmem:[#allocation7 + $0xf40] sm:$0xff]
    %v4847 = vld [vmem:[#allocation7 + $0xf48] sm:$0xff]
    %v4848 = vld [vmem:[#allocation7 + $0xf50] sm:$0xff]
    %v4849 = vld [vmem:[#allocation7 + $0xf58] sm:$0xff]
    %v4850 = vld [vmem:[#allocation7 + $0xf60] sm:$0xff]
    %v4851 = vld [vmem:[#allocation7 + $0xf68] sm:$0xff]
    %v4852 = vld [vmem:[#allocation7 + $0xf70] sm:$0xff]
    %v4853 = vld [vmem:[#allocation7 + $0xf78] sm:$0xff]
    %v4854 = vld [vmem:[#allocation7 + $0xf80] sm:$0xff]
    %v4855 = vld [vmem:[#allocation7 + $0xf88] sm:$0xff]
    %v4856 = vld [vmem:[#allocation7 + $0xf90] sm:$0xff]
    %v4857 = vld [vmem:[#allocation7 + $0xf98] sm:$0xff]
    %v4858 = vld [vmem:[#allocation7 + $0xfa0] sm:$0xff]
    %v4859 = vld [vmem:[#allocation7 + $0xfa8] sm:$0xff]
    %v4860 = vld [vmem:[#allocation7 + $0xfb0] sm:$0xff]
    %v4861 = vld [vmem:[#allocation7 + $0xfb8] sm:$0xff]
    %v4862 = vld [vmem:[#allocation7 + $0xfc0] sm:$0xff]
    %v4863 = vld [vmem:[#allocation7 + $0xfc8] sm:$0xff]
    %v4864 = vld [vmem:[#allocation7 + $0xfd0] sm:$0xff]
    %v4865 = vld [vmem:[#allocation7 + $0xfd8] sm:$0xff]
    %v4866 = vld [vmem:[#allocation7 + $0xfe0] sm:$0xff]
    %v4867 = vld [vmem:[#allocation7 + $0xfe8] sm:$0xff]
    %v4868 = vld [vmem:[#allocation7 + $0xff0] sm:$0xff]
    %v4869 = vld [vmem:[#allocation7 + $0xff8] sm:$0xff]
    %v5382 = vunpack.c.l.b16 %v4358
    %v5383 = vunpack.c.h.b16 %v4358
    %v5384 = vunpack.c.l.b16 %v4359
    %v5385 = vunpack.c.h.b16 %v4359
    %v5386 = vunpack.c.l.b16 %v4360
    %v5387 = vunpack.c.h.b16 %v4360
    %v5388 = vunpack.c.l.b16 %v4361
    %v5389 = vunpack.c.h.b16 %v4361
    %v5390 = vunpack.c.l.b16 %v4362
    %v5391 = vunpack.c.h.b16 %v4362
    %v5392 = vunpack.c.l.b16 %v4363
    %v5393 = vunpack.c.h.b16 %v4363
    %v5394 = vunpack.c.l.b16 %v4364
    %v5395 = vunpack.c.h.b16 %v4364
    %v5396 = vunpack.c.l.b16 %v4365
    %v5397 = vunpack.c.h.b16 %v4365
    %v5398 = vunpack.c.l.b16 %v4366
    %v5399 = vunpack.c.h.b16 %v4366
    %v5400 = vunpack.c.l.b16 %v4367
    %v5401 = vunpack.c.h.b16 %v4367
    %v5402 = vunpack.c.l.b16 %v4368
    %v5403 = vunpack.c.h.b16 %v4368
    %v5404 = vunpack.c.l.b16 %v4369
    %v5405 = vunpack.c.h.b16 %v4369
    %v5406 = vunpack.c.l.b16 %v4370
    %v5407 = vunpack.c.h.b16 %v4370
    %v5408 = vunpack.c.l.b16 %v4371
    %v5409 = vunpack.c.h.b16 %v4371
    %v5410 = vunpack.c.l.b16 %v4372
    %v5411 = vunpack.c.h.b16 %v4372
    %v5412 = vunpack.c.l.b16 %v4373
    %v5413 = vunpack.c.h.b16 %v4373
    %v5414 = vunpack.c.l.b16 %v4374
    %v5415 = vunpack.c.h.b16 %v4374
    %v5416 = vunpack.c.l.b16 %v4375
    %v5417 = vunpack.c.h.b16 %v4375
    %v5418 = vunpack.c.l.b16 %v4376
    %v5419 = vunpack.c.h.b16 %v4376
    %v5420 = vunpack.c.l.b16 %v4377
    %v5421 = vunpack.c.h.b16 %v4377
    %v5422 = vunpack.c.l.b16 %v4378
    %v5423 = vunpack.c.h.b16 %v4378
    %v5424 = vunpack.c.l.b16 %v4379
    %v5425 = vunpack.c.h.b16 %v4379
    %v5426 = vunpack.c.l.b16 %v4380
    %v5427 = vunpack.c.h.b16 %v4380
    %v5428 = vunpack.c.l.b16 %v4381
    %v5429 = vunpack.c.h.b16 %v4381
    %v5430 = vunpack.c.l.b16 %v4382
    %v5431 = vunpack.c.h.b16 %v4382
    %v5432 = vunpack.c.l.b16 %v4383
    %v5433 = vunpack.c.h.b16 %v4383
    %v5434 = vunpack.c.l.b16 %v4384
    %v5435 = vunpack.c.h.b16 %v4384
    %v5436 = vunpack.c.l.b16 %v4385
    %v5437 = vunpack.c.h.b16 %v4385
    %v5438 = vunpack.c.l.b16 %v4386
    %v5439 = vunpack.c.h.b16 %v4386
    %v5440 = vunpack.c.l.b16 %v4387
    %v5441 = vunpack.c.h.b16 %v4387
    %v5442 = vunpack.c.l.b16 %v4388
    %v5443 = vunpack.c.h.b16 %v4388
    %v5444 = vunpack.c.l.b16 %v4389
    %v5445 = vunpack.c.h.b16 %v4389
    %v5446 = vunpack.c.l.b16 %v4390
    %v5447 = vunpack.c.h.b16 %v4390
    %v5448 = vunpack.c.l.b16 %v4391
    %v5449 = vunpack.c.h.b16 %v4391
    %v5450 = vunpack.c.l.b16 %v4392
    %v5451 = vunpack.c.h.b16 %v4392
    %v5452 = vunpack.c.l.b16 %v4393
    %v5453 = vunpack.c.h.b16 %v4393
    %v5454 = vunpack.c.l.b16 %v4394
    %v5455 = vunpack.c.h.b16 %v4394
    %v5456 = vunpack.c.l.b16 %v4395
    %v5457 = vunpack.c.h.b16 %v4395
    %v5458 = vunpack.c.l.b16 %v4396
    %v5459 = vunpack.c.h.b16 %v4396
    %v5460 = vunpack.c.l.b16 %v4397
    %v5461 = vunpack.c.h.b16 %v4397
    %v5462 = vunpack.c.l.b16 %v4398
    %v5463 = vunpack.c.h.b16 %v4398
    %v5464 = vunpack.c.l.b16 %v4399
    %v5465 = vunpack.c.h.b16 %v4399
    %v5466 = vunpack.c.l.b16 %v4400
    %v5467 = vunpack.c.h.b16 %v4400
    %v5468 = vunpack.c.l.b16 %v4401
    %v5469 = vunpack.c.h.b16 %v4401
    %v5470 = vunpack.c.l.b16 %v4402
    %v5471 = vunpack.c.h.b16 %v4402
    %v5472 = vunpack.c.l.b16 %v4403
    %v5473 = vunpack.c.h.b16 %v4403
    %v5474 = vunpack.c.l.b16 %v4404
    %v5475 = vunpack.c.h.b16 %v4404
    %v5476 = vunpack.c.l.b16 %v4405
    %v5477 = vunpack.c.h.b16 %v4405
    %v5478 = vunpack.c.l.b16 %v4406
    %v5479 = vunpack.c.h.b16 %v4406
    %v5480 = vunpack.c.l.b16 %v4407
    %v5481 = vunpack.c.h.b16 %v4407
    %v5482 = vunpack.c.l.b16 %v4408
    %v5483 = vunpack.c.h.b16 %v4408
    %v5484 = vunpack.c.l.b16 %v4409
    %v5485 = vunpack.c.h.b16 %v4409
    %v5486 = vunpack.c.l.b16 %v4410
    %v5487 = vunpack.c.h.b16 %v4410
    %v5488 = vunpack.c.l.b16 %v4411
    %v5489 = vunpack.c.h.b16 %v4411
    %v5490 = vunpack.c.l.b16 %v4412
    %v5491 = vunpack.c.h.b16 %v4412
    %v5492 = vunpack.c.l.b16 %v4413
    %v5493 = vunpack.c.h.b16 %v4413
    %v5494 = vunpack.c.l.b16 %v4414
    %v5495 = vunpack.c.h.b16 %v4414
    %v5496 = vunpack.c.l.b16 %v4415
    %v5497 = vunpack.c.h.b16 %v4415
    %v5498 = vunpack.c.l.b16 %v4416
    %v5499 = vunpack.c.h.b16 %v4416
    %v5500 = vunpack.c.l.b16 %v4417
    %v5501 = vunpack.c.h.b16 %v4417
    %v5502 = vunpack.c.l.b16 %v4418
    %v5503 = vunpack.c.h.b16 %v4418
    %v5504 = vunpack.c.l.b16 %v4419
    %v5505 = vunpack.c.h.b16 %v4419
    %v5506 = vunpack.c.l.b16 %v4420
    %v5507 = vunpack.c.h.b16 %v4420
    %v5508 = vunpack.c.l.b16 %v4421
    %v5509 = vunpack.c.h.b16 %v4421
    %v5510 = vunpack.c.l.b16 %v4422
    %v5511 = vunpack.c.h.b16 %v4422
    %v5512 = vunpack.c.l.b16 %v4423
    %v5513 = vunpack.c.h.b16 %v4423
    %v5514 = vunpack.c.l.b16 %v4424
    %v5515 = vunpack.c.h.b16 %v4424
    %v5516 = vunpack.c.l.b16 %v4425
    %v5517 = vunpack.c.h.b16 %v4425
    %v5518 = vunpack.c.l.b16 %v4426
    %v5519 = vunpack.c.h.b16 %v4426
    %v5520 = vunpack.c.l.b16 %v4427
    %v5521 = vunpack.c.h.b16 %v4427
    %v5522 = vunpack.c.l.b16 %v4428
    %v5523 = vunpack.c.h.b16 %v4428
    %v5524 = vunpack.c.l.b16 %v4429
    %v5525 = vunpack.c.h.b16 %v4429
    %v5526 = vunpack.c.l.b16 %v4430
    %v5527 = vunpack.c.h.b16 %v4430
    %v5528 = vunpack.c.l.b16 %v4431
    %v5529 = vunpack.c.h.b16 %v4431
    %v5530 = vunpack.c.l.b16 %v4432
    %v5531 = vunpack.c.h.b16 %v4432
    %v5532 = vunpack.c.l.b16 %v4433
    %v5533 = vunpack.c.h.b16 %v4433
    %v5534 = vunpack.c.l.b16 %v4434
    %v5535 = vunpack.c.h.b16 %v4434
    %v5536 = vunpack.c.l.b16 %v4435
    %v5537 = vunpack.c.h.b16 %v4435
    %v5538 = vunpack.c.l.b16 %v4436
    %v5539 = vunpack.c.h.b16 %v4436
    %v5540 = vunpack.c.l.b16 %v4437
    %v5541 = vunpack.c.h.b16 %v4437
    %v5542 = vunpack.c.l.b16 %v4438
    %v5543 = vunpack.c.h.b16 %v4438
    %v5544 = vunpack.c.l.b16 %v4439
    %v5545 = vunpack.c.h.b16 %v4439
    %v5546 = vunpack.c.l.b16 %v4440
    %v5547 = vunpack.c.h.b16 %v4440
    %v5548 = vunpack.c.l.b16 %v4441
    %v5549 = vunpack.c.h.b16 %v4441
    %v5550 = vunpack.c.l.b16 %v4442
    %v5551 = vunpack.c.h.b16 %v4442
    %v5552 = vunpack.c.l.b16 %v4443
    %v5553 = vunpack.c.h.b16 %v4443
    %v5554 = vunpack.c.l.b16 %v4444
    %v5555 = vunpack.c.h.b16 %v4444
    %v5556 = vunpack.c.l.b16 %v4445
    %v5557 = vunpack.c.h.b16 %v4445
    %v5558 = vunpack.c.l.b16 %v4446
    %v5559 = vunpack.c.h.b16 %v4446
    %v5560 = vunpack.c.l.b16 %v4447
    %v5561 = vunpack.c.h.b16 %v4447
    %v5562 = vunpack.c.l.b16 %v4448
    %v5563 = vunpack.c.h.b16 %v4448
    %v5564 = vunpack.c.l.b16 %v4449
    %v5565 = vunpack.c.h.b16 %v4449
    %v5566 = vunpack.c.l.b16 %v4450
    %v5567 = vunpack.c.h.b16 %v4450
    %v5568 = vunpack.c.l.b16 %v4451
    %v5569 = vunpack.c.h.b16 %v4451
    %v5570 = vunpack.c.l.b16 %v4452
    %v5571 = vunpack.c.h.b16 %v4452
    %v5572 = vunpack.c.l.b16 %v4453
    %v5573 = vunpack.c.h.b16 %v4453
    %v5574 = vunpack.c.l.b16 %v4454
    %v5575 = vunpack.c.h.b16 %v4454
    %v5576 = vunpack.c.l.b16 %v4455
    %v5577 = vunpack.c.h.b16 %v4455
    %v5578 = vunpack.c.l.b16 %v4456
    %v5579 = vunpack.c.h.b16 %v4456
    %v5580 = vunpack.c.l.b16 %v4457
    %v5581 = vunpack.c.h.b16 %v4457
    %v5582 = vunpack.c.l.b16 %v4458
    %v5583 = vunpack.c.h.b16 %v4458
    %v5584 = vunpack.c.l.b16 %v4459
    %v5585 = vunpack.c.h.b16 %v4459
    %v5586 = vunpack.c.l.b16 %v4460
    %v5587 = vunpack.c.h.b16 %v4460
    %v5588 = vunpack.c.l.b16 %v4461
    %v5589 = vunpack.c.h.b16 %v4461
    %v5590 = vunpack.c.l.b16 %v4462
    %v5591 = vunpack.c.h.b16 %v4462
    %v5592 = vunpack.c.l.b16 %v4463
    %v5593 = vunpack.c.h.b16 %v4463
    %v5594 = vunpack.c.l.b16 %v4464
    %v5595 = vunpack.c.h.b16 %v4464
    %v5596 = vunpack.c.l.b16 %v4465
    %v5597 = vunpack.c.h.b16 %v4465
    %v5598 = vunpack.c.l.b16 %v4466
    %v5599 = vunpack.c.h.b16 %v4466
    %v5600 = vunpack.c.l.b16 %v4467
    %v5601 = vunpack.c.h.b16 %v4467
    %v5602 = vunpack.c.l.b16 %v4468
    %v5603 = vunpack.c.h.b16 %v4468
    %v5604 = vunpack.c.l.b16 %v4469
    %v5605 = vunpack.c.h.b16 %v4469
    %v5606 = vunpack.c.l.b16 %v4470
    %v5607 = vunpack.c.h.b16 %v4470
    %v5608 = vunpack.c.l.b16 %v4471
    %v5609 = vunpack.c.h.b16 %v4471
    %v5610 = vunpack.c.l.b16 %v4472
    %v5611 = vunpack.c.h.b16 %v4472
    %v5612 = vunpack.c.l.b16 %v4473
    %v5613 = vunpack.c.h.b16 %v4473
    %v5614 = vunpack.c.l.b16 %v4474
    %v5615 = vunpack.c.h.b16 %v4474
    %v5616 = vunpack.c.l.b16 %v4475
    %v5617 = vunpack.c.h.b16 %v4475
    %v5618 = vunpack.c.l.b16 %v4476
    %v5619 = vunpack.c.h.b16 %v4476
    %v5620 = vunpack.c.l.b16 %v4477
    %v5621 = vunpack.c.h.b16 %v4477
    %v5622 = vunpack.c.l.b16 %v4478
    %v5623 = vunpack.c.h.b16 %v4478
    %v5624 = vunpack.c.l.b16 %v4479
    %v5625 = vunpack.c.h.b16 %v4479
    %v5626 = vunpack.c.l.b16 %v4480
    %v5627 = vunpack.c.h.b16 %v4480
    %v5628 = vunpack.c.l.b16 %v4481
    %v5629 = vunpack.c.h.b16 %v4481
    %v5630 = vunpack.c.l.b16 %v4482
    %v5631 = vunpack.c.h.b16 %v4482
    %v5632 = vunpack.c.l.b16 %v4483
    %v5633 = vunpack.c.h.b16 %v4483
    %v5634 = vunpack.c.l.b16 %v4484
    %v5635 = vunpack.c.h.b16 %v4484
    %v5636 = vunpack.c.l.b16 %v4485
    %v5637 = vunpack.c.h.b16 %v4485
    %v5638 = vunpack.c.l.b16 %v4486
    %v5639 = vunpack.c.h.b16 %v4486
    %v5640 = vunpack.c.l.b16 %v4487
    %v5641 = vunpack.c.h.b16 %v4487
    %v5642 = vunpack.c.l.b16 %v4488
    %v5643 = vunpack.c.h.b16 %v4488
    %v5644 = vunpack.c.l.b16 %v4489
    %v5645 = vunpack.c.h.b16 %v4489
    %v5646 = vunpack.c.l.b16 %v4490
    %v5647 = vunpack.c.h.b16 %v4490
    %v5648 = vunpack.c.l.b16 %v4491
    %v5649 = vunpack.c.h.b16 %v4491
    %v5650 = vunpack.c.l.b16 %v4492
    %v5651 = vunpack.c.h.b16 %v4492
    %v5652 = vunpack.c.l.b16 %v4493
    %v5653 = vunpack.c.h.b16 %v4493
    %v5654 = vunpack.c.l.b16 %v4494
    %v5655 = vunpack.c.h.b16 %v4494
    %v5656 = vunpack.c.l.b16 %v4495
    %v5657 = vunpack.c.h.b16 %v4495
    %v5658 = vunpack.c.l.b16 %v4496
    %v5659 = vunpack.c.h.b16 %v4496
    %v5660 = vunpack.c.l.b16 %v4497
    %v5661 = vunpack.c.h.b16 %v4497
    %v5662 = vunpack.c.l.b16 %v4498
    %v5663 = vunpack.c.h.b16 %v4498
    %v5664 = vunpack.c.l.b16 %v4499
    %v5665 = vunpack.c.h.b16 %v4499
    %v5666 = vunpack.c.l.b16 %v4500
    %v5667 = vunpack.c.h.b16 %v4500
    %v5668 = vunpack.c.l.b16 %v4501
    %v5669 = vunpack.c.h.b16 %v4501
    %v5670 = vunpack.c.l.b16 %v4502
    %v5671 = vunpack.c.h.b16 %v4502
    %v5672 = vunpack.c.l.b16 %v4503
    %v5673 = vunpack.c.h.b16 %v4503
    %v5674 = vunpack.c.l.b16 %v4504
    %v5675 = vunpack.c.h.b16 %v4504
    %v5676 = vunpack.c.l.b16 %v4505
    %v5677 = vunpack.c.h.b16 %v4505
    %v5678 = vunpack.c.l.b16 %v4506
    %v5679 = vunpack.c.h.b16 %v4506
    %v5680 = vunpack.c.l.b16 %v4507
    %v5681 = vunpack.c.h.b16 %v4507
    %v5682 = vunpack.c.l.b16 %v4508
    %v5683 = vunpack.c.h.b16 %v4508
    %v5684 = vunpack.c.l.b16 %v4509
    %v5685 = vunpack.c.h.b16 %v4509
    %v5686 = vunpack.c.l.b16 %v4510
    %v5687 = vunpack.c.h.b16 %v4510
    %v5688 = vunpack.c.l.b16 %v4511
    %v5689 = vunpack.c.h.b16 %v4511
    %v5690 = vunpack.c.l.b16 %v4512
    %v5691 = vunpack.c.h.b16 %v4512
    %v5692 = vunpack.c.l.b16 %v4513
    %v5693 = vunpack.c.h.b16 %v4513
    %v5694 = vunpack.c.l.b16 %v4514
    %v5695 = vunpack.c.h.b16 %v4514
    %v5696 = vunpack.c.l.b16 %v4515
    %v5697 = vunpack.c.h.b16 %v4515
    %v5698 = vunpack.c.l.b16 %v4516
    %v5699 = vunpack.c.h.b16 %v4516
    %v5700 = vunpack.c.l.b16 %v4517
    %v5701 = vunpack.c.h.b16 %v4517
    %v5702 = vunpack.c.l.b16 %v4518
    %v5703 = vunpack.c.h.b16 %v4518
    %v5704 = vunpack.c.l.b16 %v4519
    %v5705 = vunpack.c.h.b16 %v4519
    %v5706 = vunpack.c.l.b16 %v4520
    %v5707 = vunpack.c.h.b16 %v4520
    %v5708 = vunpack.c.l.b16 %v4521
    %v5709 = vunpack.c.h.b16 %v4521
    %v5710 = vunpack.c.l.b16 %v4522
    %v5711 = vunpack.c.h.b16 %v4522
    %v5712 = vunpack.c.l.b16 %v4523
    %v5713 = vunpack.c.h.b16 %v4523
    %v5714 = vunpack.c.l.b16 %v4524
    %v5715 = vunpack.c.h.b16 %v4524
    %v5716 = vunpack.c.l.b16 %v4525
    %v5717 = vunpack.c.h.b16 %v4525
    %v5718 = vunpack.c.l.b16 %v4526
    %v5719 = vunpack.c.h.b16 %v4526
    %v5720 = vunpack.c.l.b16 %v4527
    %v5721 = vunpack.c.h.b16 %v4527
    %v5722 = vunpack.c.l.b16 %v4528
    %v5723 = vunpack.c.h.b16 %v4528
    %v5724 = vunpack.c.l.b16 %v4529
    %v5725 = vunpack.c.h.b16 %v4529
    %v5726 = vunpack.c.l.b16 %v4530
    %v5727 = vunpack.c.h.b16 %v4530
    %v5728 = vunpack.c.l.b16 %v4531
    %v5729 = vunpack.c.h.b16 %v4531
    %v5730 = vunpack.c.l.b16 %v4532
    %v5731 = vunpack.c.h.b16 %v4532
    %v5732 = vunpack.c.l.b16 %v4533
    %v5733 = vunpack.c.h.b16 %v4533
    %v5734 = vunpack.c.l.b16 %v4534
    %v5735 = vunpack.c.h.b16 %v4534
    %v5736 = vunpack.c.l.b16 %v4535
    %v5737 = vunpack.c.h.b16 %v4535
    %v5738 = vunpack.c.l.b16 %v4536
    %v5739 = vunpack.c.h.b16 %v4536
    %v5740 = vunpack.c.l.b16 %v4537
    %v5741 = vunpack.c.h.b16 %v4537
    %v5742 = vunpack.c.l.b16 %v4538
    %v5743 = vunpack.c.h.b16 %v4538
    %v5744 = vunpack.c.l.b16 %v4539
    %v5745 = vunpack.c.h.b16 %v4539
    %v5746 = vunpack.c.l.b16 %v4540
    %v5747 = vunpack.c.h.b16 %v4540
    %v5748 = vunpack.c.l.b16 %v4541
    %v5749 = vunpack.c.h.b16 %v4541
    %v5750 = vunpack.c.l.b16 %v4542
    %v5751 = vunpack.c.h.b16 %v4542
    %v5752 = vunpack.c.l.b16 %v4543
    %v5753 = vunpack.c.h.b16 %v4543
    %v5754 = vunpack.c.l.b16 %v4544
    %v5755 = vunpack.c.h.b16 %v4544
    %v5756 = vunpack.c.l.b16 %v4545
    %v5757 = vunpack.c.h.b16 %v4545
    %v5758 = vunpack.c.l.b16 %v4546
    %v5759 = vunpack.c.h.b16 %v4546
    %v5760 = vunpack.c.l.b16 %v4547
    %v5761 = vunpack.c.h.b16 %v4547
    %v5762 = vunpack.c.l.b16 %v4548
    %v5763 = vunpack.c.h.b16 %v4548
    %v5764 = vunpack.c.l.b16 %v4549
    %v5765 = vunpack.c.h.b16 %v4549
    %v5766 = vunpack.c.l.b16 %v4550
    %v5767 = vunpack.c.h.b16 %v4550
    %v5768 = vunpack.c.l.b16 %v4551
    %v5769 = vunpack.c.h.b16 %v4551
    %v5770 = vunpack.c.l.b16 %v4552
    %v5771 = vunpack.c.h.b16 %v4552
    %v5772 = vunpack.c.l.b16 %v4553
    %v5773 = vunpack.c.h.b16 %v4553
    %v5774 = vunpack.c.l.b16 %v4554
    %v5775 = vunpack.c.h.b16 %v4554
    %v5776 = vunpack.c.l.b16 %v4555
    %v5777 = vunpack.c.h.b16 %v4555
    %v5778 = vunpack.c.l.b16 %v4556
    %v5779 = vunpack.c.h.b16 %v4556
    %v5780 = vunpack.c.l.b16 %v4557
    %v5781 = vunpack.c.h.b16 %v4557
    %v5782 = vunpack.c.l.b16 %v4558
    %v5783 = vunpack.c.h.b16 %v4558
    %v5784 = vunpack.c.l.b16 %v4559
    %v5785 = vunpack.c.h.b16 %v4559
    %v5786 = vunpack.c.l.b16 %v4560
    %v5787 = vunpack.c.h.b16 %v4560
    %v5788 = vunpack.c.l.b16 %v4561
    %v5789 = vunpack.c.h.b16 %v4561
    %v5790 = vunpack.c.l.b16 %v4562
    %v5791 = vunpack.c.h.b16 %v4562
    %v5792 = vunpack.c.l.b16 %v4563
    %v5793 = vunpack.c.h.b16 %v4563
    %v5794 = vunpack.c.l.b16 %v4564
    %v5795 = vunpack.c.h.b16 %v4564
    %v5796 = vunpack.c.l.b16 %v4565
    %v5797 = vunpack.c.h.b16 %v4565
    %v5798 = vunpack.c.l.b16 %v4566
    %v5799 = vunpack.c.h.b16 %v4566
    %v5800 = vunpack.c.l.b16 %v4567
    %v5801 = vunpack.c.h.b16 %v4567
    %v5802 = vunpack.c.l.b16 %v4568
    %v5803 = vunpack.c.h.b16 %v4568
    %v5804 = vunpack.c.l.b16 %v4569
    %v5805 = vunpack.c.h.b16 %v4569
    %v5806 = vunpack.c.l.b16 %v4570
    %v5807 = vunpack.c.h.b16 %v4570
    %v5808 = vunpack.c.l.b16 %v4571
    %v5809 = vunpack.c.h.b16 %v4571
    %v5810 = vunpack.c.l.b16 %v4572
    %v5811 = vunpack.c.h.b16 %v4572
    %v5812 = vunpack.c.l.b16 %v4573
    %v5813 = vunpack.c.h.b16 %v4573
    %v5814 = vunpack.c.l.b16 %v4574
    %v5815 = vunpack.c.h.b16 %v4574
    %v5816 = vunpack.c.l.b16 %v4575
    %v5817 = vunpack.c.h.b16 %v4575
    %v5818 = vunpack.c.l.b16 %v4576
    %v5819 = vunpack.c.h.b16 %v4576
    %v5820 = vunpack.c.l.b16 %v4577
    %v5821 = vunpack.c.h.b16 %v4577
    %v5822 = vunpack.c.l.b16 %v4578
    %v5823 = vunpack.c.h.b16 %v4578
    %v5824 = vunpack.c.l.b16 %v4579
    %v5825 = vunpack.c.h.b16 %v4579
    %v5826 = vunpack.c.l.b16 %v4580
    %v5827 = vunpack.c.h.b16 %v4580
    %v5828 = vunpack.c.l.b16 %v4581
    %v5829 = vunpack.c.h.b16 %v4581
    %v5830 = vunpack.c.l.b16 %v4582
    %v5831 = vunpack.c.h.b16 %v4582
    %v5832 = vunpack.c.l.b16 %v4583
    %v5833 = vunpack.c.h.b16 %v4583
    %v5834 = vunpack.c.l.b16 %v4584
    %v5835 = vunpack.c.h.b16 %v4584
    %v5836 = vunpack.c.l.b16 %v4585
    %v5837 = vunpack.c.h.b16 %v4585
    %v5838 = vunpack.c.l.b16 %v4586
    %v5839 = vunpack.c.h.b16 %v4586
    %v5840 = vunpack.c.l.b16 %v4587
    %v5841 = vunpack.c.h.b16 %v4587
    %v5842 = vunpack.c.l.b16 %v4588
    %v5843 = vunpack.c.h.b16 %v4588
    %v5844 = vunpack.c.l.b16 %v4589
    %v5845 = vunpack.c.h.b16 %v4589
    %v5846 = vunpack.c.l.b16 %v4590
    %v5847 = vunpack.c.h.b16 %v4590
    %v5848 = vunpack.c.l.b16 %v4591
    %v5849 = vunpack.c.h.b16 %v4591
    %v5850 = vunpack.c.l.b16 %v4592
    %v5851 = vunpack.c.h.b16 %v4592
    %v5852 = vunpack.c.l.b16 %v4593
    %v5853 = vunpack.c.h.b16 %v4593
    %v5854 = vunpack.c.l.b16 %v4594
    %v5855 = vunpack.c.h.b16 %v4594
    %v5856 = vunpack.c.l.b16 %v4595
    %v5857 = vunpack.c.h.b16 %v4595
    %v5858 = vunpack.c.l.b16 %v4596
    %v5859 = vunpack.c.h.b16 %v4596
    %v5860 = vunpack.c.l.b16 %v4597
    %v5861 = vunpack.c.h.b16 %v4597
    %v5862 = vunpack.c.l.b16 %v4598
    %v5863 = vunpack.c.h.b16 %v4598
    %v5864 = vunpack.c.l.b16 %v4599
    %v5865 = vunpack.c.h.b16 %v4599
    %v5866 = vunpack.c.l.b16 %v4600
    %v5867 = vunpack.c.h.b16 %v4600
    %v5868 = vunpack.c.l.b16 %v4601
    %v5869 = vunpack.c.h.b16 %v4601
    %v5870 = vunpack.c.l.b16 %v4602
    %v5871 = vunpack.c.h.b16 %v4602
    %v5872 = vunpack.c.l.b16 %v4603
    %v5873 = vunpack.c.h.b16 %v4603
    %v5874 = vunpack.c.l.b16 %v4604
    %v5875 = vunpack.c.h.b16 %v4604
    %v5876 = vunpack.c.l.b16 %v4605
    %v5877 = vunpack.c.h.b16 %v4605
    %v5878 = vunpack.c.l.b16 %v4606
    %v5879 = vunpack.c.h.b16 %v4606
    %v5880 = vunpack.c.l.b16 %v4607
    %v5881 = vunpack.c.h.b16 %v4607
    %v5882 = vunpack.c.l.b16 %v4608
    %v5883 = vunpack.c.h.b16 %v4608
    %v5884 = vunpack.c.l.b16 %v4609
    %v5885 = vunpack.c.h.b16 %v4609
    %v5886 = vunpack.c.l.b16 %v4610
    %v5887 = vunpack.c.h.b16 %v4610
    %v5888 = vunpack.c.l.b16 %v4611
    %v5889 = vunpack.c.h.b16 %v4611
    %v5890 = vunpack.c.l.b16 %v4612
    %v5891 = vunpack.c.h.b16 %v4612
    %v5892 = vunpack.c.l.b16 %v4613
    %v5893 = vunpack.c.h.b16 %v4613
    %v5894 = vunpack.c.l.b16 %v4614
    %v5895 = vunpack.c.h.b16 %v4614
    %v5896 = vunpack.c.l.b16 %v4615
    %v5897 = vunpack.c.h.b16 %v4615
    %v5898 = vunpack.c.l.b16 %v4616
    %v5899 = vunpack.c.h.b16 %v4616
    %v5900 = vunpack.c.l.b16 %v4617
    %v5901 = vunpack.c.h.b16 %v4617
    %v5902 = vunpack.c.l.b16 %v4618
    %v5903 = vunpack.c.h.b16 %v4618
    %v5904 = vunpack.c.l.b16 %v4619
    %v5905 = vunpack.c.h.b16 %v4619
    %v5906 = vunpack.c.l.b16 %v4620
    %v5907 = vunpack.c.h.b16 %v4620
    %v5908 = vunpack.c.l.b16 %v4621
    %v5909 = vunpack.c.h.b16 %v4621
    %v5910 = vunpack.c.l.b16 %v4622
    %v5911 = vunpack.c.h.b16 %v4622
    %v5912 = vunpack.c.l.b16 %v4623
    %v5913 = vunpack.c.h.b16 %v4623
    %v5914 = vunpack.c.l.b16 %v4624
    %v5915 = vunpack.c.h.b16 %v4624
    %v5916 = vunpack.c.l.b16 %v4625
    %v5917 = vunpack.c.h.b16 %v4625
    %v5918 = vunpack.c.l.b16 %v4626
    %v5919 = vunpack.c.h.b16 %v4626
    %v5920 = vunpack.c.l.b16 %v4627
    %v5921 = vunpack.c.h.b16 %v4627
    %v5922 = vunpack.c.l.b16 %v4628
    %v5923 = vunpack.c.h.b16 %v4628
    %v5924 = vunpack.c.l.b16 %v4629
    %v5925 = vunpack.c.h.b16 %v4629
    %v5926 = vunpack.c.l.b16 %v4630
    %v5927 = vunpack.c.h.b16 %v4630
    %v5928 = vunpack.c.l.b16 %v4631
    %v5929 = vunpack.c.h.b16 %v4631
    %v5930 = vunpack.c.l.b16 %v4632
    %v5931 = vunpack.c.h.b16 %v4632
    %v5932 = vunpack.c.l.b16 %v4633
    %v5933 = vunpack.c.h.b16 %v4633
    %v5934 = vunpack.c.l.b16 %v4634
    %v5935 = vunpack.c.h.b16 %v4634
    %v5936 = vunpack.c.l.b16 %v4635
    %v5937 = vunpack.c.h.b16 %v4635
    %v5938 = vunpack.c.l.b16 %v4636
    %v5939 = vunpack.c.h.b16 %v4636
    %v5940 = vunpack.c.l.b16 %v4637
    %v5941 = vunpack.c.h.b16 %v4637
    %v5942 = vunpack.c.l.b16 %v4638
    %v5943 = vunpack.c.h.b16 %v4638
    %v5944 = vunpack.c.l.b16 %v4639
    %v5945 = vunpack.c.h.b16 %v4639
    %v5946 = vunpack.c.l.b16 %v4640
    %v5947 = vunpack.c.h.b16 %v4640
    %v5948 = vunpack.c.l.b16 %v4641
    %v5949 = vunpack.c.h.b16 %v4641
    %v5950 = vunpack.c.l.b16 %v4642
    %v5951 = vunpack.c.h.b16 %v4642
    %v5952 = vunpack.c.l.b16 %v4643
    %v5953 = vunpack.c.h.b16 %v4643
    %v5954 = vunpack.c.l.b16 %v4644
    %v5955 = vunpack.c.h.b16 %v4644
    %v5956 = vunpack.c.l.b16 %v4645
    %v5957 = vunpack.c.h.b16 %v4645
    %v5958 = vunpack.c.l.b16 %v4646
    %v5959 = vunpack.c.h.b16 %v4646
    %v5960 = vunpack.c.l.b16 %v4647
    %v5961 = vunpack.c.h.b16 %v4647
    %v5962 = vunpack.c.l.b16 %v4648
    %v5963 = vunpack.c.h.b16 %v4648
    %v5964 = vunpack.c.l.b16 %v4649
    %v5965 = vunpack.c.h.b16 %v4649
    %v5966 = vunpack.c.l.b16 %v4650
    %v5967 = vunpack.c.h.b16 %v4650
    %v5968 = vunpack.c.l.b16 %v4651
    %v5969 = vunpack.c.h.b16 %v4651
    %v5970 = vunpack.c.l.b16 %v4652
    %v5971 = vunpack.c.h.b16 %v4652
    %v5972 = vunpack.c.l.b16 %v4653
    %v5973 = vunpack.c.h.b16 %v4653
    %v5974 = vunpack.c.l.b16 %v4654
    %v5975 = vunpack.c.h.b16 %v4654
    %v5976 = vunpack.c.l.b16 %v4655
    %v5977 = vunpack.c.h.b16 %v4655
    %v5978 = vunpack.c.l.b16 %v4656
    %v5979 = vunpack.c.h.b16 %v4656
    %v5980 = vunpack.c.l.b16 %v4657
    %v5981 = vunpack.c.h.b16 %v4657
    %v5982 = vunpack.c.l.b16 %v4658
    %v5983 = vunpack.c.h.b16 %v4658
    %v5984 = vunpack.c.l.b16 %v4659
    %v5985 = vunpack.c.h.b16 %v4659
    %v5986 = vunpack.c.l.b16 %v4660
    %v5987 = vunpack.c.h.b16 %v4660
    %v5988 = vunpack.c.l.b16 %v4661
    %v5989 = vunpack.c.h.b16 %v4661
    %v5990 = vunpack.c.l.b16 %v4662
    %v5991 = vunpack.c.h.b16 %v4662
    %v5992 = vunpack.c.l.b16 %v4663
    %v5993 = vunpack.c.h.b16 %v4663
    %v5994 = vunpack.c.l.b16 %v4664
    %v5995 = vunpack.c.h.b16 %v4664
    %v5996 = vunpack.c.l.b16 %v4665
    %v5997 = vunpack.c.h.b16 %v4665
    %v5998 = vunpack.c.l.b16 %v4666
    %v5999 = vunpack.c.h.b16 %v4666
    %v6000 = vunpack.c.l.b16 %v4667
    %v6001 = vunpack.c.h.b16 %v4667
    %v6002 = vunpack.c.l.b16 %v4668
    %v6003 = vunpack.c.h.b16 %v4668
    %v6004 = vunpack.c.l.b16 %v4669
    %v6005 = vunpack.c.h.b16 %v4669
    %v6006 = vunpack.c.l.b16 %v4670
    %v6007 = vunpack.c.h.b16 %v4670
    %v6008 = vunpack.c.l.b16 %v4671
    %v6009 = vunpack.c.h.b16 %v4671
    %v6010 = vunpack.c.l.b16 %v4672
    %v6011 = vunpack.c.h.b16 %v4672
    %v6012 = vunpack.c.l.b16 %v4673
    %v6013 = vunpack.c.h.b16 %v4673
    %v6014 = vunpack.c.l.b16 %v4674
    %v6015 = vunpack.c.h.b16 %v4674
    %v6016 = vunpack.c.l.b16 %v4675
    %v6017 = vunpack.c.h.b16 %v4675
    %v6018 = vunpack.c.l.b16 %v4676
    %v6019 = vunpack.c.h.b16 %v4676
    %v6020 = vunpack.c.l.b16 %v4677
    %v6021 = vunpack.c.h.b16 %v4677
    %v6022 = vunpack.c.l.b16 %v4678
    %v6023 = vunpack.c.h.b16 %v4678
    %v6024 = vunpack.c.l.b16 %v4679
    %v6025 = vunpack.c.h.b16 %v4679
    %v6026 = vunpack.c.l.b16 %v4680
    %v6027 = vunpack.c.h.b16 %v4680
    %v6028 = vunpack.c.l.b16 %v4681
    %v6029 = vunpack.c.h.b16 %v4681
    %v6030 = vunpack.c.l.b16 %v4682
    %v6031 = vunpack.c.h.b16 %v4682
    %v6032 = vunpack.c.l.b16 %v4683
    %v6033 = vunpack.c.h.b16 %v4683
    %v6034 = vunpack.c.l.b16 %v4684
    %v6035 = vunpack.c.h.b16 %v4684
    %v6036 = vunpack.c.l.b16 %v4685
    %v6037 = vunpack.c.h.b16 %v4685
    %v6038 = vunpack.c.l.b16 %v4686
    %v6039 = vunpack.c.h.b16 %v4686
    %v6040 = vunpack.c.l.b16 %v4687
    %v6041 = vunpack.c.h.b16 %v4687
    %v6042 = vunpack.c.l.b16 %v4688
    %v6043 = vunpack.c.h.b16 %v4688
    %v6044 = vunpack.c.l.b16 %v4689
    %v6045 = vunpack.c.h.b16 %v4689
    %v6046 = vunpack.c.l.b16 %v4690
    %v6047 = vunpack.c.h.b16 %v4690
    %v6048 = vunpack.c.l.b16 %v4691
    %v6049 = vunpack.c.h.b16 %v4691
    %v6050 = vunpack.c.l.b16 %v4692
    %v6051 = vunpack.c.h.b16 %v4692
    %v6052 = vunpack.c.l.b16 %v4693
    %v6053 = vunpack.c.h.b16 %v4693
    %v6054 = vunpack.c.l.b16 %v4694
    %v6055 = vunpack.c.h.b16 %v4694
    %v6056 = vunpack.c.l.b16 %v4695
    %v6057 = vunpack.c.h.b16 %v4695
    %v6058 = vunpack.c.l.b16 %v4696
    %v6059 = vunpack.c.h.b16 %v4696
    %v6060 = vunpack.c.l.b16 %v4697
    %v6061 = vunpack.c.h.b16 %v4697
    %v6062 = vunpack.c.l.b16 %v4698
    %v6063 = vunpack.c.h.b16 %v4698
    %v6064 = vunpack.c.l.b16 %v4699
    %v6065 = vunpack.c.h.b16 %v4699
    %v6066 = vunpack.c.l.b16 %v4700
    %v6067 = vunpack.c.h.b16 %v4700
    %v6068 = vunpack.c.l.b16 %v4701
    %v6069 = vunpack.c.h.b16 %v4701
    %v6070 = vunpack.c.l.b16 %v4702
    %v6071 = vunpack.c.h.b16 %v4702
    %v6072 = vunpack.c.l.b16 %v4703
    %v6073 = vunpack.c.h.b16 %v4703
    %v6074 = vunpack.c.l.b16 %v4704
    %v6075 = vunpack.c.h.b16 %v4704
    %v6076 = vunpack.c.l.b16 %v4705
    %v6077 = vunpack.c.h.b16 %v4705
    %v6078 = vunpack.c.l.b16 %v4706
    %v6079 = vunpack.c.h.b16 %v4706
    %v6080 = vunpack.c.l.b16 %v4707
    %v6081 = vunpack.c.h.b16 %v4707
    %v6082 = vunpack.c.l.b16 %v4708
    %v6083 = vunpack.c.h.b16 %v4708
    %v6084 = vunpack.c.l.b16 %v4709
    %v6085 = vunpack.c.h.b16 %v4709
    %v6086 = vunpack.c.l.b16 %v4710
    %v6087 = vunpack.c.h.b16 %v4710
    %v6088 = vunpack.c.l.b16 %v4711
    %v6089 = vunpack.c.h.b16 %v4711
    %v6090 = vunpack.c.l.b16 %v4712
    %v6091 = vunpack.c.h.b16 %v4712
    %v6092 = vunpack.c.l.b16 %v4713
    %v6093 = vunpack.c.h.b16 %v4713
    %v6094 = vunpack.c.l.b16 %v4714
    %v6095 = vunpack.c.h.b16 %v4714
    %v6096 = vunpack.c.l.b16 %v4715
    %v6097 = vunpack.c.h.b16 %v4715
    %v6098 = vunpack.c.l.b16 %v4716
    %v6099 = vunpack.c.h.b16 %v4716
    %v6100 = vunpack.c.l.b16 %v4717
    %v6101 = vunpack.c.h.b16 %v4717
    %v6102 = vunpack.c.l.b16 %v4718
    %v6103 = vunpack.c.h.b16 %v4718
    %v6104 = vunpack.c.l.b16 %v4719
    %v6105 = vunpack.c.h.b16 %v4719
    %v6106 = vunpack.c.l.b16 %v4720
    %v6107 = vunpack.c.h.b16 %v4720
    %v6108 = vunpack.c.l.b16 %v4721
    %v6109 = vunpack.c.h.b16 %v4721
    %v6110 = vunpack.c.l.b16 %v4722
    %v6111 = vunpack.c.h.b16 %v4722
    %v6112 = vunpack.c.l.b16 %v4723
    %v6113 = vunpack.c.h.b16 %v4723
    %v6114 = vunpack.c.l.b16 %v4724
    %v6115 = vunpack.c.h.b16 %v4724
    %v6116 = vunpack.c.l.b16 %v4725
    %v6117 = vunpack.c.h.b16 %v4725
    %v6118 = vunpack.c.l.b16 %v4726
    %v6119 = vunpack.c.h.b16 %v4726
    %v6120 = vunpack.c.l.b16 %v4727
    %v6121 = vunpack.c.h.b16 %v4727
    %v6122 = vunpack.c.l.b16 %v4728
    %v6123 = vunpack.c.h.b16 %v4728
    %v6124 = vunpack.c.l.b16 %v4729
    %v6125 = vunpack.c.h.b16 %v4729
    %v6126 = vunpack.c.l.b16 %v4730
    %v6127 = vunpack.c.h.b16 %v4730
    %v6128 = vunpack.c.l.b16 %v4731
    %v6129 = vunpack.c.h.b16 %v4731
    %v6130 = vunpack.c.l.b16 %v4732
    %v6131 = vunpack.c.h.b16 %v4732
    %v6132 = vunpack.c.l.b16 %v4733
    %v6133 = vunpack.c.h.b16 %v4733
    %v6134 = vunpack.c.l.b16 %v4734
    %v6135 = vunpack.c.h.b16 %v4734
    %v6136 = vunpack.c.l.b16 %v4735
    %v6137 = vunpack.c.h.b16 %v4735
    %v6138 = vunpack.c.l.b16 %v4736
    %v6139 = vunpack.c.h.b16 %v4736
    %v6140 = vunpack.c.l.b16 %v4737
    %v6141 = vunpack.c.h.b16 %v4737
    %v6142 = vunpack.c.l.b16 %v4738
    %v6143 = vunpack.c.h.b16 %v4738
    %v6144 = vunpack.c.l.b16 %v4739
    %v6145 = vunpack.c.h.b16 %v4739
    %v6146 = vunpack.c.l.b16 %v4740
    %v6147 = vunpack.c.h.b16 %v4740
    %v6148 = vunpack.c.l.b16 %v4741
    %v6149 = vunpack.c.h.b16 %v4741
    %v6150 = vunpack.c.l.b16 %v4742
    %v6151 = vunpack.c.h.b16 %v4742
    %v6152 = vunpack.c.l.b16 %v4743
    %v6153 = vunpack.c.h.b16 %v4743
    %v6154 = vunpack.c.l.b16 %v4744
    %v6155 = vunpack.c.h.b16 %v4744
    %v6156 = vunpack.c.l.b16 %v4745
    %v6157 = vunpack.c.h.b16 %v4745
    %v6158 = vunpack.c.l.b16 %v4746
    %v6159 = vunpack.c.h.b16 %v4746
    %v6160 = vunpack.c.l.b16 %v4747
    %v6161 = vunpack.c.h.b16 %v4747
    %v6162 = vunpack.c.l.b16 %v4748
    %v6163 = vunpack.c.h.b16 %v4748
    %v6164 = vunpack.c.l.b16 %v4749
    %v6165 = vunpack.c.h.b16 %v4749
    %v6166 = vunpack.c.l.b16 %v4750
    %v6167 = vunpack.c.h.b16 %v4750
    %v6168 = vunpack.c.l.b16 %v4751
    %v6169 = vunpack.c.h.b16 %v4751
    %v6170 = vunpack.c.l.b16 %v4752
    %v6171 = vunpack.c.h.b16 %v4752
    %v6172 = vunpack.c.l.b16 %v4753
    %v6173 = vunpack.c.h.b16 %v4753
    %v6174 = vunpack.c.l.b16 %v4754
    %v6175 = vunpack.c.h.b16 %v4754
    %v6176 = vunpack.c.l.b16 %v4755
    %v6177 = vunpack.c.h.b16 %v4755
    %v6178 = vunpack.c.l.b16 %v4756
    %v6179 = vunpack.c.h.b16 %v4756
    %v6180 = vunpack.c.l.b16 %v4757
    %v6181 = vunpack.c.h.b16 %v4757
    %v6182 = vunpack.c.l.b16 %v4758
    %v6183 = vunpack.c.h.b16 %v4758
    %v6184 = vunpack.c.l.b16 %v4759
    %v6185 = vunpack.c.h.b16 %v4759
    %v6186 = vunpack.c.l.b16 %v4760
    %v6187 = vunpack.c.h.b16 %v4760
    %v6188 = vunpack.c.l.b16 %v4761
    %v6189 = vunpack.c.h.b16 %v4761
    %v6190 = vunpack.c.l.b16 %v4762
    %v6191 = vunpack.c.h.b16 %v4762
    %v6192 = vunpack.c.l.b16 %v4763
    %v6193 = vunpack.c.h.b16 %v4763
    %v6194 = vunpack.c.l.b16 %v4764
    %v6195 = vunpack.c.h.b16 %v4764
    %v6196 = vunpack.c.l.b16 %v4765
    %v6197 = vunpack.c.h.b16 %v4765
    %v6198 = vunpack.c.l.b16 %v4766
    %v6199 = vunpack.c.h.b16 %v4766
    %v6200 = vunpack.c.l.b16 %v4767
    %v6201 = vunpack.c.h.b16 %v4767
    %v6202 = vunpack.c.l.b16 %v4768
    %v6203 = vunpack.c.h.b16 %v4768
    %v6204 = vunpack.c.l.b16 %v4769
    %v6205 = vunpack.c.h.b16 %v4769
    %v6206 = vunpack.c.l.b16 %v4770
    %v6207 = vunpack.c.h.b16 %v4770
    %v6208 = vunpack.c.l.b16 %v4771
    %v6209 = vunpack.c.h.b16 %v4771
    %v6210 = vunpack.c.l.b16 %v4772
    %v6211 = vunpack.c.h.b16 %v4772
    %v6212 = vunpack.c.l.b16 %v4773
    %v6213 = vunpack.c.h.b16 %v4773
    %v6214 = vunpack.c.l.b16 %v4774
    %v6215 = vunpack.c.h.b16 %v4774
    %v6216 = vunpack.c.l.b16 %v4775
    %v6217 = vunpack.c.h.b16 %v4775
    %v6218 = vunpack.c.l.b16 %v4776
    %v6219 = vunpack.c.h.b16 %v4776
    %v6220 = vunpack.c.l.b16 %v4777
    %v6221 = vunpack.c.h.b16 %v4777
    %v6222 = vunpack.c.l.b16 %v4778
    %v6223 = vunpack.c.h.b16 %v4778
    %v6224 = vunpack.c.l.b16 %v4779
    %v6225 = vunpack.c.h.b16 %v4779
    %v6226 = vunpack.c.l.b16 %v4780
    %v6227 = vunpack.c.h.b16 %v4780
    %v6228 = vunpack.c.l.b16 %v4781
    %v6229 = vunpack.c.h.b16 %v4781
    %v6230 = vunpack.c.l.b16 %v4782
    %v6231 = vunpack.c.h.b16 %v4782
    %v6232 = vunpack.c.l.b16 %v4783
    %v6233 = vunpack.c.h.b16 %v4783
    %v6234 = vunpack.c.l.b16 %v4784
    %v6235 = vunpack.c.h.b16 %v4784
    %v6236 = vunpack.c.l.b16 %v4785
    %v6237 = vunpack.c.h.b16 %v4785
    %v6238 = vunpack.c.l.b16 %v4786
    %v6239 = vunpack.c.h.b16 %v4786
    %v6240 = vunpack.c.l.b16 %v4787
    %v6241 = vunpack.c.h.b16 %v4787
    %v6242 = vunpack.c.l.b16 %v4788
    %v6243 = vunpack.c.h.b16 %v4788
    %v6244 = vunpack.c.l.b16 %v4789
    %v6245 = vunpack.c.h.b16 %v4789
    %v6246 = vunpack.c.l.b16 %v4790
    %v6247 = vunpack.c.h.b16 %v4790
    %v6248 = vunpack.c.l.b16 %v4791
    %v6249 = vunpack.c.h.b16 %v4791
    %v6250 = vunpack.c.l.b16 %v4792
    %v6251 = vunpack.c.h.b16 %v4792
    %v6252 = vunpack.c.l.b16 %v4793
    %v6253 = vunpack.c.h.b16 %v4793
    %v6254 = vunpack.c.l.b16 %v4794
    %v6255 = vunpack.c.h.b16 %v4794
    %v6256 = vunpack.c.l.b16 %v4795
    %v6257 = vunpack.c.h.b16 %v4795
    %v6258 = vunpack.c.l.b16 %v4796
    %v6259 = vunpack.c.h.b16 %v4796
    %v6260 = vunpack.c.l.b16 %v4797
    %v6261 = vunpack.c.h.b16 %v4797
    %v6262 = vunpack.c.l.b16 %v4798
    %v6263 = vunpack.c.h.b16 %v4798
    %v6264 = vunpack.c.l.b16 %v4799
    %v6265 = vunpack.c.h.b16 %v4799
    %v6266 = vunpack.c.l.b16 %v4800
    %v6267 = vunpack.c.h.b16 %v4800
    %v6268 = vunpack.c.l.b16 %v4801
    %v6269 = vunpack.c.h.b16 %v4801
    %v6270 = vunpack.c.l.b16 %v4802
    %v6271 = vunpack.c.h.b16 %v4802
    %v6272 = vunpack.c.l.b16 %v4803
    %v6273 = vunpack.c.h.b16 %v4803
    %v6274 = vunpack.c.l.b16 %v4804
    %v6275 = vunpack.c.h.b16 %v4804
    %v6276 = vunpack.c.l.b16 %v4805
    %v6277 = vunpack.c.h.b16 %v4805
    %v6278 = vunpack.c.l.b16 %v4806
    %v6279 = vunpack.c.h.b16 %v4806
    %v6280 = vunpack.c.l.b16 %v4807
    %v6281 = vunpack.c.h.b16 %v4807
    %v6282 = vunpack.c.l.b16 %v4808
    %v6283 = vunpack.c.h.b16 %v4808
    %v6284 = vunpack.c.l.b16 %v4809
    %v6285 = vunpack.c.h.b16 %v4809
    %v6286 = vunpack.c.l.b16 %v4810
    %v6287 = vunpack.c.h.b16 %v4810
    %v6288 = vunpack.c.l.b16 %v4811
    %v6289 = vunpack.c.h.b16 %v4811
    %v6290 = vunpack.c.l.b16 %v4812
    %v6291 = vunpack.c.h.b16 %v4812
    %v6292 = vunpack.c.l.b16 %v4813
    %v6293 = vunpack.c.h.b16 %v4813
    %v6294 = vunpack.c.l.b16 %v4814
    %v6295 = vunpack.c.h.b16 %v4814
    %v6296 = vunpack.c.l.b16 %v4815
    %v6297 = vunpack.c.h.b16 %v4815
    %v6298 = vunpack.c.l.b16 %v4816
    %v6299 = vunpack.c.h.b16 %v4816
    %v6300 = vunpack.c.l.b16 %v4817
    %v6301 = vunpack.c.h.b16 %v4817
    %v6302 = vunpack.c.l.b16 %v4818
    %v6303 = vunpack.c.h.b16 %v4818
    %v6304 = vunpack.c.l.b16 %v4819
    %v6305 = vunpack.c.h.b16 %v4819
    %v6306 = vunpack.c.l.b16 %v4820
    %v6307 = vunpack.c.h.b16 %v4820
    %v6308 = vunpack.c.l.b16 %v4821
    %v6309 = vunpack.c.h.b16 %v4821
    %v6310 = vunpack.c.l.b16 %v4822
    %v6311 = vunpack.c.h.b16 %v4822
    %v6312 = vunpack.c.l.b16 %v4823
    %v6313 = vunpack.c.h.b16 %v4823
    %v6314 = vunpack.c.l.b16 %v4824
    %v6315 = vunpack.c.h.b16 %v4824
    %v6316 = vunpack.c.l.b16 %v4825
    %v6317 = vunpack.c.h.b16 %v4825
    %v6318 = vunpack.c.l.b16 %v4826
    %v6319 = vunpack.c.h.b16 %v4826
    %v6320 = vunpack.c.l.b16 %v4827
    %v6321 = vunpack.c.h.b16 %v4827
    %v6322 = vunpack.c.l.b16 %v4828
    %v6323 = vunpack.c.h.b16 %v4828
    %v6324 = vunpack.c.l.b16 %v4829
    %v6325 = vunpack.c.h.b16 %v4829
    %v6326 = vunpack.c.l.b16 %v4830
    %v6327 = vunpack.c.h.b16 %v4830
    %v6328 = vunpack.c.l.b16 %v4831
    %v6329 = vunpack.c.h.b16 %v4831
    %v6330 = vunpack.c.l.b16 %v4832
    %v6331 = vunpack.c.h.b16 %v4832
    %v6332 = vunpack.c.l.b16 %v4833
    %v6333 = vunpack.c.h.b16 %v4833
    %v6334 = vunpack.c.l.b16 %v4834
    %v6335 = vunpack.c.h.b16 %v4834
    %v6336 = vunpack.c.l.b16 %v4835
    %v6337 = vunpack.c.h.b16 %v4835
    %v6338 = vunpack.c.l.b16 %v4836
    %v6339 = vunpack.c.h.b16 %v4836
    %v6340 = vunpack.c.l.b16 %v4837
    %v6341 = vunpack.c.h.b16 %v4837
    %v6342 = vunpack.c.l.b16 %v4838
    %v6343 = vunpack.c.h.b16 %v4838
    %v6344 = vunpack.c.l.b16 %v4839
    %v6345 = vunpack.c.h.b16 %v4839
    %v6346 = vunpack.c.l.b16 %v4840
    %v6347 = vunpack.c.h.b16 %v4840
    %v6348 = vunpack.c.l.b16 %v4841
    %v6349 = vunpack.c.h.b16 %v4841
    %v6350 = vunpack.c.l.b16 %v4842
    %v6351 = vunpack.c.h.b16 %v4842
    %v6352 = vunpack.c.l.b16 %v4843
    %v6353 = vunpack.c.h.b16 %v4843
    %v6354 = vunpack.c.l.b16 %v4844
    %v6355 = vunpack.c.h.b16 %v4844
    %v6356 = vunpack.c.l.b16 %v4845
    %v6357 = vunpack.c.h.b16 %v4845
    %v6358 = vunpack.c.l.b16 %v4846
    %v6359 = vunpack.c.h.b16 %v4846
    %v6360 = vunpack.c.l.b16 %v4847
    %v6361 = vunpack.c.h.b16 %v4847
    %v6362 = vunpack.c.l.b16 %v4848
    %v6363 = vunpack.c.h.b16 %v4848
    %v6364 = vunpack.c.l.b16 %v4849
    %v6365 = vunpack.c.h.b16 %v4849
    %v6366 = vunpack.c.l.b16 %v4850
    %v6367 = vunpack.c.h.b16 %v4850
    %v6368 = vunpack.c.l.b16 %v4851
    %v6369 = vunpack.c.h.b16 %v4851
    %v6370 = vunpack.c.l.b16 %v4852
    %v6371 = vunpack.c.h.b16 %v4852
    %v6372 = vunpack.c.l.b16 %v4853
    %v6373 = vunpack.c.h.b16 %v4853
    %v6374 = vunpack.c.l.b16 %v4854
    %v6375 = vunpack.c.h.b16 %v4854
    %v6376 = vunpack.c.l.b16 %v4855
    %v6377 = vunpack.c.h.b16 %v4855
    %v6378 = vunpack.c.l.b16 %v4856
    %v6379 = vunpack.c.h.b16 %v4856
    %v6380 = vunpack.c.l.b16 %v4857
    %v6381 = vunpack.c.h.b16 %v4857
    %v6382 = vunpack.c.l.b16 %v4858
    %v6383 = vunpack.c.h.b16 %v4858
    %v6384 = vunpack.c.l.b16 %v4859
    %v6385 = vunpack.c.h.b16 %v4859
    %v6386 = vunpack.c.l.b16 %v4860
    %v6387 = vunpack.c.h.b16 %v4860
    %v6388 = vunpack.c.l.b16 %v4861
    %v6389 = vunpack.c.h.b16 %v4861
    %v6390 = vunpack.c.l.b16 %v4862
    %v6391 = vunpack.c.h.b16 %v4862
    %v6392 = vunpack.c.l.b16 %v4863
    %v6393 = vunpack.c.h.b16 %v4863
    %v6394 = vunpack.c.l.b16 %v4864
    %v6395 = vunpack.c.h.b16 %v4864
    %v6396 = vunpack.c.l.b16 %v4865
    %v6397 = vunpack.c.h.b16 %v4865
    %v6398 = vunpack.c.l.b16 %v4866
    %v6399 = vunpack.c.h.b16 %v4866
    %v6400 = vunpack.c.l.b16 %v4867
    %v6401 = vunpack.c.h.b16 %v4867
    %v6402 = vunpack.c.l.b16 %v4868
    %v6403 = vunpack.c.h.b16 %v4868
    %v6404 = vunpack.c.l.b16 %v4869
    %v6405 = vunpack.c.h.b16 %v4869
    %v6406 = vpack.c.b16 %v5386, %v5382
    %v6407 = vpack.c.b16 %v5387, %v5383
    %v6408 = vpack.c.b16 %v5388, %v5384
    %v6409 = vpack.c.b16 %v5389, %v5385
    %v6410 = vpack.c.b16 %v5394, %v5390
    %v6411 = vpack.c.b16 %v5395, %v5391
    %v6412 = vpack.c.b16 %v5396, %v5392
    %v6413 = vpack.c.b16 %v5397, %v5393
    %v6414 = vpack.c.b16 %v5402, %v5398
    %v6415 = vpack.c.b16 %v5403, %v5399
    %v6416 = vpack.c.b16 %v5404, %v5400
    %v6417 = vpack.c.b16 %v5405, %v5401
    %v6418 = vpack.c.b16 %v5410, %v5406
    %v6419 = vpack.c.b16 %v5411, %v5407
    %v6420 = vpack.c.b16 %v5412, %v5408
    %v6421 = vpack.c.b16 %v5413, %v5409
    %v6422 = vpack.c.b16 %v5418, %v5414
    %v6423 = vpack.c.b16 %v5419, %v5415
    %v6424 = vpack.c.b16 %v5420, %v5416
    %v6425 = vpack.c.b16 %v5421, %v5417
    %v6426 = vpack.c.b16 %v5426, %v5422
    %v6427 = vpack.c.b16 %v5427, %v5423
    %v6428 = vpack.c.b16 %v5428, %v5424
    %v6429 = vpack.c.b16 %v5429, %v5425
    %v6430 = vpack.c.b16 %v5434, %v5430
    %v6431 = vpack.c.b16 %v5435, %v5431
    %v6432 = vpack.c.b16 %v5436, %v5432
    %v6433 = vpack.c.b16 %v5437, %v5433
    %v6434 = vpack.c.b16 %v5442, %v5438
    %v6435 = vpack.c.b16 %v5443, %v5439
    %v6436 = vpack.c.b16 %v5444, %v5440
    %v6437 = vpack.c.b16 %v5445, %v5441
    %v6438 = vpack.c.b16 %v5450, %v5446
    %v6439 = vpack.c.b16 %v5451, %v5447
    %v6440 = vpack.c.b16 %v5452, %v5448
    %v6441 = vpack.c.b16 %v5453, %v5449
    %v6442 = vpack.c.b16 %v5458, %v5454
    %v6443 = vpack.c.b16 %v5459, %v5455
    %v6444 = vpack.c.b16 %v5460, %v5456
    %v6445 = vpack.c.b16 %v5461, %v5457
    %v6446 = vpack.c.b16 %v5466, %v5462
    %v6447 = vpack.c.b16 %v5467, %v5463
    %v6448 = vpack.c.b16 %v5468, %v5464
    %v6449 = vpack.c.b16 %v5469, %v5465
    %v6450 = vpack.c.b16 %v5474, %v5470
    %v6451 = vpack.c.b16 %v5475, %v5471
    %v6452 = vpack.c.b16 %v5476, %v5472
    %v6453 = vpack.c.b16 %v5477, %v5473
    %v6454 = vpack.c.b16 %v5482, %v5478
    %v6455 = vpack.c.b16 %v5483, %v5479
    %v6456 = vpack.c.b16 %v5484, %v5480
    %v6457 = vpack.c.b16 %v5485, %v5481
    %v6458 = vpack.c.b16 %v5490, %v5486
    %v6459 = vpack.c.b16 %v5491, %v5487
    %v6460 = vpack.c.b16 %v5492, %v5488
    %v6461 = vpack.c.b16 %v5493, %v5489
    %v6462 = vpack.c.b16 %v5498, %v5494
    %v6463 = vpack.c.b16 %v5499, %v5495
    %v6464 = vpack.c.b16 %v5500, %v5496
    %v6465 = vpack.c.b16 %v5501, %v5497
    %v6466 = vpack.c.b16 %v5506, %v5502
    %v6467 = vpack.c.b16 %v5507, %v5503
    %v6468 = vpack.c.b16 %v5508, %v5504
    %v6469 = vpack.c.b16 %v5509, %v5505
    %v6470 = vpack.c.b16 %v5514, %v5510
    %v6471 = vpack.c.b16 %v5515, %v5511
    %v6472 = vpack.c.b16 %v5516, %v5512
    %v6473 = vpack.c.b16 %v5517, %v5513
    %v6474 = vpack.c.b16 %v5522, %v5518
    %v6475 = vpack.c.b16 %v5523, %v5519
    %v6476 = vpack.c.b16 %v5524, %v5520
    %v6477 = vpack.c.b16 %v5525, %v5521
    %v6478 = vpack.c.b16 %v5530, %v5526
    %v6479 = vpack.c.b16 %v5531, %v5527
    %v6480 = vpack.c.b16 %v5532, %v5528
    %v6481 = vpack.c.b16 %v5533, %v5529
    %v6482 = vpack.c.b16 %v5538, %v5534
    %v6483 = vpack.c.b16 %v5539, %v5535
    %v6484 = vpack.c.b16 %v5540, %v5536
    %v6485 = vpack.c.b16 %v5541, %v5537
    %v6486 = vpack.c.b16 %v5546, %v5542
    %v6487 = vpack.c.b16 %v5547, %v5543
    %v6488 = vpack.c.b16 %v5548, %v5544
    %v6489 = vpack.c.b16 %v5549, %v5545
    %v6490 = vpack.c.b16 %v5554, %v5550
    %v6491 = vpack.c.b16 %v5555, %v5551
    %v6492 = vpack.c.b16 %v5556, %v5552
    %v6493 = vpack.c.b16 %v5557, %v5553
    %v6494 = vpack.c.b16 %v5562, %v5558
    %v6495 = vpack.c.b16 %v5563, %v5559
    %v6496 = vpack.c.b16 %v5564, %v5560
    %v6497 = vpack.c.b16 %v5565, %v5561
    %v6498 = vpack.c.b16 %v5570, %v5566
    %v6499 = vpack.c.b16 %v5571, %v5567
    %v6500 = vpack.c.b16 %v5572, %v5568
    %v6501 = vpack.c.b16 %v5573, %v5569
    %v6502 = vpack.c.b16 %v5578, %v5574
    %v6503 = vpack.c.b16 %v5579, %v5575
    %v6504 = vpack.c.b16 %v5580, %v5576
    %v6505 = vpack.c.b16 %v5581, %v5577
    %v6506 = vpack.c.b16 %v5586, %v5582
    %v6507 = vpack.c.b16 %v5587, %v5583
    %v6508 = vpack.c.b16 %v5588, %v5584
    %v6509 = vpack.c.b16 %v5589, %v5585
    %v6510 = vpack.c.b16 %v5594, %v5590
    %v6511 = vpack.c.b16 %v5595, %v5591
    %v6512 = vpack.c.b16 %v5596, %v5592
    %v6513 = vpack.c.b16 %v5597, %v5593
    %v6514 = vpack.c.b16 %v5602, %v5598
    %v6515 = vpack.c.b16 %v5603, %v5599
    %v6516 = vpack.c.b16 %v5604, %v5600
    %v6517 = vpack.c.b16 %v5605, %v5601
    %v6518 = vpack.c.b16 %v5610, %v5606
    %v6519 = vpack.c.b16 %v5611, %v5607
    %v6520 = vpack.c.b16 %v5612, %v5608
    %v6521 = vpack.c.b16 %v5613, %v5609
    %v6522 = vpack.c.b16 %v5618, %v5614
    %v6523 = vpack.c.b16 %v5619, %v5615
    %v6524 = vpack.c.b16 %v5620, %v5616
    %v6525 = vpack.c.b16 %v5621, %v5617
    %v6526 = vpack.c.b16 %v5626, %v5622
    %v6527 = vpack.c.b16 %v5627, %v5623
    %v6528 = vpack.c.b16 %v5628, %v5624
    %v6529 = vpack.c.b16 %v5629, %v5625
    %v6530 = vpack.c.b16 %v5634, %v5630
    %v6531 = vpack.c.b16 %v5635, %v5631
    %v6532 = vpack.c.b16 %v5636, %v5632
    %v6533 = vpack.c.b16 %v5637, %v5633
    %v6534 = vpack.c.b16 %v5642, %v5638
    %v6535 = vpack.c.b16 %v5643, %v5639
    %v6536 = vpack.c.b16 %v5644, %v5640
    %v6537 = vpack.c.b16 %v5645, %v5641
    %v6538 = vpack.c.b16 %v5650, %v5646
    %v6539 = vpack.c.b16 %v5651, %v5647
    %v6540 = vpack.c.b16 %v5652, %v5648
    %v6541 = vpack.c.b16 %v5653, %v5649
    %v6542 = vpack.c.b16 %v5658, %v5654
    %v6543 = vpack.c.b16 %v5659, %v5655
    %v6544 = vpack.c.b16 %v5660, %v5656
    %v6545 = vpack.c.b16 %v5661, %v5657
    %v6546 = vpack.c.b16 %v5666, %v5662
    %v6547 = vpack.c.b16 %v5667, %v5663
    %v6548 = vpack.c.b16 %v5668, %v5664
    %v6549 = vpack.c.b16 %v5669, %v5665
    %v6550 = vpack.c.b16 %v5674, %v5670
    %v6551 = vpack.c.b16 %v5675, %v5671
    %v6552 = vpack.c.b16 %v5676, %v5672
    %v6553 = vpack.c.b16 %v5677, %v5673
    %v6554 = vpack.c.b16 %v5682, %v5678
    %v6555 = vpack.c.b16 %v5683, %v5679
    %v6556 = vpack.c.b16 %v5684, %v5680
    %v6557 = vpack.c.b16 %v5685, %v5681
    %v6558 = vpack.c.b16 %v5690, %v5686
    %v6559 = vpack.c.b16 %v5691, %v5687
    %v6560 = vpack.c.b16 %v5692, %v5688
    %v6561 = vpack.c.b16 %v5693, %v5689
    %v6562 = vpack.c.b16 %v5698, %v5694
    %v6563 = vpack.c.b16 %v5699, %v5695
    %v6564 = vpack.c.b16 %v5700, %v5696
    %v6565 = vpack.c.b16 %v5701, %v5697
    %v6566 = vpack.c.b16 %v5706, %v5702
    %v6567 = vpack.c.b16 %v5707, %v5703
    %v6568 = vpack.c.b16 %v5708, %v5704
    %v6569 = vpack.c.b16 %v5709, %v5705
    %v6570 = vpack.c.b16 %v5714, %v5710
    %v6571 = vpack.c.b16 %v5715, %v5711
    %v6572 = vpack.c.b16 %v5716, %v5712
    %v6573 = vpack.c.b16 %v5717, %v5713
    %v6574 = vpack.c.b16 %v5722, %v5718
    %v6575 = vpack.c.b16 %v5723, %v5719
    %v6576 = vpack.c.b16 %v5724, %v5720
    %v6577 = vpack.c.b16 %v5725, %v5721
    %v6578 = vpack.c.b16 %v5730, %v5726
    %v6579 = vpack.c.b16 %v5731, %v5727
    %v6580 = vpack.c.b16 %v5732, %v5728
    %v6581 = vpack.c.b16 %v5733, %v5729
    %v6582 = vpack.c.b16 %v5738, %v5734
    %v6583 = vpack.c.b16 %v5739, %v5735
    %v6584 = vpack.c.b16 %v5740, %v5736
    %v6585 = vpack.c.b16 %v5741, %v5737
    %v6586 = vpack.c.b16 %v5746, %v5742
    %v6587 = vpack.c.b16 %v5747, %v5743
    %v6588 = vpack.c.b16 %v5748, %v5744
    %v6589 = vpack.c.b16 %v5749, %v5745
    %v6590 = vpack.c.b16 %v5754, %v5750
    %v6591 = vpack.c.b16 %v5755, %v5751
    %v6592 = vpack.c.b16 %v5756, %v5752
    %v6593 = vpack.c.b16 %v5757, %v5753
    %v6594 = vpack.c.b16 %v5762, %v5758
    %v6595 = vpack.c.b16 %v5763, %v5759
    %v6596 = vpack.c.b16 %v5764, %v5760
    %v6597 = vpack.c.b16 %v5765, %v5761
    %v6598 = vpack.c.b16 %v5770, %v5766
    %v6599 = vpack.c.b16 %v5771, %v5767
    %v6600 = vpack.c.b16 %v5772, %v5768
    %v6601 = vpack.c.b16 %v5773, %v5769
    %v6602 = vpack.c.b16 %v5778, %v5774
    %v6603 = vpack.c.b16 %v5779, %v5775
    %v6604 = vpack.c.b16 %v5780, %v5776
    %v6605 = vpack.c.b16 %v5781, %v5777
    %v6606 = vpack.c.b16 %v5786, %v5782
    %v6607 = vpack.c.b16 %v5787, %v5783
    %v6608 = vpack.c.b16 %v5788, %v5784
    %v6609 = vpack.c.b16 %v5789, %v5785
    %v6610 = vpack.c.b16 %v5794, %v5790
    %v6611 = vpack.c.b16 %v5795, %v5791
    %v6612 = vpack.c.b16 %v5796, %v5792
    %v6613 = vpack.c.b16 %v5797, %v5793
    %v6614 = vpack.c.b16 %v5802, %v5798
    %v6615 = vpack.c.b16 %v5803, %v5799
    %v6616 = vpack.c.b16 %v5804, %v5800
    %v6617 = vpack.c.b16 %v5805, %v5801
    %v6618 = vpack.c.b16 %v5810, %v5806
    %v6619 = vpack.c.b16 %v5811, %v5807
    %v6620 = vpack.c.b16 %v5812, %v5808
    %v6621 = vpack.c.b16 %v5813, %v5809
    %v6622 = vpack.c.b16 %v5818, %v5814
    %v6623 = vpack.c.b16 %v5819, %v5815
    %v6624 = vpack.c.b16 %v5820, %v5816
    %v6625 = vpack.c.b16 %v5821, %v5817
    %v6626 = vpack.c.b16 %v5826, %v5822
    %v6627 = vpack.c.b16 %v5827, %v5823
    %v6628 = vpack.c.b16 %v5828, %v5824
    %v6629 = vpack.c.b16 %v5829, %v5825
    %v6630 = vpack.c.b16 %v5834, %v5830
    %v6631 = vpack.c.b16 %v5835, %v5831
    %v6632 = vpack.c.b16 %v5836, %v5832
    %v6633 = vpack.c.b16 %v5837, %v5833
    %v6634 = vpack.c.b16 %v5842, %v5838
    %v6635 = vpack.c.b16 %v5843, %v5839
    %v6636 = vpack.c.b16 %v5844, %v5840
    %v6637 = vpack.c.b16 %v5845, %v5841
    %v6638 = vpack.c.b16 %v5850, %v5846
    %v6639 = vpack.c.b16 %v5851, %v5847
    %v6640 = vpack.c.b16 %v5852, %v5848
    %v6641 = vpack.c.b16 %v5853, %v5849
    %v6642 = vpack.c.b16 %v5858, %v5854
    %v6643 = vpack.c.b16 %v5859, %v5855
    %v6644 = vpack.c.b16 %v5860, %v5856
    %v6645 = vpack.c.b16 %v5861, %v5857
    %v6646 = vpack.c.b16 %v5866, %v5862
    %v6647 = vpack.c.b16 %v5867, %v5863
    %v6648 = vpack.c.b16 %v5868, %v5864
    %v6649 = vpack.c.b16 %v5869, %v5865
    %v6650 = vpack.c.b16 %v5874, %v5870
    %v6651 = vpack.c.b16 %v5875, %v5871
    %v6652 = vpack.c.b16 %v5876, %v5872
    %v6653 = vpack.c.b16 %v5877, %v5873
    %v6654 = vpack.c.b16 %v5882, %v5878
    %v6655 = vpack.c.b16 %v5883, %v5879
    %v6656 = vpack.c.b16 %v5884, %v5880
    %v6657 = vpack.c.b16 %v5885, %v5881
    %v6658 = vpack.c.b16 %v5890, %v5886
    %v6659 = vpack.c.b16 %v5891, %v5887
    %v6660 = vpack.c.b16 %v5892, %v5888
    %v6661 = vpack.c.b16 %v5893, %v5889
    %v6662 = vpack.c.b16 %v5898, %v5894
    %v6663 = vpack.c.b16 %v5899, %v5895
    %v6664 = vpack.c.b16 %v5900, %v5896
    %v6665 = vpack.c.b16 %v5901, %v5897
    %v6666 = vpack.c.b16 %v5906, %v5902
    %v6667 = vpack.c.b16 %v5907, %v5903
    %v6668 = vpack.c.b16 %v5908, %v5904
    %v6669 = vpack.c.b16 %v5909, %v5905
    %v6670 = vpack.c.b16 %v5914, %v5910
    %v6671 = vpack.c.b16 %v5915, %v5911
    %v6672 = vpack.c.b16 %v5916, %v5912
    %v6673 = vpack.c.b16 %v5917, %v5913
    %v6674 = vpack.c.b16 %v5922, %v5918
    %v6675 = vpack.c.b16 %v5923, %v5919
    %v6676 = vpack.c.b16 %v5924, %v5920
    %v6677 = vpack.c.b16 %v5925, %v5921
    %v6678 = vpack.c.b16 %v5930, %v5926
    %v6679 = vpack.c.b16 %v5931, %v5927
    %v6680 = vpack.c.b16 %v5932, %v5928
    %v6681 = vpack.c.b16 %v5933, %v5929
    %v6682 = vpack.c.b16 %v5938, %v5934
    %v6683 = vpack.c.b16 %v5939, %v5935
    %v6684 = vpack.c.b16 %v5940, %v5936
    %v6685 = vpack.c.b16 %v5941, %v5937
    %v6686 = vpack.c.b16 %v5946, %v5942
    %v6687 = vpack.c.b16 %v5947, %v5943
    %v6688 = vpack.c.b16 %v5948, %v5944
    %v6689 = vpack.c.b16 %v5949, %v5945
    %v6690 = vpack.c.b16 %v5954, %v5950
    %v6691 = vpack.c.b16 %v5955, %v5951
    %v6692 = vpack.c.b16 %v5956, %v5952
    %v6693 = vpack.c.b16 %v5957, %v5953
    %v6694 = vpack.c.b16 %v5962, %v5958
    %v6695 = vpack.c.b16 %v5963, %v5959
    %v6696 = vpack.c.b16 %v5964, %v5960
    %v6697 = vpack.c.b16 %v5965, %v5961
    %v6698 = vpack.c.b16 %v5970, %v5966
    %v6699 = vpack.c.b16 %v5971, %v5967
    %v6700 = vpack.c.b16 %v5972, %v5968
    %v6701 = vpack.c.b16 %v5973, %v5969
    %v6702 = vpack.c.b16 %v5978, %v5974
    %v6703 = vpack.c.b16 %v5979, %v5975
    %v6704 = vpack.c.b16 %v5980, %v5976
    %v6705 = vpack.c.b16 %v5981, %v5977
    %v6706 = vpack.c.b16 %v5986, %v5982
    %v6707 = vpack.c.b16 %v5987, %v5983
    %v6708 = vpack.c.b16 %v5988, %v5984
    %v6709 = vpack.c.b16 %v5989, %v5985
    %v6710 = vpack.c.b16 %v5994, %v5990
    %v6711 = vpack.c.b16 %v5995, %v5991
    %v6712 = vpack.c.b16 %v5996, %v5992
    %v6713 = vpack.c.b16 %v5997, %v5993
    %v6714 = vpack.c.b16 %v6002, %v5998
    %v6715 = vpack.c.b16 %v6003, %v5999
    %v6716 = vpack.c.b16 %v6004, %v6000
    %v6717 = vpack.c.b16 %v6005, %v6001
    %v6718 = vpack.c.b16 %v6010, %v6006
    %v6719 = vpack.c.b16 %v6011, %v6007
    %v6720 = vpack.c.b16 %v6012, %v6008
    %v6721 = vpack.c.b16 %v6013, %v6009
    %v6722 = vpack.c.b16 %v6018, %v6014
    %v6723 = vpack.c.b16 %v6019, %v6015
    %v6724 = vpack.c.b16 %v6020, %v6016
    %v6725 = vpack.c.b16 %v6021, %v6017
    %v6726 = vpack.c.b16 %v6026, %v6022
    %v6727 = vpack.c.b16 %v6027, %v6023
    %v6728 = vpack.c.b16 %v6028, %v6024
    %v6729 = vpack.c.b16 %v6029, %v6025
    %v6730 = vpack.c.b16 %v6034, %v6030
    %v6731 = vpack.c.b16 %v6035, %v6031
    %v6732 = vpack.c.b16 %v6036, %v6032
    %v6733 = vpack.c.b16 %v6037, %v6033
    %v6734 = vpack.c.b16 %v6042, %v6038
    %v6735 = vpack.c.b16 %v6043, %v6039
    %v6736 = vpack.c.b16 %v6044, %v6040
    %v6737 = vpack.c.b16 %v6045, %v6041
    %v6738 = vpack.c.b16 %v6050, %v6046
    %v6739 = vpack.c.b16 %v6051, %v6047
    %v6740 = vpack.c.b16 %v6052, %v6048
    %v6741 = vpack.c.b16 %v6053, %v6049
    %v6742 = vpack.c.b16 %v6058, %v6054
    %v6743 = vpack.c.b16 %v6059, %v6055
    %v6744 = vpack.c.b16 %v6060, %v6056
    %v6745 = vpack.c.b16 %v6061, %v6057
    %v6746 = vpack.c.b16 %v6066, %v6062
    %v6747 = vpack.c.b16 %v6067, %v6063
    %v6748 = vpack.c.b16 %v6068, %v6064
    %v6749 = vpack.c.b16 %v6069, %v6065
    %v6750 = vpack.c.b16 %v6074, %v6070
    %v6751 = vpack.c.b16 %v6075, %v6071
    %v6752 = vpack.c.b16 %v6076, %v6072
    %v6753 = vpack.c.b16 %v6077, %v6073
    %v6754 = vpack.c.b16 %v6082, %v6078
    %v6755 = vpack.c.b16 %v6083, %v6079
    %v6756 = vpack.c.b16 %v6084, %v6080
    %v6757 = vpack.c.b16 %v6085, %v6081
    %v6758 = vpack.c.b16 %v6090, %v6086
    %v6759 = vpack.c.b16 %v6091, %v6087
    %v6760 = vpack.c.b16 %v6092, %v6088
    %v6761 = vpack.c.b16 %v6093, %v6089
    %v6762 = vpack.c.b16 %v6098, %v6094
    %v6763 = vpack.c.b16 %v6099, %v6095
    %v6764 = vpack.c.b16 %v6100, %v6096
    %v6765 = vpack.c.b16 %v6101, %v6097
    %v6766 = vpack.c.b16 %v6106, %v6102
    %v6767 = vpack.c.b16 %v6107, %v6103
    %v6768 = vpack.c.b16 %v6108, %v6104
    %v6769 = vpack.c.b16 %v6109, %v6105
    %v6770 = vpack.c.b16 %v6114, %v6110
    %v6771 = vpack.c.b16 %v6115, %v6111
    %v6772 = vpack.c.b16 %v6116, %v6112
    %v6773 = vpack.c.b16 %v6117, %v6113
    %v6774 = vpack.c.b16 %v6122, %v6118
    %v6775 = vpack.c.b16 %v6123, %v6119
    %v6776 = vpack.c.b16 %v6124, %v6120
    %v6777 = vpack.c.b16 %v6125, %v6121
    %v6778 = vpack.c.b16 %v6130, %v6126
    %v6779 = vpack.c.b16 %v6131, %v6127
    %v6780 = vpack.c.b16 %v6132, %v6128
    %v6781 = vpack.c.b16 %v6133, %v6129
    %v6782 = vpack.c.b16 %v6138, %v6134
    %v6783 = vpack.c.b16 %v6139, %v6135
    %v6784 = vpack.c.b16 %v6140, %v6136
    %v6785 = vpack.c.b16 %v6141, %v6137
    %v6786 = vpack.c.b16 %v6146, %v6142
    %v6787 = vpack.c.b16 %v6147, %v6143
    %v6788 = vpack.c.b16 %v6148, %v6144
    %v6789 = vpack.c.b16 %v6149, %v6145
    %v6790 = vpack.c.b16 %v6154, %v6150
    %v6791 = vpack.c.b16 %v6155, %v6151
    %v6792 = vpack.c.b16 %v6156, %v6152
    %v6793 = vpack.c.b16 %v6157, %v6153
    %v6794 = vpack.c.b16 %v6162, %v6158
    %v6795 = vpack.c.b16 %v6163, %v6159
    %v6796 = vpack.c.b16 %v6164, %v6160
    %v6797 = vpack.c.b16 %v6165, %v6161
    %v6798 = vpack.c.b16 %v6170, %v6166
    %v6799 = vpack.c.b16 %v6171, %v6167
    %v6800 = vpack.c.b16 %v6172, %v6168
    %v6801 = vpack.c.b16 %v6173, %v6169
    %v6802 = vpack.c.b16 %v6178, %v6174
    %v6803 = vpack.c.b16 %v6179, %v6175
    %v6804 = vpack.c.b16 %v6180, %v6176
    %v6805 = vpack.c.b16 %v6181, %v6177
    %v6806 = vpack.c.b16 %v6186, %v6182
    %v6807 = vpack.c.b16 %v6187, %v6183
    %v6808 = vpack.c.b16 %v6188, %v6184
    %v6809 = vpack.c.b16 %v6189, %v6185
    %v6810 = vpack.c.b16 %v6194, %v6190
    %v6811 = vpack.c.b16 %v6195, %v6191
    %v6812 = vpack.c.b16 %v6196, %v6192
    %v6813 = vpack.c.b16 %v6197, %v6193
    %v6814 = vpack.c.b16 %v6202, %v6198
    %v6815 = vpack.c.b16 %v6203, %v6199
    %v6816 = vpack.c.b16 %v6204, %v6200
    %v6817 = vpack.c.b16 %v6205, %v6201
    %v6818 = vpack.c.b16 %v6210, %v6206
    %v6819 = vpack.c.b16 %v6211, %v6207
    %v6820 = vpack.c.b16 %v6212, %v6208
    %v6821 = vpack.c.b16 %v6213, %v6209
    %v6822 = vpack.c.b16 %v6218, %v6214
    %v6823 = vpack.c.b16 %v6219, %v6215
    %v6824 = vpack.c.b16 %v6220, %v6216
    %v6825 = vpack.c.b16 %v6221, %v6217
    %v6826 = vpack.c.b16 %v6226, %v6222
    %v6827 = vpack.c.b16 %v6227, %v6223
    %v6828 = vpack.c.b16 %v6228, %v6224
    %v6829 = vpack.c.b16 %v6229, %v6225
    %v6830 = vpack.c.b16 %v6234, %v6230
    %v6831 = vpack.c.b16 %v6235, %v6231
    %v6832 = vpack.c.b16 %v6236, %v6232
    %v6833 = vpack.c.b16 %v6237, %v6233
    %v6834 = vpack.c.b16 %v6242, %v6238
    %v6835 = vpack.c.b16 %v6243, %v6239
    %v6836 = vpack.c.b16 %v6244, %v6240
    %v6837 = vpack.c.b16 %v6245, %v6241
    %v6838 = vpack.c.b16 %v6250, %v6246
    %v6839 = vpack.c.b16 %v6251, %v6247
    %v6840 = vpack.c.b16 %v6252, %v6248
    %v6841 = vpack.c.b16 %v6253, %v6249
    %v6842 = vpack.c.b16 %v6258, %v6254
    %v6843 = vpack.c.b16 %v6259, %v6255
    %v6844 = vpack.c.b16 %v6260, %v6256
    %v6845 = vpack.c.b16 %v6261, %v6257
    %v6846 = vpack.c.b16 %v6266, %v6262
    %v6847 = vpack.c.b16 %v6267, %v6263
    %v6848 = vpack.c.b16 %v6268, %v6264
    %v6849 = vpack.c.b16 %v6269, %v6265
    %v6850 = vpack.c.b16 %v6274, %v6270
    %v6851 = vpack.c.b16 %v6275, %v6271
    %v6852 = vpack.c.b16 %v6276, %v6272
    %v6853 = vpack.c.b16 %v6277, %v6273
    %v6854 = vpack.c.b16 %v6282, %v6278
    %v6855 = vpack.c.b16 %v6283, %v6279
    %v6856 = vpack.c.b16 %v6284, %v6280
    %v6857 = vpack.c.b16 %v6285, %v6281
    %v6858 = vpack.c.b16 %v6290, %v6286
    %v6859 = vpack.c.b16 %v6291, %v6287
    %v6860 = vpack.c.b16 %v6292, %v6288
    %v6861 = vpack.c.b16 %v6293, %v6289
    %v6862 = vpack.c.b16 %v6298, %v6294
    %v6863 = vpack.c.b16 %v6299, %v6295
    %v6864 = vpack.c.b16 %v6300, %v6296
    %v6865 = vpack.c.b16 %v6301, %v6297
    %v6866 = vpack.c.b16 %v6306, %v6302
    %v6867 = vpack.c.b16 %v6307, %v6303
    %v6868 = vpack.c.b16 %v6308, %v6304
    %v6869 = vpack.c.b16 %v6309, %v6305
    %v6870 = vpack.c.b16 %v6314, %v6310
    %v6871 = vpack.c.b16 %v6315, %v6311
    %v6872 = vpack.c.b16 %v6316, %v6312
    %v6873 = vpack.c.b16 %v6317, %v6313
    %v6874 = vpack.c.b16 %v6322, %v6318
    %v6875 = vpack.c.b16 %v6323, %v6319
    %v6876 = vpack.c.b16 %v6324, %v6320
    %v6877 = vpack.c.b16 %v6325, %v6321
    %v6878 = vpack.c.b16 %v6330, %v6326
    %v6879 = vpack.c.b16 %v6331, %v6327
    %v6880 = vpack.c.b16 %v6332, %v6328
    %v6881 = vpack.c.b16 %v6333, %v6329
    %v6882 = vpack.c.b16 %v6338, %v6334
    %v6883 = vpack.c.b16 %v6339, %v6335
    %v6884 = vpack.c.b16 %v6340, %v6336
    %v6885 = vpack.c.b16 %v6341, %v6337
    %v6886 = vpack.c.b16 %v6346, %v6342
    %v6887 = vpack.c.b16 %v6347, %v6343
    %v6888 = vpack.c.b16 %v6348, %v6344
    %v6889 = vpack.c.b16 %v6349, %v6345
    %v6890 = vpack.c.b16 %v6354, %v6350
    %v6891 = vpack.c.b16 %v6355, %v6351
    %v6892 = vpack.c.b16 %v6356, %v6352
    %v6893 = vpack.c.b16 %v6357, %v6353
    %v6894 = vpack.c.b16 %v6362, %v6358
    %v6895 = vpack.c.b16 %v6363, %v6359
    %v6896 = vpack.c.b16 %v6364, %v6360
    %v6897 = vpack.c.b16 %v6365, %v6361
    %v6898 = vpack.c.b16 %v6370, %v6366
    %v6899 = vpack.c.b16 %v6371, %v6367
    %v6900 = vpack.c.b16 %v6372, %v6368
    %v6901 = vpack.c.b16 %v6373, %v6369
    %v6902 = vpack.c.b16 %v6378, %v6374
    %v6903 = vpack.c.b16 %v6379, %v6375
    %v6904 = vpack.c.b16 %v6380, %v6376
    %v6905 = vpack.c.b16 %v6381, %v6377
    %v6906 = vpack.c.b16 %v6386, %v6382
    %v6907 = vpack.c.b16 %v6387, %v6383
    %v6908 = vpack.c.b16 %v6388, %v6384
    %v6909 = vpack.c.b16 %v6389, %v6385
    %v6910 = vpack.c.b16 %v6394, %v6390
    %v6911 = vpack.c.b16 %v6395, %v6391
    %v6912 = vpack.c.b16 %v6396, %v6392
    %v6913 = vpack.c.b16 %v6397, %v6393
    %v6914 = vpack.c.b16 %v6402, %v6398
    %v6915 = vpack.c.b16 %v6403, %v6399
    %v6916 = vpack.c.b16 %v6404, %v6400
    %v6917 = vpack.c.b16 %v6405, %v6401
    %7430 = vmatpush.bf16.msra.mxu0 %v6434
    %7431 = vmatpush.bf16.msra.mxu0 %v6430
    %7432 = vmatpush.bf16.msra.mxu0 %v6426
    %7433 = vmatpush.bf16.msra.mxu0 %v6422
    %7434 = vmatpush.bf16.msra.mxu0 %v6418
    %7435 = vmatpush.bf16.msra.mxu0 %v6414
    %7436 = vmatpush.bf16.msra.mxu0 %v6410
    %7437 = vmatpush.bf16.msra.mxu0 %v6406
    %7438 = vmatmul.bf16.gmra.mxu0 %v4342
    %v7439 = vpop.f32.mrf.mxu0
    %v7440 = vadd.f32 0.0, %v7439
    %v7441 = vpop.f32.mrf.mxu0
    %v7442 = vadd.f32 0.0, %v7441
    %7443 = vdwg.mxu0
    %7444 = vmatpush.bf16.msra.mxu0 %v6466
    %7445 = vmatpush.bf16.msra.mxu0 %v6462
    %7446 = vmatpush.bf16.msra.mxu0 %v6458
    %7447 = vmatpush.bf16.msra.mxu0 %v6454
    %7448 = vmatpush.bf16.msra.mxu0 %v6450
    %7449 = vmatpush.bf16.msra.mxu0 %v6446
    %7450 = vmatpush.bf16.msra.mxu0 %v6442
    %7451 = vmatpush.bf16.msra.mxu0 %v6438
    %7452 = vmatmul.bf16.gmra.mxu0 %v4343
    %v7453 = vpop.f32.mrf.mxu0
    %v7454 = vadd.f32 %v7440, %v7453
    %v7455 = vpop.f32.mrf.mxu0
    %v7456 = vadd.f32 %v7442, %v7455
    %7457 = vdwg.mxu0
    %7458 = vmatpush.bf16.msra.mxu0 %v6498
    %7459 = vmatpush.bf16.msra.mxu0 %v6494
    %7460 = vmatpush.bf16.msra.mxu0 %v6490
    %7461 = vmatpush.bf16.msra.mxu0 %v6486
    %7462 = vmatpush.bf16.msra.mxu0 %v6482
    %7463 = vmatpush.bf16.msra.mxu0 %v6478
    %7464 = vmatpush.bf16.msra.mxu0 %v6474
    %7465 = vmatpush.bf16.msra.mxu0 %v6470
    %7466 = vmatmul.bf16.gmra.mxu0 %v4344
    %v7467 = vpop.f32.mrf.mxu0
    %v7468 = vadd.f32 %v7454, %v7467
    %v7469 = vpop.f32.mrf.mxu0
    %v7470 = vadd.f32 %v7456, %v7469
    %7471 = vdwg.mxu0
    %7472 = vmatpush.bf16.msra.mxu0 %v6530
    %7473 = vmatpush.bf16.msra.mxu0 %v6526
    %7474 = vmatpush.bf16.msra.mxu0 %v6522
    %7475 = vmatpush.bf16.msra.mxu0 %v6518
    %7476 = vmatpush.bf16.msra.mxu0 %v6514
    %7477 = vmatpush.bf16.msra.mxu0 %v6510
    %7478 = vmatpush.bf16.msra.mxu0 %v6506
    %7479 = vmatpush.bf16.msra.mxu0 %v6502
    %7480 = vmatmul.bf16.gmra.mxu0 %v4345
    %v7481 = vpop.f32.mrf.mxu0
    %v7482 = vadd.f32 %v7468, %v7481
    %v7483 = vpop.f32.mrf.mxu0
    %v7484 = vadd.f32 %v7470, %v7483
    %7485 = vdwg.mxu0
    %7486 = vmatpush.bf16.msra.mxu0 %v6562
    %7487 = vmatpush.bf16.msra.mxu0 %v6558
    %7488 = vmatpush.bf16.msra.mxu0 %v6554
    %7489 = vmatpush.bf16.msra.mxu0 %v6550
    %7490 = vmatpush.bf16.msra.mxu0 %v6546
    %7491 = vmatpush.bf16.msra.mxu0 %v6542
    %7492 = vmatpush.bf16.msra.mxu0 %v6538
    %7493 = vmatpush.bf16.msra.mxu0 %v6534
    %7494 = vmatmul.bf16.gmra.mxu0 %v4346
    %v7495 = vpop.f32.mrf.mxu0
    %v7496 = vadd.f32 %v7482, %v7495
    %v7497 = vpop.f32.mrf.mxu0
    %v7498 = vadd.f32 %v7484, %v7497
    %7499 = vdwg.mxu0
    %7500 = vmatpush.bf16.msra.mxu0 %v6594
    %7501 = vmatpush.bf16.msra.mxu0 %v6590
    %7502 = vmatpush.bf16.msra.mxu0 %v6586
    %7503 = vmatpush.bf16.msra.mxu0 %v6582
    %7504 = vmatpush.bf16.msra.mxu0 %v6578
    %7505 = vmatpush.bf16.msra.mxu0 %v6574
    %7506 = vmatpush.bf16.msra.mxu0 %v6570
    %7507 = vmatpush.bf16.msra.mxu0 %v6566
    %7508 = vmatmul.bf16.gmra.mxu0 %v4347
    %v7509 = vpop.f32.mrf.mxu0
    %v7510 = vadd.f32 %v7496, %v7509
    %v7511 = vpop.f32.mrf.mxu0
    %v7512 = vadd.f32 %v7498, %v7511
    %7513 = vdwg.mxu0
    %7514 = vmatpush.bf16.msra.mxu0 %v6626
    %7515 = vmatpush.bf16.msra.mxu0 %v6622
    %7516 = vmatpush.bf16.msra.mxu0 %v6618
    %7517 = vmatpush.bf16.msra.mxu0 %v6614
    %7518 = vmatpush.bf16.msra.mxu0 %v6610
    %7519 = vmatpush.bf16.msra.mxu0 %v6606
    %7520 = vmatpush.bf16.msra.mxu0 %v6602
    %7521 = vmatpush.bf16.msra.mxu0 %v6598
    %7522 = vmatmul.bf16.gmra.mxu0 %v4348
    %v7523 = vpop.f32.mrf.mxu0
    %v7524 = vadd.f32 %v7510, %v7523
    %v7525 = vpop.f32.mrf.mxu0
    %v7526 = vadd.f32 %v7512, %v7525
    %7527 = vdwg.mxu0
    %7528 = vmatpush.bf16.msra.mxu0 %v6658
    %7529 = vmatpush.bf16.msra.mxu0 %v6654
    %7530 = vmatpush.bf16.msra.mxu0 %v6650
    %7531 = vmatpush.bf16.msra.mxu0 %v6646
    %7532 = vmatpush.bf16.msra.mxu0 %v6642
    %7533 = vmatpush.bf16.msra.mxu0 %v6638
    %7534 = vmatpush.bf16.msra.mxu0 %v6634
    %7535 = vmatpush.bf16.msra.mxu0 %v6630
    %7536 = vmatmul.bf16.gmra.mxu0 %v4349
    %v7537 = vpop.f32.mrf.mxu0
    %v7538 = vadd.f32 %v7524, %v7537
    %v7539 = vpop.f32.mrf.mxu0
    %v7540 = vadd.f32 %v7526, %v7539
    %7541 = vdwg.mxu0
    %7542 = vmatpush.bf16.msra.mxu0 %v6690
    %7543 = vmatpush.bf16.msra.mxu0 %v6686
    %7544 = vmatpush.bf16.msra.mxu0 %v6682
    %7545 = vmatpush.bf16.msra.mxu0 %v6678
    %7546 = vmatpush.bf16.msra.mxu0 %v6674
    %7547 = vmatpush.bf16.msra.mxu0 %v6670
    %7548 = vmatpush.bf16.msra.mxu0 %v6666
    %7549 = vmatpush.bf16.msra.mxu0 %v6662
    %7550 = vmatmul.bf16.gmra.mxu0 %v4350
    %v7551 = vpop.f32.mrf.mxu0
    %v7552 = vadd.f32 %v7538, %v7551
    %v7553 = vpop.f32.mrf.mxu0
    %v7554 = vadd.f32 %v7540, %v7553
    %7555 = vdwg.mxu0
    %7556 = vmatpush.bf16.msra.mxu0 %v6722
    %7557 = vmatpush.bf16.msra.mxu0 %v6718
    %7558 = vmatpush.bf16.msra.mxu0 %v6714
    %7559 = vmatpush.bf16.msra.mxu0 %v6710
    %7560 = vmatpush.bf16.msra.mxu0 %v6706
    %7561 = vmatpush.bf16.msra.mxu0 %v6702
    %7562 = vmatpush.bf16.msra.mxu0 %v6698
    %7563 = vmatpush.bf16.msra.mxu0 %v6694
    %7564 = vmatmul.bf16.gmra.mxu0 %v4351
    %v7565 = vpop.f32.mrf.mxu0
    %v7566 = vadd.f32 %v7552, %v7565
    %v7567 = vpop.f32.mrf.mxu0
    %v7568 = vadd.f32 %v7554, %v7567
    %7569 = vdwg.mxu0
    %7570 = vmatpush.bf16.msra.mxu0 %v6754
    %7571 = vmatpush.bf16.msra.mxu0 %v6750
    %7572 = vmatpush.bf16.msra.mxu0 %v6746
    %7573 = vmatpush.bf16.msra.mxu0 %v6742
    %7574 = vmatpush.bf16.msra.mxu0 %v6738
    %7575 = vmatpush.bf16.msra.mxu0 %v6734
    %7576 = vmatpush.bf16.msra.mxu0 %v6730
    %7577 = vmatpush.bf16.msra.mxu0 %v6726
    %7578 = vmatmul.bf16.gmra.mxu0 %v4352
    %v7579 = vpop.f32.mrf.mxu0
    %v7580 = vadd.f32 %v7566, %v7579
    %v7581 = vpop.f32.mrf.mxu0
    %v7582 = vadd.f32 %v7568, %v7581
    %7583 = vdwg.mxu0
    %7584 = vmatpush.bf16.msra.mxu0 %v6786
    %7585 = vmatpush.bf16.msra.mxu0 %v6782
    %7586 = vmatpush.bf16.msra.mxu0 %v6778
    %7587 = vmatpush.bf16.msra.mxu0 %v6774
    %7588 = vmatpush.bf16.msra.mxu0 %v6770
    %7589 = vmatpush.bf16.msra.mxu0 %v6766
    %7590 = vmatpush.bf16.msra.mxu0 %v6762
    %7591 = vmatpush.bf16.msra.mxu0 %v6758
    %7592 = vmatmul.bf16.gmra.mxu0 %v4353
    %v7593 = vpop.f32.mrf.mxu0
    %v7594 = vadd.f32 %v7580, %v7593
    %v7595 = vpop.f32.mrf.mxu0
    %v7596 = vadd.f32 %v7582, %v7595
    %7597 = vdwg.mxu0
    %7598 = vmatpush.bf16.msra.mxu0 %v6818
    %7599 = vmatpush.bf16.msra.mxu0 %v6814
    %7600 = vmatpush.bf16.msra.mxu0 %v6810
    %7601 = vmatpush.bf16.msra.mxu0 %v6806
    %7602 = vmatpush.bf16.msra.mxu0 %v6802
    %7603 = vmatpush.bf16.msra.mxu0 %v6798
    %7604 = vmatpush.bf16.msra.mxu0 %v6794
    %7605 = vmatpush.bf16.msra.mxu0 %v6790
    %7606 = vmatmul.bf16.gmra.mxu0 %v4354
    %v7607 = vpop.f32.mrf.mxu0
    %v7608 = vadd.f32 %v7594, %v7607
    %v7609 = vpop.f32.mrf.mxu0
    %v7610 = vadd.f32 %v7596, %v7609
    %7611 = vdwg.mxu0
    %7612 = vmatpush.bf16.msra.mxu0 %v6850
    %7613 = vmatpush.bf16.msra.mxu0 %v6846
    %7614 = vmatpush.bf16.msra.mxu0 %v6842
    %7615 = vmatpush.bf16.msra.mxu0 %v6838
    %7616 = vmatpush.bf16.msra.mxu0 %v6834
    %7617 = vmatpush.bf16.msra.mxu0 %v6830
    %7618 = vmatpush.bf16.msra.mxu0 %v6826
    %7619 = vmatpush.bf16.msra.mxu0 %v6822
    %7620 = vmatmul.bf16.gmra.mxu0 %v4355
    %v7621 = vpop.f32.mrf.mxu0
    %v7622 = vadd.f32 %v7608, %v7621
    %v7623 = vpop.f32.mrf.mxu0
    %v7624 = vadd.f32 %v7610, %v7623
    %7625 = vdwg.mxu0
    %7626 = vmatpush.bf16.msra.mxu0 %v6882
    %7627 = vmatpush.bf16.msra.mxu0 %v6878
    %7628 = vmatpush.bf16.msra.mxu0 %v6874
    %7629 = vmatpush.bf16.msra.mxu0 %v6870
    %7630 = vmatpush.bf16.msra.mxu0 %v6866
    %7631 = vmatpush.bf16.msra.mxu0 %v6862
    %7632 = vmatpush.bf16.msra.mxu0 %v6858
    %7633 = vmatpush.bf16.msra.mxu0 %v6854
    %7634 = vmatmul.bf16.gmra.mxu0 %v4356
    %v7635 = vpop.f32.mrf.mxu0
    %v7636 = vadd.f32 %v7622, %v7635
    %v7637 = vpop.f32.mrf.mxu0
    %v7638 = vadd.f32 %v7624, %v7637
    %7639 = vdwg.mxu0
    %7640 = vmatpush.bf16.msra.mxu0 %v6914
    %7641 = vmatpush.bf16.msra.mxu0 %v6910
    %7642 = vmatpush.bf16.msra.mxu0 %v6906
    %7643 = vmatpush.bf16.msra.mxu0 %v6902
    %7644 = vmatpush.bf16.msra.mxu0 %v6898
    %7645 = vmatpush.bf16.msra.mxu0 %v6894
    %7646 = vmatpush.bf16.msra.mxu0 %v6890
    %7647 = vmatpush.bf16.msra.mxu0 %v6886
    %7648 = vmatmul.bf16.gmra.mxu0 %v4357
    %v7649 = vpop.f32.mrf.mxu0
    %v7650 = vadd.f32 %v7636, %v7649
    %v7651 = vpop.f32.mrf.mxu0
    %v7652 = vadd.f32 %v7638, %v7651
    %7653 = vdwg.mxu0
    %7654 = vmatpush.bf16.msra.mxu0 %v6435
    %7655 = vmatpush.bf16.msra.mxu0 %v6431
    %7656 = vmatpush.bf16.msra.mxu0 %v6427
    %7657 = vmatpush.bf16.msra.mxu0 %v6423
    %7658 = vmatpush.bf16.msra.mxu0 %v6419
    %7659 = vmatpush.bf16.msra.mxu0 %v6415
    %7660 = vmatpush.bf16.msra.mxu0 %v6411
    %7661 = vmatpush.bf16.msra.mxu0 %v6407
    %7662 = vmatmul.bf16.gmra.mxu0 %v4342
    %v7663 = vpop.f32.mrf.mxu0
    %v7664 = vadd.f32 0.0, %v7663
    %v7665 = vpop.f32.mrf.mxu0
    %v7666 = vadd.f32 0.0, %v7665
    %7667 = vdwg.mxu0
    %7668 = vmatpush.bf16.msra.mxu0 %v6467
    %7669 = vmatpush.bf16.msra.mxu0 %v6463
    %7670 = vmatpush.bf16.msra.mxu0 %v6459
    %7671 = vmatpush.bf16.msra.mxu0 %v6455
    %7672 = vmatpush.bf16.msra.mxu0 %v6451
    %7673 = vmatpush.bf16.msra.mxu0 %v6447
    %7674 = vmatpush.bf16.msra.mxu0 %v6443
    %7675 = vmatpush.bf16.msra.mxu0 %v6439
    %7676 = vmatmul.bf16.gmra.mxu0 %v4343
    %v7677 = vpop.f32.mrf.mxu0
    %v7678 = vadd.f32 %v7664, %v7677
    %v7679 = vpop.f32.mrf.mxu0
    %v7680 = vadd.f32 %v7666, %v7679
    %7681 = vdwg.mxu0
    %7682 = vmatpush.bf16.msra.mxu0 %v6499
    %7683 = vmatpush.bf16.msra.mxu0 %v6495
    %7684 = vmatpush.bf16.msra.mxu0 %v6491
    %7685 = vmatpush.bf16.msra.mxu0 %v6487
    %7686 = vmatpush.bf16.msra.mxu0 %v6483
    %7687 = vmatpush.bf16.msra.mxu0 %v6479
    %7688 = vmatpush.bf16.msra.mxu0 %v6475
    %7689 = vmatpush.bf16.msra.mxu0 %v6471
    %7690 = vmatmul.bf16.gmra.mxu0 %v4344
    %v7691 = vpop.f32.mrf.mxu0
    %v7692 = vadd.f32 %v7678, %v7691
    %v7693 = vpop.f32.mrf.mxu0
    %v7694 = vadd.f32 %v7680, %v7693
    %7695 = vdwg.mxu0
    %7696 = vmatpush.bf16.msra.mxu0 %v6531
    %7697 = vmatpush.bf16.msra.mxu0 %v6527
    %7698 = vmatpush.bf16.msra.mxu0 %v6523
    %7699 = vmatpush.bf16.msra.mxu0 %v6519
    %7700 = vmatpush.bf16.msra.mxu0 %v6515
    %7701 = vmatpush.bf16.msra.mxu0 %v6511
    %7702 = vmatpush.bf16.msra.mxu0 %v6507
    %7703 = vmatpush.bf16.msra.mxu0 %v6503
    %7704 = vmatmul.bf16.gmra.mxu0 %v4345
    %v7705 = vpop.f32.mrf.mxu0
    %v7706 = vadd.f32 %v7692, %v7705
    %v7707 = vpop.f32.mrf.mxu0
    %v7708 = vadd.f32 %v7694, %v7707
    %7709 = vdwg.mxu0
    %7710 = vmatpush.bf16.msra.mxu0 %v6563
    %7711 = vmatpush.bf16.msra.mxu0 %v6559
    %7712 = vmatpush.bf16.msra.mxu0 %v6555
    %7713 = vmatpush.bf16.msra.mxu0 %v6551
    %7714 = vmatpush.bf16.msra.mxu0 %v6547
    %7715 = vmatpush.bf16.msra.mxu0 %v6543
    %7716 = vmatpush.bf16.msra.mxu0 %v6539
    %7717 = vmatpush.bf16.msra.mxu0 %v6535
    %7718 = vmatmul.bf16.gmra.mxu0 %v4346
    %v7719 = vpop.f32.mrf.mxu0
    %v7720 = vadd.f32 %v7706, %v7719
    %v7721 = vpop.f32.mrf.mxu0
    %v7722 = vadd.f32 %v7708, %v7721
    %7723 = vdwg.mxu0
    %7724 = vmatpush.bf16.msra.mxu0 %v6595
    %7725 = vmatpush.bf16.msra.mxu0 %v6591
    %7726 = vmatpush.bf16.msra.mxu0 %v6587
    %7727 = vmatpush.bf16.msra.mxu0 %v6583
    %7728 = vmatpush.bf16.msra.mxu0 %v6579
    %7729 = vmatpush.bf16.msra.mxu0 %v6575
    %7730 = vmatpush.bf16.msra.mxu0 %v6571
    %7731 = vmatpush.bf16.msra.mxu0 %v6567
    %7732 = vmatmul.bf16.gmra.mxu0 %v4347
    %v7733 = vpop.f32.mrf.mxu0
    %v7734 = vadd.f32 %v7720, %v7733
    %v7735 = vpop.f32.mrf.mxu0
    %v7736 = vadd.f32 %v7722, %v7735
    %7737 = vdwg.mxu0
    %7738 = vmatpush.bf16.msra.mxu0 %v6627
    %7739 = vmatpush.bf16.msra.mxu0 %v6623
    %7740 = vmatpush.bf16.msra.mxu0 %v6619
    %7741 = vmatpush.bf16.msra.mxu0 %v6615
    %7742 = vmatpush.bf16.msra.mxu0 %v6611
    %7743 = vmatpush.bf16.msra.mxu0 %v6607
    %7744 = vmatpush.bf16.msra.mxu0 %v6603
    %7745 = vmatpush.bf16.msra.mxu0 %v6599
    %7746 = vmatmul.bf16.gmra.mxu0 %v4348
    %v7747 = vpop.f32.mrf.mxu0
    %v7748 = vadd.f32 %v7734, %v7747
    %v7749 = vpop.f32.mrf.mxu0
    %v7750 = vadd.f32 %v7736, %v7749
    %7751 = vdwg.mxu0
    %7752 = vmatpush.bf16.msra.mxu0 %v6659
    %7753 = vmatpush.bf16.msra.mxu0 %v6655
    %7754 = vmatpush.bf16.msra.mxu0 %v6651
    %7755 = vmatpush.bf16.msra.mxu0 %v6647
    %7756 = vmatpush.bf16.msra.mxu0 %v6643
    %7757 = vmatpush.bf16.msra.mxu0 %v6639
    %7758 = vmatpush.bf16.msra.mxu0 %v6635
    %7759 = vmatpush.bf16.msra.mxu0 %v6631
    %7760 = vmatmul.bf16.gmra.mxu0 %v4349
    %v7761 = vpop.f32.mrf.mxu0
    %v7762 = vadd.f32 %v7748, %v7761
    %v7763 = vpop.f32.mrf.mxu0
    %v7764 = vadd.f32 %v7750, %v7763
    %7765 = vdwg.mxu0
    %7766 = vmatpush.bf16.msra.mxu0 %v6691
    %7767 = vmatpush.bf16.msra.mxu0 %v6687
    %7768 = vmatpush.bf16.msra.mxu0 %v6683
    %7769 = vmatpush.bf16.msra.mxu0 %v6679
    %7770 = vmatpush.bf16.msra.mxu0 %v6675
    %7771 = vmatpush.bf16.msra.mxu0 %v6671
    %7772 = vmatpush.bf16.msra.mxu0 %v6667
    %7773 = vmatpush.bf16.msra.mxu0 %v6663
    %7774 = vmatmul.bf16.gmra.mxu0 %v4350
    %v7775 = vpop.f32.mrf.mxu0
    %v7776 = vadd.f32 %v7762, %v7775
    %v7777 = vpop.f32.mrf.mxu0
    %v7778 = vadd.f32 %v7764, %v7777
    %7779 = vdwg.mxu0
    %7780 = vmatpush.bf16.msra.mxu0 %v6723
    %7781 = vmatpush.bf16.msra.mxu0 %v6719
    %7782 = vmatpush.bf16.msra.mxu0 %v6715
    %7783 = vmatpush.bf16.msra.mxu0 %v6711
    %7784 = vmatpush.bf16.msra.mxu0 %v6707
    %7785 = vmatpush.bf16.msra.mxu0 %v6703
    %7786 = vmatpush.bf16.msra.mxu0 %v6699
    %7787 = vmatpush.bf16.msra.mxu0 %v6695
    %7788 = vmatmul.bf16.gmra.mxu0 %v4351
    %v7789 = vpop.f32.mrf.mxu0
    %v7790 = vadd.f32 %v7776, %v7789
    %v7791 = vpop.f32.mrf.mxu0
    %v7792 = vadd.f32 %v7778, %v7791
    %7793 = vdwg.mxu0
    %7794 = vmatpush.bf16.msra.mxu0 %v6755
    %7795 = vmatpush.bf16.msra.mxu0 %v6751
    %7796 = vmatpush.bf16.msra.mxu0 %v6747
    %7797 = vmatpush.bf16.msra.mxu0 %v6743
    %7798 = vmatpush.bf16.msra.mxu0 %v6739
    %7799 = vmatpush.bf16.msra.mxu0 %v6735
    %7800 = vmatpush.bf16.msra.mxu0 %v6731
    %7801 = vmatpush.bf16.msra.mxu0 %v6727
    %7802 = vmatmul.bf16.gmra.mxu0 %v4352
    %v7803 = vpop.f32.mrf.mxu0
    %v7804 = vadd.f32 %v7790, %v7803
    %v7805 = vpop.f32.mrf.mxu0
    %v7806 = vadd.f32 %v7792, %v7805
    %7807 = vdwg.mxu0
    %7808 = vmatpush.bf16.msra.mxu0 %v6787
    %7809 = vmatpush.bf16.msra.mxu0 %v6783
    %7810 = vmatpush.bf16.msra.mxu0 %v6779
    %7811 = vmatpush.bf16.msra.mxu0 %v6775
    %7812 = vmatpush.bf16.msra.mxu0 %v6771
    %7813 = vmatpush.bf16.msra.mxu0 %v6767
    %7814 = vmatpush.bf16.msra.mxu0 %v6763
    %7815 = vmatpush.bf16.msra.mxu0 %v6759
    %7816 = vmatmul.bf16.gmra.mxu0 %v4353
    %v7817 = vpop.f32.mrf.mxu0
    %v7818 = vadd.f32 %v7804, %v7817
    %v7819 = vpop.f32.mrf.mxu0
    %v7820 = vadd.f32 %v7806, %v7819
    %7821 = vdwg.mxu0
    %7822 = vmatpush.bf16.msra.mxu0 %v6819
    %7823 = vmatpush.bf16.msra.mxu0 %v6815
    %7824 = vmatpush.bf16.msra.mxu0 %v6811
    %7825 = vmatpush.bf16.msra.mxu0 %v6807
    %7826 = vmatpush.bf16.msra.mxu0 %v6803
    %7827 = vmatpush.bf16.msra.mxu0 %v6799
    %7828 = vmatpush.bf16.msra.mxu0 %v6795
    %7829 = vmatpush.bf16.msra.mxu0 %v6791
    %7830 = vmatmul.bf16.gmra.mxu0 %v4354
    %v7831 = vpop.f32.mrf.mxu0
    %v7832 = vadd.f32 %v7818, %v7831
    %v7833 = vpop.f32.mrf.mxu0
    %v7834 = vadd.f32 %v7820, %v7833
    %7835 = vdwg.mxu0
    %7836 = vmatpush.bf16.msra.mxu0 %v6851
    %7837 = vmatpush.bf16.msra.mxu0 %v6847
    %7838 = vmatpush.bf16.msra.mxu0 %v6843
    %7839 = vmatpush.bf16.msra.mxu0 %v6839
    %7840 = vmatpush.bf16.msra.mxu0 %v6835
    %7841 = vmatpush.bf16.msra.mxu0 %v6831
    %7842 = vmatpush.bf16.msra.mxu0 %v6827
    %7843 = vmatpush.bf16.msra.mxu0 %v6823
    %7844 = vmatmul.bf16.gmra.mxu0 %v4355
    %v7845 = vpop.f32.mrf.mxu0
    %v7846 = vadd.f32 %v7832, %v7845
    %v7847 = vpop.f32.mrf.mxu0
    %v7848 = vadd.f32 %v7834, %v7847
    %7849 = vdwg.mxu0
    %7850 = vmatpush.bf16.msra.mxu0 %v6883
    %7851 = vmatpush.bf16.msra.mxu0 %v6879
    %7852 = vmatpush.bf16.msra.mxu0 %v6875
    %7853 = vmatpush.bf16.msra.mxu0 %v6871
    %7854 = vmatpush.bf16.msra.mxu0 %v6867
    %7855 = vmatpush.bf16.msra.mxu0 %v6863
    %7856 = vmatpush.bf16.msra.mxu0 %v6859
    %7857 = vmatpush.bf16.msra.mxu0 %v6855
    %7858 = vmatmul.bf16.gmra.mxu0 %v4356
    %v7859 = vpop.f32.mrf.mxu0
    %v7860 = vadd.f32 %v7846, %v7859
    %v7861 = vpop.f32.mrf.mxu0
    %v7862 = vadd.f32 %v7848, %v7861
    %7863 = vdwg.mxu0
    %7864 = vmatpush.bf16.msra.mxu0 %v6915
    %7865 = vmatpush.bf16.msra.mxu0 %v6911
    %7866 = vmatpush.bf16.msra.mxu0 %v6907
    %7867 = vmatpush.bf16.msra.mxu0 %v6903
    %7868 = vmatpush.bf16.msra.mxu0 %v6899
    %7869 = vmatpush.bf16.msra.mxu0 %v6895
    %7870 = vmatpush.bf16.msra.mxu0 %v6891
    %7871 = vmatpush.bf16.msra.mxu0 %v6887
    %7872 = vmatmul.bf16.gmra.mxu0 %v4357
    %v7873 = vpop.f32.mrf.mxu0
    %v7874 = vadd.f32 %v7860, %v7873
    %v7875 = vpop.f32.mrf.mxu0
    %v7876 = vadd.f32 %v7862, %v7875
    %7877 = vdwg.mxu0
    %7878 = vmatpush.bf16.msra.mxu0 %v6436
    %7879 = vmatpush.bf16.msra.mxu0 %v6432
    %7880 = vmatpush.bf16.msra.mxu0 %v6428
    %7881 = vmatpush.bf16.msra.mxu0 %v6424
    %7882 = vmatpush.bf16.msra.mxu0 %v6420
    %7883 = vmatpush.bf16.msra.mxu0 %v6416
    %7884 = vmatpush.bf16.msra.mxu0 %v6412
    %7885 = vmatpush.bf16.msra.mxu0 %v6408
    %7886 = vmatmul.bf16.gmra.mxu0 %v4342
    %v7887 = vpop.f32.mrf.mxu0
    %v7888 = vadd.f32 0.0, %v7887
    %v7889 = vpop.f32.mrf.mxu0
    %v7890 = vadd.f32 0.0, %v7889
    %7891 = vdwg.mxu0
    %7892 = vmatpush.bf16.msra.mxu0 %v6468
    %7893 = vmatpush.bf16.msra.mxu0 %v6464
    %7894 = vmatpush.bf16.msra.mxu0 %v6460
    %7895 = vmatpush.bf16.msra.mxu0 %v6456
    %7896 = vmatpush.bf16.msra.mxu0 %v6452
    %7897 = vmatpush.bf16.msra.mxu0 %v6448
    %7898 = vmatpush.bf16.msra.mxu0 %v6444
    %7899 = vmatpush.bf16.msra.mxu0 %v6440
    %7900 = vmatmul.bf16.gmra.mxu0 %v4343
    %v7901 = vpop.f32.mrf.mxu0
    %v7902 = vadd.f32 %v7888, %v7901
    %v7903 = vpop.f32.mrf.mxu0
    %v7904 = vadd.f32 %v7890, %v7903
    %7905 = vdwg.mxu0
    %7906 = vmatpush.bf16.msra.mxu0 %v6500
    %7907 = vmatpush.bf16.msra.mxu0 %v6496
    %7908 = vmatpush.bf16.msra.mxu0 %v6492
    %7909 = vmatpush.bf16.msra.mxu0 %v6488
    %7910 = vmatpush.bf16.msra.mxu0 %v6484
    %7911 = vmatpush.bf16.msra.mxu0 %v6480
    %7912 = vmatpush.bf16.msra.mxu0 %v6476
    %7913 = vmatpush.bf16.msra.mxu0 %v6472
    %7914 = vmatmul.bf16.gmra.mxu0 %v4344
    %v7915 = vpop.f32.mrf.mxu0
    %v7916 = vadd.f32 %v7902, %v7915
    %v7917 = vpop.f32.mrf.mxu0
    %v7918 = vadd.f32 %v7904, %v7917
    %7919 = vdwg.mxu0
    %7920 = vmatpush.bf16.msra.mxu0 %v6532
    %7921 = vmatpush.bf16.msra.mxu0 %v6528
    %7922 = vmatpush.bf16.msra.mxu0 %v6524
    %7923 = vmatpush.bf16.msra.mxu0 %v6520
    %7924 = vmatpush.bf16.msra.mxu0 %v6516
    %7925 = vmatpush.bf16.msra.mxu0 %v6512
    %7926 = vmatpush.bf16.msra.mxu0 %v6508
    %7927 = vmatpush.bf16.msra.mxu0 %v6504
    %7928 = vmatmul.bf16.gmra.mxu0 %v4345
    %v7929 = vpop.f32.mrf.mxu0
    %v7930 = vadd.f32 %v7916, %v7929
    %v7931 = vpop.f32.mrf.mxu0
    %v7932 = vadd.f32 %v7918, %v7931
    %7933 = vdwg.mxu0
    %7934 = vmatpush.bf16.msra.mxu0 %v6564
    %7935 = vmatpush.bf16.msra.mxu0 %v6560
    %7936 = vmatpush.bf16.msra.mxu0 %v6556
    %7937 = vmatpush.bf16.msra.mxu0 %v6552
    %7938 = vmatpush.bf16.msra.mxu0 %v6548
    %7939 = vmatpush.bf16.msra.mxu0 %v6544
    %7940 = vmatpush.bf16.msra.mxu0 %v6540
    %7941 = vmatpush.bf16.msra.mxu0 %v6536
    %7942 = vmatmul.bf16.gmra.mxu0 %v4346
    %v7943 = vpop.f32.mrf.mxu0
    %v7944 = vadd.f32 %v7930, %v7943
    %v7945 = vpop.f32.mrf.mxu0
    %v7946 = vadd.f32 %v7932, %v7945
    %7947 = vdwg.mxu0
    %7948 = vmatpush.bf16.msra.mxu0 %v6596
    %7949 = vmatpush.bf16.msra.mxu0 %v6592
    %7950 = vmatpush.bf16.msra.mxu0 %v6588
    %7951 = vmatpush.bf16.msra.mxu0 %v6584
    %7952 = vmatpush.bf16.msra.mxu0 %v6580
    %7953 = vmatpush.bf16.msra.mxu0 %v6576
    %7954 = vmatpush.bf16.msra.mxu0 %v6572
    %7955 = vmatpush.bf16.msra.mxu0 %v6568
    %7956 = vmatmul.bf16.gmra.mxu0 %v4347
    %v7957 = vpop.f32.mrf.mxu0
    %v7958 = vadd.f32 %v7944, %v7957
    %v7959 = vpop.f32.mrf.mxu0
    %v7960 = vadd.f32 %v7946, %v7959
    %7961 = vdwg.mxu0
    %7962 = vmatpush.bf16.msra.mxu0 %v6628
    %7963 = vmatpush.bf16.msra.mxu0 %v6624
    %7964 = vmatpush.bf16.msra.mxu0 %v6620
    %7965 = vmatpush.bf16.msra.mxu0 %v6616
    %7966 = vmatpush.bf16.msra.mxu0 %v6612
    %7967 = vmatpush.bf16.msra.mxu0 %v6608
    %7968 = vmatpush.bf16.msra.mxu0 %v6604
    %7969 = vmatpush.bf16.msra.mxu0 %v6600
    %7970 = vmatmul.bf16.gmra.mxu0 %v4348
    %v7971 = vpop.f32.mrf.mxu0
    %v7972 = vadd.f32 %v7958, %v7971
    %v7973 = vpop.f32.mrf.mxu0
    %v7974 = vadd.f32 %v7960, %v7973
    %7975 = vdwg.mxu0
    %7976 = vmatpush.bf16.msra.mxu0 %v6660
    %7977 = vmatpush.bf16.msra.mxu0 %v6656
    %7978 = vmatpush.bf16.msra.mxu0 %v6652
    %7979 = vmatpush.bf16.msra.mxu0 %v6648
    %7980 = vmatpush.bf16.msra.mxu0 %v6644
    %7981 = vmatpush.bf16.msra.mxu0 %v6640
    %7982 = vmatpush.bf16.msra.mxu0 %v6636
    %7983 = vmatpush.bf16.msra.mxu0 %v6632
    %7984 = vmatmul.bf16.gmra.mxu0 %v4349
    %v7985 = vpop.f32.mrf.mxu0
    %v7986 = vadd.f32 %v7972, %v7985
    %v7987 = vpop.f32.mrf.mxu0
    %v7988 = vadd.f32 %v7974, %v7987
    %7989 = vdwg.mxu0
    %7990 = vmatpush.bf16.msra.mxu0 %v6692
    %7991 = vmatpush.bf16.msra.mxu0 %v6688
    %7992 = vmatpush.bf16.msra.mxu0 %v6684
    %7993 = vmatpush.bf16.msra.mxu0 %v6680
    %7994 = vmatpush.bf16.msra.mxu0 %v6676
    %7995 = vmatpush.bf16.msra.mxu0 %v6672
    %7996 = vmatpush.bf16.msra.mxu0 %v6668
    %7997 = vmatpush.bf16.msra.mxu0 %v6664
    %7998 = vmatmul.bf16.gmra.mxu0 %v4350
    %v7999 = vpop.f32.mrf.mxu0
    %v8000 = vadd.f32 %v7986, %v7999
    %v8001 = vpop.f32.mrf.mxu0
    %v8002 = vadd.f32 %v7988, %v8001
    %8003 = vdwg.mxu0
    %8004 = vmatpush.bf16.msra.mxu0 %v6724
    %8005 = vmatpush.bf16.msra.mxu0 %v6720
    %8006 = vmatpush.bf16.msra.mxu0 %v6716
    %8007 = vmatpush.bf16.msra.mxu0 %v6712
    %8008 = vmatpush.bf16.msra.mxu0 %v6708
    %8009 = vmatpush.bf16.msra.mxu0 %v6704
    %8010 = vmatpush.bf16.msra.mxu0 %v6700
    %8011 = vmatpush.bf16.msra.mxu0 %v6696
    %8012 = vmatmul.bf16.gmra.mxu0 %v4351
    %v8013 = vpop.f32.mrf.mxu0
    %v8014 = vadd.f32 %v8000, %v8013
    %v8015 = vpop.f32.mrf.mxu0
    %v8016 = vadd.f32 %v8002, %v8015
    %8017 = vdwg.mxu0
    %8018 = vmatpush.bf16.msra.mxu0 %v6756
    %8019 = vmatpush.bf16.msra.mxu0 %v6752
    %8020 = vmatpush.bf16.msra.mxu0 %v6748
    %8021 = vmatpush.bf16.msra.mxu0 %v6744
    %8022 = vmatpush.bf16.msra.mxu0 %v6740
    %8023 = vmatpush.bf16.msra.mxu0 %v6736
    %8024 = vmatpush.bf16.msra.mxu0 %v6732
    %8025 = vmatpush.bf16.msra.mxu0 %v6728
    %8026 = vmatmul.bf16.gmra.mxu0 %v4352
    %v8027 = vpop.f32.mrf.mxu0
    %v8028 = vadd.f32 %v8014, %v8027
    %v8029 = vpop.f32.mrf.mxu0
    %v8030 = vadd.f32 %v8016, %v8029
    %8031 = vdwg.mxu0
    %8032 = vmatpush.bf16.msra.mxu0 %v6788
    %8033 = vmatpush.bf16.msra.mxu0 %v6784
    %8034 = vmatpush.bf16.msra.mxu0 %v6780
    %8035 = vmatpush.bf16.msra.mxu0 %v6776
    %8036 = vmatpush.bf16.msra.mxu0 %v6772
    %8037 = vmatpush.bf16.msra.mxu0 %v6768
    %8038 = vmatpush.bf16.msra.mxu0 %v6764
    %8039 = vmatpush.bf16.msra.mxu0 %v6760
    %8040 = vmatmul.bf16.gmra.mxu0 %v4353
    %v8041 = vpop.f32.mrf.mxu0
    %v8042 = vadd.f32 %v8028, %v8041
    %v8043 = vpop.f32.mrf.mxu0
    %v8044 = vadd.f32 %v8030, %v8043
    %8045 = vdwg.mxu0
    %8046 = vmatpush.bf16.msra.mxu0 %v6820
    %8047 = vmatpush.bf16.msra.mxu0 %v6816
    %8048 = vmatpush.bf16.msra.mxu0 %v6812
    %8049 = vmatpush.bf16.msra.mxu0 %v6808
    %8050 = vmatpush.bf16.msra.mxu0 %v6804
    %8051 = vmatpush.bf16.msra.mxu0 %v6800
    %8052 = vmatpush.bf16.msra.mxu0 %v6796
    %8053 = vmatpush.bf16.msra.mxu0 %v6792
    %8054 = vmatmul.bf16.gmra.mxu0 %v4354
    %v8055 = vpop.f32.mrf.mxu0
    %v8056 = vadd.f32 %v8042, %v8055
    %v8057 = vpop.f32.mrf.mxu0
    %v8058 = vadd.f32 %v8044, %v8057
    %8059 = vdwg.mxu0
    %8060 = vmatpush.bf16.msra.mxu0 %v6852
    %8061 = vmatpush.bf16.msra.mxu0 %v6848
    %8062 = vmatpush.bf16.msra.mxu0 %v6844
    %8063 = vmatpush.bf16.msra.mxu0 %v6840
    %8064 = vmatpush.bf16.msra.mxu0 %v6836
    %8065 = vmatpush.bf16.msra.mxu0 %v6832
    %8066 = vmatpush.bf16.msra.mxu0 %v6828
    %8067 = vmatpush.bf16.msra.mxu0 %v6824
    %8068 = vmatmul.bf16.gmra.mxu0 %v4355
    %v8069 = vpop.f32.mrf.mxu0
    %v8070 = vadd.f32 %v8056, %v8069
    %v8071 = vpop.f32.mrf.mxu0
    %v8072 = vadd.f32 %v8058, %v8071
    %8073 = vdwg.mxu0
    %8074 = vmatpush.bf16.msra.mxu0 %v6884
    %8075 = vmatpush.bf16.msra.mxu0 %v6880
    %8076 = vmatpush.bf16.msra.mxu0 %v6876
    %8077 = vmatpush.bf16.msra.mxu0 %v6872
    %8078 = vmatpush.bf16.msra.mxu0 %v6868
    %8079 = vmatpush.bf16.msra.mxu0 %v6864
    %8080 = vmatpush.bf16.msra.mxu0 %v6860
    %8081 = vmatpush.bf16.msra.mxu0 %v6856
    %8082 = vmatmul.bf16.gmra.mxu0 %v4356
    %v8083 = vpop.f32.mrf.mxu0
    %v8084 = vadd.f32 %v8070, %v8083
    %v8085 = vpop.f32.mrf.mxu0
    %v8086 = vadd.f32 %v8072, %v8085
    %8087 = vdwg.mxu0
    %8088 = vmatpush.bf16.msra.mxu0 %v6916
    %8089 = vmatpush.bf16.msra.mxu0 %v6912
    %8090 = vmatpush.bf16.msra.mxu0 %v6908
    %8091 = vmatpush.bf16.msra.mxu0 %v6904
    %8092 = vmatpush.bf16.msra.mxu0 %v6900
    %8093 = vmatpush.bf16.msra.mxu0 %v6896
    %8094 = vmatpush.bf16.msra.mxu0 %v6892
    %8095 = vmatpush.bf16.msra.mxu0 %v6888
    %8096 = vmatmul.bf16.gmra.mxu0 %v4357
    %v8097 = vpop.f32.mrf.mxu0
    %v8098 = vadd.f32 %v8084, %v8097
    %v8099 = vpop.f32.mrf.mxu0
    %v8100 = vadd.f32 %v8086, %v8099
    %8101 = vdwg.mxu0
    %8102 = vmatpush.bf16.msra.mxu0 %v6437
    %8103 = vmatpush.bf16.msra.mxu0 %v6433
    %8104 = vmatpush.bf16.msra.mxu0 %v6429
    %8105 = vmatpush.bf16.msra.mxu0 %v6425
    %8106 = vmatpush.bf16.msra.mxu0 %v6421
    %8107 = vmatpush.bf16.msra.mxu0 %v6417
    %8108 = vmatpush.bf16.msra.mxu0 %v6413
    %8109 = vmatpush.bf16.msra.mxu0 %v6409
    %8110 = vmatmul.bf16.gmra.mxu0 %v4342
    %v8111 = vpop.f32.mrf.mxu0
    %v8112 = vadd.f32 0.0, %v8111
    %v8113 = vpop.f32.mrf.mxu0
    %v8114 = vadd.f32 0.0, %v8113
    %8115 = vdwg.mxu0
    %8116 = vmatpush.bf16.msra.mxu0 %v6469
    %8117 = vmatpush.bf16.msra.mxu0 %v6465
    %8118 = vmatpush.bf16.msra.mxu0 %v6461
    %8119 = vmatpush.bf16.msra.mxu0 %v6457
    %8120 = vmatpush.bf16.msra.mxu0 %v6453
    %8121 = vmatpush.bf16.msra.mxu0 %v6449
    %8122 = vmatpush.bf16.msra.mxu0 %v6445
    %8123 = vmatpush.bf16.msra.mxu0 %v6441
    %8124 = vmatmul.bf16.gmra.mxu0 %v4343
    %v8125 = vpop.f32.mrf.mxu0
    %v8126 = vadd.f32 %v8112, %v8125
    %v8127 = vpop.f32.mrf.mxu0
    %v8128 = vadd.f32 %v8114, %v8127
    %8129 = vdwg.mxu0
    %8130 = vmatpush.bf16.msra.mxu0 %v6501
    %8131 = vmatpush.bf16.msra.mxu0 %v6497
    %8132 = vmatpush.bf16.msra.mxu0 %v6493
    %8133 = vmatpush.bf16.msra.mxu0 %v6489
    %8134 = vmatpush.bf16.msra.mxu0 %v6485
    %8135 = vmatpush.bf16.msra.mxu0 %v6481
    %8136 = vmatpush.bf16.msra.mxu0 %v6477
    %8137 = vmatpush.bf16.msra.mxu0 %v6473
    %8138 = vmatmul.bf16.gmra.mxu0 %v4344
    %v8139 = vpop.f32.mrf.mxu0
    %v8140 = vadd.f32 %v8126, %v8139
    %v8141 = vpop.f32.mrf.mxu0
    %v8142 = vadd.f32 %v8128, %v8141
    %8143 = vdwg.mxu0
    %8144 = vmatpush.bf16.msra.mxu0 %v6533
    %8145 = vmatpush.bf16.msra.mxu0 %v6529
    %8146 = vmatpush.bf16.msra.mxu0 %v6525
    %8147 = vmatpush.bf16.msra.mxu0 %v6521
    %8148 = vmatpush.bf16.msra.mxu0 %v6517
    %8149 = vmatpush.bf16.msra.mxu0 %v6513
    %8150 = vmatpush.bf16.msra.mxu0 %v6509
    %8151 = vmatpush.bf16.msra.mxu0 %v6505
    %8152 = vmatmul.bf16.gmra.mxu0 %v4345
    %v8153 = vpop.f32.mrf.mxu0
    %v8154 = vadd.f32 %v8140, %v8153
    %v8155 = vpop.f32.mrf.mxu0
    %v8156 = vadd.f32 %v8142, %v8155
    %8157 = vdwg.mxu0
    %8158 = vmatpush.bf16.msra.mxu0 %v6565
    %8159 = vmatpush.bf16.msra.mxu0 %v6561
    %8160 = vmatpush.bf16.msra.mxu0 %v6557
    %8161 = vmatpush.bf16.msra.mxu0 %v6553
    %8162 = vmatpush.bf16.msra.mxu0 %v6549
    %8163 = vmatpush.bf16.msra.mxu0 %v6545
    %8164 = vmatpush.bf16.msra.mxu0 %v6541
    %8165 = vmatpush.bf16.msra.mxu0 %v6537
    %8166 = vmatmul.bf16.gmra.mxu0 %v4346
    %v8167 = vpop.f32.mrf.mxu0
    %v8168 = vadd.f32 %v8154, %v8167
    %v8169 = vpop.f32.mrf.mxu0
    %v8170 = vadd.f32 %v8156, %v8169
    %8171 = vdwg.mxu0
    %8172 = vmatpush.bf16.msra.mxu0 %v6597
    %8173 = vmatpush.bf16.msra.mxu0 %v6593
    %8174 = vmatpush.bf16.msra.mxu0 %v6589
    %8175 = vmatpush.bf16.msra.mxu0 %v6585
    %8176 = vmatpush.bf16.msra.mxu0 %v6581
    %8177 = vmatpush.bf16.msra.mxu0 %v6577
    %8178 = vmatpush.bf16.msra.mxu0 %v6573
    %8179 = vmatpush.bf16.msra.mxu0 %v6569
    %8180 = vmatmul.bf16.gmra.mxu0 %v4347
    %v8181 = vpop.f32.mrf.mxu0
    %v8182 = vadd.f32 %v8168, %v8181
    %v8183 = vpop.f32.mrf.mxu0
    %v8184 = vadd.f32 %v8170, %v8183
    %8185 = vdwg.mxu0
    %8186 = vmatpush.bf16.msra.mxu0 %v6629
    %8187 = vmatpush.bf16.msra.mxu0 %v6625
    %8188 = vmatpush.bf16.msra.mxu0 %v6621
    %8189 = vmatpush.bf16.msra.mxu0 %v6617
    %8190 = vmatpush.bf16.msra.mxu0 %v6613
    %8191 = vmatpush.bf16.msra.mxu0 %v6609
    %8192 = vmatpush.bf16.msra.mxu0 %v6605
    %8193 = vmatpush.bf16.msra.mxu0 %v6601
    %8194 = vmatmul.bf16.gmra.mxu0 %v4348
    %v8195 = vpop.f32.mrf.mxu0
    %v8196 = vadd.f32 %v8182, %v8195
    %v8197 = vpop.f32.mrf.mxu0
    %v8198 = vadd.f32 %v8184, %v8197
    %8199 = vdwg.mxu0
    %8200 = vmatpush.bf16.msra.mxu0 %v6661
    %8201 = vmatpush.bf16.msra.mxu0 %v6657
    %8202 = vmatpush.bf16.msra.mxu0 %v6653
    %8203 = vmatpush.bf16.msra.mxu0 %v6649
    %8204 = vmatpush.bf16.msra.mxu0 %v6645
    %8205 = vmatpush.bf16.msra.mxu0 %v6641
    %8206 = vmatpush.bf16.msra.mxu0 %v6637
    %8207 = vmatpush.bf16.msra.mxu0 %v6633
    %8208 = vmatmul.bf16.gmra.mxu0 %v4349
    %v8209 = vpop.f32.mrf.mxu0
    %v8210 = vadd.f32 %v8196, %v8209
    %v8211 = vpop.f32.mrf.mxu0
    %v8212 = vadd.f32 %v8198, %v8211
    %8213 = vdwg.mxu0
    %8214 = vmatpush.bf16.msra.mxu0 %v6693
    %8215 = vmatpush.bf16.msra.mxu0 %v6689
    %8216 = vmatpush.bf16.msra.mxu0 %v6685
    %8217 = vmatpush.bf16.msra.mxu0 %v6681
    %8218 = vmatpush.bf16.msra.mxu0 %v6677
    %8219 = vmatpush.bf16.msra.mxu0 %v6673
    %8220 = vmatpush.bf16.msra.mxu0 %v6669
    %8221 = vmatpush.bf16.msra.mxu0 %v6665
    %8222 = vmatmul.bf16.gmra.mxu0 %v4350
    %v8223 = vpop.f32.mrf.mxu0
    %v8224 = vadd.f32 %v8210, %v8223
    %v8225 = vpop.f32.mrf.mxu0
    %v8226 = vadd.f32 %v8212, %v8225
    %8227 = vdwg.mxu0
    %8228 = vmatpush.bf16.msra.mxu0 %v6725
    %8229 = vmatpush.bf16.msra.mxu0 %v6721
    %8230 = vmatpush.bf16.msra.mxu0 %v6717
    %8231 = vmatpush.bf16.msra.mxu0 %v6713
    %8232 = vmatpush.bf16.msra.mxu0 %v6709
    %8233 = vmatpush.bf16.msra.mxu0 %v6705
    %8234 = vmatpush.bf16.msra.mxu0 %v6701
    %8235 = vmatpush.bf16.msra.mxu0 %v6697
    %8236 = vmatmul.bf16.gmra.mxu0 %v4351
    %v8237 = vpop.f32.mrf.mxu0
    %v8238 = vadd.f32 %v8224, %v8237
    %v8239 = vpop.f32.mrf.mxu0
    %v8240 = vadd.f32 %v8226, %v8239
    %8241 = vdwg.mxu0
    %8242 = vmatpush.bf16.msra.mxu0 %v6757
    %8243 = vmatpush.bf16.msra.mxu0 %v6753
    %8244 = vmatpush.bf16.msra.mxu0 %v6749
    %8245 = vmatpush.bf16.msra.mxu0 %v6745
    %8246 = vmatpush.bf16.msra.mxu0 %v6741
    %8247 = vmatpush.bf16.msra.mxu0 %v6737
    %8248 = vmatpush.bf16.msra.mxu0 %v6733
    %8249 = vmatpush.bf16.msra.mxu0 %v6729
    %8250 = vmatmul.bf16.gmra.mxu0 %v4352
    %v8251 = vpop.f32.mrf.mxu0
    %v8252 = vadd.f32 %v8238, %v8251
    %v8253 = vpop.f32.mrf.mxu0
    %v8254 = vadd.f32 %v8240, %v8253
    %8255 = vdwg.mxu0
    %8256 = vmatpush.bf16.msra.mxu0 %v6789
    %8257 = vmatpush.bf16.msra.mxu0 %v6785
    %8258 = vmatpush.bf16.msra.mxu0 %v6781
    %8259 = vmatpush.bf16.msra.mxu0 %v6777
    %8260 = vmatpush.bf16.msra.mxu0 %v6773
    %8261 = vmatpush.bf16.msra.mxu0 %v6769
    %8262 = vmatpush.bf16.msra.mxu0 %v6765
    %8263 = vmatpush.bf16.msra.mxu0 %v6761
    %8264 = vmatmul.bf16.gmra.mxu0 %v4353
    %v8265 = vpop.f32.mrf.mxu0
    %v8266 = vadd.f32 %v8252, %v8265
    %v8267 = vpop.f32.mrf.mxu0
    %v8268 = vadd.f32 %v8254, %v8267
    %8269 = vdwg.mxu0
    %8270 = vmatpush.bf16.msra.mxu0 %v6821
    %8271 = vmatpush.bf16.msra.mxu0 %v6817
    %8272 = vmatpush.bf16.msra.mxu0 %v6813
    %8273 = vmatpush.bf16.msra.mxu0 %v6809
    %8274 = vmatpush.bf16.msra.mxu0 %v6805
    %8275 = vmatpush.bf16.msra.mxu0 %v6801
    %8276 = vmatpush.bf16.msra.mxu0 %v6797
    %8277 = vmatpush.bf16.msra.mxu0 %v6793
    %8278 = vmatmul.bf16.gmra.mxu0 %v4354
    %v8279 = vpop.f32.mrf.mxu0
    %v8280 = vadd.f32 %v8266, %v8279
    %v8281 = vpop.f32.mrf.mxu0
    %v8282 = vadd.f32 %v8268, %v8281
    %8283 = vdwg.mxu0
    %8284 = vmatpush.bf16.msra.mxu0 %v6853
    %8285 = vmatpush.bf16.msra.mxu0 %v6849
    %8286 = vmatpush.bf16.msra.mxu0 %v6845
    %8287 = vmatpush.bf16.msra.mxu0 %v6841
    %8288 = vmatpush.bf16.msra.mxu0 %v6837
    %8289 = vmatpush.bf16.msra.mxu0 %v6833
    %8290 = vmatpush.bf16.msra.mxu0 %v6829
    %8291 = vmatpush.bf16.msra.mxu0 %v6825
    %8292 = vmatmul.bf16.gmra.mxu0 %v4355
    %v8293 = vpop.f32.mrf.mxu0
    %v8294 = vadd.f32 %v8280, %v8293
    %v8295 = vpop.f32.mrf.mxu0
    %v8296 = vadd.f32 %v8282, %v8295
    %8297 = vdwg.mxu0
    %8298 = vmatpush.bf16.msra.mxu0 %v6885
    %8299 = vmatpush.bf16.msra.mxu0 %v6881
    %8300 = vmatpush.bf16.msra.mxu0 %v6877
    %8301 = vmatpush.bf16.msra.mxu0 %v6873
    %8302 = vmatpush.bf16.msra.mxu0 %v6869
    %8303 = vmatpush.bf16.msra.mxu0 %v6865
    %8304 = vmatpush.bf16.msra.mxu0 %v6861
    %8305 = vmatpush.bf16.msra.mxu0 %v6857
    %8306 = vmatmul.bf16.gmra.mxu0 %v4356
    %v8307 = vpop.f32.mrf.mxu0
    %v8308 = vadd.f32 %v8294, %v8307
    %v8309 = vpop.f32.mrf.mxu0
    %v8310 = vadd.f32 %v8296, %v8309
    %8311 = vdwg.mxu0
    %8312 = vmatpush.bf16.msra.mxu0 %v6917
    %8313 = vmatpush.bf16.msra.mxu0 %v6913
    %8314 = vmatpush.bf16.msra.mxu0 %v6909
    %8315 = vmatpush.bf16.msra.mxu0 %v6905
    %8316 = vmatpush.bf16.msra.mxu0 %v6901
    %8317 = vmatpush.bf16.msra.mxu0 %v6897
    %8318 = vmatpush.bf16.msra.mxu0 %v6893
    %8319 = vmatpush.bf16.msra.mxu0 %v6889
    %8320 = vmatmul.bf16.gmra.mxu0 %v4357
    %v8321 = vpop.f32.mrf.mxu0
    %v8322 = vadd.f32 %v8308, %v8321
    %v8323 = vpop.f32.mrf.mxu0
    %v8324 = vadd.f32 %v8310, %v8323
    %8325 = vdwg.mxu0
    %8326 = vst [vmem:[#allocation8] sm:$0xff] %v7650
    %8327 = vst [vmem:[#allocation8 + $0x8] sm:$0xff] %v7874
    %8328 = vst [vmem:[#allocation8 + $0x10] sm:$0xff] %v8098
    %8329 = vst [vmem:[#allocation8 + $0x18] sm:$0xff] %v8322
    %8330 = vst [vmem:[#allocation8 + $0x20] sm:$0xff] %v7652
    %8331 = vst [vmem:[#allocation8 + $0x28] sm:$0xff] %v7876
    %8332 = vst [vmem:[#allocation8 + $0x30] sm:$0xff] %v8100
    %8333 = vst [vmem:[#allocation8 + $0x38] sm:$0xff] %v8324
    // Predicated region
    $region26: #{tpu_custom_call.1} parent=1 // pred_check
      _
    $region27: #{tpu_custom_call.1} parent=1 // pred_check_branch
      %8335 = sbr.rel (0) target = $region29
    $region28: #{tpu_custom_call.1} parent=1 // pred_region
      %8337 = vsyncadd [#allocation4], 0
      %s8338 = sshll.u32 [#allocation8], 4
      %s8339 = int_to_ptr.vmem [resolvable:$true] %s8338
      %s8340 = sshll.u32 %s3, 4
      %s8341 = int_to_ptr.hbm [resolvable:$true] %s8340
      %8346 = dma.vmem_to_hbm [thread:$0]  %s8339, 1024, %s8341, [#allocation4], 512, 512, 32
    $region29: #{tpu_custom_call.1} parent=1 // pred_fallthru
      _
    // Predicated region
    $region30: #{tpu_custom_call.1} parent=1 // pred_check
      _
    $region31: #{tpu_custom_call.1} parent=1 // pred_check_branch
      %8348 = sbr.rel (0) target = $region33
    $region32: #{tpu_custom_call.1} parent=1 // pred_region
      %8350 = dma.done [#allocation4], 1024
    $region33: #{tpu_custom_call.1} parent=1 // pred_fallthru
      _
    %8351 = vsyncpa [#allocation3], 1
    %8352 = vsyncpa [#allocation6], 1
    %8353 = vsyncpa [#allocation4], 1

</llo_original>
